<compile_context>
chip_gen: v5e
topology: v5e:2x2
jax: 0.10.0
libtpu: 0.0.40
codegen_flags: <defaults>
</compile_context>

<pallas_src>
import functools

import jax
import jax.numpy as jnp
from jax import lax
from jax.experimental import pallas as pl
from jax.experimental.pallas import tpu as pltpu


def _silu(v):
    # v * sigmoid(v); exp and the approximate reciprocal both ride the EUP slot.
    return v * pl.reciprocal(1.0 + jnp.exp(-v), approx=True)


def _group_norm(v, v_masked, mask, gm, gamma, beta, eps):
    """GroupNorm over flattened (rows, C); W-pad columns masked out of the stats.

    `gm` is the (C, C) group-mean matrix with the 1/(H*W*group_size) divisor
    baked in.  Variance is computed from centered sums (no E[x^2]-E[x]^2
    cancellation).
    """
    s = jnp.sum(v_masked, axis=0, keepdims=True)                   # (1, C)
    mean = jnp.dot(s, gm, preferred_element_type=jnp.float32)      # (1, C)
    vc = v - mean
    cm = vc * mask
    q = jnp.sum(cm * cm, axis=0, keepdims=True)
    var = jnp.dot(q, gm, preferred_element_type=jnp.float32)
    inv = lax.rsqrt(var + eps)
    return vc * inv * gamma + beta


def _resblock_kernel(*refs, H, W, Wp, eps, C_in, C_out, has_skip):
    """One grid step == one batch sample; everything resident in VMEM.

    Row layout: image rows are width-padded to Wp (multiple of 8) and flattened,
    so flat row r = i * Wp + (j + 1) holds pixel (i, j); the Wp - W pad columns
    per image row are the "junk" rows masked by `mask_ref`.
    """
    if has_skip:
        (x_ref, tp_ref, mask_ref,
         g1_ref, be1_ref, gm1_ref, w1_ref, cb1_ref,
         g2_ref, be2_ref, gm2_ref, w2_ref, cb2_ref,
         sw_ref, sb_ref, o_ref, buf) = refs
    else:
        (x_ref, tp_ref, mask_ref,
         g1_ref, be1_ref, gm1_ref, w1_ref, cb1_ref,
         g2_ref, be2_ref, gm2_ref, w2_ref, cb2_ref,
         o_ref, buf) = refs
        sw_ref = sb_ref = None

    Rx = H * Wp
    top = Wp + 1                       # centre offset of the flat padded buffer
    Rbuf, Cbuf = buf.shape
    bot = Rbuf - (top + Rx)

    mask = mask_ref[...]               # (Rx, 1): 1 on real pixels, 0 on pad cols
    x = x_ref[0]                       # (Rx, C_in) f32, zero on the pad columns

    # Zero only the halo row bands (never overwritten by the activation writes).
    buf[pl.ds(0, top), :] = jnp.zeros((top, Cbuf), buf.dtype)
    buf[pl.ds(top + Rx, bot), :] = jnp.zeros((bot, Cbuf), buf.dtype)

    # ---------------- GroupNorm 1 -> SiLU ----------------
    a = _group_norm(x, x, mask, gm1_ref[...], g1_ref[...], be1_ref[...], eps)
    a = _silu(a) * mask                # re-zero pad columns (conv halo correctness)

    # ---------------- conv1: 9 shifted bf16 GEMMs (fused im2col) ----------------
    buf[pl.ds(top, Rx), 0:C_in] = a.astype(buf.dtype)
    acc = None
    for t in range(9):
        kh, kw = divmod(t, 3)
        tap = buf[pl.ds(kh * Wp + kw, Rx), 0:C_in]               # (Rx, C_in) bf16
        d = jnp.dot(tap, w1_ref[t], preferred_element_type=jnp.float32)
        acc = d if acc is None else acc + d
    # conv1 bias + hoisted time-embedding projection: one broadcast add.
    h = acc + (cb1_ref[...] + tp_ref[0])

    # ---------------- GroupNorm 2 -> SiLU (Dropout(p=0.0) == identity) ----------------
    a2 = _group_norm(h, h * mask, mask, gm2_ref[...], g2_ref[...], be2_ref[...], eps)
    a2 = _silu(a2) * mask

    # ---------------- conv2 ----------------
    buf[pl.ds(top, Rx), 0:C_out] = a2.astype(buf.dtype)
    acc2 = None
    for t in range(9):
        kh, kw = divmod(t, 3)
        tap = buf[pl.ds(kh * Wp + kw, Rx), 0:C_out]              # (Rx, C_out) bf16
        d = jnp.dot(tap, w2_ref[t], preferred_element_type=jnp.float32)
        acc2 = d if acc2 is None else acc2 + d
    h2 = acc2 + cb2_ref[...]

    # ---------------- skip connection ----------------
    if has_skip:                       # 1x1 conv skip
        skip = jnp.dot(x.astype(jnp.bfloat16), sw_ref[...],
                       preferred_element_type=jnp.float32) + sb_ref[...]
    else:                              # nn.Identity skip: no GEMM at all
        skip = x
    o_ref[0] = (h2 + skip).astype(o_ref.dtype)


def resblock_forward(x_nchw, t_emb, p, *, groups=32, eps=1e-5):
    """ResBlock forward.  x_nchw: (N, C, H, W), t_emb: (N, d_t_emb).

    `p` holds parameters in PyTorch layouts:
      gn1_g/gn1_b (C,), conv1_w (C_out, C, 3, 3), conv1_b (C_out,),
      emb_w (C_out, d_t_emb), emb_b (C_out,),
      gn2_g/gn2_b (C_out,), conv2_w (C_out, C_out, 3, 3), conv2_b (C_out,),
      skip_w (C_out, C, 1, 1) or None, skip_b (C_out,) or None.
    """
    N, C_in, H, W = x_nchw.shape
    C_out = p["conv1_w"].shape[0]
    f32, bf16 = jnp.float32, jnp.bfloat16

    # Padded row width rounded up to a sublane multiple so kh*Wp offsets align.
    Wp = ((W + 2 + 7) // 8) * 8
    Rx = H * Wp
    Rbuf = ((Rx + 2 * (Wp + 1) + 7) // 8) * 8
    Cmax = max(C_in, C_out)
    has_skip = p.get("skip_w") is not None

    # NCHW -> NHWC, zero-pad W to Wp (1 col left, Wp-W-1 right), flatten rows.
    # TODO(synk): keep NHWC end-to-end in a full UNet and fold the un-pad into
    # the kernel's output stores to avoid these extra HBM passes.
    xf = jnp.transpose(x_nchw, (0, 2, 3, 1)).astype(f32)
    xf = jnp.pad(xf, ((0, 0), (0, 0), (1, Wp - W - 1), (0, 0)))
    xf = xf.reshape(N, Rx, C_in)

    # Hoisted time-embedding projection: SiLU -> Linear (tiny M=1 GEMV in XLA).
    tproj = (jax.nn.silu(t_emb.astype(f32)) @ p["emb_w"].astype(f32).T
             + p["emb_b"].astype(f32)).reshape(N, 1, C_out)

    # Valid-pixel mask over flattened padded rows.
    jp = jnp.arange(Rx, dtype=jnp.int32) % Wp
    mask = ((jp >= 1) & (jp <= W)).astype(f32).reshape(Rx, 1)

    def group_mean_mat(C):
        gs = C // groups
        gid = jnp.arange(C) // gs
        return (gid[:, None] == gid[None, :]).astype(f32) / float(H * W * gs)

    gm1 = group_mean_mat(C_in)
    gm2 = group_mean_mat(C_out)

    # Conv weights (C_out, C_in, 3, 3) -> (9, C_in, C_out) bf16; tap = kh*3+kw.
    w1 = jnp.transpose(p["conv1_w"].astype(f32), (2, 3, 1, 0)) \
            .reshape(9, C_in, C_out).astype(bf16)
    w2 = jnp.transpose(p["conv2_w"].astype(f32), (2, 3, 1, 0)) \
            .reshape(9, C_out, C_out).astype(bf16)
    cb1 = p["conv1_b"].astype(f32).reshape(1, C_out)
    cb2 = p["conv2_b"].astype(f32).reshape(1, C_out)

    g1 = p["gn1_g"].astype(f32).reshape(1, C_in)
    b1 = p["gn1_b"].astype(f32).reshape(1, C_in)
    g2 = p["gn2_g"].astype(f32).reshape(1, C_out)
    b2 = p["gn2_b"].astype(f32).reshape(1, C_out)

    def const_spec(shape):
        # Constant-index blocks: single-buffered (no pointless double allocation).
        nd = len(shape)
        idx = lambda n, _nd=nd: (0,) * _nd
        try:
            return pl.BlockSpec(shape, idx, pipeline_mode=pl.Buffered(1))
        except Exception:             # older jax without pipeline_mode support
            return pl.BlockSpec(shape, idx)

    args = [xf, tproj, mask, g1, b1, gm1, w1, cb1, g2, b2, gm2, w2, cb2]
    in_specs = [
        pl.BlockSpec((1, Rx, C_in), lambda n: (n, 0, 0)),       # x (per sample)
        pl.BlockSpec((1, 1, C_out), lambda n: (n, 0, 0)),       # t-emb projection
        const_spec((Rx, 1)),                                    # valid-pixel mask
        const_spec((1, C_in)), const_spec((1, C_in)), const_spec((C_in, C_in)),
        const_spec((9, C_in, C_out)), const_spec((1, C_out)),   # conv1
        const_spec((1, C_out)), const_spec((1, C_out)), const_spec((C_out, C_out)),
        const_spec((9, C_out, C_out)), const_spec((1, C_out)),  # conv2
    ]
    if has_skip:
        sw = jnp.transpose(p["skip_w"].astype(f32).reshape(C_out, C_in)).astype(bf16)
        sb = p["skip_b"].astype(f32).reshape(1, C_out)
        args += [sw, sb]
        in_specs += [const_spec((C_in, C_out)), const_spec((1, C_out))]

    kernel = functools.partial(_resblock_kernel, H=H, W=W, Wp=Wp, eps=eps,
                               C_in=C_in, C_out=C_out, has_skip=has_skip)

    # TODO(synk): add H row-band (halo'd) + C_out grid tiling so real SD shapes
    # fit VMEM and both v7x TensorCores stay busy at batch 1.
    grid_spec = pltpu.PrefetchScalarGridSpec(
        num_scalar_prefetch=0,
        grid=(N,),
        in_specs=in_specs,
        out_specs=pl.BlockSpec((1, Rx, C_out), lambda n: (n, 0, 0)),
        scratch_shapes=[pltpu.VMEM((Rbuf, Cmax), bf16)],
    )

    try:
        cap = int(pltpu.get_tpu_info().vmem_capacity_bytes)
        vmem_limit = min(int(0.75 * cap), 100 * 1024 * 1024)
    except Exception:
        vmem_limit = 64 * 1024 * 1024

    flops = 2 * N * Rx * (9 * C_in * C_out + 9 * C_out * C_out
                          + (C_in * C_out if has_skip else 0))
    bytes_accessed = (4 * N * Rx * (C_in + C_out) + 2 * (w1.size + w2.size)
                      + 4 * (gm1.size + gm2.size + N * C_out))
    cost = pl.CostEstimate(flops=int(flops),
                           transcendentals=int(N * Rx * (C_in + C_out)),
                           bytes_accessed=int(bytes_accessed))

    out = pl.pallas_call(
        kernel,
        grid_spec=grid_spec,
        out_shape=jax.ShapeDtypeStruct((N, Rx, C_out), f32),
        compiler_params=pltpu.CompilerParams(
            dimension_semantics=("parallel",),
            vmem_limit_bytes=vmem_limit),
        cost_estimate=cost,
    )(*args)

    # (N, Rx, C_out) -> drop the W-pad columns -> NCHW.
    out = out.reshape(N, H, Wp, C_out)[:, :, 1:W + 1, :]
    return jnp.transpose(out, (0, 3, 1, 2))


if __name__ == "__main__":
    key = jax.random.PRNGKey(0)
    ks = jax.random.split(key, 12)

    # GroupNorm(32, C) requires C % 32 == 0, so the smallest sensible C is 32.
    N, C, H, W = 2, 32, 16, 16
    d_t_emb = 64

    x = jax.random.normal(ks[0], (N, C, H, W), dtype=jnp.float32)
    t_emb = jax.random.normal(ks[1], (N, d_t_emb), dtype=jnp.float32)

    def uinit(k, shape, fan_in):
        b = 1.0 / (fan_in ** 0.5)
        return jax.random.uniform(k, shape, jnp.float32, -b, b)

    params = {
        "gn1_g": 1.0 + 0.1 * jax.random.normal(ks[2], (C,), jnp.float32),
        "gn1_b": 0.1 * jax.random.normal(ks[3], (C,), jnp.float32),
        "conv1_w": uinit(ks[4], (C, C, 3, 3), C * 9),
        "conv1_b": uinit(ks[5], (C,), C * 9),
        "emb_w": uinit(ks[6], (C, d_t_emb), d_t_emb),
        "emb_b": uinit(ks[7], (C,), d_t_emb),
        "gn2_g": 1.0 + 0.1 * jax.random.normal(ks[8], (C,), jnp.float32),
        "gn2_b": 0.1 * jax.random.normal(ks[9], (C,), jnp.float32),
        "conv2_w": uinit(ks[10], (C, C, 3, 3), C * 9),
        "conv2_b": uinit(ks[11], (C,), C * 9),
        "skip_w": None,   # out_channels == channels -> nn.Identity skip
        "skip_b": None,
    }

    out = resblock_forward(x, t_emb, params)
    out = jax.block_until_ready(out)

    # ---------------- plain-JAX reference (same math as the PyTorch module) ----------------
    def group_norm(v, gamma, beta, groups=32, eps=1e-5):
        n, c, h, w = v.shape
        vg = v.reshape(n, groups, c // groups, h, w)
        mean = jnp.mean(vg, axis=(2, 3, 4), keepdims=True)
        var = jnp.mean((vg - mean) ** 2, axis=(2, 3, 4), keepdims=True)
        vn = ((vg - mean) / jnp.sqrt(var + eps)).reshape(n, c, h, w)
        return vn * gamma.reshape(1, c, 1, 1) + beta.reshape(1, c, 1, 1)

    def silu(v):
        return v * jax.nn.sigmoid(v)

    def conv3x3(v, w, b):
        y = lax.conv_general_dilated(v, w, (1, 1), ((1, 1), (1, 1)),
                                     dimension_numbers=("NCHW", "OIHW", "NCHW"))
        return y + b.reshape(1, -1, 1, 1)

    h_ref = conv3x3(silu(group_norm(x, params["gn1_g"], params["gn1_b"])),
                    params["conv1_w"], params["conv1_b"])
    t_proj = silu(t_emb) @ params["emb_w"].T + params["emb_b"]
    h_ref = h_ref + t_proj[:, :, None, None]
    h_ref = conv3x3(silu(group_norm(h_ref, params["gn2_g"], params["gn2_b"])),
                    params["conv2_w"], params["conv2_b"])
    ref = x + h_ref

    assert out.shape == ref.shape, (out.shape, ref.shape)
    max_err = float(jnp.max(jnp.abs(out - ref)))
    assert jnp.allclose(out, ref, atol=3e-2, rtol=3e-2), f"mismatch, max_err={max_err}"

    print("KERNEL_OK")
</pallas_src>

<mosaic_0001>
module attributes {stable_mosaic.version = 11 : i64} {
  func.func @_resblock_kernel(%arg0: i32, %arg1: memref<1x384x32xf32, #tpu.memory_space<vmem>>, %arg2: memref<1x1x32xf32, #tpu.memory_space<vmem>>, %arg3: memref<384x1xf32, #tpu.memory_space<vmem>>, %arg4: memref<1x32xf32, #tpu.memory_space<vmem>>, %arg5: memref<1x32xf32, #tpu.memory_space<vmem>>, %arg6: memref<32x32xf32, #tpu.memory_space<vmem>>, %arg7: memref<9x32x32xbf16, #tpu.memory_space<vmem>>, %arg8: memref<1x32xf32, #tpu.memory_space<vmem>>, %arg9: memref<1x32xf32, #tpu.memory_space<vmem>>, %arg10: memref<1x32xf32, #tpu.memory_space<vmem>>, %arg11: memref<32x32xf32, #tpu.memory_space<vmem>>, %arg12: memref<9x32x32xbf16, #tpu.memory_space<vmem>>, %arg13: memref<1x32xf32, #tpu.memory_space<vmem>>, %arg14: memref<1x384x32xf32, #tpu.memory_space<vmem>>, %arg15: memref<440x32xbf16, #tpu.memory_space<vmem>>) attributes {dimension_semantics = [#tpu.dimension_semantics<parallel>], iteration_bounds = array<i64: 2>, scalar_prefetch = 0 : i64, scratch_operands = 1 : i64, tpu.core_type = #tpu.core_type<tc>, window_params = [{transform_indices = @transform_0, window_bounds = array<i64: 1, 384, 32>}, {transform_indices = @transform_1, window_bounds = array<i64: 1, 1, 32>}, {pipeline_mode = #tpu.pipeline_mode<synchronous>, transform_indices = @transform_2, window_bounds = array<i64: 384, 1>}, {pipeline_mode = #tpu.pipeline_mode<synchronous>, transform_indices = @transform_3, window_bounds = array<i64: 1, 32>}, {pipeline_mode = #tpu.pipeline_mode<synchronous>, transform_indices = @transform_4, window_bounds = array<i64: 1, 32>}, {pipeline_mode = #tpu.pipeline_mode<synchronous>, transform_indices = @transform_5, window_bounds = array<i64: 32, 32>}, {pipeline_mode = #tpu.pipeline_mode<synchronous>, transform_indices = @transform_6, window_bounds = array<i64: 9, 32, 32>}, {pipeline_mode = #tpu.pipeline_mode<synchronous>, transform_indices = @transform_7, window_bounds = array<i64: 1, 32>}, {pipeline_mode = #tpu.pipeline_mode<synchronous>, transform_indices = @transform_8, window_bounds = array<i64: 1, 32>}, {pipeline_mode = #tpu.pipeline_mode<synchronous>, transform_indices = @transform_9, window_bounds = array<i64: 1, 32>}, {pipeline_mode = #tpu.pipeline_mode<synchronous>, transform_indices = @transform_10, window_bounds = array<i64: 32, 32>}, {pipeline_mode = #tpu.pipeline_mode<synchronous>, transform_indices = @transform_11, window_bounds = array<i64: 9, 32, 32>}, {pipeline_mode = #tpu.pipeline_mode<synchronous>, transform_indices = @transform_12, window_bounds = array<i64: 1, 32>}, {transform_indices = @transform_13, window_bounds = array<i64: 1, 384, 32>}]} {
    %c0 = arith.constant 0 : index
    %c0_0 = arith.constant 0 : index
    %0 = vector.load %arg3[%c0, %c0_0] : memref<384x1xf32, #tpu.memory_space<vmem>>, vector<384x1xf32>
    %c0_1 = arith.constant 0 : index
    %c0_2 = arith.constant 0 : index
    %c0_3 = arith.constant 0 : index
    %1 = vector.load %arg1[%c0_1, %c0_2, %c0_3] : memref<1x384x32xf32, #tpu.memory_space<vmem>>, vector<1x384x32xf32>
    %2 = vector.shape_cast %1 : vector<1x384x32xf32> to vector<384x32xf32>
    %cst = arith.constant 0.000000e+00 : bf16
    %3 = vector.broadcast %cst : bf16 to vector<25x32xbf16>
    %c0_4 = arith.constant 0 : index
    %c0_5 = arith.constant 0 : index
    %4 = vector.load %arg15[%c0_4, %c0_5] : memref<440x32xbf16, #tpu.memory_space<vmem>>, vector<25x32xbf16>
    tpu.vector_store %arg15[%c0_4, %c0_5], %3 {strides = array<i32>} : memref<440x32xbf16, #tpu.memory_space<vmem>>, vector<25x32xbf16>,
    %cst_6 = arith.constant 0.000000e+00 : bf16
    %5 = vector.broadcast %cst_6 : bf16 to vector<31x32xbf16>
    %c409 = arith.constant 409 : index
    %c0_7 = arith.constant 0 : index
    %6 = vector.load %arg15[%c409, %c0_7] : memref<440x32xbf16, #tpu.memory_space<vmem>>, vector<31x32xbf16>
    tpu.vector_store %arg15[%c409, %c0_7], %5 {strides = array<i32>} : memref<440x32xbf16, #tpu.memory_space<vmem>>, vector<31x32xbf16>,
    %c0_8 = arith.constant 0 : index
    %c0_9 = arith.constant 0 : index
    %7 = vector.load %arg6[%c0_8, %c0_9] : memref<32x32xf32, #tpu.memory_space<vmem>>, vector<32x32xf32>
    %c0_10 = arith.constant 0 : index
    %c0_11 = arith.constant 0 : index
    %8 = vector.load %arg4[%c0_10, %c0_11] : memref<1x32xf32, #tpu.memory_space<vmem>>, vector<1x32xf32>
    %c0_12 = arith.constant 0 : index
    %c0_13 = arith.constant 0 : index
    %9 = vector.load %arg5[%c0_12, %c0_13] : memref<1x32xf32, #tpu.memory_space<vmem>>, vector<1x32xf32>
    %cst_14 = arith.constant dense<0.000000e+00> : vector<32xf32>
    %10 = vector.multi_reduction <add>, %2, %cst_14 [0] : vector<384x32xf32> to vector<32xf32>
    %11 = vector.shape_cast %10 : vector<32xf32> to vector<1x32xf32>
    %cst_15 = arith.constant dense<0.000000e+00> : vector<1x32xf32>
    %12 = tpu.matmul %11, %7, %cst_15 {dimension_numbers = #tpu.dot_dimension_numbers<[1], [0], [0], [1], [0, 0, 1, 1], [], []>} : vector<1x32xf32>, vector<32x32xf32>, vector<1x32xf32> -> vector<1x32xf32>
    %13 = vector.broadcast %12 : vector<1x32xf32> to vector<384x32xf32>
    %14 = arith.subf %2, %13 : vector<384x32xf32>
    %15 = vector.broadcast %0 : vector<384x1xf32> to vector<384x32xf32>
    %16 = arith.mulf %14, %15 : vector<384x32xf32>
    %17 = arith.mulf %16, %16 : vector<384x32xf32>
    %cst_16 = arith.constant dense<0.000000e+00> : vector<32xf32>
    %18 = vector.multi_reduction <add>, %17, %cst_16 [0] : vector<384x32xf32> to vector<32xf32>
    %19 = vector.shape_cast %18 : vector<32xf32> to vector<1x32xf32>
    %cst_17 = arith.constant dense<0.000000e+00> : vector<1x32xf32>
    %20 = tpu.matmul %19, %7, %cst_17 {dimension_numbers = #tpu.dot_dimension_numbers<[1], [0], [0], [1], [0, 0, 1, 1], [], []>} : vector<1x32xf32>, vector<32x32xf32>, vector<1x32xf32> -> vector<1x32xf32>
    %cst_18 = arith.constant 9.99999974E-6 : f32
    %21 = vector.broadcast %cst_18 : f32 to vector<1x32xf32>
    %22 = arith.addf %20, %21 : vector<1x32xf32>
    %23 = math.rsqrt %22 : vector<1x32xf32>
    %24 = vector.broadcast %23 : vector<1x32xf32> to vector<384x32xf32>
    %25 = arith.mulf %14, %24 : vector<384x32xf32>
    %26 = vector.broadcast %8 : vector<1x32xf32> to vector<384x32xf32>
    %27 = arith.mulf %25, %26 : vector<384x32xf32>
    %28 = vector.broadcast %9 : vector<1x32xf32> to vector<384x32xf32>
    %29 = arith.addf %27, %28 : vector<384x32xf32>
    %cst_19 = arith.constant 0.000000e+00 : f32
    %30 = vector.broadcast %cst_19 : f32 to vector<384x32xf32>
    %31 = arith.subf %30, %29 : vector<384x32xf32>
    %32 = math.exp %31 : vector<384x32xf32>
    %cst_20 = arith.constant 1.000000e+00 : f32
    %33 = vector.broadcast %cst_20 : f32 to vector<384x32xf32>
    %34 = arith.addf %33, %32 : vector<384x32xf32>
    %35 = tpu.reciprocal %34 {approx = true} : vector<384x32xf32> -> vector<384x32xf32>
    %36 = arith.mulf %29, %35 : vector<384x32xf32>
    %37 = vector.broadcast %0 : vector<384x1xf32> to vector<384x32xf32>
    %38 = arith.mulf %36, %37 : vector<384x32xf32>
    %39 = arith.truncf %38 : vector<384x32xf32> to vector<384x32xbf16>
    %c25 = arith.constant 25 : index
    %c0_21 = arith.constant 0 : index
    %40 = vector.load %arg15[%c25, %c0_21] : memref<440x32xbf16, #tpu.memory_space<vmem>>, vector<384x32xbf16>
    tpu.vector_store %arg15[%c25, %c0_21], %39 {strides = array<i32>} : memref<440x32xbf16, #tpu.memory_space<vmem>>, vector<384x32xbf16>,
    %c0_22 = arith.constant 0 : index
    %c0_23 = arith.constant 0 : index
    %41 = vector.load %arg15[%c0_22, %c0_23] : memref<440x32xbf16, #tpu.memory_space<vmem>>, vector<384x32xbf16>
    %c0_24 = arith.constant 0 : index
    %c0_25 = arith.constant 0 : index
    %c0_26 = arith.constant 0 : index
    %42 = vector.load %arg7[%c0_24, %c0_25, %c0_26] : memref<9x32x32xbf16, #tpu.memory_space<vmem>>, vector<1x32x32xbf16>
    %43 = vector.shape_cast %42 : vector<1x32x32xbf16> to vector<32x32xbf16>
    %cst_27 = arith.constant dense<0.000000e+00> : vector<384x32xf32>
    %44 = tpu.matmul %41, %43, %cst_27 {dimension_numbers = #tpu.dot_dimension_numbers<[1], [0], [0], [1], [0, 0, 1, 1], [], []>} : vector<384x32xbf16>, vector<32x32xbf16>, vector<384x32xf32> -> vector<384x32xf32>
    %c1 = arith.constant 1 : index
    %c0_28 = arith.constant 0 : index
    %45 = vector.load %arg15[%c1, %c0_28] : memref<440x32xbf16, #tpu.memory_space<vmem>>, vector<384x32xbf16>
    %c1_29 = arith.constant 1 : index
    %c0_30 = arith.constant 0 : index
    %c0_31 = arith.constant 0 : index
    %46 = vector.load %arg7[%c1_29, %c0_30, %c0_31] : memref<9x32x32xbf16, #tpu.memory_space<vmem>>, vector<1x32x32xbf16>
    %47 = vector.shape_cast %46 : vector<1x32x32xbf16> to vector<32x32xbf16>
    %cst_32 = arith.constant dense<0.000000e+00> : vector<384x32xf32>
    %48 = tpu.matmul %45, %47, %cst_32 {dimension_numbers = #tpu.dot_dimension_numbers<[1], [0], [0], [1], [0, 0, 1, 1], [], []>} : vector<384x32xbf16>, vector<32x32xbf16>, vector<384x32xf32> -> vector<384x32xf32>
    %49 = arith.addf %44, %48 : vector<384x32xf32>
    %c2 = arith.constant 2 : index
    %c0_33 = arith.constant 0 : index
    %50 = vector.load %arg15[%c2, %c0_33] : memref<440x32xbf16, #tpu.memory_space<vmem>>, vector<384x32xbf16>
    %c2_34 = arith.constant 2 : index
    %c0_35 = arith.constant 0 : index
    %c0_36 = arith.constant 0 : index
    %51 = vector.load %arg7[%c2_34, %c0_35, %c0_36] : memref<9x32x32xbf16, #tpu.memory_space<vmem>>, vector<1x32x32xbf16>
    %52 = vector.shape_cast %51 : vector<1x32x32xbf16> to vector<32x32xbf16>
    %cst_37 = arith.constant dense<0.000000e+00> : vector<384x32xf32>
    %53 = tpu.matmul %50, %52, %cst_37 {dimension_numbers = #tpu.dot_dimension_numbers<[1], [0], [0], [1], [0, 0, 1, 1], [], []>} : vector<384x32xbf16>, vector<32x32xbf16>, vector<384x32xf32> -> vector<384x32xf32>
    %54 = arith.addf %49, %53 : vector<384x32xf32>
    %c24 = arith.constant 24 : index
    %c0_38 = arith.constant 0 : index
    %55 = vector.load %arg15[%c24, %c0_38] : memref<440x32xbf16, #tpu.memory_space<vmem>>, vector<384x32xbf16>
    %c3 = arith.constant 3 : index
    %c0_39 = arith.constant 0 : index
    %c0_40 = arith.constant 0 : index
    %56 = vector.load %arg7[%c3, %c0_39, %c0_40] : memref<9x32x32xbf16, #tpu.memory_space<vmem>>, vector<1x32x32xbf16>
    %57 = vector.shape_cast %56 : vector<1x32x32xbf16> to vector<32x32xbf16>
    %cst_41 = arith.constant dense<0.000000e+00> : vector<384x32xf32>
    %58 = tpu.matmul %55, %57, %cst_41 {dimension_numbers = #tpu.dot_dimension_numbers<[1], [0], [0], [1], [0, 0, 1, 1], [], []>} : vector<384x32xbf16>, vector<32x32xbf16>, vector<384x32xf32> -> vector<384x32xf32>
    %59 = arith.addf %54, %58 : vector<384x32xf32>
    %c25_42 = arith.constant 25 : index
    %c0_43 = arith.constant 0 : index
    %60 = vector.load %arg15[%c25_42, %c0_43] : memref<440x32xbf16, #tpu.memory_space<vmem>>, vector<384x32xbf16>
    %c4 = arith.constant 4 : index
    %c0_44 = arith.constant 0 : index
    %c0_45 = arith.constant 0 : index
    %61 = vector.load %arg7[%c4, %c0_44, %c0_45] : memref<9x32x32xbf16, #tpu.memory_space<vmem>>, vector<1x32x32xbf16>
    %62 = vector.shape_cast %61 : vector<1x32x32xbf16> to vector<32x32xbf16>
    %cst_46 = arith.constant dense<0.000000e+00> : vector<384x32xf32>
    %63 = tpu.matmul %60, %62, %cst_46 {dimension_numbers = #tpu.dot_dimension_numbers<[1], [0], [0], [1], [0, 0, 1, 1], [], []>} : vector<384x32xbf16>, vector<32x32xbf16>, vector<384x32xf32> -> vector<384x32xf32>
    %64 = arith.addf %59, %63 : vector<384x32xf32>
    %c26 = arith.constant 26 : index
    %c0_47 = arith.constant 0 : index
    %65 = vector.load %arg15[%c26, %c0_47] : memref<440x32xbf16, #tpu.memory_space<vmem>>, vector<384x32xbf16>
    %c5 = arith.constant 5 : index
    %c0_48 = arith.constant 0 : index
    %c0_49 = arith.constant 0 : index
    %66 = vector.load %arg7[%c5, %c0_48, %c0_49] : memref<9x32x32xbf16, #tpu.memory_space<vmem>>, vector<1x32x32xbf16>
    %67 = vector.shape_cast %66 : vector<1x32x32xbf16> to vector<32x32xbf16>
    %cst_50 = arith.constant dense<0.000000e+00> : vector<384x32xf32>
    %68 = tpu.matmul %65, %67, %cst_50 {dimension_numbers = #tpu.dot_dimension_numbers<[1], [0], [0], [1], [0, 0, 1, 1], [], []>} : vector<384x32xbf16>, vector<32x32xbf16>, vector<384x32xf32> -> vector<384x32xf32>
    %69 = arith.addf %64, %68 : vector<384x32xf32>
    %c48 = arith.constant 48 : index
    %c0_51 = arith.constant 0 : index
    %70 = vector.load %arg15[%c48, %c0_51] : memref<440x32xbf16, #tpu.memory_space<vmem>>, vector<384x32xbf16>
    %c6 = arith.constant 6 : index
    %c0_52 = arith.constant 0 : index
    %c0_53 = arith.constant 0 : index
    %71 = vector.load %arg7[%c6, %c0_52, %c0_53] : memref<9x32x32xbf16, #tpu.memory_space<vmem>>, vector<1x32x32xbf16>
    %72 = vector.shape_cast %71 : vector<1x32x32xbf16> to vector<32x32xbf16>
    %cst_54 = arith.constant dense<0.000000e+00> : vector<384x32xf32>
    %73 = tpu.matmul %70, %72, %cst_54 {dimension_numbers = #tpu.dot_dimension_numbers<[1], [0], [0], [1], [0, 0, 1, 1], [], []>} : vector<384x32xbf16>, vector<32x32xbf16>, vector<384x32xf32> -> vector<384x32xf32>
    %74 = arith.addf %69, %73 : vector<384x32xf32>
    %c49 = arith.constant 49 : index
    %c0_55 = arith.constant 0 : index
    %75 = vector.load %arg15[%c49, %c0_55] : memref<440x32xbf16, #tpu.memory_space<vmem>>, vector<384x32xbf16>
    %c7 = arith.constant 7 : index
    %c0_56 = arith.constant 0 : index
    %c0_57 = arith.constant 0 : index
    %76 = vector.load %arg7[%c7, %c0_56, %c0_57] : memref<9x32x32xbf16, #tpu.memory_space<vmem>>, vector<1x32x32xbf16>
    %77 = vector.shape_cast %76 : vector<1x32x32xbf16> to vector<32x32xbf16>
    %cst_58 = arith.constant dense<0.000000e+00> : vector<384x32xf32>
    %78 = tpu.matmul %75, %77, %cst_58 {dimension_numbers = #tpu.dot_dimension_numbers<[1], [0], [0], [1], [0, 0, 1, 1], [], []>} : vector<384x32xbf16>, vector<32x32xbf16>, vector<384x32xf32> -> vector<384x32xf32>
    %79 = arith.addf %74, %78 : vector<384x32xf32>
    %c50 = arith.constant 50 : index
    %c0_59 = arith.constant 0 : index
    %80 = vector.load %arg15[%c50, %c0_59] : memref<440x32xbf16, #tpu.memory_space<vmem>>, vector<384x32xbf16>
    %c8 = arith.constant 8 : index
    %c0_60 = arith.constant 0 : index
    %c0_61 = arith.constant 0 : index
    %81 = vector.load %arg7[%c8, %c0_60, %c0_61] : memref<9x32x32xbf16, #tpu.memory_space<vmem>>, vector<1x32x32xbf16>
    %82 = vector.shape_cast %81 : vector<1x32x32xbf16> to vector<32x32xbf16>
    %cst_62 = arith.constant dense<0.000000e+00> : vector<384x32xf32>
    %83 = tpu.matmul %80, %82, %cst_62 {dimension_numbers = #tpu.dot_dimension_numbers<[1], [0], [0], [1], [0, 0, 1, 1], [], []>} : vector<384x32xbf16>, vector<32x32xbf16>, vector<384x32xf32> -> vector<384x32xf32>
    %84 = arith.addf %79, %83 : vector<384x32xf32>
    %c0_63 = arith.constant 0 : index
    %c0_64 = arith.constant 0 : index
    %85 = vector.load %arg8[%c0_63, %c0_64] : memref<1x32xf32, #tpu.memory_space<vmem>>, vector<1x32xf32>
    %c0_65 = arith.constant 0 : index
    %c0_66 = arith.constant 0 : index
    %c0_67 = arith.constant 0 : index
    %86 = vector.load %arg2[%c0_65, %c0_66, %c0_67] : memref<1x1x32xf32, #tpu.memory_space<vmem>>, vector<1x1x32xf32>
    %87 = vector.shape_cast %86 : vector<1x1x32xf32> to vector<1x32xf32>
    %88 = arith.addf %85, %87 : vector<1x32xf32>
    %89 = vector.broadcast %88 : vector<1x32xf32> to vector<384x32xf32>
    %90 = arith.addf %84, %89 : vector<384x32xf32>
    %91 = vector.broadcast %0 : vector<384x1xf32> to vector<384x32xf32>
    %92 = arith.mulf %90, %91 : vector<384x32xf32>
    %c0_68 = arith.constant 0 : index
    %c0_69 = arith.constant 0 : index
    %93 = vector.load %arg11[%c0_68, %c0_69] : memref<32x32xf32, #tpu.memory_space<vmem>>, vector<32x32xf32>
    %c0_70 = arith.constant 0 : index
    %c0_71 = arith.constant 0 : index
    %94 = vector.load %arg9[%c0_70, %c0_71] : memref<1x32xf32, #tpu.memory_space<vmem>>, vector<1x32xf32>
    %c0_72 = arith.constant 0 : index
    %c0_73 = arith.constant 0 : index
    %95 = vector.load %arg10[%c0_72, %c0_73] : memref<1x32xf32, #tpu.memory_space<vmem>>, vector<1x32xf32>
    %cst_74 = arith.constant dense<0.000000e+00> : vector<32xf32>
    %96 = vector.multi_reduction <add>, %92, %cst_74 [0] : vector<384x32xf32> to vector<32xf32>
    %97 = vector.shape_cast %96 : vector<32xf32> to vector<1x32xf32>
    %cst_75 = arith.constant dense<0.000000e+00> : vector<1x32xf32>
    %98 = tpu.matmul %97, %93, %cst_75 {dimension_numbers = #tpu.dot_dimension_numbers<[1], [0], [0], [1], [0, 0, 1, 1], [], []>} : vector<1x32xf32>, vector<32x32xf32>, vector<1x32xf32> -> vector<1x32xf32>
    %99 = vector.broadcast %98 : vector<1x32xf32> to vector<384x32xf32>
    %100 = arith.subf %90, %99 : vector<384x32xf32>
    %101 = vector.broadcast %0 : vector<384x1xf32> to vector<384x32xf32>
    %102 = arith.mulf %100, %101 : vector<384x32xf32>
    %103 = arith.mulf %102, %102 : vector<384x32xf32>
    %cst_76 = arith.constant dense<0.000000e+00> : vector<32xf32>
    %104 = vector.multi_reduction <add>, %103, %cst_76 [0] : vector<384x32xf32> to vector<32xf32>
    %105 = vector.shape_cast %104 : vector<32xf32> to vector<1x32xf32>
    %cst_77 = arith.constant dense<0.000000e+00> : vector<1x32xf32>
    %106 = tpu.matmul %105, %93, %cst_77 {dimension_numbers = #tpu.dot_dimension_numbers<[1], [0], [0], [1], [0, 0, 1, 1], [], []>} : vector<1x32xf32>, vector<32x32xf32>, vector<1x32xf32> -> vector<1x32xf32>
    %cst_78 = arith.constant 9.99999974E-6 : f32
    %107 = vector.broadcast %cst_78 : f32 to vector<1x32xf32>
    %108 = arith.addf %106, %107 : vector<1x32xf32>
    %109 = math.rsqrt %108 : vector<1x32xf32>
    %110 = vector.broadcast %109 : vector<1x32xf32> to vector<384x32xf32>
    %111 = arith.mulf %100, %110 : vector<384x32xf32>
    %112 = vector.broadcast %94 : vector<1x32xf32> to vector<384x32xf32>
    %113 = arith.mulf %111, %112 : vector<384x32xf32>
    %114 = vector.broadcast %95 : vector<1x32xf32> to vector<384x32xf32>
    %115 = arith.addf %113, %114 : vector<384x32xf32>
    %cst_79 = arith.constant 0.000000e+00 : f32
    %116 = vector.broadcast %cst_79 : f32 to vector<384x32xf32>
    %117 = arith.subf %116, %115 : vector<384x32xf32>
    %118 = math.exp %117 : vector<384x32xf32>
    %cst_80 = arith.constant 1.000000e+00 : f32
    %119 = vector.broadcast %cst_80 : f32 to vector<384x32xf32>
    %120 = arith.addf %119, %118 : vector<384x32xf32>
    %121 = tpu.reciprocal %120 {approx = true} : vector<384x32xf32> -> vector<384x32xf32>
    %122 = arith.mulf %115, %121 : vector<384x32xf32>
    %123 = vector.broadcast %0 : vector<384x1xf32> to vector<384x32xf32>
    %124 = arith.mulf %122, %123 : vector<384x32xf32>
    %125 = arith.truncf %124 : vector<384x32xf32> to vector<384x32xbf16>
    %c25_81 = arith.constant 25 : index
    %c0_82 = arith.constant 0 : index
    %126 = vector.load %arg15[%c25_81, %c0_82] : memref<440x32xbf16, #tpu.memory_space<vmem>>, vector<384x32xbf16>
    tpu.vector_store %arg15[%c25_81, %c0_82], %125 {strides = array<i32>} : memref<440x32xbf16, #tpu.memory_space<vmem>>, vector<384x32xbf16>,
    %c0_83 = arith.constant 0 : index
    %c0_84 = arith.constant 0 : index
    %127 = vector.load %arg15[%c0_83, %c0_84] : memref<440x32xbf16, #tpu.memory_space<vmem>>, vector<384x32xbf16>
    %c0_85 = arith.constant 0 : index
    %c0_86 = arith.constant 0 : index
    %c0_87 = arith.constant 0 : index
    %128 = vector.load %arg12[%c0_85, %c0_86, %c0_87] : memref<9x32x32xbf16, #tpu.memory_space<vmem>>, vector<1x32x32xbf16>
    %129 = vector.shape_cast %128 : vector<1x32x32xbf16> to vector<32x32xbf16>
    %cst_88 = arith.constant dense<0.000000e+00> : vector<384x32xf32>
    %130 = tpu.matmul %127, %129, %cst_88 {dimension_numbers = #tpu.dot_dimension_numbers<[1], [0], [0], [1], [0, 0, 1, 1], [], []>} : vector<384x32xbf16>, vector<32x32xbf16>, vector<384x32xf32> -> vector<384x32xf32>
    %c1_89 = arith.constant 1 : index
    %c0_90 = arith.constant 0 : index
    %131 = vector.load %arg15[%c1_89, %c0_90] : memref<440x32xbf16, #tpu.memory_space<vmem>>, vector<384x32xbf16>
    %c1_91 = arith.constant 1 : index
    %c0_92 = arith.constant 0 : index
    %c0_93 = arith.constant 0 : index
    %132 = vector.load %arg12[%c1_91, %c0_92, %c0_93] : memref<9x32x32xbf16, #tpu.memory_space<vmem>>, vector<1x32x32xbf16>
    %133 = vector.shape_cast %132 : vector<1x32x32xbf16> to vector<32x32xbf16>
    %cst_94 = arith.constant dense<0.000000e+00> : vector<384x32xf32>
    %134 = tpu.matmul %131, %133, %cst_94 {dimension_numbers = #tpu.dot_dimension_numbers<[1], [0], [0], [1], [0, 0, 1, 1], [], []>} : vector<384x32xbf16>, vector<32x32xbf16>, vector<384x32xf32> -> vector<384x32xf32>
    %135 = arith.addf %130, %134 : vector<384x32xf32>
    %c2_95 = arith.constant 2 : index
    %c0_96 = arith.constant 0 : index
    %136 = vector.load %arg15[%c2_95, %c0_96] : memref<440x32xbf16, #tpu.memory_space<vmem>>, vector<384x32xbf16>
    %c2_97 = arith.constant 2 : index
    %c0_98 = arith.constant 0 : index
    %c0_99 = arith.constant 0 : index
    %137 = vector.load %arg12[%c2_97, %c0_98, %c0_99] : memref<9x32x32xbf16, #tpu.memory_space<vmem>>, vector<1x32x32xbf16>
    %138 = vector.shape_cast %137 : vector<1x32x32xbf16> to vector<32x32xbf16>
    %cst_100 = arith.constant dense<0.000000e+00> : vector<384x32xf32>
    %139 = tpu.matmul %136, %138, %cst_100 {dimension_numbers = #tpu.dot_dimension_numbers<[1], [0], [0], [1], [0, 0, 1, 1], [], []>} : vector<384x32xbf16>, vector<32x32xbf16>, vector<384x32xf32> -> vector<384x32xf32>
    %140 = arith.addf %135, %139 : vector<384x32xf32>
    %c24_101 = arith.constant 24 : index
    %c0_102 = arith.constant 0 : index
    %141 = vector.load %arg15[%c24_101, %c0_102] : memref<440x32xbf16, #tpu.memory_space<vmem>>, vector<384x32xbf16>
    %c3_103 = arith.constant 3 : index
    %c0_104 = arith.constant 0 : index
    %c0_105 = arith.constant 0 : index
    %142 = vector.load %arg12[%c3_103, %c0_104, %c0_105] : memref<9x32x32xbf16, #tpu.memory_space<vmem>>, vector<1x32x32xbf16>
    %143 = vector.shape_cast %142 : vector<1x32x32xbf16> to vector<32x32xbf16>
    %cst_106 = arith.constant dense<0.000000e+00> : vector<384x32xf32>
    %144 = tpu.matmul %141, %143, %cst_106 {dimension_numbers = #tpu.dot_dimension_numbers<[1], [0], [0], [1], [0, 0, 1, 1], [], []>} : vector<384x32xbf16>, vector<32x32xbf16>, vector<384x32xf32> -> vector<384x32xf32>
    %145 = arith.addf %140, %144 : vector<384x32xf32>
    %c25_107 = arith.constant 25 : index
    %c0_108 = arith.constant 0 : index
    %146 = vector.load %arg15[%c25_107, %c0_108] : memref<440x32xbf16, #tpu.memory_space<vmem>>, vector<384x32xbf16>
    %c4_109 = arith.constant 4 : index
    %c0_110 = arith.constant 0 : index
    %c0_111 = arith.constant 0 : index
    %147 = vector.load %arg12[%c4_109, %c0_110, %c0_111] : memref<9x32x32xbf16, #tpu.memory_space<vmem>>, vector<1x32x32xbf16>
    %148 = vector.shape_cast %147 : vector<1x32x32xbf16> to vector<32x32xbf16>
    %cst_112 = arith.constant dense<0.000000e+00> : vector<384x32xf32>
    %149 = tpu.matmul %146, %148, %cst_112 {dimension_numbers = #tpu.dot_dimension_numbers<[1], [0], [0], [1], [0, 0, 1, 1], [], []>} : vector<384x32xbf16>, vector<32x32xbf16>, vector<384x32xf32> -> vector<384x32xf32>
    %150 = arith.addf %145, %149 : vector<384x32xf32>
    %c26_113 = arith.constant 26 : index
    %c0_114 = arith.constant 0 : index
    %151 = vector.load %arg15[%c26_113, %c0_114] : memref<440x32xbf16, #tpu.memory_space<vmem>>, vector<384x32xbf16>
    %c5_115 = arith.constant 5 : index
    %c0_116 = arith.constant 0 : index
    %c0_117 = arith.constant 0 : index
    %152 = vector.load %arg12[%c5_115, %c0_116, %c0_117] : memref<9x32x32xbf16, #tpu.memory_space<vmem>>, vector<1x32x32xbf16>
    %153 = vector.shape_cast %152 : vector<1x32x32xbf16> to vector<32x32xbf16>
    %cst_118 = arith.constant dense<0.000000e+00> : vector<384x32xf32>
    %154 = tpu.matmul %151, %153, %cst_118 {dimension_numbers = #tpu.dot_dimension_numbers<[1], [0], [0], [1], [0, 0, 1, 1], [], []>} : vector<384x32xbf16>, vector<32x32xbf16>, vector<384x32xf32> -> vector<384x32xf32>
    %155 = arith.addf %150, %154 : vector<384x32xf32>
    %c48_119 = arith.constant 48 : index
    %c0_120 = arith.constant 0 : index
    %156 = vector.load %arg15[%c48_119, %c0_120] : memref<440x32xbf16, #tpu.memory_space<vmem>>, vector<384x32xbf16>
    %c6_121 = arith.constant 6 : index
    %c0_122 = arith.constant 0 : index
    %c0_123 = arith.constant 0 : index
    %157 = vector.load %arg12[%c6_121, %c0_122, %c0_123] : memref<9x32x32xbf16, #tpu.memory_space<vmem>>, vector<1x32x32xbf16>
    %158 = vector.shape_cast %157 : vector<1x32x32xbf16> to vector<32x32xbf16>
    %cst_124 = arith.constant dense<0.000000e+00> : vector<384x32xf32>
    %159 = tpu.matmul %156, %158, %cst_124 {dimension_numbers = #tpu.dot_dimension_numbers<[1], [0], [0], [1], [0, 0, 1, 1], [], []>} : vector<384x32xbf16>, vector<32x32xbf16>, vector<384x32xf32> -> vector<384x32xf32>
    %160 = arith.addf %155, %159 : vector<384x32xf32>
    %c49_125 = arith.constant 49 : index
    %c0_126 = arith.constant 0 : index
    %161 = vector.load %arg15[%c49_125, %c0_126] : memref<440x32xbf16, #tpu.memory_space<vmem>>, vector<384x32xbf16>
    %c7_127 = arith.constant 7 : index
    %c0_128 = arith.constant 0 : index
    %c0_129 = arith.constant 0 : index
    %162 = vector.load %arg12[%c7_127, %c0_128, %c0_129] : memref<9x32x32xbf16, #tpu.memory_space<vmem>>, vector<1x32x32xbf16>
    %163 = vector.shape_cast %162 : vector<1x32x32xbf16> to vector<32x32xbf16>
    %cst_130 = arith.constant dense<0.000000e+00> : vector<384x32xf32>
    %164 = tpu.matmul %161, %163, %cst_130 {dimension_numbers = #tpu.dot_dimension_numbers<[1], [0], [0], [1], [0, 0, 1, 1], [], []>} : vector<384x32xbf16>, vector<32x32xbf16>, vector<384x32xf32> -> vector<384x32xf32>
    %165 = arith.addf %160, %164 : vector<384x32xf32>
    %c50_131 = arith.constant 50 : index
    %c0_132 = arith.constant 0 : index
    %166 = vector.load %arg15[%c50_131, %c0_132] : memref<440x32xbf16, #tpu.memory_space<vmem>>, vector<384x32xbf16>
    %c8_133 = arith.constant 8 : index
    %c0_134 = arith.constant 0 : index
    %c0_135 = arith.constant 0 : index
    %167 = vector.load %arg12[%c8_133, %c0_134, %c0_135] : memref<9x32x32xbf16, #tpu.memory_space<vmem>>, vector<1x32x32xbf16>
    %168 = vector.shape_cast %167 : vector<1x32x32xbf16> to vector<32x32xbf16>
    %cst_136 = arith.constant dense<0.000000e+00> : vector<384x32xf32>
    %169 = tpu.matmul %166, %168, %cst_136 {dimension_numbers = #tpu.dot_dimension_numbers<[1], [0], [0], [1], [0, 0, 1, 1], [], []>} : vector<384x32xbf16>, vector<32x32xbf16>, vector<384x32xf32> -> vector<384x32xf32>
    %170 = arith.addf %165, %169 : vector<384x32xf32>
    %c0_137 = arith.constant 0 : index
    %c0_138 = arith.constant 0 : index
    %171 = vector.load %arg13[%c0_137, %c0_138] : memref<1x32xf32, #tpu.memory_space<vmem>>, vector<1x32xf32>
    %172 = vector.broadcast %171 : vector<1x32xf32> to vector<384x32xf32>
    %173 = arith.addf %170, %172 : vector<384x32xf32>
    %174 = arith.addf %173, %2 : vector<384x32xf32>
    %c0_139 = arith.constant 0 : index
    %c0_140 = arith.constant 0 : index
    %c0_141 = arith.constant 0 : index
    %175 = vector.load %arg14[%c0_139, %c0_140, %c0_141] : memref<1x384x32xf32, #tpu.memory_space<vmem>>, vector<1x384x32xf32>
    %176 = vector.shape_cast %175 : vector<1x384x32xf32> to vector<384x32xf32>
    %177 = vector.shape_cast %174 : vector<384x32xf32> to vector<1x384x32xf32>
    tpu.vector_store %arg14[%c0_139, %c0_140, %c0_141], %177 {strides = array<i32>} : memref<1x384x32xf32, #tpu.memory_space<vmem>>, vector<1x384x32xf32>,
    return
  }
  func.func @transform_0(%arg0: i32) -> (i32, i32, i32) {
    %c0_i32 = arith.constant 0 : i32
    %c0_i32_0 = arith.constant 0 : i32
    %c0_i32_1 = arith.constant 0 : i32
    return %arg0, %c0_i32, %c0_i32_0 : i32, i32, i32
  }
  func.func @transform_1(%arg0: i32) -> (i32, i32, i32) {
    %c0_i32 = arith.constant 0 : i32
    %c0_i32_0 = arith.constant 0 : i32
    %c0_i32_1 = arith.constant 0 : i32
    return %arg0, %c0_i32, %c0_i32_0 : i32, i32, i32
  }
  func.func @transform_2(%arg0: i32) -> (i32, i32) {
    %c0_i32 = arith.constant 0 : i32
    %c0_i32_0 = arith.constant 0 : i32
    %c0_i32_1 = arith.constant 0 : i32
    return %c0_i32, %c0_i32_0 : i32, i32
  }
  func.func @transform_3(%arg0: i32) -> (i32, i32) {
    %c0_i32 = arith.constant 0 : i32
    %c0_i32_0 = arith.constant 0 : i32
    %c0_i32_1 = arith.constant 0 : i32
    return %c0_i32, %c0_i32_0 : i32, i32
  }
  func.func @transform_4(%arg0: i32) -> (i32, i32) {
    %c0_i32 = arith.constant 0 : i32
    %c0_i32_0 = arith.constant 0 : i32
    %c0_i32_1 = arith.constant 0 : i32
    return %c0_i32, %c0_i32_0 : i32, i32
  }
  func.func @transform_5(%arg0: i32) -> (i32, i32) {
    %c0_i32 = arith.constant 0 : i32
    %c0_i32_0 = arith.constant 0 : i32
    %c0_i32_1 = arith.constant 0 : i32
    return %c0_i32, %c0_i32_0 : i32, i32
  }
  func.func @transform_6(%arg0: i32) -> (i32, i32, i32) {
    %c0_i32 = arith.constant 0 : i32
    %c0_i32_0 = arith.constant 0 : i32
    %c0_i32_1 = arith.constant 0 : i32
    %c0_i32_2 = arith.constant 0 : i32
    return %c0_i32, %c0_i32_0, %c0_i32_1 : i32, i32, i32
  }
  func.func @transform_7(%arg0: i32) -> (i32, i32) {
    %c0_i32 = arith.constant 0 : i32
    %c0_i32_0 = arith.constant 0 : i32
    %c0_i32_1 = arith.constant 0 : i32
    return %c0_i32, %c0_i32_0 : i32, i32
  }
  func.func @transform_8(%arg0: i32) -> (i32, i32) {
    %c0_i32 = arith.constant 0 : i32
    %c0_i32_0 = arith.constant 0 : i32
    %c0_i32_1 = arith.constant 0 : i32
    return %c0_i32, %c0_i32_0 : i32, i32
  }
  func.func @transform_9(%arg0: i32) -> (i32, i32) {
    %c0_i32 = arith.constant 0 : i32
    %c0_i32_0 = arith.constant 0 : i32
    %c0_i32_1 = arith.constant 0 : i32
    return %c0_i32, %c0_i32_0 : i32, i32
  }
  func.func @transform_10(%arg0: i32) -> (i32, i32) {
    %c0_i32 = arith.constant 0 : i32
    %c0_i32_0 = arith.constant 0 : i32
    %c0_i32_1 = arith.constant 0 : i32
    return %c0_i32, %c0_i32_0 : i32, i32
  }
  func.func @transform_11(%arg0: i32) -> (i32, i32, i32) {
    %c0_i32 = arith.constant 0 : i32
    %c0_i32_0 = arith.constant 0 : i32
    %c0_i32_1 = arith.constant 0 : i32
    %c0_i32_2 = arith.constant 0 : i32
    return %c0_i32, %c0_i32_0, %c0_i32_1 : i32, i32, i32
  }
  func.func @transform_12(%arg0: i32) -> (i32, i32) {
    %c0_i32 = arith.constant 0 : i32
    %c0_i32_0 = arith.constant 0 : i32
    %c0_i32_1 = arith.constant 0 : i32
    return %c0_i32, %c0_i32_0 : i32, i32
  }
  func.func @transform_13(%arg0: i32) -> (i32, i32, i32) {
    %c0_i32 = arith.constant 0 : i32
    %c0_i32_0 = arith.constant 0 : i32
    %c0_i32_1 = arith.constant 0 : i32
    return %arg0, %c0_i32, %c0_i32_0 : i32, i32, i32
  }
}

</mosaic_0001>

<llo_original>
// kernel: tpu_custom_call.1
$region0: #{tpu_custom_call.1}
  #allocation0 [shape = 'u32[]', space=smem, size = 0x4, offset = 0x4, fixed_abs, tag = 'smem constant byte address 0x4 - core index']
  #allocation1 [shape = 'u32[72,128]{1,0:T(1,128)}', space=vmem, size = 0x9000, scoped, tag = 'internal scratch']
  #allocation2 [shape = 'bf16[440,32]{1,0:T(8,128)(2,1)}', space=vmem, size = 0x1b800, scoped, tag = 'scratch operand']
  %s0 = inlined_call_operand.vmem [shape: f32[2,384,32], index: 0, kind: input, shape index: {}]
  %s1 = inlined_call_operand.vmem [shape: f32[2,1,32], index: 1, kind: input, shape index: {}]
  %s2 = inlined_call_operand.vmem [shape: f32[384,1], index: 2, kind: input, shape index: {}]
  %s3 = inlined_call_operand.vmem [shape: f32[1,32], index: 3, kind: input, shape index: {}]
  %s4 = inlined_call_operand.vmem [shape: f32[1,32], index: 4, kind: input, shape index: {}]
  %s5 = inlined_call_operand.vmem [shape: f32[32,32], index: 5, kind: input, shape index: {}]
  %s6 = inlined_call_operand.vmem [shape: bf16[9,32,32], index: 6, kind: input, shape index: {}]
  %s7 = inlined_call_operand.vmem [shape: f32[1,32], index: 7, kind: input, shape index: {}]
  %s8 = inlined_call_operand.vmem [shape: f32[1,32], index: 8, kind: input, shape index: {}]
  %s9 = inlined_call_operand.vmem [shape: f32[1,32], index: 9, kind: input, shape index: {}]
  %s10 = inlined_call_operand.vmem [shape: f32[32,32], index: 10, kind: input, shape index: {}]
  %s11 = inlined_call_operand.vmem [shape: bf16[9,32,32], index: 11, kind: input, shape index: {}]
  %s12 = inlined_call_operand.vmem [shape: f32[1,32], index: 12, kind: input, shape index: {}]
  %s13 = inlined_call_operand.vmem [shape: f32[2,384,32], index: 13, kind: output, shape index: {}]
  %s14 = sld [smem:[#allocation0]]
  $region85: #{tpu_custom_call.1} parent=0
    _
  %s16 = ssub.s32 1, %s14
  %s17 = scalar_select 0, %s16, %s14
  loop: start=0, step=1, limit=4
  $region2: #{tpu_custom_call.1} parent=0 // loop_pre_header
    _
  $region3: #{tpu_custom_call.1} parent=0 // loop_header
    %s19 = sphi 0, %s23
    %p20 = scmp.ge.s32.totalorder %s19, 4
    %s29 = sphi 0, %s31
    %s32 = sphi 0, %s29
    %s33 = sphi 0, %s32
    %s49 = sphi 0, %s33
    %s55 = sphi 0, %s57
    %s58 = sphi 0, %s55
    %s59 = sphi 0, %s58
    %s75 = sphi 0, %s59
    %s79 = sphi 0, %s79
    %s81 = sphi 0, %s79
    %s82 = sphi 0, %s81
    %s96 = sphi 0, %s82
    %s100 = sphi 0, %s100
    %s102 = sphi 0, %s100
    %s103 = sphi 0, %s102
    %s117 = sphi 0, %s103
    %s121 = sphi 0, %s121
    %s123 = sphi 0, %s121
    %s124 = sphi 0, %s123
    %s138 = sphi 0, %s124
    %s142 = sphi 0, %s142
    %s144 = sphi 0, %s142
    %s145 = sphi 0, %s144
    %s159 = sphi 0, %s145
    %s163 = sphi 0, %s163
    %s165 = sphi 0, %s163
    %s166 = sphi 0, %s165
    %s180 = sphi 0, %s166
    %s184 = sphi 0, %s184
    %s186 = sphi 0, %s184
    %s187 = sphi 0, %s186
    %s201 = sphi 0, %s187
    %s205 = sphi 0, %s205
    %s207 = sphi 0, %s205
    %s208 = sphi 0, %s207
    %s222 = sphi 0, %s208
    %s226 = sphi 0, %s226
    %s228 = sphi 0, %s226
    %s229 = sphi 0, %s228
    %s243 = sphi 0, %s229
    %s247 = sphi 0, %s247
    %s249 = sphi 0, %s247
    %s250 = sphi 0, %s249
    %s264 = sphi 0, %s250
    %s268 = sphi 0, %s268
    %s270 = sphi 0, %s268
    %s271 = sphi 0, %s270
    %s285 = sphi 0, %s271
    %s289 = sphi 0, %s289
    %s291 = sphi 0, %s289
    %s292 = sphi 0, %s291
    %s306 = sphi 0, %s292
    %s312 = sphi 0, %s314
    %s315 = sphi 0, %s312
    %s316 = sphi 0, %s315
    %s332 = sphi 0, %s316
  $region4: #{tpu_custom_call.1} parent=0 // loop_header_branch
    %22 = sbr.rel (%p20) target = $region8
  $region5: #{tpu_custom_call.1} parent=0 // loop_body
    %s24 = ssub.s32 %s19, 1
    %s25 = ssub.s32 %s19, 2
    %s26 = sadd.s32 %s19, 1
    %s27 = ssub.s32 %s19, %s26
    %p28 = scmp.eq.s32.totalorder %s27, 0
    %s30 = sadd.s32 %s29, 1
    %s31 = scalar_select %p28, %s29, %s30
    %p34 = pneg %p28
    %p35 = scmp.eq.s32.totalorder %s19, 1
    %p36 = por %p34, %p35
    %p37 = scmp.ne.s32.totalorder %s29, %s32
    %p38 = scmp.eq.s32.totalorder %s19, 0
    %p39 = por %p37, %p38
    %p40 = scmp.ne.s32.totalorder %s29, %s32
    %p41 = scmp.eq.s32.totalorder %s24, 1
    %p42 = por %p40, %p41
    %p43 = scmp.ne.s32.totalorder %s32, %s33
    %p44 = scmp.eq.s32.totalorder %s24, 0
    %p45 = por %p43, %p44
    %p46 = scmp.ne.s32.totalorder %s32, %s33
    %p47 = scmp.eq.s32.totalorder %s25, 1
    %p48 = por %p46, %p47
    %p50 = scmp.ne.s32.totalorder %s33, %s49
    %p51 = scmp.eq.s32.totalorder %s25, 0
    %p52 = por %p50, %p51
    %s53 = ssub.s32 %s19, %s26
    %p54 = scmp.eq.s32.totalorder %s53, 0
    %s56 = sadd.s32 %s55, 1
    %s57 = scalar_select %p54, %s55, %s56
    %p60 = pneg %p54
    %p61 = scmp.eq.s32.totalorder %s19, 1
    %p62 = por %p60, %p61
    %p63 = scmp.ne.s32.totalorder %s55, %s58
    %p64 = scmp.eq.s32.totalorder %s19, 0
    %p65 = por %p63, %p64
    %p66 = scmp.ne.s32.totalorder %s55, %s58
    %p67 = scmp.eq.s32.totalorder %s24, 1
    %p68 = por %p66, %p67
    %p69 = scmp.ne.s32.totalorder %s58, %s59
    %p70 = scmp.eq.s32.totalorder %s24, 0
    %p71 = por %p69, %p70
    %p72 = scmp.ne.s32.totalorder %s58, %s59
    %p73 = scmp.eq.s32.totalorder %s25, 1
    %p74 = por %p72, %p73
    %p76 = scmp.ne.s32.totalorder %s59, %s75
    %p77 = scmp.eq.s32.totalorder %s25, 0
    %p78 = por %p76, %p77
    %s80 = sadd.s32 %s79, 1
    %p83 = scmp.eq.s32.totalorder %s19, 1
    %p84 = scmp.ne.s32.totalorder %s79, %s81
    %p85 = scmp.eq.s32.totalorder %s19, 0
    %p86 = por %p84, %p85
    %p87 = scmp.ne.s32.totalorder %s79, %s81
    %p88 = scmp.eq.s32.totalorder %s24, 1
    %p89 = por %p87, %p88
    %p90 = scmp.ne.s32.totalorder %s81, %s82
    %p91 = scmp.eq.s32.totalorder %s24, 0
    %p92 = por %p90, %p91
    %p93 = scmp.ne.s32.totalorder %s81, %s82
    %p94 = scmp.eq.s32.totalorder %s25, 1
    %p95 = por %p93, %p94
    %p97 = scmp.ne.s32.totalorder %s82, %s96
    %p98 = scmp.eq.s32.totalorder %s25, 0
    %p99 = por %p97, %p98
    %s101 = sadd.s32 %s100, 1
    %p104 = scmp.eq.s32.totalorder %s19, 1
    %p105 = scmp.ne.s32.totalorder %s100, %s102
    %p106 = scmp.eq.s32.totalorder %s19, 0
    %p107 = por %p105, %p106
    %p108 = scmp.ne.s32.totalorder %s100, %s102
    %p109 = scmp.eq.s32.totalorder %s24, 1
    %p110 = por %p108, %p109
    %p111 = scmp.ne.s32.totalorder %s102, %s103
    %p112 = scmp.eq.s32.totalorder %s24, 0
    %p113 = por %p111, %p112
    %p114 = scmp.ne.s32.totalorder %s102, %s103
    %p115 = scmp.eq.s32.totalorder %s25, 1
    %p116 = por %p114, %p115
    %p118 = scmp.ne.s32.totalorder %s103, %s117
    %p119 = scmp.eq.s32.totalorder %s25, 0
    %p120 = por %p118, %p119
    %s122 = sadd.s32 %s121, 1
    %p125 = scmp.eq.s32.totalorder %s19, 1
    %p126 = scmp.ne.s32.totalorder %s121, %s123
    %p127 = scmp.eq.s32.totalorder %s19, 0
    %p128 = por %p126, %p127
    %p129 = scmp.ne.s32.totalorder %s121, %s123
    %p130 = scmp.eq.s32.totalorder %s24, 1
    %p131 = por %p129, %p130
    %p132 = scmp.ne.s32.totalorder %s123, %s124
    %p133 = scmp.eq.s32.totalorder %s24, 0
    %p134 = por %p132, %p133
    %p135 = scmp.ne.s32.totalorder %s123, %s124
    %p136 = scmp.eq.s32.totalorder %s25, 1
    %p137 = por %p135, %p136
    %p139 = scmp.ne.s32.totalorder %s124, %s138
    %p140 = scmp.eq.s32.totalorder %s25, 0
    %p141 = por %p139, %p140
    %s143 = sadd.s32 %s142, 1
    %p146 = scmp.eq.s32.totalorder %s19, 1
    %p147 = scmp.ne.s32.totalorder %s142, %s144
    %p148 = scmp.eq.s32.totalorder %s19, 0
    %p149 = por %p147, %p148
    %p150 = scmp.ne.s32.totalorder %s142, %s144
    %p151 = scmp.eq.s32.totalorder %s24, 1
    %p152 = por %p150, %p151
    %p153 = scmp.ne.s32.totalorder %s144, %s145
    %p154 = scmp.eq.s32.totalorder %s24, 0
    %p155 = por %p153, %p154
    %p156 = scmp.ne.s32.totalorder %s144, %s145
    %p157 = scmp.eq.s32.totalorder %s25, 1
    %p158 = por %p156, %p157
    %p160 = scmp.ne.s32.totalorder %s145, %s159
    %p161 = scmp.eq.s32.totalorder %s25, 0
    %p162 = por %p160, %p161
    %s164 = sadd.s32 %s163, 1
    %p167 = scmp.eq.s32.totalorder %s19, 1
    %p168 = scmp.ne.s32.totalorder %s163, %s165
    %p169 = scmp.eq.s32.totalorder %s19, 0
    %p170 = por %p168, %p169
    %p171 = scmp.ne.s32.totalorder %s163, %s165
    %p172 = scmp.eq.s32.totalorder %s24, 1
    %p173 = por %p171, %p172
    %p174 = scmp.ne.s32.totalorder %s165, %s166
    %p175 = scmp.eq.s32.totalorder %s24, 0
    %p176 = por %p174, %p175
    %p177 = scmp.ne.s32.totalorder %s165, %s166
    %p178 = scmp.eq.s32.totalorder %s25, 1
    %p179 = por %p177, %p178
    %p181 = scmp.ne.s32.totalorder %s166, %s180
    %p182 = scmp.eq.s32.totalorder %s25, 0
    %p183 = por %p181, %p182
    %s185 = sadd.s32 %s184, 1
    %p188 = scmp.eq.s32.totalorder %s19, 1
    %p189 = scmp.ne.s32.totalorder %s184, %s186
    %p190 = scmp.eq.s32.totalorder %s19, 0
    %p191 = por %p189, %p190
    %p192 = scmp.ne.s32.totalorder %s184, %s186
    %p193 = scmp.eq.s32.totalorder %s24, 1
    %p194 = por %p192, %p193
    %p195 = scmp.ne.s32.totalorder %s186, %s187
    %p196 = scmp.eq.s32.totalorder %s24, 0
    %p197 = por %p195, %p196
    %p198 = scmp.ne.s32.totalorder %s186, %s187
    %p199 = scmp.eq.s32.totalorder %s25, 1
    %p200 = por %p198, %p199
    %p202 = scmp.ne.s32.totalorder %s187, %s201
    %p203 = scmp.eq.s32.totalorder %s25, 0
    %p204 = por %p202, %p203
    %s206 = sadd.s32 %s205, 1
    %p209 = scmp.eq.s32.totalorder %s19, 1
    %p210 = scmp.ne.s32.totalorder %s205, %s207
    %p211 = scmp.eq.s32.totalorder %s19, 0
    %p212 = por %p210, %p211
    %p213 = scmp.ne.s32.totalorder %s205, %s207
    %p214 = scmp.eq.s32.totalorder %s24, 1
    %p215 = por %p213, %p214
    %p216 = scmp.ne.s32.totalorder %s207, %s208
    %p217 = scmp.eq.s32.totalorder %s24, 0
    %p218 = por %p216, %p217
    %p219 = scmp.ne.s32.totalorder %s207, %s208
    %p220 = scmp.eq.s32.totalorder %s25, 1
    %p221 = por %p219, %p220
    %p223 = scmp.ne.s32.totalorder %s208, %s222
    %p224 = scmp.eq.s32.totalorder %s25, 0
    %p225 = por %p223, %p224
    %s227 = sadd.s32 %s226, 1
    %p230 = scmp.eq.s32.totalorder %s19, 1
    %p231 = scmp.ne.s32.totalorder %s226, %s228
    %p232 = scmp.eq.s32.totalorder %s19, 0
    %p233 = por %p231, %p232
    %p234 = scmp.ne.s32.totalorder %s226, %s228
    %p235 = scmp.eq.s32.totalorder %s24, 1
    %p236 = por %p234, %p235
    %p237 = scmp.ne.s32.totalorder %s228, %s229
    %p238 = scmp.eq.s32.totalorder %s24, 0
    %p239 = por %p237, %p238
    %p240 = scmp.ne.s32.totalorder %s228, %s229
    %p241 = scmp.eq.s32.totalorder %s25, 1
    %p242 = por %p240, %p241
    %p244 = scmp.ne.s32.totalorder %s229, %s243
    %p245 = scmp.eq.s32.totalorder %s25, 0
    %p246 = por %p244, %p245
    %s248 = sadd.s32 %s247, 1
    %p251 = scmp.eq.s32.totalorder %s19, 1
    %p252 = scmp.ne.s32.totalorder %s247, %s249
    %p253 = scmp.eq.s32.totalorder %s19, 0
    %p254 = por %p252, %p253
    %p255 = scmp.ne.s32.totalorder %s247, %s249
    %p256 = scmp.eq.s32.totalorder %s24, 1
    %p257 = por %p255, %p256
    %p258 = scmp.ne.s32.totalorder %s249, %s250
    %p259 = scmp.eq.s32.totalorder %s24, 0
    %p260 = por %p258, %p259
    %p261 = scmp.ne.s32.totalorder %s249, %s250
    %p262 = scmp.eq.s32.totalorder %s25, 1
    %p263 = por %p261, %p262
    %p265 = scmp.ne.s32.totalorder %s250, %s264
    %p266 = scmp.eq.s32.totalorder %s25, 0
    %p267 = por %p265, %p266
    %s269 = sadd.s32 %s268, 1
    %p272 = scmp.eq.s32.totalorder %s19, 1
    %p273 = scmp.ne.s32.totalorder %s268, %s270
    %p274 = scmp.eq.s32.totalorder %s19, 0
    %p275 = por %p273, %p274
    %p276 = scmp.ne.s32.totalorder %s268, %s270
    %p277 = scmp.eq.s32.totalorder %s24, 1
    %p278 = por %p276, %p277
    %p279 = scmp.ne.s32.totalorder %s270, %s271
    %p280 = scmp.eq.s32.totalorder %s24, 0
    %p281 = por %p279, %p280
    %p282 = scmp.ne.s32.totalorder %s270, %s271
    %p283 = scmp.eq.s32.totalorder %s25, 1
    %p284 = por %p282, %p283
    %p286 = scmp.ne.s32.totalorder %s271, %s285
    %p287 = scmp.eq.s32.totalorder %s25, 0
    %p288 = por %p286, %p287
    %s290 = sadd.s32 %s289, 1
    %p293 = scmp.eq.s32.totalorder %s19, 1
    %p294 = scmp.ne.s32.totalorder %s289, %s291
    %p295 = scmp.eq.s32.totalorder %s19, 0
    %p296 = por %p294, %p295
    %p297 = scmp.ne.s32.totalorder %s289, %s291
    %p298 = scmp.eq.s32.totalorder %s24, 1
    %p299 = por %p297, %p298
    %p300 = scmp.ne.s32.totalorder %s291, %s292
    %p301 = scmp.eq.s32.totalorder %s24, 0
    %p302 = por %p300, %p301
    %p303 = scmp.ne.s32.totalorder %s291, %s292
    %p304 = scmp.eq.s32.totalorder %s25, 1
    %p305 = por %p303, %p304
    %p307 = scmp.ne.s32.totalorder %s292, %s306
    %p308 = scmp.eq.s32.totalorder %s25, 0
    %p309 = por %p307, %p308
    %s310 = ssub.s32 %s19, %s26
    %p311 = scmp.eq.s32.totalorder %s310, 0
    %s313 = sadd.s32 %s312, 1
    %s314 = scalar_select %p311, %s312, %s313
    %p317 = pneg %p311
    %p318 = scmp.eq.s32.totalorder %s19, 1
    %p319 = por %p317, %p318
    %p320 = scmp.ne.s32.totalorder %s312, %s315
    %p321 = scmp.eq.s32.totalorder %s19, 0
    %p322 = por %p320, %p321
    %p323 = scmp.ne.s32.totalorder %s312, %s315
    %p324 = scmp.eq.s32.totalorder %s24, 1
    %p325 = por %p323, %p324
    %p326 = scmp.ne.s32.totalorder %s315, %s316
    %p327 = scmp.eq.s32.totalorder %s24, 0
    %p328 = por %p326, %p327
    %p329 = scmp.ne.s32.totalorder %s315, %s316
    %p330 = scmp.eq.s32.totalorder %s25, 1
    %p331 = por %p329, %p330
    %p333 = scmp.ne.s32.totalorder %s316, %s332
    %p334 = scmp.eq.s32.totalorder %s25, 0
    %p335 = por %p333, %p334
    %p336 = scmp.le.s32.totalorder 1, %s19
    %p337 = scmp.lt.s32.totalorder %s19, 3
    %p338 = pnand %p336, %p337
    %p339 = pneg %p338
    // Predicated region
    $region9: #{tpu_custom_call.1} parent=5 // pred_check
      _
    $region10: #{tpu_custom_call.1} parent=5 // pred_check_branch
      %341 = sbr.rel (%p338) target = $region12
    $region11: #{tpu_custom_call.1} parent=5 // pred_region
      %s342 = ssub.s32 %s19, 1
      // Predicated region
      $region13: #{tpu_custom_call.1} parent=11 // pred_check
        %p343 = pneg %p92
      $region14: #{tpu_custom_call.1} parent=11 // pred_check_branch
        %345 = sbr.rel (%p343) target = $region16
      $region15: #{tpu_custom_call.1} parent=11 // pred_region
        _
      $region16: #{tpu_custom_call.1} parent=11 // pred_fallthru
        _
      // Predicated region
      $region17: #{tpu_custom_call.1} parent=11 // pred_check
        %p346 = pneg %p113
      $region18: #{tpu_custom_call.1} parent=11 // pred_check_branch
        %348 = sbr.rel (%p346) target = $region20
      $region19: #{tpu_custom_call.1} parent=11 // pred_region
        _
      $region20: #{tpu_custom_call.1} parent=11 // pred_fallthru
        _
      // Predicated region
      $region21: #{tpu_custom_call.1} parent=11 // pred_check
        %p349 = pneg %p134
      $region22: #{tpu_custom_call.1} parent=11 // pred_check_branch
        %351 = sbr.rel (%p349) target = $region24
      $region23: #{tpu_custom_call.1} parent=11 // pred_region
        _
      $region24: #{tpu_custom_call.1} parent=11 // pred_fallthru
        _
      // Predicated region
      $region25: #{tpu_custom_call.1} parent=11 // pred_check
        %p352 = pneg %p155
      $region26: #{tpu_custom_call.1} parent=11 // pred_check_branch
        %354 = sbr.rel (%p352) target = $region28
      $region27: #{tpu_custom_call.1} parent=11 // pred_region
        _
      $region28: #{tpu_custom_call.1} parent=11 // pred_fallthru
        _
      // Predicated region
      $region29: #{tpu_custom_call.1} parent=11 // pred_check
        %p355 = pneg %p176
      $region30: #{tpu_custom_call.1} parent=11 // pred_check_branch
        %357 = sbr.rel (%p355) target = $region32
      $region31: #{tpu_custom_call.1} parent=11 // pred_region
        _
      $region32: #{tpu_custom_call.1} parent=11 // pred_fallthru
        _
      // Predicated region
      $region33: #{tpu_custom_call.1} parent=11 // pred_check
        %p358 = pneg %p197
      $region34: #{tpu_custom_call.1} parent=11 // pred_check_branch
        %360 = sbr.rel (%p358) target = $region36
      $region35: #{tpu_custom_call.1} parent=11 // pred_region
        _
      $region36: #{tpu_custom_call.1} parent=11 // pred_fallthru
        _
      // Predicated region
      $region37: #{tpu_custom_call.1} parent=11 // pred_check
        %p361 = pneg %p218
      $region38: #{tpu_custom_call.1} parent=11 // pred_check_branch
        %363 = sbr.rel (%p361) target = $region40
      $region39: #{tpu_custom_call.1} parent=11 // pred_region
        _
      $region40: #{tpu_custom_call.1} parent=11 // pred_fallthru
        _
      // Predicated region
      $region41: #{tpu_custom_call.1} parent=11 // pred_check
        %p364 = pneg %p239
      $region42: #{tpu_custom_call.1} parent=11 // pred_check_branch
        %366 = sbr.rel (%p364) target = $region44
      $region43: #{tpu_custom_call.1} parent=11 // pred_region
        _
      $region44: #{tpu_custom_call.1} parent=11 // pred_fallthru
        _
      // Predicated region
      $region45: #{tpu_custom_call.1} parent=11 // pred_check
        %p367 = pneg %p260
      $region46: #{tpu_custom_call.1} parent=11 // pred_check_branch
        %369 = sbr.rel (%p367) target = $region48
      $region47: #{tpu_custom_call.1} parent=11 // pred_region
        _
      $region48: #{tpu_custom_call.1} parent=11 // pred_fallthru
        _
      // Predicated region
      $region49: #{tpu_custom_call.1} parent=11 // pred_check
        %p370 = pneg %p281
      $region50: #{tpu_custom_call.1} parent=11 // pred_check_branch
        %372 = sbr.rel (%p370) target = $region52
      $region51: #{tpu_custom_call.1} parent=11 // pred_region
        _
      $region52: #{tpu_custom_call.1} parent=11 // pred_fallthru
        _
      // Predicated region
      $region53: #{tpu_custom_call.1} parent=11 // pred_check
        %p373 = pneg %p302
      $region54: #{tpu_custom_call.1} parent=11 // pred_check_branch
        %375 = sbr.rel (%p373) target = $region56
      $region55: #{tpu_custom_call.1} parent=11 // pred_region
        _
      $region56: #{tpu_custom_call.1} parent=11 // pred_fallthru
        _
    $region12: #{tpu_custom_call.1} parent=5 // pred_fallthru
      _
    %p376 = scmp.lt.s32.totalorder %s19, 2
    // Predicated region
    $region57: #{tpu_custom_call.1} parent=5 // pred_check
      %p377 = pneg %p376
    $region58: #{tpu_custom_call.1} parent=5 // pred_check_branch
      %379 = sbr.rel (%p377) target = $region60
    $region59: #{tpu_custom_call.1} parent=5 // pred_region
      // Predicated region
      $region61: #{tpu_custom_call.1} parent=59 // pred_check
        %p380 = pneg %p39
      $region62: #{tpu_custom_call.1} parent=59 // pred_check_branch
        %382 = sbr.rel (%p380) target = $region64
      $region63: #{tpu_custom_call.1} parent=59 // pred_region
        %p383 = scmp.lt.s32.totalorder %s19, 1
        %s384 = scalar_select %p383, %s19, 1
        %s385 = smul.addr %s384, 48
        %s386 = smul.addr %s385, 8
        %s387 = scalar_lea.vmem %s0, %s386
      $region64: #{tpu_custom_call.1} parent=59 // pred_fallthru
        _
      // Predicated region
      $region65: #{tpu_custom_call.1} parent=59 // pred_check
        %p388 = pneg %p65
      $region66: #{tpu_custom_call.1} parent=59 // pred_check_branch
        %390 = sbr.rel (%p388) target = $region68
      $region67: #{tpu_custom_call.1} parent=59 // pred_region
        %p391 = scmp.lt.s32.totalorder %s19, 1
        %s392 = scalar_select %p391, %s19, 1
        %s393 = scalar_lea.vmem %s1, %s392
      $region68: #{tpu_custom_call.1} parent=59 // pred_fallthru
        _
    $region60: #{tpu_custom_call.1} parent=5 // pred_fallthru
      _
    %p394 = scmp.le.s32.totalorder 1, %s19
    %p395 = scmp.lt.s32.totalorder %s19, 3
    %p396 = pnand %p394, %p395
    %p397 = pneg %p396
    // Predicated region
    $region69: #{tpu_custom_call.1} parent=5 // pred_check
      _
    $region70: #{tpu_custom_call.1} parent=5 // pred_check_branch
      %399 = sbr.rel (%p396) target = $region72
    $region71: #{tpu_custom_call.1} parent=5 // pred_region
      %s400 = ssub.s32 %s19, 1
      %p401 = scmp.lt.s32.totalorder %s24, 1
      %s402 = scalar_select %p401, %s24, 1
      %s403 = smul.addr %s402, 48
      %s404 = smul.addr %s403, 8
      %s405 = scalar_lea.vmem %s0, %s404
      %p406 = pneg %p45
      %p407 = pneg %p42
      %p408 = scmp.lt.s32.totalorder %s24, 1
      %s409 = scalar_select %p408, %s24, 1
      %s410 = scalar_lea.vmem %s1, %s409
      %p411 = pneg %p71
      %p412 = pneg %p68
      %p413 = pneg %p92
      %p414 = pneg %p89
      %p415 = pneg %p113
      %p416 = pneg %p110
      %p417 = pneg %p134
      %p418 = pneg %p131
      %p419 = pneg %p155
      %p420 = pneg %p152
      %p421 = pneg %p176
      %p422 = pneg %p173
      %p423 = pneg %p197
      %p424 = pneg %p194
      %p425 = pneg %p218
      %p426 = pneg %p215
      %p427 = pneg %p239
      %p428 = pneg %p236
      %p429 = pneg %p260
      %p430 = pneg %p257
      %p431 = pneg %p281
      %p432 = pneg %p278
      %p433 = pneg %p302
      %p434 = pneg %p299
      %p435 = pneg %p328
      %p436 = pneg %p325
      %p437 = scmp.lt.s32.totalorder %s24, 1
      %s438 = scalar_select %p437, %s24, 1
      %s439 = smul.addr %s438, 48
      %s440 = smul.addr %s439, 8
      %s441 = scalar_lea.vmem %s13, %s440
      %p442 = scmp.lt.s32.totalorder %s24, 1
      %s443 = scalar_select %p442, %s24, 1
      %s444 = smul.addr %s443, 48
      %s445 = smul.addr %s444, 8
      %s446 = scalar_lea.vmem %s0, %s445
      %p447 = scmp.lt.s32.totalorder %s24, 1
      %s448 = scalar_select %p447, %s24, 1
      %s449 = scalar_lea.vmem %s1, %s448
      %p450 = scmp.lt.s32.totalorder %s24, 1
      %s451 = scalar_select %p450, %s24, 1
      %s452 = smul.addr %s451, 48
      %s453 = smul.addr %s452, 8
      %s454 = scalar_lea.vmem %s13, %s453
      %v456 = vld [vmem:[%s2] sm:$0xff]
      %v457 = vld [vmem:[%s2 + $0x8] sm:$0xff]
      %v458 = vld [vmem:[%s2 + $0x10] sm:$0xff]
      %v459 = vld [vmem:[%s2 + $0x18] sm:$0xff]
      %v460 = vld [vmem:[%s2 + $0x20] sm:$0xff]
      %v461 = vld [vmem:[%s2 + $0x28] sm:$0xff]
      %v462 = vld [vmem:[%s2 + $0x30] sm:$0xff]
      %v463 = vld [vmem:[%s2 + $0x38] sm:$0xff]
      %v464 = vld [vmem:[%s2 + $0x40] sm:$0xff]
      %v465 = vld [vmem:[%s2 + $0x48] sm:$0xff]
      %v466 = vld [vmem:[%s2 + $0x50] sm:$0xff]
      %v467 = vld [vmem:[%s2 + $0x58] sm:$0xff]
      %v468 = vld [vmem:[%s2 + $0x60] sm:$0xff]
      %v469 = vld [vmem:[%s2 + $0x68] sm:$0xff]
      %v470 = vld [vmem:[%s2 + $0x70] sm:$0xff]
      %v471 = vld [vmem:[%s2 + $0x78] sm:$0xff]
      %v472 = vld [vmem:[%s2 + $0x80] sm:$0xff]
      %v473 = vld [vmem:[%s2 + $0x88] sm:$0xff]
      %v474 = vld [vmem:[%s2 + $0x90] sm:$0xff]
      %v475 = vld [vmem:[%s2 + $0x98] sm:$0xff]
      %v476 = vld [vmem:[%s2 + $0xa0] sm:$0xff]
      %v477 = vld [vmem:[%s2 + $0xa8] sm:$0xff]
      %v478 = vld [vmem:[%s2 + $0xb0] sm:$0xff]
      %v479 = vld [vmem:[%s2 + $0xb8] sm:$0xff]
      %v480 = vld [vmem:[%s2 + $0xc0] sm:$0xff]
      %v481 = vld [vmem:[%s2 + $0xc8] sm:$0xff]
      %v482 = vld [vmem:[%s2 + $0xd0] sm:$0xff]
      %v483 = vld [vmem:[%s2 + $0xd8] sm:$0xff]
      %v484 = vld [vmem:[%s2 + $0xe0] sm:$0xff]
      %v485 = vld [vmem:[%s2 + $0xe8] sm:$0xff]
      %v486 = vld [vmem:[%s2 + $0xf0] sm:$0xff]
      %v487 = vld [vmem:[%s2 + $0xf8] sm:$0xff]
      %v488 = vld [vmem:[%s2 + $0x100] sm:$0xff]
      %v489 = vld [vmem:[%s2 + $0x108] sm:$0xff]
      %v490 = vld [vmem:[%s2 + $0x110] sm:$0xff]
      %v491 = vld [vmem:[%s2 + $0x118] sm:$0xff]
      %v492 = vld [vmem:[%s2 + $0x120] sm:$0xff]
      %v493 = vld [vmem:[%s2 + $0x128] sm:$0xff]
      %v494 = vld [vmem:[%s2 + $0x130] sm:$0xff]
      %v495 = vld [vmem:[%s2 + $0x138] sm:$0xff]
      %v496 = vld [vmem:[%s2 + $0x140] sm:$0xff]
      %v497 = vld [vmem:[%s2 + $0x148] sm:$0xff]
      %v498 = vld [vmem:[%s2 + $0x150] sm:$0xff]
      %v499 = vld [vmem:[%s2 + $0x158] sm:$0xff]
      %v500 = vld [vmem:[%s2 + $0x160] sm:$0xff]
      %v501 = vld [vmem:[%s2 + $0x168] sm:$0xff]
      %v502 = vld [vmem:[%s2 + $0x170] sm:$0xff]
      %v503 = vld [vmem:[%s2 + $0x178] sm:$0xff]
      %v504 = vld [vmem:[%s446] sm:$0xff]
      %v505 = vld [vmem:[%s446 + $0x8] sm:$0xff]
      %v506 = vld [vmem:[%s446 + $0x10] sm:$0xff]
      %v507 = vld [vmem:[%s446 + $0x18] sm:$0xff]
      %v508 = vld [vmem:[%s446 + $0x20] sm:$0xff]
      %v509 = vld [vmem:[%s446 + $0x28] sm:$0xff]
      %v510 = vld [vmem:[%s446 + $0x30] sm:$0xff]
      %v511 = vld [vmem:[%s446 + $0x38] sm:$0xff]
      %v512 = vld [vmem:[%s446 + $0x40] sm:$0xff]
      %v513 = vld [vmem:[%s446 + $0x48] sm:$0xff]
      %v514 = vld [vmem:[%s446 + $0x50] sm:$0xff]
      %v515 = vld [vmem:[%s446 + $0x58] sm:$0xff]
      %v516 = vld [vmem:[%s446 + $0x60] sm:$0xff]
      %v517 = vld [vmem:[%s446 + $0x68] sm:$0xff]
      %v518 = vld [vmem:[%s446 + $0x70] sm:$0xff]
      %v519 = vld [vmem:[%s446 + $0x78] sm:$0xff]
      %v520 = vld [vmem:[%s446 + $0x80] sm:$0xff]
      %v521 = vld [vmem:[%s446 + $0x88] sm:$0xff]
      %v522 = vld [vmem:[%s446 + $0x90] sm:$0xff]
      %v523 = vld [vmem:[%s446 + $0x98] sm:$0xff]
      %v524 = vld [vmem:[%s446 + $0xa0] sm:$0xff]
      %v525 = vld [vmem:[%s446 + $0xa8] sm:$0xff]
      %v526 = vld [vmem:[%s446 + $0xb0] sm:$0xff]
      %v527 = vld [vmem:[%s446 + $0xb8] sm:$0xff]
      %v528 = vld [vmem:[%s446 + $0xc0] sm:$0xff]
      %v529 = vld [vmem:[%s446 + $0xc8] sm:$0xff]
      %v530 = vld [vmem:[%s446 + $0xd0] sm:$0xff]
      %v531 = vld [vmem:[%s446 + $0xd8] sm:$0xff]
      %v532 = vld [vmem:[%s446 + $0xe0] sm:$0xff]
      %v533 = vld [vmem:[%s446 + $0xe8] sm:$0xff]
      %v534 = vld [vmem:[%s446 + $0xf0] sm:$0xff]
      %v535 = vld [vmem:[%s446 + $0xf8] sm:$0xff]
      %v536 = vld [vmem:[%s446 + $0x100] sm:$0xff]
      %v537 = vld [vmem:[%s446 + $0x108] sm:$0xff]
      %v538 = vld [vmem:[%s446 + $0x110] sm:$0xff]
      %v539 = vld [vmem:[%s446 + $0x118] sm:$0xff]
      %v540 = vld [vmem:[%s446 + $0x120] sm:$0xff]
      %v541 = vld [vmem:[%s446 + $0x128] sm:$0xff]
      %v542 = vld [vmem:[%s446 + $0x130] sm:$0xff]
      %v543 = vld [vmem:[%s446 + $0x138] sm:$0xff]
      %v544 = vld [vmem:[%s446 + $0x140] sm:$0xff]
      %v545 = vld [vmem:[%s446 + $0x148] sm:$0xff]
      %v546 = vld [vmem:[%s446 + $0x150] sm:$0xff]
      %v547 = vld [vmem:[%s446 + $0x158] sm:$0xff]
      %v548 = vld [vmem:[%s446 + $0x160] sm:$0xff]
      %v549 = vld [vmem:[%s446 + $0x168] sm:$0xff]
      %v550 = vld [vmem:[%s446 + $0x170] sm:$0xff]
      %v551 = vld [vmem:[%s446 + $0x178] sm:$0xff]
      %vm552 = vcmask 257024
      %553 = vst.msk [vmem:[#allocation2] sm:$0xf] %vm552, 0
      %554 = vst.msk [vmem:[#allocation2 + $0x4] sm:$0xf] %vm552, 0
      %555 = vst.msk [vmem:[#allocation2 + $0x8] sm:$0xf] %vm552, 0
      %vm556 = vcmask 253952
      %vm557 = vsmask.f32 256
      %vm558 = vmand %vm556, %vm557
      %v559 = vld [vmem:[#allocation2 + $0xc] sm:$0x1]
      %v560 = vsel %vm558, 0, %v559
      %561 = vst [vmem:[#allocation2 + $0xc] sm:$0x1] %v560
      %vm562 = vcmask 257024
      %vm563 = vsmask.f32 7938
      %vm564 = vmand %vm562, %vm563
      %v565 = vld [vmem:[#allocation2 + $0xcc] sm:$0xf]
      %v566 = vsel %vm564, 0, %v565
      %567 = vst [vmem:[#allocation2 + $0xcc] sm:$0xf] %v566
      %568 = vst.msk [vmem:[#allocation2 + $0xd0] sm:$0xf] %vm552, 0
      %569 = vst.msk [vmem:[#allocation2 + $0xd4] sm:$0xf] %vm552, 0
      %570 = vst.msk [vmem:[#allocation2 + $0xd8] sm:$0xf] %vm552, 0
      %v571 = vld [vmem:[%s5] sm:$0xff]
      %v572 = vld [vmem:[%s5 + $0x8] sm:$0xff]
      %v573 = vld [vmem:[%s5 + $0x10] sm:$0xff]
      %v574 = vld [vmem:[%s5 + $0x18] sm:$0xff]
      %v575 = vld [vmem:[%s3] sm:$0x1]
      %v576 = vld [vmem:[%s4] sm:$0x1]
      %vm577 = vcmask 261120
      %v578 = vsel %vm577, %v504, 0.0
      %v579 = vsel %vm577, %v505, 0.0
      %v580 = vadd.f32 %v578, %v579
      %v581 = vsel %vm577, %v506, 0.0
      %v582 = vadd.f32 %v580, %v581
      %v583 = vsel %vm577, %v507, 0.0
      %v584 = vadd.f32 %v582, %v583
      %v585 = vsel %vm577, %v508, 0.0
      %v586 = vadd.f32 %v584, %v585
      %v587 = vsel %vm577, %v509, 0.0
      %v588 = vadd.f32 %v586, %v587
      %v589 = vsel %vm577, %v510, 0.0
      %v590 = vadd.f32 %v588, %v589
      %v591 = vsel %vm577, %v511, 0.0
      %v592 = vadd.f32 %v590, %v591
      %v593 = vsel %vm577, %v512, 0.0
      %v594 = vadd.f32 %v592, %v593
      %v595 = vsel %vm577, %v513, 0.0
      %v596 = vadd.f32 %v594, %v595
      %v597 = vsel %vm577, %v514, 0.0
      %v598 = vadd.f32 %v596, %v597
      %v599 = vsel %vm577, %v515, 0.0
      %v600 = vadd.f32 %v598, %v599
      %v601 = vsel %vm577, %v516, 0.0
      %v602 = vadd.f32 %v600, %v601
      %v603 = vsel %vm577, %v517, 0.0
      %v604 = vadd.f32 %v602, %v603
      %v605 = vsel %vm577, %v518, 0.0
      %v606 = vadd.f32 %v604, %v605
      %v607 = vsel %vm577, %v519, 0.0
      %v608 = vadd.f32 %v606, %v607
      %v609 = vsel %vm577, %v520, 0.0
      %v610 = vadd.f32 %v608, %v609
      %v611 = vsel %vm577, %v521, 0.0
      %v612 = vadd.f32 %v610, %v611
      %v613 = vsel %vm577, %v522, 0.0
      %v614 = vadd.f32 %v612, %v613
      %v615 = vsel %vm577, %v523, 0.0
      %v616 = vadd.f32 %v614, %v615
      %v617 = vsel %vm577, %v524, 0.0
      %v618 = vadd.f32 %v616, %v617
      %v619 = vsel %vm577, %v525, 0.0
      %v620 = vadd.f32 %v618, %v619
      %v621 = vsel %vm577, %v526, 0.0
      %v622 = vadd.f32 %v620, %v621
      %v623 = vsel %vm577, %v527, 0.0
      %v624 = vadd.f32 %v622, %v623
      %v625 = vsel %vm577, %v528, 0.0
      %v626 = vadd.f32 %v624, %v625
      %v627 = vsel %vm577, %v529, 0.0
      %v628 = vadd.f32 %v626, %v627
      %v629 = vsel %vm577, %v530, 0.0
      %v630 = vadd.f32 %v628, %v629
      %v631 = vsel %vm577, %v531, 0.0
      %v632 = vadd.f32 %v630, %v631
      %v633 = vsel %vm577, %v532, 0.0
      %v634 = vadd.f32 %v632, %v633
      %v635 = vsel %vm577, %v533, 0.0
      %v636 = vadd.f32 %v634, %v635
      %v637 = vsel %vm577, %v534, 0.0
      %v638 = vadd.f32 %v636, %v637
      %v639 = vsel %vm577, %v535, 0.0
      %v640 = vadd.f32 %v638, %v639
      %v641 = vsel %vm577, %v536, 0.0
      %v642 = vadd.f32 %v640, %v641
      %v643 = vsel %vm577, %v537, 0.0
      %v644 = vadd.f32 %v642, %v643
      %v645 = vsel %vm577, %v538, 0.0
      %v646 = vadd.f32 %v644, %v645
      %v647 = vsel %vm577, %v539, 0.0
      %v648 = vadd.f32 %v646, %v647
      %v649 = vsel %vm577, %v540, 0.0
      %v650 = vadd.f32 %v648, %v649
      %v651 = vsel %vm577, %v541, 0.0
      %v652 = vadd.f32 %v650, %v651
      %v653 = vsel %vm577, %v542, 0.0
      %v654 = vadd.f32 %v652, %v653
      %v655 = vsel %vm577, %v543, 0.0
      %v656 = vadd.f32 %v654, %v655
      %v657 = vsel %vm577, %v544, 0.0
      %v658 = vadd.f32 %v656, %v657
      %v659 = vsel %vm577, %v545, 0.0
      %v660 = vadd.f32 %v658, %v659
      %v661 = vsel %vm577, %v546, 0.0
      %v662 = vadd.f32 %v660, %v661
      %v663 = vsel %vm577, %v547, 0.0
      %v664 = vadd.f32 %v662, %v663
      %v665 = vsel %vm577, %v548, 0.0
      %v666 = vadd.f32 %v664, %v665
      %v667 = vsel %vm577, %v549, 0.0
      %v668 = vadd.f32 %v666, %v667
      %v669 = vsel %vm577, %v550, 0.0
      %v670 = vadd.f32 %v668, %v669
      %v671 = vsel %vm577, %v551, 0.0
      %v672 = vadd.f32 %v670, %v671
      %v673 = vrot.slane %v672, 4
      %v674 = vadd.f32 %v672, %v673
      %v675 = vrot.slane %v674, 2
      %v676 = vadd.f32 %v674, %v675
      %v677 = vrot.slane %v676, 1
      %v678 = vadd.f32 %v676, %v677
      %v680 = vsel %vm577, %v678, 0
      %682 = vmatpush.msra.mxu0 0.0
      %683 = vmatpush.msra.mxu0 0.0
      %684 = vmatpush.msra.mxu0 0.0
      %685 = vmatpush.msra.mxu0 0.0
      %686 = vmatpush.msra.mxu0 0.0
      %687 = vmatpush.msra.mxu0 0.0
      %688 = vmatpush.msra.mxu0 0.0
      %689 = vmatpush.msra.mxu0 0.0
      %690 = vmatpush.msra.mxu0 0.0
      %691 = vmatpush.msra.mxu0 0.0
      %692 = vmatpush.msra.mxu0 0.0
      %693 = vmatpush.msra.mxu0 0.0
      %694 = vmatpush.msra.mxu0 %v574
      %695 = vmatpush.msra.mxu0 %v573
      %696 = vmatpush.msra.mxu0 %v572
      %697 = vmatpush.msra.mxu0 %v571
      %698 = vmatmul.f32.gmra.mxu0 %v680
      %v699 = vpop.f32.mrf.mxu0
      %v700 = vadd.f32 0.0, %v699
      %701 = vdwg.mxu0
      %v702 = vperm.slane %v700, 0
      %v703 = vsub.f32 %v504, %v702
      %v704 = vsub.f32 %v505, %v702
      %v705 = vsub.f32 %v506, %v702
      %v706 = vsub.f32 %v507, %v702
      %v707 = vsub.f32 %v508, %v702
      %v708 = vsub.f32 %v509, %v702
      %v709 = vsub.f32 %v510, %v702
      %v710 = vsub.f32 %v511, %v702
      %v711 = vsub.f32 %v512, %v702
      %v712 = vsub.f32 %v513, %v702
      %v713 = vsub.f32 %v514, %v702
      %v714 = vsub.f32 %v515, %v702
      %v715 = vsub.f32 %v516, %v702
      %v716 = vsub.f32 %v517, %v702
      %v717 = vsub.f32 %v518, %v702
      %v718 = vsub.f32 %v519, %v702
      %v719 = vsub.f32 %v520, %v702
      %v720 = vsub.f32 %v521, %v702
      %v721 = vsub.f32 %v522, %v702
      %v722 = vsub.f32 %v523, %v702
      %v723 = vsub.f32 %v524, %v702
      %v724 = vsub.f32 %v525, %v702
      %v725 = vsub.f32 %v526, %v702
      %v726 = vsub.f32 %v527, %v702
      %v727 = vsub.f32 %v528, %v702
      %v728 = vsub.f32 %v529, %v702
      %v729 = vsub.f32 %v530, %v702
      %v730 = vsub.f32 %v531, %v702
      %v731 = vsub.f32 %v532, %v702
      %v732 = vsub.f32 %v533, %v702
      %v733 = vsub.f32 %v534, %v702
      %v734 = vsub.f32 %v535, %v702
      %v735 = vsub.f32 %v536, %v702
      %v736 = vsub.f32 %v537, %v702
      %v737 = vsub.f32 %v538, %v702
      %v738 = vsub.f32 %v539, %v702
      %v739 = vsub.f32 %v540, %v702
      %v740 = vsub.f32 %v541, %v702
      %v741 = vsub.f32 %v542, %v702
      %v742 = vsub.f32 %v543, %v702
      %v743 = vsub.f32 %v544, %v702
      %v744 = vsub.f32 %v545, %v702
      %v745 = vsub.f32 %v546, %v702
      %v746 = vsub.f32 %v547, %v702
      %v747 = vsub.f32 %v548, %v702
      %v748 = vsub.f32 %v549, %v702
      %v749 = vsub.f32 %v550, %v702
      %v750 = vsub.f32 %v551, %v702
      %752 = vset.pattern.permute.xlu0 0
      %753 = vperm.xlu0 %752, %v456
      %v754 = vpop.permute.xlu0 %753
      %757 = vset.pattern.permute.xlu0 0
      %758 = vperm.xlu0 %757, %v457
      %v759 = vpop.permute.xlu0 %758
      %762 = vset.pattern.permute.xlu0 0
      %763 = vperm.xlu0 %762, %v458
      %v764 = vpop.permute.xlu0 %763
      %767 = vset.pattern.permute.xlu0 0
      %768 = vperm.xlu0 %767, %v459
      %v769 = vpop.permute.xlu0 %768
      %772 = vset.pattern.permute.xlu0 0
      %773 = vperm.xlu0 %772, %v460
      %v774 = vpop.permute.xlu0 %773
      %777 = vset.pattern.permute.xlu0 0
      %778 = vperm.xlu0 %777, %v461
      %v779 = vpop.permute.xlu0 %778
      %782 = vset.pattern.permute.xlu0 0
      %783 = vperm.xlu0 %782, %v462
      %v784 = vpop.permute.xlu0 %783
      %787 = vset.pattern.permute.xlu0 0
      %788 = vperm.xlu0 %787, %v463
      %v789 = vpop.permute.xlu0 %788
      %792 = vset.pattern.permute.xlu0 0
      %793 = vperm.xlu0 %792, %v464
      %v794 = vpop.permute.xlu0 %793
      %797 = vset.pattern.permute.xlu0 0
      %798 = vperm.xlu0 %797, %v465
      %v799 = vpop.permute.xlu0 %798
      %802 = vset.pattern.permute.xlu0 0
      %803 = vperm.xlu0 %802, %v466
      %v804 = vpop.permute.xlu0 %803
      %807 = vset.pattern.permute.xlu0 0
      %808 = vperm.xlu0 %807, %v467
      %v809 = vpop.permute.xlu0 %808
      %812 = vset.pattern.permute.xlu0 0
      %813 = vperm.xlu0 %812, %v468
      %v814 = vpop.permute.xlu0 %813
      %817 = vset.pattern.permute.xlu0 0
      %818 = vperm.xlu0 %817, %v469
      %v819 = vpop.permute.xlu0 %818
      %822 = vset.pattern.permute.xlu0 0
      %823 = vperm.xlu0 %822, %v470
      %v824 = vpop.permute.xlu0 %823
      %827 = vset.pattern.permute.xlu0 0
      %828 = vperm.xlu0 %827, %v471
      %v829 = vpop.permute.xlu0 %828
      %832 = vset.pattern.permute.xlu0 0
      %833 = vperm.xlu0 %832, %v472
      %v834 = vpop.permute.xlu0 %833
      %837 = vset.pattern.permute.xlu0 0
      %838 = vperm.xlu0 %837, %v473
      %v839 = vpop.permute.xlu0 %838
      %842 = vset.pattern.permute.xlu0 0
      %843 = vperm.xlu0 %842, %v474
      %v844 = vpop.permute.xlu0 %843
      %847 = vset.pattern.permute.xlu0 0
      %848 = vperm.xlu0 %847, %v475
      %v849 = vpop.permute.xlu0 %848
      %852 = vset.pattern.permute.xlu0 0
      %853 = vperm.xlu0 %852, %v476
      %v854 = vpop.permute.xlu0 %853
      %857 = vset.pattern.permute.xlu0 0
      %858 = vperm.xlu0 %857, %v477
      %v859 = vpop.permute.xlu0 %858
      %862 = vset.pattern.permute.xlu0 0
      %863 = vperm.xlu0 %862, %v478
      %v864 = vpop.permute.xlu0 %863
      %867 = vset.pattern.permute.xlu0 0
      %868 = vperm.xlu0 %867, %v479
      %v869 = vpop.permute.xlu0 %868
      %872 = vset.pattern.permute.xlu0 0
      %873 = vperm.xlu0 %872, %v480
      %v874 = vpop.permute.xlu0 %873
      %877 = vset.pattern.permute.xlu0 0
      %878 = vperm.xlu0 %877, %v481
      %v879 = vpop.permute.xlu0 %878
      %882 = vset.pattern.permute.xlu0 0
      %883 = vperm.xlu0 %882, %v482
      %v884 = vpop.permute.xlu0 %883
      %887 = vset.pattern.permute.xlu0 0
      %888 = vperm.xlu0 %887, %v483
      %v889 = vpop.permute.xlu0 %888
      %892 = vset.pattern.permute.xlu0 0
      %893 = vperm.xlu0 %892, %v484
      %v894 = vpop.permute.xlu0 %893
      %897 = vset.pattern.permute.xlu0 0
      %898 = vperm.xlu0 %897, %v485
      %v899 = vpop.permute.xlu0 %898
      %902 = vset.pattern.permute.xlu0 0
      %903 = vperm.xlu0 %902, %v486
      %v904 = vpop.permute.xlu0 %903
      %907 = vset.pattern.permute.xlu0 0
      %908 = vperm.xlu0 %907, %v487
      %v909 = vpop.permute.xlu0 %908
      %912 = vset.pattern.permute.xlu0 0
      %913 = vperm.xlu0 %912, %v488
      %v914 = vpop.permute.xlu0 %913
      %917 = vset.pattern.permute.xlu0 0
      %918 = vperm.xlu0 %917, %v489
      %v919 = vpop.permute.xlu0 %918
      %922 = vset.pattern.permute.xlu0 0
      %923 = vperm.xlu0 %922, %v490
      %v924 = vpop.permute.xlu0 %923
      %927 = vset.pattern.permute.xlu0 0
      %928 = vperm.xlu0 %927, %v491
      %v929 = vpop.permute.xlu0 %928
      %932 = vset.pattern.permute.xlu0 0
      %933 = vperm.xlu0 %932, %v492
      %v934 = vpop.permute.xlu0 %933
      %937 = vset.pattern.permute.xlu0 0
      %938 = vperm.xlu0 %937, %v493
      %v939 = vpop.permute.xlu0 %938
      %942 = vset.pattern.permute.xlu0 0
      %943 = vperm.xlu0 %942, %v494
      %v944 = vpop.permute.xlu0 %943
      %947 = vset.pattern.permute.xlu0 0
      %948 = vperm.xlu0 %947, %v495
      %v949 = vpop.permute.xlu0 %948
      %952 = vset.pattern.permute.xlu0 0
      %953 = vperm.xlu0 %952, %v496
      %v954 = vpop.permute.xlu0 %953
      %957 = vset.pattern.permute.xlu0 0
      %958 = vperm.xlu0 %957, %v497
      %v959 = vpop.permute.xlu0 %958
      %962 = vset.pattern.permute.xlu0 0
      %963 = vperm.xlu0 %962, %v498
      %v964 = vpop.permute.xlu0 %963
      %967 = vset.pattern.permute.xlu0 0
      %968 = vperm.xlu0 %967, %v499
      %v969 = vpop.permute.xlu0 %968
      %972 = vset.pattern.permute.xlu0 0
      %973 = vperm.xlu0 %972, %v500
      %v974 = vpop.permute.xlu0 %973
      %977 = vset.pattern.permute.xlu0 0
      %978 = vperm.xlu0 %977, %v501
      %v979 = vpop.permute.xlu0 %978
      %982 = vset.pattern.permute.xlu0 0
      %983 = vperm.xlu0 %982, %v502
      %v984 = vpop.permute.xlu0 %983
      %987 = vset.pattern.permute.xlu0 0
      %988 = vperm.xlu0 %987, %v503
      %v989 = vpop.permute.xlu0 %988
      %v991 = vmul.f32 %v703, %v754
      %v992 = vmul.f32 %v704, %v759
      %v993 = vmul.f32 %v705, %v764
      %v994 = vmul.f32 %v706, %v769
      %v995 = vmul.f32 %v707, %v774
      %v996 = vmul.f32 %v708, %v779
      %v997 = vmul.f32 %v709, %v784
      %v998 = vmul.f32 %v710, %v789
      %v999 = vmul.f32 %v711, %v794
      %v1000 = vmul.f32 %v712, %v799
      %v1001 = vmul.f32 %v713, %v804
      %v1002 = vmul.f32 %v714, %v809
      %v1003 = vmul.f32 %v715, %v814
      %v1004 = vmul.f32 %v716, %v819
      %v1005 = vmul.f32 %v717, %v824
      %v1006 = vmul.f32 %v718, %v829
      %v1007 = vmul.f32 %v719, %v834
      %v1008 = vmul.f32 %v720, %v839
      %v1009 = vmul.f32 %v721, %v844
      %v1010 = vmul.f32 %v722, %v849
      %v1011 = vmul.f32 %v723, %v854
      %v1012 = vmul.f32 %v724, %v859
      %v1013 = vmul.f32 %v725, %v864
      %v1014 = vmul.f32 %v726, %v869
      %v1015 = vmul.f32 %v727, %v874
      %v1016 = vmul.f32 %v728, %v879
      %v1017 = vmul.f32 %v729, %v884
      %v1018 = vmul.f32 %v730, %v889
      %v1019 = vmul.f32 %v731, %v894
      %v1020 = vmul.f32 %v732, %v899
      %v1021 = vmul.f32 %v733, %v904
      %v1022 = vmul.f32 %v734, %v909
      %v1023 = vmul.f32 %v735, %v914
      %v1024 = vmul.f32 %v736, %v919
      %v1025 = vmul.f32 %v737, %v924
      %v1026 = vmul.f32 %v738, %v929
      %v1027 = vmul.f32 %v739, %v934
      %v1028 = vmul.f32 %v740, %v939
      %v1029 = vmul.f32 %v741, %v944
      %v1030 = vmul.f32 %v742, %v949
      %v1031 = vmul.f32 %v743, %v954
      %v1032 = vmul.f32 %v744, %v959
      %v1033 = vmul.f32 %v745, %v964
      %v1034 = vmul.f32 %v746, %v969
      %v1035 = vmul.f32 %v747, %v974
      %v1036 = vmul.f32 %v748, %v979
      %v1037 = vmul.f32 %v749, %v984
      %v1038 = vmul.f32 %v750, %v989
      %v1039 = vmul.f32 %v991, %v991
      %v1040 = vmul.f32 %v992, %v992
      %v1041 = vmul.f32 %v993, %v993
      %v1042 = vmul.f32 %v994, %v994
      %v1043 = vmul.f32 %v995, %v995
      %v1044 = vmul.f32 %v996, %v996
      %v1045 = vmul.f32 %v997, %v997
      %v1046 = vmul.f32 %v998, %v998
      %v1047 = vmul.f32 %v999, %v999
      %v1048 = vmul.f32 %v1000, %v1000
      %v1049 = vmul.f32 %v1001, %v1001
      %v1050 = vmul.f32 %v1002, %v1002
      %v1051 = vmul.f32 %v1003, %v1003
      %v1052 = vmul.f32 %v1004, %v1004
      %v1053 = vmul.f32 %v1005, %v1005
      %v1054 = vmul.f32 %v1006, %v1006
      %v1055 = vmul.f32 %v1007, %v1007
      %v1056 = vmul.f32 %v1008, %v1008
      %v1057 = vmul.f32 %v1009, %v1009
      %v1058 = vmul.f32 %v1010, %v1010
      %v1059 = vmul.f32 %v1011, %v1011
      %v1060 = vmul.f32 %v1012, %v1012
      %v1061 = vmul.f32 %v1013, %v1013
      %v1062 = vmul.f32 %v1014, %v1014
      %v1063 = vmul.f32 %v1015, %v1015
      %v1064 = vmul.f32 %v1016, %v1016
      %v1065 = vmul.f32 %v1017, %v1017
      %v1066 = vmul.f32 %v1018, %v1018
      %v1067 = vmul.f32 %v1019, %v1019
      %v1068 = vmul.f32 %v1020, %v1020
      %v1069 = vmul.f32 %v1021, %v1021
      %v1070 = vmul.f32 %v1022, %v1022
      %v1071 = vmul.f32 %v1023, %v1023
      %v1072 = vmul.f32 %v1024, %v1024
      %v1073 = vmul.f32 %v1025, %v1025
      %v1074 = vmul.f32 %v1026, %v1026
      %v1075 = vmul.f32 %v1027, %v1027
      %v1076 = vmul.f32 %v1028, %v1028
      %v1077 = vmul.f32 %v1029, %v1029
      %v1078 = vmul.f32 %v1030, %v1030
      %v1079 = vmul.f32 %v1031, %v1031
      %v1080 = vmul.f32 %v1032, %v1032
      %v1081 = vmul.f32 %v1033, %v1033
      %v1082 = vmul.f32 %v1034, %v1034
      %v1083 = vmul.f32 %v1035, %v1035
      %v1084 = vmul.f32 %v1036, %v1036
      %v1085 = vmul.f32 %v1037, %v1037
      %v1086 = vmul.f32 %v1038, %v1038
      %v1087 = vsel %vm577, %v1039, 0.0
      %v1088 = vsel %vm577, %v1040, 0.0
      %v1089 = vadd.f32 %v1087, %v1088
      %v1090 = vsel %vm577, %v1041, 0.0
      %v1091 = vadd.f32 %v1089, %v1090
      %v1092 = vsel %vm577, %v1042, 0.0
      %v1093 = vadd.f32 %v1091, %v1092
      %v1094 = vsel %vm577, %v1043, 0.0
      %v1095 = vadd.f32 %v1093, %v1094
      %v1096 = vsel %vm577, %v1044, 0.0
      %v1097 = vadd.f32 %v1095, %v1096
      %v1098 = vsel %vm577, %v1045, 0.0
      %v1099 = vadd.f32 %v1097, %v1098
      %v1100 = vsel %vm577, %v1046, 0.0
      %v1101 = vadd.f32 %v1099, %v1100
      %v1102 = vsel %vm577, %v1047, 0.0
      %v1103 = vadd.f32 %v1101, %v1102
      %v1104 = vsel %vm577, %v1048, 0.0
      %v1105 = vadd.f32 %v1103, %v1104
      %v1106 = vsel %vm577, %v1049, 0.0
      %v1107 = vadd.f32 %v1105, %v1106
      %v1108 = vsel %vm577, %v1050, 0.0
      %v1109 = vadd.f32 %v1107, %v1108
      %v1110 = vsel %vm577, %v1051, 0.0
      %v1111 = vadd.f32 %v1109, %v1110
      %v1112 = vsel %vm577, %v1052, 0.0
      %v1113 = vadd.f32 %v1111, %v1112
      %v1114 = vsel %vm577, %v1053, 0.0
      %v1115 = vadd.f32 %v1113, %v1114
      %v1116 = vsel %vm577, %v1054, 0.0
      %v1117 = vadd.f32 %v1115, %v1116
      %v1118 = vsel %vm577, %v1055, 0.0
      %v1119 = vadd.f32 %v1117, %v1118
      %v1120 = vsel %vm577, %v1056, 0.0
      %v1121 = vadd.f32 %v1119, %v1120
      %v1122 = vsel %vm577, %v1057, 0.0
      %v1123 = vadd.f32 %v1121, %v1122
      %v1124 = vsel %vm577, %v1058, 0.0
      %v1125 = vadd.f32 %v1123, %v1124
      %v1126 = vsel %vm577, %v1059, 0.0
      %v1127 = vadd.f32 %v1125, %v1126
      %v1128 = vsel %vm577, %v1060, 0.0
      %v1129 = vadd.f32 %v1127, %v1128
      %v1130 = vsel %vm577, %v1061, 0.0
      %v1131 = vadd.f32 %v1129, %v1130
      %v1132 = vsel %vm577, %v1062, 0.0
      %v1133 = vadd.f32 %v1131, %v1132
      %v1134 = vsel %vm577, %v1063, 0.0
      %v1135 = vadd.f32 %v1133, %v1134
      %v1136 = vsel %vm577, %v1064, 0.0
      %v1137 = vadd.f32 %v1135, %v1136
      %v1138 = vsel %vm577, %v1065, 0.0
      %v1139 = vadd.f32 %v1137, %v1138
      %v1140 = vsel %vm577, %v1066, 0.0
      %v1141 = vadd.f32 %v1139, %v1140
      %v1142 = vsel %vm577, %v1067, 0.0
      %v1143 = vadd.f32 %v1141, %v1142
      %v1144 = vsel %vm577, %v1068, 0.0
      %v1145 = vadd.f32 %v1143, %v1144
      %v1146 = vsel %vm577, %v1069, 0.0
      %v1147 = vadd.f32 %v1145, %v1146
      %v1148 = vsel %vm577, %v1070, 0.0
      %v1149 = vadd.f32 %v1147, %v1148
      %v1150 = vsel %vm577, %v1071, 0.0
      %v1151 = vadd.f32 %v1149, %v1150
      %v1152 = vsel %vm577, %v1072, 0.0
      %v1153 = vadd.f32 %v1151, %v1152
      %v1154 = vsel %vm577, %v1073, 0.0
      %v1155 = vadd.f32 %v1153, %v1154
      %v1156 = vsel %vm577, %v1074, 0.0
      %v1157 = vadd.f32 %v1155, %v1156
      %v1158 = vsel %vm577, %v1075, 0.0
      %v1159 = vadd.f32 %v1157, %v1158
      %v1160 = vsel %vm577, %v1076, 0.0
      %v1161 = vadd.f32 %v1159, %v1160
      %v1162 = vsel %vm577, %v1077, 0.0
      %v1163 = vadd.f32 %v1161, %v1162
      %v1164 = vsel %vm577, %v1078, 0.0
      %v1165 = vadd.f32 %v1163, %v1164
      %v1166 = vsel %vm577, %v1079, 0.0
      %v1167 = vadd.f32 %v1165, %v1166
      %v1168 = vsel %vm577, %v1080, 0.0
      %v1169 = vadd.f32 %v1167, %v1168
      %v1170 = vsel %vm577, %v1081, 0.0
      %v1171 = vadd.f32 %v1169, %v1170
      %v1172 = vsel %vm577, %v1082, 0.0
      %v1173 = vadd.f32 %v1171, %v1172
      %v1174 = vsel %vm577, %v1083, 0.0
      %v1175 = vadd.f32 %v1173, %v1174
      %v1176 = vsel %vm577, %v1084, 0.0
      %v1177 = vadd.f32 %v1175, %v1176
      %v1178 = vsel %vm577, %v1085, 0.0
      %v1179 = vadd.f32 %v1177, %v1178
      %v1180 = vsel %vm577, %v1086, 0.0
      %v1181 = vadd.f32 %v1179, %v1180
      %v1182 = vrot.slane %v1181, 4
      %v1183 = vadd.f32 %v1181, %v1182
      %v1184 = vrot.slane %v1183, 2
      %v1185 = vadd.f32 %v1183, %v1184
      %v1186 = vrot.slane %v1185, 1
      %v1187 = vadd.f32 %v1185, %v1186
      %v1189 = vsel %vm577, %v1187, 0
      %1191 = vmatpush.msra.mxu0 0.0
      %1192 = vmatpush.msra.mxu0 0.0
      %1193 = vmatpush.msra.mxu0 0.0
      %1194 = vmatpush.msra.mxu0 0.0
      %1195 = vmatpush.msra.mxu0 0.0
      %1196 = vmatpush.msra.mxu0 0.0
      %1197 = vmatpush.msra.mxu0 0.0
      %1198 = vmatpush.msra.mxu0 0.0
      %1199 = vmatpush.msra.mxu0 0.0
      %1200 = vmatpush.msra.mxu0 0.0
      %1201 = vmatpush.msra.mxu0 0.0
      %1202 = vmatpush.msra.mxu0 0.0
      %1203 = vmatpush.msra.mxu0 %v574
      %1204 = vmatpush.msra.mxu0 %v573
      %1205 = vmatpush.msra.mxu0 %v572
      %1206 = vmatpush.msra.mxu0 %v571
      %1207 = vmatmul.f32.gmra.mxu0 %v1189
      %v1208 = vpop.f32.mrf.mxu0
      %v1209 = vadd.f32 1e-05, %v1208
      %1210 = vdwg.mxu0
      %v1211 = vrsqrt.pop %v1209
      %v1212 = vmul.f32 %v1211, %v1209
      %v1213 = vmul.f32 %v1212, %v1211
      %v1214 = vmul.f32 0.5, %v1213
      %v1215 = vsub.f32 1.5, %v1214
      %v1216 = vmul.f32 %v1211, %v1215
      %vm1217 = vweird.f32 %v1209
      %vm1218 = vweird.f32 %v1211
      %vm1219 = vmor %vm1217, %vm1218
      %v1220 = vsel %vm1219, %v1211, %v1216
      %v1221 = vperm.slane %v1220, 0
      %v1222 = vmul.f32 %v703, %v1221
      %v1223 = vmul.f32 %v704, %v1221
      %v1224 = vmul.f32 %v705, %v1221
      %v1225 = vmul.f32 %v706, %v1221
      %v1226 = vmul.f32 %v707, %v1221
      %v1227 = vmul.f32 %v708, %v1221
      %v1228 = vmul.f32 %v709, %v1221
      %v1229 = vmul.f32 %v710, %v1221
      %v1230 = vmul.f32 %v711, %v1221
      %v1231 = vmul.f32 %v712, %v1221
      %v1232 = vmul.f32 %v713, %v1221
      %v1233 = vmul.f32 %v714, %v1221
      %v1234 = vmul.f32 %v715, %v1221
      %v1235 = vmul.f32 %v716, %v1221
      %v1236 = vmul.f32 %v717, %v1221
      %v1237 = vmul.f32 %v718, %v1221
      %v1238 = vmul.f32 %v719, %v1221
      %v1239 = vmul.f32 %v720, %v1221
      %v1240 = vmul.f32 %v721, %v1221
      %v1241 = vmul.f32 %v722, %v1221
      %v1242 = vmul.f32 %v723, %v1221
      %v1243 = vmul.f32 %v724, %v1221
      %v1244 = vmul.f32 %v725, %v1221
      %v1245 = vmul.f32 %v726, %v1221
      %v1246 = vmul.f32 %v727, %v1221
      %v1247 = vmul.f32 %v728, %v1221
      %v1248 = vmul.f32 %v729, %v1221
      %v1249 = vmul.f32 %v730, %v1221
      %v1250 = vmul.f32 %v731, %v1221
      %v1251 = vmul.f32 %v732, %v1221
      %v1252 = vmul.f32 %v733, %v1221
      %v1253 = vmul.f32 %v734, %v1221
      %v1254 = vmul.f32 %v735, %v1221
      %v1255 = vmul.f32 %v736, %v1221
      %v1256 = vmul.f32 %v737, %v1221
      %v1257 = vmul.f32 %v738, %v1221
      %v1258 = vmul.f32 %v739, %v1221
      %v1259 = vmul.f32 %v740, %v1221
      %v1260 = vmul.f32 %v741, %v1221
      %v1261 = vmul.f32 %v742, %v1221
      %v1262 = vmul.f32 %v743, %v1221
      %v1263 = vmul.f32 %v744, %v1221
      %v1264 = vmul.f32 %v745, %v1221
      %v1265 = vmul.f32 %v746, %v1221
      %v1266 = vmul.f32 %v747, %v1221
      %v1267 = vmul.f32 %v748, %v1221
      %v1268 = vmul.f32 %v749, %v1221
      %v1269 = vmul.f32 %v750, %v1221
      %v1271 = vperm.slane %v575, 0
      %v1273 = vmul.f32 %v1222, %v1271
      %v1274 = vmul.f32 %v1223, %v1271
      %v1275 = vmul.f32 %v1224, %v1271
      %v1276 = vmul.f32 %v1225, %v1271
      %v1277 = vmul.f32 %v1226, %v1271
      %v1278 = vmul.f32 %v1227, %v1271
      %v1279 = vmul.f32 %v1228, %v1271
      %v1280 = vmul.f32 %v1229, %v1271
      %v1281 = vmul.f32 %v1230, %v1271
      %v1282 = vmul.f32 %v1231, %v1271
      %v1283 = vmul.f32 %v1232, %v1271
      %v1284 = vmul.f32 %v1233, %v1271
      %v1285 = vmul.f32 %v1234, %v1271
      %v1286 = vmul.f32 %v1235, %v1271
      %v1287 = vmul.f32 %v1236, %v1271
      %v1288 = vmul.f32 %v1237, %v1271
      %v1289 = vmul.f32 %v1238, %v1271
      %v1290 = vmul.f32 %v1239, %v1271
      %v1291 = vmul.f32 %v1240, %v1271
      %v1292 = vmul.f32 %v1241, %v1271
      %v1293 = vmul.f32 %v1242, %v1271
      %v1294 = vmul.f32 %v1243, %v1271
      %v1295 = vmul.f32 %v1244, %v1271
      %v1296 = vmul.f32 %v1245, %v1271
      %v1297 = vmul.f32 %v1246, %v1271
      %v1298 = vmul.f32 %v1247, %v1271
      %v1299 = vmul.f32 %v1248, %v1271
      %v1300 = vmul.f32 %v1249, %v1271
      %v1301 = vmul.f32 %v1250, %v1271
      %v1302 = vmul.f32 %v1251, %v1271
      %v1303 = vmul.f32 %v1252, %v1271
      %v1304 = vmul.f32 %v1253, %v1271
      %v1305 = vmul.f32 %v1254, %v1271
      %v1306 = vmul.f32 %v1255, %v1271
      %v1307 = vmul.f32 %v1256, %v1271
      %v1308 = vmul.f32 %v1257, %v1271
      %v1309 = vmul.f32 %v1258, %v1271
      %v1310 = vmul.f32 %v1259, %v1271
      %v1311 = vmul.f32 %v1260, %v1271
      %v1312 = vmul.f32 %v1261, %v1271
      %v1313 = vmul.f32 %v1262, %v1271
      %v1314 = vmul.f32 %v1263, %v1271
      %v1315 = vmul.f32 %v1264, %v1271
      %v1316 = vmul.f32 %v1265, %v1271
      %v1317 = vmul.f32 %v1266, %v1271
      %v1318 = vmul.f32 %v1267, %v1271
      %v1319 = vmul.f32 %v1268, %v1271
      %v1320 = vmul.f32 %v1269, %v1271
      %v1322 = vperm.slane %v576, 0
      %v1324 = vadd.f32 %v1273, %v1322
      %v1325 = vadd.f32 %v1274, %v1322
      %v1326 = vadd.f32 %v1275, %v1322
      %v1327 = vadd.f32 %v1276, %v1322
      %v1328 = vadd.f32 %v1277, %v1322
      %v1329 = vadd.f32 %v1278, %v1322
      %v1330 = vadd.f32 %v1279, %v1322
      %v1331 = vadd.f32 %v1280, %v1322
      %v1332 = vadd.f32 %v1281, %v1322
      %v1333 = vadd.f32 %v1282, %v1322
      %v1334 = vadd.f32 %v1283, %v1322
      %v1335 = vadd.f32 %v1284, %v1322
      %v1336 = vadd.f32 %v1285, %v1322
      %v1337 = vadd.f32 %v1286, %v1322
      %v1338 = vadd.f32 %v1287, %v1322
      %v1339 = vadd.f32 %v1288, %v1322
      %v1340 = vadd.f32 %v1289, %v1322
      %v1341 = vadd.f32 %v1290, %v1322
      %v1342 = vadd.f32 %v1291, %v1322
      %v1343 = vadd.f32 %v1292, %v1322
      %v1344 = vadd.f32 %v1293, %v1322
      %v1345 = vadd.f32 %v1294, %v1322
      %v1346 = vadd.f32 %v1295, %v1322
      %v1347 = vadd.f32 %v1296, %v1322
      %v1348 = vadd.f32 %v1297, %v1322
      %v1349 = vadd.f32 %v1298, %v1322
      %v1350 = vadd.f32 %v1299, %v1322
      %v1351 = vadd.f32 %v1300, %v1322
      %v1352 = vadd.f32 %v1301, %v1322
      %v1353 = vadd.f32 %v1302, %v1322
      %v1354 = vadd.f32 %v1303, %v1322
      %v1355 = vadd.f32 %v1304, %v1322
      %v1356 = vadd.f32 %v1305, %v1322
      %v1357 = vadd.f32 %v1306, %v1322
      %v1358 = vadd.f32 %v1307, %v1322
      %v1359 = vadd.f32 %v1308, %v1322
      %v1360 = vadd.f32 %v1309, %v1322
      %v1361 = vadd.f32 %v1310, %v1322
      %v1362 = vadd.f32 %v1311, %v1322
      %v1363 = vadd.f32 %v1312, %v1322
      %v1364 = vadd.f32 %v1313, %v1322
      %v1365 = vadd.f32 %v1314, %v1322
      %v1366 = vadd.f32 %v1315, %v1322
      %v1367 = vadd.f32 %v1316, %v1322
      %v1368 = vadd.f32 %v1317, %v1322
      %v1369 = vadd.f32 %v1318, %v1322
      %v1370 = vadd.f32 %v1319, %v1322
      %v1371 = vadd.f32 %v1320, %v1322
      %v1372 = vsub.f32 0.0, %v1324
      %v1373 = vsub.f32 0.0, %v1325
      %v1374 = vsub.f32 0.0, %v1326
      %v1375 = vsub.f32 0.0, %v1327
      %v1376 = vsub.f32 0.0, %v1328
      %v1377 = vsub.f32 0.0, %v1329
      %v1378 = vsub.f32 0.0, %v1330
      %v1379 = vsub.f32 0.0, %v1331
      %v1380 = vsub.f32 0.0, %v1332
      %v1381 = vsub.f32 0.0, %v1333
      %v1382 = vsub.f32 0.0, %v1334
      %v1383 = vsub.f32 0.0, %v1335
      %v1384 = vsub.f32 0.0, %v1336
      %v1385 = vsub.f32 0.0, %v1337
      %v1386 = vsub.f32 0.0, %v1338
      %v1387 = vsub.f32 0.0, %v1339
      %v1388 = vsub.f32 0.0, %v1340
      %v1389 = vsub.f32 0.0, %v1341
      %v1390 = vsub.f32 0.0, %v1342
      %v1391 = vsub.f32 0.0, %v1343
      %v1392 = vsub.f32 0.0, %v1344
      %v1393 = vsub.f32 0.0, %v1345
      %v1394 = vsub.f32 0.0, %v1346
      %v1395 = vsub.f32 0.0, %v1347
      %v1396 = vsub.f32 0.0, %v1348
      %v1397 = vsub.f32 0.0, %v1349
      %v1398 = vsub.f32 0.0, %v1350
      %v1399 = vsub.f32 0.0, %v1351
      %v1400 = vsub.f32 0.0, %v1352
      %v1401 = vsub.f32 0.0, %v1353
      %v1402 = vsub.f32 0.0, %v1354
      %v1403 = vsub.f32 0.0, %v1355
      %v1404 = vsub.f32 0.0, %v1356
      %v1405 = vsub.f32 0.0, %v1357
      %v1406 = vsub.f32 0.0, %v1358
      %v1407 = vsub.f32 0.0, %v1359
      %v1408 = vsub.f32 0.0, %v1360
      %v1409 = vsub.f32 0.0, %v1361
      %v1410 = vsub.f32 0.0, %v1362
      %v1411 = vsub.f32 0.0, %v1363
      %v1412 = vsub.f32 0.0, %v1364
      %v1413 = vsub.f32 0.0, %v1365
      %v1414 = vsub.f32 0.0, %v1366
      %v1415 = vsub.f32 0.0, %v1367
      %v1416 = vsub.f32 0.0, %v1368
      %v1417 = vsub.f32 0.0, %v1369
      %v1418 = vsub.f32 0.0, %v1370
      %v1419 = vsub.f32 0.0, %v1371
      %v1420 = vmul.f32 %v1372, 1.442695
      %v1421 = vpow.pop %v1420
      %v1422 = vmul.f32 %v1373, 1.442695
      %v1423 = vpow.pop %v1422
      %v1424 = vmul.f32 %v1374, 1.442695
      %v1425 = vpow.pop %v1424
      %v1426 = vmul.f32 %v1375, 1.442695
      %v1427 = vpow.pop %v1426
      %v1428 = vmul.f32 %v1376, 1.442695
      %v1429 = vpow.pop %v1428
      %v1430 = vmul.f32 %v1377, 1.442695
      %v1431 = vpow.pop %v1430
      %v1432 = vmul.f32 %v1378, 1.442695
      %v1433 = vpow.pop %v1432
      %v1434 = vmul.f32 %v1379, 1.442695
      %v1435 = vpow.pop %v1434
      %v1436 = vmul.f32 %v1380, 1.442695
      %v1437 = vpow.pop %v1436
      %v1438 = vmul.f32 %v1381, 1.442695
      %v1439 = vpow.pop %v1438
      %v1440 = vmul.f32 %v1382, 1.442695
      %v1441 = vpow.pop %v1440
      %v1442 = vmul.f32 %v1383, 1.442695
      %v1443 = vpow.pop %v1442
      %v1444 = vmul.f32 %v1384, 1.442695
      %v1445 = vpow.pop %v1444
      %v1446 = vmul.f32 %v1385, 1.442695
      %v1447 = vpow.pop %v1446
      %v1448 = vmul.f32 %v1386, 1.442695
      %v1449 = vpow.pop %v1448
      %v1450 = vmul.f32 %v1387, 1.442695
      %v1451 = vpow.pop %v1450
      %v1452 = vmul.f32 %v1388, 1.442695
      %v1453 = vpow.pop %v1452
      %v1454 = vmul.f32 %v1389, 1.442695
      %v1455 = vpow.pop %v1454
      %v1456 = vmul.f32 %v1390, 1.442695
      %v1457 = vpow.pop %v1456
      %v1458 = vmul.f32 %v1391, 1.442695
      %v1459 = vpow.pop %v1458
      %v1460 = vmul.f32 %v1392, 1.442695
      %v1461 = vpow.pop %v1460
      %v1462 = vmul.f32 %v1393, 1.442695
      %v1463 = vpow.pop %v1462
      %v1464 = vmul.f32 %v1394, 1.442695
      %v1465 = vpow.pop %v1464
      %v1466 = vmul.f32 %v1395, 1.442695
      %v1467 = vpow.pop %v1466
      %v1468 = vmul.f32 %v1396, 1.442695
      %v1469 = vpow.pop %v1468
      %v1470 = vmul.f32 %v1397, 1.442695
      %v1471 = vpow.pop %v1470
      %v1472 = vmul.f32 %v1398, 1.442695
      %v1473 = vpow.pop %v1472
      %v1474 = vmul.f32 %v1399, 1.442695
      %v1475 = vpow.pop %v1474
      %v1476 = vmul.f32 %v1400, 1.442695
      %v1477 = vpow.pop %v1476
      %v1478 = vmul.f32 %v1401, 1.442695
      %v1479 = vpow.pop %v1478
      %v1480 = vmul.f32 %v1402, 1.442695
      %v1481 = vpow.pop %v1480
      %v1482 = vmul.f32 %v1403, 1.442695
      %v1483 = vpow.pop %v1482
      %v1484 = vmul.f32 %v1404, 1.442695
      %v1485 = vpow.pop %v1484
      %v1486 = vmul.f32 %v1405, 1.442695
      %v1487 = vpow.pop %v1486
      %v1488 = vmul.f32 %v1406, 1.442695
      %v1489 = vpow.pop %v1488
      %v1490 = vmul.f32 %v1407, 1.442695
      %v1491 = vpow.pop %v1490
      %v1492 = vmul.f32 %v1408, 1.442695
      %v1493 = vpow.pop %v1492
      %v1494 = vmul.f32 %v1409, 1.442695
      %v1495 = vpow.pop %v1494
      %v1496 = vmul.f32 %v1410, 1.442695
      %v1497 = vpow.pop %v1496
      %v1498 = vmul.f32 %v1411, 1.442695
      %v1499 = vpow.pop %v1498
      %v1500 = vmul.f32 %v1412, 1.442695
      %v1501 = vpow.pop %v1500
      %v1502 = vmul.f32 %v1413, 1.442695
      %v1503 = vpow.pop %v1502
      %v1504 = vmul.f32 %v1414, 1.442695
      %v1505 = vpow.pop %v1504
      %v1506 = vmul.f32 %v1415, 1.442695
      %v1507 = vpow.pop %v1506
      %v1508 = vmul.f32 %v1416, 1.442695
      %v1509 = vpow.pop %v1508
      %v1510 = vmul.f32 %v1417, 1.442695
      %v1511 = vpow.pop %v1510
      %v1512 = vmul.f32 %v1418, 1.442695
      %v1513 = vpow.pop %v1512
      %v1514 = vmul.f32 %v1419, 1.442695
      %v1515 = vpow.pop %v1514
      %v1516 = vadd.f32 %v1421, 1.0
      %v1517 = vadd.f32 %v1423, 1.0
      %v1518 = vadd.f32 %v1425, 1.0
      %v1519 = vadd.f32 %v1427, 1.0
      %v1520 = vadd.f32 %v1429, 1.0
      %v1521 = vadd.f32 %v1431, 1.0
      %v1522 = vadd.f32 %v1433, 1.0
      %v1523 = vadd.f32 %v1435, 1.0
      %v1524 = vadd.f32 %v1437, 1.0
      %v1525 = vadd.f32 %v1439, 1.0
      %v1526 = vadd.f32 %v1441, 1.0
      %v1527 = vadd.f32 %v1443, 1.0
      %v1528 = vadd.f32 %v1445, 1.0
      %v1529 = vadd.f32 %v1447, 1.0
      %v1530 = vadd.f32 %v1449, 1.0
      %v1531 = vadd.f32 %v1451, 1.0
      %v1532 = vadd.f32 %v1453, 1.0
      %v1533 = vadd.f32 %v1455, 1.0
      %v1534 = vadd.f32 %v1457, 1.0
      %v1535 = vadd.f32 %v1459, 1.0
      %v1536 = vadd.f32 %v1461, 1.0
      %v1537 = vadd.f32 %v1463, 1.0
      %v1538 = vadd.f32 %v1465, 1.0
      %v1539 = vadd.f32 %v1467, 1.0
      %v1540 = vadd.f32 %v1469, 1.0
      %v1541 = vadd.f32 %v1471, 1.0
      %v1542 = vadd.f32 %v1473, 1.0
      %v1543 = vadd.f32 %v1475, 1.0
      %v1544 = vadd.f32 %v1477, 1.0
      %v1545 = vadd.f32 %v1479, 1.0
      %v1546 = vadd.f32 %v1481, 1.0
      %v1547 = vadd.f32 %v1483, 1.0
      %v1548 = vadd.f32 %v1485, 1.0
      %v1549 = vadd.f32 %v1487, 1.0
      %v1550 = vadd.f32 %v1489, 1.0
      %v1551 = vadd.f32 %v1491, 1.0
      %v1552 = vadd.f32 %v1493, 1.0
      %v1553 = vadd.f32 %v1495, 1.0
      %v1554 = vadd.f32 %v1497, 1.0
      %v1555 = vadd.f32 %v1499, 1.0
      %v1556 = vadd.f32 %v1501, 1.0
      %v1557 = vadd.f32 %v1503, 1.0
      %v1558 = vadd.f32 %v1505, 1.0
      %v1559 = vadd.f32 %v1507, 1.0
      %v1560 = vadd.f32 %v1509, 1.0
      %v1561 = vadd.f32 %v1511, 1.0
      %v1562 = vadd.f32 %v1513, 1.0
      %v1563 = vadd.f32 %v1515, 1.0
      %v1564 = vrcp.pop %v1516
      %v1565 = vrcp.pop %v1517
      %v1566 = vrcp.pop %v1518
      %v1567 = vrcp.pop %v1519
      %v1568 = vrcp.pop %v1520
      %v1569 = vrcp.pop %v1521
      %v1570 = vrcp.pop %v1522
      %v1571 = vrcp.pop %v1523
      %v1572 = vrcp.pop %v1524
      %v1573 = vrcp.pop %v1525
      %v1574 = vrcp.pop %v1526
      %v1575 = vrcp.pop %v1527
      %v1576 = vrcp.pop %v1528
      %v1577 = vrcp.pop %v1529
      %v1578 = vrcp.pop %v1530
      %v1579 = vrcp.pop %v1531
      %v1580 = vrcp.pop %v1532
      %v1581 = vrcp.pop %v1533
      %v1582 = vrcp.pop %v1534
      %v1583 = vrcp.pop %v1535
      %v1584 = vrcp.pop %v1536
      %v1585 = vrcp.pop %v1537
      %v1586 = vrcp.pop %v1538
      %v1587 = vrcp.pop %v1539
      %v1588 = vrcp.pop %v1540
      %v1589 = vrcp.pop %v1541
      %v1590 = vrcp.pop %v1542
      %v1591 = vrcp.pop %v1543
      %v1592 = vrcp.pop %v1544
      %v1593 = vrcp.pop %v1545
      %v1594 = vrcp.pop %v1546
      %v1595 = vrcp.pop %v1547
      %v1596 = vrcp.pop %v1548
      %v1597 = vrcp.pop %v1549
      %v1598 = vrcp.pop %v1550
      %v1599 = vrcp.pop %v1551
      %v1600 = vrcp.pop %v1552
      %v1601 = vrcp.pop %v1553
      %v1602 = vrcp.pop %v1554
      %v1603 = vrcp.pop %v1555
      %v1604 = vrcp.pop %v1556
      %v1605 = vrcp.pop %v1557
      %v1606 = vrcp.pop %v1558
      %v1607 = vrcp.pop %v1559
      %v1608 = vrcp.pop %v1560
      %v1609 = vrcp.pop %v1561
      %v1610 = vrcp.pop %v1562
      %v1611 = vrcp.pop %v1563
      %v1612 = vmul.f32 %v1324, %v1564
      %v1613 = vmul.f32 %v1325, %v1565
      %v1614 = vmul.f32 %v1326, %v1566
      %v1615 = vmul.f32 %v1327, %v1567
      %v1616 = vmul.f32 %v1328, %v1568
      %v1617 = vmul.f32 %v1329, %v1569
      %v1618 = vmul.f32 %v1330, %v1570
      %v1619 = vmul.f32 %v1331, %v1571
      %v1620 = vmul.f32 %v1332, %v1572
      %v1621 = vmul.f32 %v1333, %v1573
      %v1622 = vmul.f32 %v1334, %v1574
      %v1623 = vmul.f32 %v1335, %v1575
      %v1624 = vmul.f32 %v1336, %v1576
      %v1625 = vmul.f32 %v1337, %v1577
      %v1626 = vmul.f32 %v1338, %v1578
      %v1627 = vmul.f32 %v1339, %v1579
      %v1628 = vmul.f32 %v1340, %v1580
      %v1629 = vmul.f32 %v1341, %v1581
      %v1630 = vmul.f32 %v1342, %v1582
      %v1631 = vmul.f32 %v1343, %v1583
      %v1632 = vmul.f32 %v1344, %v1584
      %v1633 = vmul.f32 %v1345, %v1585
      %v1634 = vmul.f32 %v1346, %v1586
      %v1635 = vmul.f32 %v1347, %v1587
      %v1636 = vmul.f32 %v1348, %v1588
      %v1637 = vmul.f32 %v1349, %v1589
      %v1638 = vmul.f32 %v1350, %v1590
      %v1639 = vmul.f32 %v1351, %v1591
      %v1640 = vmul.f32 %v1352, %v1592
      %v1641 = vmul.f32 %v1353, %v1593
      %v1642 = vmul.f32 %v1354, %v1594
      %v1643 = vmul.f32 %v1355, %v1595
      %v1644 = vmul.f32 %v1356, %v1596
      %v1645 = vmul.f32 %v1357, %v1597
      %v1646 = vmul.f32 %v1358, %v1598
      %v1647 = vmul.f32 %v1359, %v1599
      %v1648 = vmul.f32 %v1360, %v1600
      %v1649 = vmul.f32 %v1361, %v1601
      %v1650 = vmul.f32 %v1362, %v1602
      %v1651 = vmul.f32 %v1363, %v1603
      %v1652 = vmul.f32 %v1364, %v1604
      %v1653 = vmul.f32 %v1365, %v1605
      %v1654 = vmul.f32 %v1366, %v1606
      %v1655 = vmul.f32 %v1367, %v1607
      %v1656 = vmul.f32 %v1368, %v1608
      %v1657 = vmul.f32 %v1369, %v1609
      %v1658 = vmul.f32 %v1370, %v1610
      %v1659 = vmul.f32 %v1371, %v1611
      %v1660 = vmul.f32 %v1612, %v754
      %v1661 = vmul.f32 %v1613, %v759
      %v1662 = vmul.f32 %v1614, %v764
      %v1663 = vmul.f32 %v1615, %v769
      %v1664 = vmul.f32 %v1616, %v774
      %v1665 = vmul.f32 %v1617, %v779
      %v1666 = vmul.f32 %v1618, %v784
      %v1667 = vmul.f32 %v1619, %v789
      %v1668 = vmul.f32 %v1620, %v794
      %v1669 = vmul.f32 %v1621, %v799
      %v1670 = vmul.f32 %v1622, %v804
      %v1671 = vmul.f32 %v1623, %v809
      %v1672 = vmul.f32 %v1624, %v814
      %v1673 = vmul.f32 %v1625, %v819
      %v1674 = vmul.f32 %v1626, %v824
      %v1675 = vmul.f32 %v1627, %v829
      %v1676 = vmul.f32 %v1628, %v834
      %v1677 = vmul.f32 %v1629, %v839
      %v1678 = vmul.f32 %v1630, %v844
      %v1679 = vmul.f32 %v1631, %v849
      %v1680 = vmul.f32 %v1632, %v854
      %v1681 = vmul.f32 %v1633, %v859
      %v1682 = vmul.f32 %v1634, %v864
      %v1683 = vmul.f32 %v1635, %v869
      %v1684 = vmul.f32 %v1636, %v874
      %v1685 = vmul.f32 %v1637, %v879
      %v1686 = vmul.f32 %v1638, %v884
      %v1687 = vmul.f32 %v1639, %v889
      %v1688 = vmul.f32 %v1640, %v894
      %v1689 = vmul.f32 %v1641, %v899
      %v1690 = vmul.f32 %v1642, %v904
      %v1691 = vmul.f32 %v1643, %v909
      %v1692 = vmul.f32 %v1644, %v914
      %v1693 = vmul.f32 %v1645, %v919
      %v1694 = vmul.f32 %v1646, %v924
      %v1695 = vmul.f32 %v1647, %v929
      %v1696 = vmul.f32 %v1648, %v934
      %v1697 = vmul.f32 %v1649, %v939
      %v1698 = vmul.f32 %v1650, %v944
      %v1699 = vmul.f32 %v1651, %v949
      %v1700 = vmul.f32 %v1652, %v954
      %v1701 = vmul.f32 %v1653, %v959
      %v1702 = vmul.f32 %v1654, %v964
      %v1703 = vmul.f32 %v1655, %v969
      %v1704 = vmul.f32 %v1656, %v974
      %v1705 = vmul.f32 %v1657, %v979
      %v1706 = vmul.f32 %v1658, %v984
      %v1707 = vmul.f32 %v1659, %v989
      %v1708 = vpack.c.bf16 %v1660, %v1660
      %v1709 = vpack.c.bf16 %v1661, %v1661
      %v1710 = vpack.c.bf16 %v1662, %v1662
      %v1711 = vpack.c.bf16 %v1663, %v1663
      %v1712 = vpack.c.bf16 %v1664, %v1664
      %v1713 = vpack.c.bf16 %v1665, %v1665
      %v1714 = vpack.c.bf16 %v1666, %v1666
      %v1715 = vpack.c.bf16 %v1667, %v1667
      %v1716 = vpack.c.bf16 %v1668, %v1668
      %v1717 = vpack.c.bf16 %v1669, %v1669
      %v1718 = vpack.c.bf16 %v1670, %v1670
      %v1719 = vpack.c.bf16 %v1671, %v1671
      %v1720 = vpack.c.bf16 %v1672, %v1672
      %v1721 = vpack.c.bf16 %v1673, %v1673
      %v1722 = vpack.c.bf16 %v1674, %v1674
      %v1723 = vpack.c.bf16 %v1675, %v1675
      %v1724 = vpack.c.bf16 %v1676, %v1676
      %v1725 = vpack.c.bf16 %v1677, %v1677
      %v1726 = vpack.c.bf16 %v1678, %v1678
      %v1727 = vpack.c.bf16 %v1679, %v1679
      %v1728 = vpack.c.bf16 %v1680, %v1680
      %v1729 = vpack.c.bf16 %v1681, %v1681
      %v1730 = vpack.c.bf16 %v1682, %v1682
      %v1731 = vpack.c.bf16 %v1683, %v1683
      %v1732 = vpack.c.bf16 %v1684, %v1684
      %v1733 = vpack.c.bf16 %v1685, %v1685
      %v1734 = vpack.c.bf16 %v1686, %v1686
      %v1735 = vpack.c.bf16 %v1687, %v1687
      %v1736 = vpack.c.bf16 %v1688, %v1688
      %v1737 = vpack.c.bf16 %v1689, %v1689
      %v1738 = vpack.c.bf16 %v1690, %v1690
      %v1739 = vpack.c.bf16 %v1691, %v1691
      %v1740 = vpack.c.bf16 %v1692, %v1692
      %v1741 = vpack.c.bf16 %v1693, %v1693
      %v1742 = vpack.c.bf16 %v1694, %v1694
      %v1743 = vpack.c.bf16 %v1695, %v1695
      %v1744 = vpack.c.bf16 %v1696, %v1696
      %v1745 = vpack.c.bf16 %v1697, %v1697
      %v1746 = vpack.c.bf16 %v1698, %v1698
      %v1747 = vpack.c.bf16 %v1699, %v1699
      %v1748 = vpack.c.bf16 %v1700, %v1700
      %v1749 = vpack.c.bf16 %v1701, %v1701
      %v1750 = vpack.c.bf16 %v1702, %v1702
      %v1751 = vpack.c.bf16 %v1703, %v1703
      %v1752 = vpack.c.bf16 %v1704, %v1704
      %v1753 = vpack.c.bf16 %v1705, %v1705
      %v1754 = vpack.c.bf16 %v1706, %v1706
      %v1755 = vpack.c.bf16 %v1707, %v1707
      %vm1756 = vsmask.f32 4368
      %vm1757 = vmor %vm557, %vm1756
      %v1759 = vshrl.u32 %v1708, 16
      %v1761 = vrot.slane %v1759, 7
      %v1762 = vshll.u32 %v1708, 16
      %v1764 = vor.u32 %v1761, %v1762
      %v1765 = vrot.slane %v1761, 4
      %v1767 = vshrl.u32 %v1709, 16
      %v1769 = vrot.slane %v1767, 7
      %v1770 = vshll.u32 %v1709, 16
      %v1772 = vor.u32 %v1769, %v1770
      %v1773 = vsel %vm1757, %v1765, %v1772
      %v1774 = vrot.slane %v1769, 4
      %v1776 = vshrl.u32 %v1710, 16
      %v1778 = vrot.slane %v1776, 7
      %v1779 = vshll.u32 %v1710, 16
      %v1781 = vor.u32 %v1778, %v1779
      %v1782 = vsel %vm1757, %v1774, %v1781
      %v1783 = vrot.slane %v1778, 4
      %v1785 = vshrl.u32 %v1711, 16
      %v1787 = vrot.slane %v1785, 7
      %v1788 = vshll.u32 %v1711, 16
      %v1790 = vor.u32 %v1787, %v1788
      %v1791 = vsel %vm1757, %v1783, %v1790
      %v1792 = vrot.slane %v1787, 4
      %v1794 = vshrl.u32 %v1712, 16
      %v1796 = vrot.slane %v1794, 7
      %v1797 = vshll.u32 %v1712, 16
      %v1799 = vor.u32 %v1796, %v1797
      %v1800 = vsel %vm1757, %v1792, %v1799
      %v1801 = vrot.slane %v1796, 4
      %v1803 = vshrl.u32 %v1713, 16
      %v1805 = vrot.slane %v1803, 7
      %v1806 = vshll.u32 %v1713, 16
      %v1808 = vor.u32 %v1805, %v1806
      %v1809 = vsel %vm1757, %v1801, %v1808
      %v1810 = vrot.slane %v1805, 4
      %v1812 = vshrl.u32 %v1714, 16
      %v1814 = vrot.slane %v1812, 7
      %v1815 = vshll.u32 %v1714, 16
      %v1817 = vor.u32 %v1814, %v1815
      %v1818 = vsel %vm1757, %v1810, %v1817
      %v1819 = vrot.slane %v1814, 4
      %v1821 = vshrl.u32 %v1715, 16
      %v1823 = vrot.slane %v1821, 7
      %v1824 = vshll.u32 %v1715, 16
      %v1826 = vor.u32 %v1823, %v1824
      %v1827 = vsel %vm1757, %v1819, %v1826
      %v1828 = vrot.slane %v1823, 4
      %v1830 = vshrl.u32 %v1716, 16
      %v1832 = vrot.slane %v1830, 7
      %v1833 = vshll.u32 %v1716, 16
      %v1835 = vor.u32 %v1832, %v1833
      %v1836 = vsel %vm1757, %v1828, %v1835
      %v1837 = vrot.slane %v1832, 4
      %v1839 = vshrl.u32 %v1717, 16
      %v1841 = vrot.slane %v1839, 7
      %v1842 = vshll.u32 %v1717, 16
      %v1844 = vor.u32 %v1841, %v1842
      %v1845 = vsel %vm1757, %v1837, %v1844
      %v1846 = vrot.slane %v1841, 4
      %v1848 = vshrl.u32 %v1718, 16
      %v1850 = vrot.slane %v1848, 7
      %v1851 = vshll.u32 %v1718, 16
      %v1853 = vor.u32 %v1850, %v1851
      %v1854 = vsel %vm1757, %v1846, %v1853
      %v1855 = vrot.slane %v1850, 4
      %v1857 = vshrl.u32 %v1719, 16
      %v1859 = vrot.slane %v1857, 7
      %v1860 = vshll.u32 %v1719, 16
      %v1862 = vor.u32 %v1859, %v1860
      %v1863 = vsel %vm1757, %v1855, %v1862
      %v1864 = vrot.slane %v1859, 4
      %v1866 = vshrl.u32 %v1720, 16
      %v1868 = vrot.slane %v1866, 7
      %v1869 = vshll.u32 %v1720, 16
      %v1871 = vor.u32 %v1868, %v1869
      %v1872 = vsel %vm1757, %v1864, %v1871
      %v1873 = vrot.slane %v1868, 4
      %v1875 = vshrl.u32 %v1721, 16
      %v1877 = vrot.slane %v1875, 7
      %v1878 = vshll.u32 %v1721, 16
      %v1880 = vor.u32 %v1877, %v1878
      %v1881 = vsel %vm1757, %v1873, %v1880
      %v1882 = vrot.slane %v1877, 4
      %v1884 = vshrl.u32 %v1722, 16
      %v1886 = vrot.slane %v1884, 7
      %v1887 = vshll.u32 %v1722, 16
      %v1889 = vor.u32 %v1886, %v1887
      %v1890 = vsel %vm1757, %v1882, %v1889
      %v1891 = vrot.slane %v1886, 4
      %v1893 = vshrl.u32 %v1723, 16
      %v1895 = vrot.slane %v1893, 7
      %v1896 = vshll.u32 %v1723, 16
      %v1898 = vor.u32 %v1895, %v1896
      %v1899 = vsel %vm1757, %v1891, %v1898
      %v1900 = vrot.slane %v1895, 4
      %v1902 = vshrl.u32 %v1724, 16
      %v1904 = vrot.slane %v1902, 7
      %v1905 = vshll.u32 %v1724, 16
      %v1907 = vor.u32 %v1904, %v1905
      %v1908 = vsel %vm1757, %v1900, %v1907
      %v1909 = vrot.slane %v1904, 4
      %v1911 = vshrl.u32 %v1725, 16
      %v1913 = vrot.slane %v1911, 7
      %v1914 = vshll.u32 %v1725, 16
      %v1916 = vor.u32 %v1913, %v1914
      %v1917 = vsel %vm1757, %v1909, %v1916
      %v1918 = vrot.slane %v1913, 4
      %v1920 = vshrl.u32 %v1726, 16
      %v1922 = vrot.slane %v1920, 7
      %v1923 = vshll.u32 %v1726, 16
      %v1925 = vor.u32 %v1922, %v1923
      %v1926 = vsel %vm1757, %v1918, %v1925
      %v1927 = vrot.slane %v1922, 4
      %v1929 = vshrl.u32 %v1727, 16
      %v1931 = vrot.slane %v1929, 7
      %v1932 = vshll.u32 %v1727, 16
      %v1934 = vor.u32 %v1931, %v1932
      %v1935 = vsel %vm1757, %v1927, %v1934
      %v1936 = vrot.slane %v1931, 4
      %v1938 = vshrl.u32 %v1728, 16
      %v1940 = vrot.slane %v1938, 7
      %v1941 = vshll.u32 %v1728, 16
      %v1943 = vor.u32 %v1940, %v1941
      %v1944 = vsel %vm1757, %v1936, %v1943
      %v1945 = vrot.slane %v1940, 4
      %v1947 = vshrl.u32 %v1729, 16
      %v1949 = vrot.slane %v1947, 7
      %v1950 = vshll.u32 %v1729, 16
      %v1952 = vor.u32 %v1949, %v1950
      %v1953 = vsel %vm1757, %v1945, %v1952
      %v1954 = vrot.slane %v1949, 4
      %v1956 = vshrl.u32 %v1730, 16
      %v1958 = vrot.slane %v1956, 7
      %v1959 = vshll.u32 %v1730, 16
      %v1961 = vor.u32 %v1958, %v1959
      %v1962 = vsel %vm1757, %v1954, %v1961
      %v1963 = vrot.slane %v1958, 4
      %v1965 = vshrl.u32 %v1731, 16
      %v1967 = vrot.slane %v1965, 7
      %v1968 = vshll.u32 %v1731, 16
      %v1970 = vor.u32 %v1967, %v1968
      %v1971 = vsel %vm1757, %v1963, %v1970
      %v1972 = vrot.slane %v1967, 4
      %v1974 = vshrl.u32 %v1732, 16
      %v1976 = vrot.slane %v1974, 7
      %v1977 = vshll.u32 %v1732, 16
      %v1979 = vor.u32 %v1976, %v1977
      %v1980 = vsel %vm1757, %v1972, %v1979
      %v1981 = vrot.slane %v1976, 4
      %v1983 = vshrl.u32 %v1733, 16
      %v1985 = vrot.slane %v1983, 7
      %v1986 = vshll.u32 %v1733, 16
      %v1988 = vor.u32 %v1985, %v1986
      %v1989 = vsel %vm1757, %v1981, %v1988
      %v1990 = vrot.slane %v1985, 4
      %v1992 = vshrl.u32 %v1734, 16
      %v1994 = vrot.slane %v1992, 7
      %v1995 = vshll.u32 %v1734, 16
      %v1997 = vor.u32 %v1994, %v1995
      %v1998 = vsel %vm1757, %v1990, %v1997
      %v1999 = vrot.slane %v1994, 4
      %v2001 = vshrl.u32 %v1735, 16
      %v2003 = vrot.slane %v2001, 7
      %v2004 = vshll.u32 %v1735, 16
      %v2006 = vor.u32 %v2003, %v2004
      %v2007 = vsel %vm1757, %v1999, %v2006
      %v2008 = vrot.slane %v2003, 4
      %v2010 = vshrl.u32 %v1736, 16
      %v2012 = vrot.slane %v2010, 7
      %v2013 = vshll.u32 %v1736, 16
      %v2015 = vor.u32 %v2012, %v2013
      %v2016 = vsel %vm1757, %v2008, %v2015
      %v2017 = vrot.slane %v2012, 4
      %v2019 = vshrl.u32 %v1737, 16
      %v2021 = vrot.slane %v2019, 7
      %v2022 = vshll.u32 %v1737, 16
      %v2024 = vor.u32 %v2021, %v2022
      %v2025 = vsel %vm1757, %v2017, %v2024
      %v2026 = vrot.slane %v2021, 4
      %v2028 = vshrl.u32 %v1738, 16
      %v2030 = vrot.slane %v2028, 7
      %v2031 = vshll.u32 %v1738, 16
      %v2033 = vor.u32 %v2030, %v2031
      %v2034 = vsel %vm1757, %v2026, %v2033
      %v2035 = vrot.slane %v2030, 4
      %v2037 = vshrl.u32 %v1739, 16
      %v2039 = vrot.slane %v2037, 7
      %v2040 = vshll.u32 %v1739, 16
      %v2042 = vor.u32 %v2039, %v2040
      %v2043 = vsel %vm1757, %v2035, %v2042
      %v2044 = vrot.slane %v2039, 4
      %v2046 = vshrl.u32 %v1740, 16
      %v2048 = vrot.slane %v2046, 7
      %v2049 = vshll.u32 %v1740, 16
      %v2051 = vor.u32 %v2048, %v2049
      %v2052 = vsel %vm1757, %v2044, %v2051
      %v2053 = vrot.slane %v2048, 4
      %v2055 = vshrl.u32 %v1741, 16
      %v2057 = vrot.slane %v2055, 7
      %v2058 = vshll.u32 %v1741, 16
      %v2060 = vor.u32 %v2057, %v2058
      %v2061 = vsel %vm1757, %v2053, %v2060
      %v2062 = vrot.slane %v2057, 4
      %v2064 = vshrl.u32 %v1742, 16
      %v2066 = vrot.slane %v2064, 7
      %v2067 = vshll.u32 %v1742, 16
      %v2069 = vor.u32 %v2066, %v2067
      %v2070 = vsel %vm1757, %v2062, %v2069
      %v2071 = vrot.slane %v2066, 4
      %v2073 = vshrl.u32 %v1743, 16
      %v2075 = vrot.slane %v2073, 7
      %v2076 = vshll.u32 %v1743, 16
      %v2078 = vor.u32 %v2075, %v2076
      %v2079 = vsel %vm1757, %v2071, %v2078
      %v2080 = vrot.slane %v2075, 4
      %v2082 = vshrl.u32 %v1744, 16
      %v2084 = vrot.slane %v2082, 7
      %v2085 = vshll.u32 %v1744, 16
      %v2087 = vor.u32 %v2084, %v2085
      %v2088 = vsel %vm1757, %v2080, %v2087
      %v2089 = vrot.slane %v2084, 4
      %v2091 = vshrl.u32 %v1745, 16
      %v2093 = vrot.slane %v2091, 7
      %v2094 = vshll.u32 %v1745, 16
      %v2096 = vor.u32 %v2093, %v2094
      %v2097 = vsel %vm1757, %v2089, %v2096
      %v2098 = vrot.slane %v2093, 4
      %v2100 = vshrl.u32 %v1746, 16
      %v2102 = vrot.slane %v2100, 7
      %v2103 = vshll.u32 %v1746, 16
      %v2105 = vor.u32 %v2102, %v2103
      %v2106 = vsel %vm1757, %v2098, %v2105
      %v2107 = vrot.slane %v2102, 4
      %v2109 = vshrl.u32 %v1747, 16
      %v2111 = vrot.slane %v2109, 7
      %v2112 = vshll.u32 %v1747, 16
      %v2114 = vor.u32 %v2111, %v2112
      %v2115 = vsel %vm1757, %v2107, %v2114
      %v2116 = vrot.slane %v2111, 4
      %v2118 = vshrl.u32 %v1748, 16
      %v2120 = vrot.slane %v2118, 7
      %v2121 = vshll.u32 %v1748, 16
      %v2123 = vor.u32 %v2120, %v2121
      %v2124 = vsel %vm1757, %v2116, %v2123
      %v2125 = vrot.slane %v2120, 4
      %v2127 = vshrl.u32 %v1749, 16
      %v2129 = vrot.slane %v2127, 7
      %v2130 = vshll.u32 %v1749, 16
      %v2132 = vor.u32 %v2129, %v2130
      %v2133 = vsel %vm1757, %v2125, %v2132
      %v2134 = vrot.slane %v2129, 4
      %v2136 = vshrl.u32 %v1750, 16
      %v2138 = vrot.slane %v2136, 7
      %v2139 = vshll.u32 %v1750, 16
      %v2141 = vor.u32 %v2138, %v2139
      %v2142 = vsel %vm1757, %v2134, %v2141
      %v2143 = vrot.slane %v2138, 4
      %v2145 = vshrl.u32 %v1751, 16
      %v2147 = vrot.slane %v2145, 7
      %v2148 = vshll.u32 %v1751, 16
      %v2150 = vor.u32 %v2147, %v2148
      %v2151 = vsel %vm1757, %v2143, %v2150
      %v2152 = vrot.slane %v2147, 4
      %v2154 = vshrl.u32 %v1752, 16
      %v2156 = vrot.slane %v2154, 7
      %v2157 = vshll.u32 %v1752, 16
      %v2159 = vor.u32 %v2156, %v2157
      %v2160 = vsel %vm1757, %v2152, %v2159
      %v2161 = vrot.slane %v2156, 4
      %v2163 = vshrl.u32 %v1753, 16
      %v2165 = vrot.slane %v2163, 7
      %v2166 = vshll.u32 %v1753, 16
      %v2168 = vor.u32 %v2165, %v2166
      %v2169 = vsel %vm1757, %v2161, %v2168
      %v2170 = vrot.slane %v2165, 4
      %v2172 = vshrl.u32 %v1754, 16
      %v2174 = vrot.slane %v2172, 7
      %v2175 = vshll.u32 %v1754, 16
      %v2177 = vor.u32 %v2174, %v2175
      %v2178 = vsel %vm1757, %v2170, %v2177
      %v2179 = vrot.slane %v2174, 4
      %v2181 = vshrl.u32 %v1755, 16
      %v2183 = vrot.slane %v2181, 7
      %v2184 = vshll.u32 %v1755, 16
      %v2186 = vor.u32 %v2183, %v2184
      %v2187 = vsel %vm1757, %v2179, %v2186
      %v2188 = vrot.slane %v2183, 4
      %v2238 = vld [vmem:[#allocation2 + $0xc] sm:$0xf]
      %v2239 = vsel %vm564, %v1764, %v2238
      %2240 = vst [vmem:[#allocation2 + $0xc] sm:$0xf] %v2239
      %2241 = vst.msk [vmem:[#allocation2 + $0x10] sm:$0xf] %vm552, %v1773
      %2242 = vst.msk [vmem:[#allocation2 + $0x14] sm:$0xf] %vm552, %v1782
      %2243 = vst.msk [vmem:[#allocation2 + $0x18] sm:$0xf] %vm552, %v1791
      %2244 = vst.msk [vmem:[#allocation2 + $0x1c] sm:$0xf] %vm552, %v1800
      %2245 = vst.msk [vmem:[#allocation2 + $0x20] sm:$0xf] %vm552, %v1809
      %2246 = vst.msk [vmem:[#allocation2 + $0x24] sm:$0xf] %vm552, %v1818
      %2247 = vst.msk [vmem:[#allocation2 + $0x28] sm:$0xf] %vm552, %v1827
      %2248 = vst.msk [vmem:[#allocation2 + $0x2c] sm:$0xf] %vm552, %v1836
      %2249 = vst.msk [vmem:[#allocation2 + $0x30] sm:$0xf] %vm552, %v1845
      %2250 = vst.msk [vmem:[#allocation2 + $0x34] sm:$0xf] %vm552, %v1854
      %2251 = vst.msk [vmem:[#allocation2 + $0x38] sm:$0xf] %vm552, %v1863
      %2252 = vst.msk [vmem:[#allocation2 + $0x3c] sm:$0xf] %vm552, %v1872
      %2253 = vst.msk [vmem:[#allocation2 + $0x40] sm:$0xf] %vm552, %v1881
      %2254 = vst.msk [vmem:[#allocation2 + $0x44] sm:$0xf] %vm552, %v1890
      %2255 = vst.msk [vmem:[#allocation2 + $0x48] sm:$0xf] %vm552, %v1899
      %2256 = vst.msk [vmem:[#allocation2 + $0x4c] sm:$0xf] %vm552, %v1908
      %2257 = vst.msk [vmem:[#allocation2 + $0x50] sm:$0xf] %vm552, %v1917
      %2258 = vst.msk [vmem:[#allocation2 + $0x54] sm:$0xf] %vm552, %v1926
      %2259 = vst.msk [vmem:[#allocation2 + $0x58] sm:$0xf] %vm552, %v1935
      %2260 = vst.msk [vmem:[#allocation2 + $0x5c] sm:$0xf] %vm552, %v1944
      %2261 = vst.msk [vmem:[#allocation2 + $0x60] sm:$0xf] %vm552, %v1953
      %2262 = vst.msk [vmem:[#allocation2 + $0x64] sm:$0xf] %vm552, %v1962
      %2263 = vst.msk [vmem:[#allocation2 + $0x68] sm:$0xf] %vm552, %v1971
      %2264 = vst.msk [vmem:[#allocation2 + $0x6c] sm:$0xf] %vm552, %v1980
      %2265 = vst.msk [vmem:[#allocation2 + $0x70] sm:$0xf] %vm552, %v1989
      %2266 = vst.msk [vmem:[#allocation2 + $0x74] sm:$0xf] %vm552, %v1998
      %2267 = vst.msk [vmem:[#allocation2 + $0x78] sm:$0xf] %vm552, %v2007
      %2268 = vst.msk [vmem:[#allocation2 + $0x7c] sm:$0xf] %vm552, %v2016
      %2269 = vst.msk [vmem:[#allocation2 + $0x80] sm:$0xf] %vm552, %v2025
      %2270 = vst.msk [vmem:[#allocation2 + $0x84] sm:$0xf] %vm552, %v2034
      %2271 = vst.msk [vmem:[#allocation2 + $0x88] sm:$0xf] %vm552, %v2043
      %2272 = vst.msk [vmem:[#allocation2 + $0x8c] sm:$0xf] %vm552, %v2052
      %2273 = vst.msk [vmem:[#allocation2 + $0x90] sm:$0xf] %vm552, %v2061
      %2274 = vst.msk [vmem:[#allocation2 + $0x94] sm:$0xf] %vm552, %v2070
      %2275 = vst.msk [vmem:[#allocation2 + $0x98] sm:$0xf] %vm552, %v2079
      %2276 = vst.msk [vmem:[#allocation2 + $0x9c] sm:$0xf] %vm552, %v2088
      %2277 = vst.msk [vmem:[#allocation2 + $0xa0] sm:$0xf] %vm552, %v2097
      %2278 = vst.msk [vmem:[#allocation2 + $0xa4] sm:$0xf] %vm552, %v2106
      %2279 = vst.msk [vmem:[#allocation2 + $0xa8] sm:$0xf] %vm552, %v2115
      %2280 = vst.msk [vmem:[#allocation2 + $0xac] sm:$0xf] %vm552, %v2124
      %2281 = vst.msk [vmem:[#allocation2 + $0xb0] sm:$0xf] %vm552, %v2133
      %2282 = vst.msk [vmem:[#allocation2 + $0xb4] sm:$0xf] %vm552, %v2142
      %2283 = vst.msk [vmem:[#allocation2 + $0xb8] sm:$0xf] %vm552, %v2151
      %2284 = vst.msk [vmem:[#allocation2 + $0xbc] sm:$0xf] %vm552, %v2160
      %2285 = vst.msk [vmem:[#allocation2 + $0xc0] sm:$0xf] %vm552, %v2169
      %2286 = vst.msk [vmem:[#allocation2 + $0xc4] sm:$0xf] %vm552, %v2178
      %2287 = vst.msk [vmem:[#allocation2 + $0xc8] sm:$0xf] %vm552, %v2187
      %v2288 = vld [vmem:[#allocation2 + $0xcc] sm:$0x1]
      %v2289 = vsel %vm558, %v2188, %v2288
      %2290 = vst [vmem:[#allocation2 + $0xcc] sm:$0x1] %v2289
      %v2291 = vld [vmem:[#allocation2] sm:$0xf]
      %v2292 = vld [vmem:[#allocation2 + $0x4] sm:$0xf]
      %v2293 = vld [vmem:[#allocation2 + $0x8] sm:$0xf]
      %v2294 = vld [vmem:[#allocation2 + $0xc] sm:$0xf]
      %v2295 = vld [vmem:[#allocation2 + $0x10] sm:$0xf]
      %v2296 = vld [vmem:[#allocation2 + $0x14] sm:$0xf]
      %v2297 = vld [vmem:[#allocation2 + $0x18] sm:$0xf]
      %v2298 = vld [vmem:[#allocation2 + $0x1c] sm:$0xf]
      %v2299 = vld [vmem:[#allocation2 + $0x20] sm:$0xf]
      %v2300 = vld [vmem:[#allocation2 + $0x24] sm:$0xf]
      %v2301 = vld [vmem:[#allocation2 + $0x28] sm:$0xf]
      %v2302 = vld [vmem:[#allocation2 + $0x2c] sm:$0xf]
      %v2303 = vld [vmem:[#allocation2 + $0x30] sm:$0xf]
      %v2304 = vld [vmem:[#allocation2 + $0x34] sm:$0xf]
      %v2305 = vld [vmem:[#allocation2 + $0x38] sm:$0xf]
      %v2306 = vld [vmem:[#allocation2 + $0x3c] sm:$0xf]
      %v2307 = vld [vmem:[#allocation2 + $0x40] sm:$0xf]
      %v2308 = vld [vmem:[#allocation2 + $0x44] sm:$0xf]
      %v2309 = vld [vmem:[#allocation2 + $0x48] sm:$0xf]
      %v2310 = vld [vmem:[#allocation2 + $0x4c] sm:$0xf]
      %v2311 = vld [vmem:[#allocation2 + $0x50] sm:$0xf]
      %v2312 = vld [vmem:[#allocation2 + $0x54] sm:$0xf]
      %v2313 = vld [vmem:[#allocation2 + $0x58] sm:$0xf]
      %v2314 = vld [vmem:[#allocation2 + $0x5c] sm:$0xf]
      %v2315 = vld [vmem:[#allocation2 + $0x60] sm:$0xf]
      %v2316 = vld [vmem:[#allocation2 + $0x64] sm:$0xf]
      %v2317 = vld [vmem:[#allocation2 + $0x68] sm:$0xf]
      %v2318 = vld [vmem:[#allocation2 + $0x6c] sm:$0xf]
      %v2319 = vld [vmem:[#allocation2 + $0x70] sm:$0xf]
      %v2320 = vld [vmem:[#allocation2 + $0x74] sm:$0xf]
      %v2321 = vld [vmem:[#allocation2 + $0x78] sm:$0xf]
      %v2322 = vld [vmem:[#allocation2 + $0x7c] sm:$0xf]
      %v2323 = vld [vmem:[#allocation2 + $0x80] sm:$0xf]
      %v2324 = vld [vmem:[#allocation2 + $0x84] sm:$0xf]
      %v2325 = vld [vmem:[#allocation2 + $0x88] sm:$0xf]
      %v2326 = vld [vmem:[#allocation2 + $0x8c] sm:$0xf]
      %v2327 = vld [vmem:[#allocation2 + $0x90] sm:$0xf]
      %v2328 = vld [vmem:[#allocation2 + $0x94] sm:$0xf]
      %v2329 = vld [vmem:[#allocation2 + $0x98] sm:$0xf]
      %v2330 = vld [vmem:[#allocation2 + $0x9c] sm:$0xf]
      %v2331 = vld [vmem:[#allocation2 + $0xa0] sm:$0xf]
      %v2332 = vld [vmem:[#allocation2 + $0xa4] sm:$0xf]
      %v2333 = vld [vmem:[#allocation2 + $0xa8] sm:$0xf]
      %v2334 = vld [vmem:[#allocation2 + $0xac] sm:$0xf]
      %v2335 = vld [vmem:[#allocation2 + $0xb0] sm:$0xf]
      %v2336 = vld [vmem:[#allocation2 + $0xb4] sm:$0xf]
      %v2337 = vld [vmem:[#allocation2 + $0xb8] sm:$0xf]
      %v2338 = vld [vmem:[#allocation2 + $0xbc] sm:$0xf]
      %v2339 = vld [vmem:[%s6] sm:$0xf]
      %v2340 = vld [vmem:[%s6 + $0x4] sm:$0xf]
      %v2341 = vld [vmem:[%s6 + $0x8] sm:$0xf]
      %v2342 = vld [vmem:[%s6 + $0xc] sm:$0xf]
      %v2343 = vld [vmem:[#allocation2 + $0xc0] sm:$0x1]
      %s2344 = scalar_lea.vmem %s6, 16
      %v2345 = vld [vmem:[%s2344] sm:$0xf]
      %v2346 = vld [vmem:[%s2344 + $0x4] sm:$0xf]
      %v2347 = vld [vmem:[%s2344 + $0x8] sm:$0xf]
      %v2348 = vld [vmem:[%s2344 + $0xc] sm:$0xf]
      %v2398 = vunpack.c.l.b16 %v2291
      %v2399 = vunpack.c.l.b16 %v2292
      %v2400 = vunpack.c.l.b16 %v2293
      %v2401 = vunpack.c.l.b16 %v2294
      %v2402 = vunpack.c.l.b16 %v2295
      %v2403 = vunpack.c.l.b16 %v2296
      %v2404 = vunpack.c.l.b16 %v2297
      %v2405 = vunpack.c.l.b16 %v2298
      %v2406 = vunpack.c.l.b16 %v2299
      %v2407 = vunpack.c.l.b16 %v2300
      %v2408 = vunpack.c.l.b16 %v2301
      %v2409 = vunpack.c.l.b16 %v2302
      %v2410 = vunpack.c.l.b16 %v2303
      %v2411 = vunpack.c.l.b16 %v2304
      %v2412 = vunpack.c.l.b16 %v2305
      %v2413 = vunpack.c.l.b16 %v2306
      %v2414 = vunpack.c.l.b16 %v2307
      %v2415 = vunpack.c.l.b16 %v2308
      %v2416 = vunpack.c.l.b16 %v2309
      %v2417 = vunpack.c.l.b16 %v2310
      %v2418 = vunpack.c.l.b16 %v2311
      %v2419 = vunpack.c.l.b16 %v2312
      %v2420 = vunpack.c.l.b16 %v2313
      %v2421 = vunpack.c.l.b16 %v2314
      %v2422 = vunpack.c.l.b16 %v2315
      %v2423 = vunpack.c.l.b16 %v2316
      %v2424 = vunpack.c.l.b16 %v2317
      %v2425 = vunpack.c.l.b16 %v2318
      %v2426 = vunpack.c.l.b16 %v2319
      %v2427 = vunpack.c.l.b16 %v2320
      %v2428 = vunpack.c.l.b16 %v2321
      %v2429 = vunpack.c.l.b16 %v2322
      %v2430 = vunpack.c.l.b16 %v2323
      %v2431 = vunpack.c.l.b16 %v2324
      %v2432 = vunpack.c.l.b16 %v2325
      %v2433 = vunpack.c.l.b16 %v2326
      %v2434 = vunpack.c.l.b16 %v2327
      %v2435 = vunpack.c.l.b16 %v2328
      %v2436 = vunpack.c.l.b16 %v2329
      %v2437 = vunpack.c.l.b16 %v2330
      %v2438 = vunpack.c.l.b16 %v2331
      %v2439 = vunpack.c.l.b16 %v2332
      %v2440 = vunpack.c.l.b16 %v2333
      %v2441 = vunpack.c.l.b16 %v2334
      %v2442 = vunpack.c.l.b16 %v2335
      %v2443 = vunpack.c.l.b16 %v2336
      %v2444 = vunpack.c.l.b16 %v2337
      %v2445 = vunpack.c.l.b16 %v2338
      %v2446 = vunpack.c.l.b16 %v2343
      %v2447 = vpack.c.b16 %v2399, %v2398
      %v2448 = vpack.c.b16 %v2401, %v2400
      %v2449 = vpack.c.b16 %v2403, %v2402
      %v2450 = vpack.c.b16 %v2405, %v2404
      %v2451 = vpack.c.b16 %v2407, %v2406
      %v2452 = vpack.c.b16 %v2409, %v2408
      %v2453 = vpack.c.b16 %v2411, %v2410
      %v2454 = vpack.c.b16 %v2413, %v2412
      %v2455 = vpack.c.b16 %v2415, %v2414
      %v2456 = vpack.c.b16 %v2417, %v2416
      %v2457 = vpack.c.b16 %v2419, %v2418
      %v2458 = vpack.c.b16 %v2421, %v2420
      %v2459 = vpack.c.b16 %v2423, %v2422
      %v2460 = vpack.c.b16 %v2425, %v2424
      %v2461 = vpack.c.b16 %v2427, %v2426
      %v2462 = vpack.c.b16 %v2429, %v2428
      %v2463 = vpack.c.b16 %v2431, %v2430
      %v2464 = vpack.c.b16 %v2433, %v2432
      %v2465 = vpack.c.b16 %v2435, %v2434
      %v2466 = vpack.c.b16 %v2437, %v2436
      %v2467 = vpack.c.b16 %v2439, %v2438
      %v2468 = vpack.c.b16 %v2441, %v2440
      %v2469 = vpack.c.b16 %v2443, %v2442
      %v2470 = vpack.c.b16 %v2445, %v2444
      %v2471 = vpack.c.b16 %v2446, %v2446
      %vm2472 = vsmask.f32 7424
      %v2474 = vshrl.u32 %v2447, 16
      %v2476 = vshll.u32 %v2447, 16
      %v2478 = vrot.slane %v2476, 1
      %v2479 = vor.u32 %v2474, %v2478
      %v2481 = vshll.u32 %v2448, 16
      %v2483 = vrot.slane %v2481, 1
      %v2484 = vsel %vm2472, %v2479, %v2483
      %v2485 = vshrl.u32 %v2448, 16
      %v2487 = vor.u32 %v2485, %v2483
      %v2489 = vshll.u32 %v2449, 16
      %v2491 = vrot.slane %v2489, 1
      %v2492 = vsel %vm2472, %v2487, %v2491
      %v2493 = vshrl.u32 %v2449, 16
      %v2495 = vor.u32 %v2493, %v2491
      %v2497 = vshll.u32 %v2450, 16
      %v2499 = vrot.slane %v2497, 1
      %v2500 = vsel %vm2472, %v2495, %v2499
      %v2501 = vshrl.u32 %v2450, 16
      %v2503 = vor.u32 %v2501, %v2499
      %v2505 = vshll.u32 %v2451, 16
      %v2507 = vrot.slane %v2505, 1
      %v2508 = vsel %vm2472, %v2503, %v2507
      %v2509 = vshrl.u32 %v2451, 16
      %v2511 = vor.u32 %v2509, %v2507
      %v2513 = vshll.u32 %v2452, 16
      %v2515 = vrot.slane %v2513, 1
      %v2516 = vsel %vm2472, %v2511, %v2515
      %v2517 = vshrl.u32 %v2452, 16
      %v2519 = vor.u32 %v2517, %v2515
      %v2521 = vshll.u32 %v2453, 16
      %v2523 = vrot.slane %v2521, 1
      %v2524 = vsel %vm2472, %v2519, %v2523
      %v2525 = vshrl.u32 %v2453, 16
      %v2527 = vor.u32 %v2525, %v2523
      %v2529 = vshll.u32 %v2454, 16
      %v2531 = vrot.slane %v2529, 1
      %v2532 = vsel %vm2472, %v2527, %v2531
      %v2533 = vshrl.u32 %v2454, 16
      %v2535 = vor.u32 %v2533, %v2531
      %v2537 = vshll.u32 %v2455, 16
      %v2539 = vrot.slane %v2537, 1
      %v2540 = vsel %vm2472, %v2535, %v2539
      %v2541 = vshrl.u32 %v2455, 16
      %v2543 = vor.u32 %v2541, %v2539
      %v2545 = vshll.u32 %v2456, 16
      %v2547 = vrot.slane %v2545, 1
      %v2548 = vsel %vm2472, %v2543, %v2547
      %v2549 = vshrl.u32 %v2456, 16
      %v2551 = vor.u32 %v2549, %v2547
      %v2553 = vshll.u32 %v2457, 16
      %v2555 = vrot.slane %v2553, 1
      %v2556 = vsel %vm2472, %v2551, %v2555
      %v2557 = vshrl.u32 %v2457, 16
      %v2559 = vor.u32 %v2557, %v2555
      %v2561 = vshll.u32 %v2458, 16
      %v2563 = vrot.slane %v2561, 1
      %v2564 = vsel %vm2472, %v2559, %v2563
      %v2565 = vshrl.u32 %v2458, 16
      %v2567 = vor.u32 %v2565, %v2563
      %v2569 = vshll.u32 %v2459, 16
      %v2571 = vrot.slane %v2569, 1
      %v2572 = vsel %vm2472, %v2567, %v2571
      %v2573 = vshrl.u32 %v2459, 16
      %v2575 = vor.u32 %v2573, %v2571
      %v2577 = vshll.u32 %v2460, 16
      %v2579 = vrot.slane %v2577, 1
      %v2580 = vsel %vm2472, %v2575, %v2579
      %v2581 = vshrl.u32 %v2460, 16
      %v2583 = vor.u32 %v2581, %v2579
      %v2585 = vshll.u32 %v2461, 16
      %v2587 = vrot.slane %v2585, 1
      %v2588 = vsel %vm2472, %v2583, %v2587
      %v2589 = vshrl.u32 %v2461, 16
      %v2591 = vor.u32 %v2589, %v2587
      %v2593 = vshll.u32 %v2462, 16
      %v2595 = vrot.slane %v2593, 1
      %v2596 = vsel %vm2472, %v2591, %v2595
      %v2597 = vshrl.u32 %v2462, 16
      %v2599 = vor.u32 %v2597, %v2595
      %v2601 = vshll.u32 %v2463, 16
      %v2603 = vrot.slane %v2601, 1
      %v2604 = vsel %vm2472, %v2599, %v2603
      %v2605 = vshrl.u32 %v2463, 16
      %v2607 = vor.u32 %v2605, %v2603
      %v2609 = vshll.u32 %v2464, 16
      %v2611 = vrot.slane %v2609, 1
      %v2612 = vsel %vm2472, %v2607, %v2611
      %v2613 = vshrl.u32 %v2464, 16
      %v2615 = vor.u32 %v2613, %v2611
      %v2617 = vshll.u32 %v2465, 16
      %v2619 = vrot.slane %v2617, 1
      %v2620 = vsel %vm2472, %v2615, %v2619
      %v2621 = vshrl.u32 %v2465, 16
      %v2623 = vor.u32 %v2621, %v2619
      %v2625 = vshll.u32 %v2466, 16
      %v2627 = vrot.slane %v2625, 1
      %v2628 = vsel %vm2472, %v2623, %v2627
      %v2629 = vshrl.u32 %v2466, 16
      %v2631 = vor.u32 %v2629, %v2627
      %v2633 = vshll.u32 %v2467, 16
      %v2635 = vrot.slane %v2633, 1
      %v2636 = vsel %vm2472, %v2631, %v2635
      %v2637 = vshrl.u32 %v2467, 16
      %v2639 = vor.u32 %v2637, %v2635
      %v2641 = vshll.u32 %v2468, 16
      %v2643 = vrot.slane %v2641, 1
      %v2644 = vsel %vm2472, %v2639, %v2643
      %v2645 = vshrl.u32 %v2468, 16
      %v2647 = vor.u32 %v2645, %v2643
      %v2649 = vshll.u32 %v2469, 16
      %v2651 = vrot.slane %v2649, 1
      %v2652 = vsel %vm2472, %v2647, %v2651
      %v2653 = vshrl.u32 %v2469, 16
      %v2655 = vor.u32 %v2653, %v2651
      %v2657 = vshll.u32 %v2470, 16
      %v2659 = vrot.slane %v2657, 1
      %v2660 = vsel %vm2472, %v2655, %v2659
      %v2661 = vshrl.u32 %v2470, 16
      %v2663 = vor.u32 %v2661, %v2659
      %v2665 = vshll.u32 %v2471, 16
      %v2667 = vrot.slane %v2665, 1
      %v2668 = vsel %vm2472, %v2663, %v2667
      %v2673 = vunpack.c.l.b16 %v2345
      %v2674 = vunpack.c.l.b16 %v2346
      %v2675 = vunpack.c.l.b16 %v2347
      %v2676 = vunpack.c.l.b16 %v2348
      %v2677 = vpack.c.b16 %v2674, %v2673
      %v2678 = vpack.c.b16 %v2676, %v2675
      %v2682 = vsel %vm577, %v2484, 0
      %v2685 = vsel %vm577, %v2492, 0
      %v2688 = vsel %vm577, %v2500, 0
      %v2691 = vsel %vm577, %v2508, 0
      %v2694 = vsel %vm577, %v2516, 0
      %v2697 = vsel %vm577, %v2524, 0
      %v2700 = vsel %vm577, %v2532, 0
      %v2703 = vsel %vm577, %v2540, 0
      %v2706 = vsel %vm577, %v2548, 0
      %v2709 = vsel %vm577, %v2556, 0
      %v2712 = vsel %vm577, %v2564, 0
      %v2715 = vsel %vm577, %v2572, 0
      %v2718 = vsel %vm577, %v2580, 0
      %v2721 = vsel %vm577, %v2588, 0
      %v2724 = vsel %vm577, %v2596, 0
      %v2727 = vsel %vm577, %v2604, 0
      %v2730 = vsel %vm577, %v2612, 0
      %v2733 = vsel %vm577, %v2620, 0
      %v2736 = vsel %vm577, %v2628, 0
      %v2739 = vsel %vm577, %v2636, 0
      %v2742 = vsel %vm577, %v2644, 0
      %v2745 = vsel %vm577, %v2652, 0
      %v2748 = vsel %vm577, %v2660, 0
      %v2751 = vsel %vm577, %v2668, 0
      %2753 = vmatpush.bf16.msra.mxu0 0
      %2754 = vmatpush.bf16.msra.mxu0 0
      %2755 = vmatpush.bf16.msra.mxu0 0
      %2756 = vmatpush.bf16.msra.mxu0 0
      %2757 = vmatpush.bf16.msra.mxu0 0
      %2758 = vmatpush.bf16.msra.mxu0 0
      %2759 = vmatpush.bf16.msra.mxu0 %v2678
      %2760 = vmatpush.bf16.msra.mxu0 %v2677
      %2761 = vmatmul.bf16.gmra.mxu0 %v2682
      %v2762 = vpop.f32.mrf.mxu0
      %v2763 = vadd.f32 0.0, %v2762
      %v2764 = vpop.f32.mrf.mxu0
      %v2765 = vadd.f32 0.0, %v2764
      %2766 = vmatmul.bf16.gmra.mxu0 %v2685
      %v2767 = vpop.f32.mrf.mxu0
      %v2768 = vadd.f32 0.0, %v2767
      %v2769 = vpop.f32.mrf.mxu0
      %v2770 = vadd.f32 0.0, %v2769
      %2771 = vmatmul.bf16.gmra.mxu0 %v2688
      %v2772 = vpop.f32.mrf.mxu0
      %v2773 = vadd.f32 0.0, %v2772
      %v2774 = vpop.f32.mrf.mxu0
      %v2775 = vadd.f32 0.0, %v2774
      %2776 = vmatmul.bf16.gmra.mxu0 %v2691
      %v2777 = vpop.f32.mrf.mxu0
      %v2778 = vadd.f32 0.0, %v2777
      %v2779 = vpop.f32.mrf.mxu0
      %v2780 = vadd.f32 0.0, %v2779
      %2781 = vmatmul.bf16.gmra.mxu0 %v2694
      %v2782 = vpop.f32.mrf.mxu0
      %v2783 = vadd.f32 0.0, %v2782
      %v2784 = vpop.f32.mrf.mxu0
      %v2785 = vadd.f32 0.0, %v2784
      %2786 = vmatmul.bf16.gmra.mxu0 %v2697
      %v2787 = vpop.f32.mrf.mxu0
      %v2788 = vadd.f32 0.0, %v2787
      %v2789 = vpop.f32.mrf.mxu0
      %v2790 = vadd.f32 0.0, %v2789
      %2791 = vmatmul.bf16.gmra.mxu0 %v2700
      %v2792 = vpop.f32.mrf.mxu0
      %v2793 = vadd.f32 0.0, %v2792
      %v2794 = vpop.f32.mrf.mxu0
      %v2795 = vadd.f32 0.0, %v2794
      %2796 = vmatmul.bf16.gmra.mxu0 %v2703
      %v2797 = vpop.f32.mrf.mxu0
      %v2798 = vadd.f32 0.0, %v2797
      %v2799 = vpop.f32.mrf.mxu0
      %v2800 = vadd.f32 0.0, %v2799
      %2801 = vmatmul.bf16.gmra.mxu0 %v2706
      %v2802 = vpop.f32.mrf.mxu0
      %v2803 = vadd.f32 0.0, %v2802
      %v2804 = vpop.f32.mrf.mxu0
      %v2805 = vadd.f32 0.0, %v2804
      %2806 = vmatmul.bf16.gmra.mxu0 %v2709
      %v2807 = vpop.f32.mrf.mxu0
      %v2808 = vadd.f32 0.0, %v2807
      %v2809 = vpop.f32.mrf.mxu0
      %v2810 = vadd.f32 0.0, %v2809
      %2811 = vmatmul.bf16.gmra.mxu0 %v2712
      %v2812 = vpop.f32.mrf.mxu0
      %v2813 = vadd.f32 0.0, %v2812
      %v2814 = vpop.f32.mrf.mxu0
      %v2815 = vadd.f32 0.0, %v2814
      %2816 = vmatmul.bf16.gmra.mxu0 %v2715
      %v2817 = vpop.f32.mrf.mxu0
      %v2818 = vadd.f32 0.0, %v2817
      %v2819 = vpop.f32.mrf.mxu0
      %v2820 = vadd.f32 0.0, %v2819
      %2821 = vmatmul.bf16.gmra.mxu0 %v2718
      %v2822 = vpop.f32.mrf.mxu0
      %v2823 = vadd.f32 0.0, %v2822
      %v2824 = vpop.f32.mrf.mxu0
      %v2825 = vadd.f32 0.0, %v2824
      %2826 = vmatmul.bf16.gmra.mxu0 %v2721
      %v2827 = vpop.f32.mrf.mxu0
      %v2828 = vadd.f32 0.0, %v2827
      %v2829 = vpop.f32.mrf.mxu0
      %v2830 = vadd.f32 0.0, %v2829
      %2831 = vmatmul.bf16.gmra.mxu0 %v2724
      %v2832 = vpop.f32.mrf.mxu0
      %v2833 = vadd.f32 0.0, %v2832
      %v2834 = vpop.f32.mrf.mxu0
      %v2835 = vadd.f32 0.0, %v2834
      %2836 = vmatmul.bf16.gmra.mxu0 %v2727
      %v2837 = vpop.f32.mrf.mxu0
      %v2838 = vadd.f32 0.0, %v2837
      %v2839 = vpop.f32.mrf.mxu0
      %v2840 = vadd.f32 0.0, %v2839
      %2841 = vmatmul.bf16.gmra.mxu0 %v2730
      %v2842 = vpop.f32.mrf.mxu0
      %v2843 = vadd.f32 0.0, %v2842
      %v2844 = vpop.f32.mrf.mxu0
      %v2845 = vadd.f32 0.0, %v2844
      %2846 = vmatmul.bf16.gmra.mxu0 %v2733
      %v2847 = vpop.f32.mrf.mxu0
      %v2848 = vadd.f32 0.0, %v2847
      %v2849 = vpop.f32.mrf.mxu0
      %v2850 = vadd.f32 0.0, %v2849
      %2851 = vmatmul.bf16.gmra.mxu0 %v2736
      %v2852 = vpop.f32.mrf.mxu0
      %v2853 = vadd.f32 0.0, %v2852
      %v2854 = vpop.f32.mrf.mxu0
      %v2855 = vadd.f32 0.0, %v2854
      %2856 = vmatmul.bf16.gmra.mxu0 %v2739
      %v2857 = vpop.f32.mrf.mxu0
      %v2858 = vadd.f32 0.0, %v2857
      %v2859 = vpop.f32.mrf.mxu0
      %v2860 = vadd.f32 0.0, %v2859
      %2861 = vmatmul.bf16.gmra.mxu0 %v2742
      %v2862 = vpop.f32.mrf.mxu0
      %v2863 = vadd.f32 0.0, %v2862
      %v2864 = vpop.f32.mrf.mxu0
      %v2865 = vadd.f32 0.0, %v2864
      %2866 = vmatmul.bf16.gmra.mxu0 %v2745
      %v2867 = vpop.f32.mrf.mxu0
      %v2868 = vadd.f32 0.0, %v2867
      %v2869 = vpop.f32.mrf.mxu0
      %v2870 = vadd.f32 0.0, %v2869
      %2871 = vmatmul.bf16.gmra.mxu0 %v2748
      %v2872 = vpop.f32.mrf.mxu0
      %v2873 = vadd.f32 0.0, %v2872
      %v2874 = vpop.f32.mrf.mxu0
      %v2875 = vadd.f32 0.0, %v2874
      %2876 = vmatmul.bf16.gmra.mxu0 %v2751
      %v2877 = vpop.f32.mrf.mxu0
      %v2878 = vadd.f32 0.0, %v2877
      %v2879 = vpop.f32.mrf.mxu0
      %v2880 = vadd.f32 0.0, %v2879
      %2881 = vdwg.mxu0
      %v2886 = vunpack.c.l.b16 %v2339
      %v2887 = vunpack.c.l.b16 %v2340
      %v2888 = vunpack.c.l.b16 %v2341
      %v2889 = vunpack.c.l.b16 %v2342
      %v2890 = vpack.c.b16 %v2887, %v2886
      %v2891 = vpack.c.b16 %v2889, %v2888
      %v2894 = vsel %vm577, %v2447, 0
      %v2896 = vsel %vm577, %v2448, 0
      %v2898 = vsel %vm577, %v2449, 0
      %v2900 = vsel %vm577, %v2450, 0
      %v2902 = vsel %vm577, %v2451, 0
      %v2904 = vsel %vm577, %v2452, 0
      %v2906 = vsel %vm577, %v2453, 0
      %v2908 = vsel %vm577, %v2454, 0
      %v2910 = vsel %vm577, %v2455, 0
      %v2912 = vsel %vm577, %v2456, 0
      %v2914 = vsel %vm577, %v2457, 0
      %v2916 = vsel %vm577, %v2458, 0
      %v2918 = vsel %vm577, %v2459, 0
      %v2920 = vsel %vm577, %v2460, 0
      %v2922 = vsel %vm577, %v2461, 0
      %v2924 = vsel %vm577, %v2462, 0
      %v2926 = vsel %vm577, %v2463, 0
      %v2928 = vsel %vm577, %v2464, 0
      %v2930 = vsel %vm577, %v2465, 0
      %v2932 = vsel %vm577, %v2466, 0
      %v2934 = vsel %vm577, %v2467, 0
      %v2936 = vsel %vm577, %v2468, 0
      %v2938 = vsel %vm577, %v2469, 0
      %v2940 = vsel %vm577, %v2470, 0
      %2942 = vmatpush.bf16.msra.mxu0 0
      %2943 = vmatpush.bf16.msra.mxu0 0
      %2944 = vmatpush.bf16.msra.mxu0 0
      %2945 = vmatpush.bf16.msra.mxu0 0
      %2946 = vmatpush.bf16.msra.mxu0 0
      %2947 = vmatpush.bf16.msra.mxu0 0
      %2948 = vmatpush.bf16.msra.mxu0 %v2891
      %2949 = vmatpush.bf16.msra.mxu0 %v2890
      %2950 = vmatmul.bf16.gmra.mxu0 %v2894
      %v2951 = vpop.f32.mrf.mxu0
      %v2952 = vadd.f32 %v2763, %v2951
      %v2953 = vpop.f32.mrf.mxu0
      %v2954 = vadd.f32 %v2765, %v2953
      %2955 = vmatmul.bf16.gmra.mxu0 %v2896
      %v2956 = vpop.f32.mrf.mxu0
      %v2957 = vadd.f32 %v2768, %v2956
      %v2958 = vpop.f32.mrf.mxu0
      %v2959 = vadd.f32 %v2770, %v2958
      %2960 = vmatmul.bf16.gmra.mxu0 %v2898
      %v2961 = vpop.f32.mrf.mxu0
      %v2962 = vadd.f32 %v2773, %v2961
      %v2963 = vpop.f32.mrf.mxu0
      %v2964 = vadd.f32 %v2775, %v2963
      %2965 = vmatmul.bf16.gmra.mxu0 %v2900
      %v2966 = vpop.f32.mrf.mxu0
      %v2967 = vadd.f32 %v2778, %v2966
      %v2968 = vpop.f32.mrf.mxu0
      %v2969 = vadd.f32 %v2780, %v2968
      %2970 = vmatmul.bf16.gmra.mxu0 %v2902
      %v2971 = vpop.f32.mrf.mxu0
      %v2972 = vadd.f32 %v2783, %v2971
      %v2973 = vpop.f32.mrf.mxu0
      %v2974 = vadd.f32 %v2785, %v2973
      %2975 = vmatmul.bf16.gmra.mxu0 %v2904
      %v2976 = vpop.f32.mrf.mxu0
      %v2977 = vadd.f32 %v2788, %v2976
      %v2978 = vpop.f32.mrf.mxu0
      %v2979 = vadd.f32 %v2790, %v2978
      %2980 = vmatmul.bf16.gmra.mxu0 %v2906
      %v2981 = vpop.f32.mrf.mxu0
      %v2982 = vadd.f32 %v2793, %v2981
      %v2983 = vpop.f32.mrf.mxu0
      %v2984 = vadd.f32 %v2795, %v2983
      %2985 = vmatmul.bf16.gmra.mxu0 %v2908
      %v2986 = vpop.f32.mrf.mxu0
      %v2987 = vadd.f32 %v2798, %v2986
      %v2988 = vpop.f32.mrf.mxu0
      %v2989 = vadd.f32 %v2800, %v2988
      %2990 = vmatmul.bf16.gmra.mxu0 %v2910
      %v2991 = vpop.f32.mrf.mxu0
      %v2992 = vadd.f32 %v2803, %v2991
      %v2993 = vpop.f32.mrf.mxu0
      %v2994 = vadd.f32 %v2805, %v2993
      %2995 = vmatmul.bf16.gmra.mxu0 %v2912
      %v2996 = vpop.f32.mrf.mxu0
      %v2997 = vadd.f32 %v2808, %v2996
      %v2998 = vpop.f32.mrf.mxu0
      %v2999 = vadd.f32 %v2810, %v2998
      %3000 = vmatmul.bf16.gmra.mxu0 %v2914
      %v3001 = vpop.f32.mrf.mxu0
      %v3002 = vadd.f32 %v2813, %v3001
      %v3003 = vpop.f32.mrf.mxu0
      %v3004 = vadd.f32 %v2815, %v3003
      %3005 = vmatmul.bf16.gmra.mxu0 %v2916
      %v3006 = vpop.f32.mrf.mxu0
      %v3007 = vadd.f32 %v2818, %v3006
      %v3008 = vpop.f32.mrf.mxu0
      %v3009 = vadd.f32 %v2820, %v3008
      %3010 = vmatmul.bf16.gmra.mxu0 %v2918
      %v3011 = vpop.f32.mrf.mxu0
      %v3012 = vadd.f32 %v2823, %v3011
      %v3013 = vpop.f32.mrf.mxu0
      %v3014 = vadd.f32 %v2825, %v3013
      %3015 = vmatmul.bf16.gmra.mxu0 %v2920
      %v3016 = vpop.f32.mrf.mxu0
      %v3017 = vadd.f32 %v2828, %v3016
      %v3018 = vpop.f32.mrf.mxu0
      %v3019 = vadd.f32 %v2830, %v3018
      %3020 = vmatmul.bf16.gmra.mxu0 %v2922
      %v3021 = vpop.f32.mrf.mxu0
      %v3022 = vadd.f32 %v2833, %v3021
      %v3023 = vpop.f32.mrf.mxu0
      %v3024 = vadd.f32 %v2835, %v3023
      %3025 = vmatmul.bf16.gmra.mxu0 %v2924
      %v3026 = vpop.f32.mrf.mxu0
      %v3027 = vadd.f32 %v2838, %v3026
      %v3028 = vpop.f32.mrf.mxu0
      %v3029 = vadd.f32 %v2840, %v3028
      %3030 = vmatmul.bf16.gmra.mxu0 %v2926
      %v3031 = vpop.f32.mrf.mxu0
      %v3032 = vadd.f32 %v2843, %v3031
      %v3033 = vpop.f32.mrf.mxu0
      %v3034 = vadd.f32 %v2845, %v3033
      %3035 = vmatmul.bf16.gmra.mxu0 %v2928
      %v3036 = vpop.f32.mrf.mxu0
      %v3037 = vadd.f32 %v2848, %v3036
      %v3038 = vpop.f32.mrf.mxu0
      %v3039 = vadd.f32 %v2850, %v3038
      %3040 = vmatmul.bf16.gmra.mxu0 %v2930
      %v3041 = vpop.f32.mrf.mxu0
      %v3042 = vadd.f32 %v2853, %v3041
      %v3043 = vpop.f32.mrf.mxu0
      %v3044 = vadd.f32 %v2855, %v3043
      %3045 = vmatmul.bf16.gmra.mxu0 %v2932
      %v3046 = vpop.f32.mrf.mxu0
      %v3047 = vadd.f32 %v2858, %v3046
      %v3048 = vpop.f32.mrf.mxu0
      %v3049 = vadd.f32 %v2860, %v3048
      %3050 = vmatmul.bf16.gmra.mxu0 %v2934
      %v3051 = vpop.f32.mrf.mxu0
      %v3052 = vadd.f32 %v2863, %v3051
      %v3053 = vpop.f32.mrf.mxu0
      %v3054 = vadd.f32 %v2865, %v3053
      %3055 = vmatmul.bf16.gmra.mxu0 %v2936
      %v3056 = vpop.f32.mrf.mxu0
      %v3057 = vadd.f32 %v2868, %v3056
      %v3058 = vpop.f32.mrf.mxu0
      %v3059 = vadd.f32 %v2870, %v3058
      %3060 = vmatmul.bf16.gmra.mxu0 %v2938
      %v3061 = vpop.f32.mrf.mxu0
      %v3062 = vadd.f32 %v2873, %v3061
      %v3063 = vpop.f32.mrf.mxu0
      %v3064 = vadd.f32 %v2875, %v3063
      %3065 = vmatmul.bf16.gmra.mxu0 %v2940
      %v3066 = vpop.f32.mrf.mxu0
      %v3067 = vadd.f32 %v2878, %v3066
      %v3068 = vpop.f32.mrf.mxu0
      %v3069 = vadd.f32 %v2880, %v3068
      %3070 = vdwg.mxu0
      %v3071 = vld [vmem:[#allocation2] sm:$0xe]
      %s3072 = scalar_lea.vmem %s6, 32
      %v3073 = vld [vmem:[%s3072] sm:$0xf]
      %v3074 = vld [vmem:[%s3072 + $0x4] sm:$0xf]
      %v3075 = vld [vmem:[%s3072 + $0x8] sm:$0xf]
      %v3076 = vld [vmem:[%s3072 + $0xc] sm:$0xf]
      %v3078 = vunpack.c.l.b16 %v3071
      %v3079 = vpack.c.b16 %v2399, %v3078
      %vm3080 = vcmask 1046528
      %v3081 = vrot.slane %v3079, 1
      %v3082 = vrot.slane %v2448, 1
      %v3083 = vsel %vm3080, %v3081, %v3082
      %v3084 = vrot.slane %v2449, 1
      %v3085 = vsel %vm3080, %v3082, %v3084
      %v3086 = vrot.slane %v2450, 1
      %v3087 = vsel %vm3080, %v3084, %v3086
      %v3088 = vrot.slane %v2451, 1
      %v3089 = vsel %vm3080, %v3086, %v3088
      %v3090 = vrot.slane %v2452, 1
      %v3091 = vsel %vm3080, %v3088, %v3090
      %v3092 = vrot.slane %v2453, 1
      %v3093 = vsel %vm3080, %v3090, %v3092
      %v3094 = vrot.slane %v2454, 1
      %v3095 = vsel %vm3080, %v3092, %v3094
      %v3096 = vrot.slane %v2455, 1
      %v3097 = vsel %vm3080, %v3094, %v3096
      %v3098 = vrot.slane %v2456, 1
      %v3099 = vsel %vm3080, %v3096, %v3098
      %v3100 = vrot.slane %v2457, 1
      %v3101 = vsel %vm3080, %v3098, %v3100
      %v3102 = vrot.slane %v2458, 1
      %v3103 = vsel %vm3080, %v3100, %v3102
      %v3104 = vrot.slane %v2459, 1
      %v3105 = vsel %vm3080, %v3102, %v3104
      %v3106 = vrot.slane %v2460, 1
      %v3107 = vsel %vm3080, %v3104, %v3106
      %v3108 = vrot.slane %v2461, 1
      %v3109 = vsel %vm3080, %v3106, %v3108
      %v3110 = vrot.slane %v2462, 1
      %v3111 = vsel %vm3080, %v3108, %v3110
      %v3112 = vrot.slane %v2463, 1
      %v3113 = vsel %vm3080, %v3110, %v3112
      %v3114 = vrot.slane %v2464, 1
      %v3115 = vsel %vm3080, %v3112, %v3114
      %v3116 = vrot.slane %v2465, 1
      %v3117 = vsel %vm3080, %v3114, %v3116
      %v3118 = vrot.slane %v2466, 1
      %v3119 = vsel %vm3080, %v3116, %v3118
      %v3120 = vrot.slane %v2467, 1
      %v3121 = vsel %vm3080, %v3118, %v3120
      %v3122 = vrot.slane %v2468, 1
      %v3123 = vsel %vm3080, %v3120, %v3122
      %v3124 = vrot.slane %v2469, 1
      %v3125 = vsel %vm3080, %v3122, %v3124
      %v3126 = vrot.slane %v2470, 1
      %v3127 = vsel %vm3080, %v3124, %v3126
      %v3128 = vrot.slane %v2471, 1
      %v3129 = vsel %vm3080, %v3126, %v3128
      %v3134 = vunpack.c.l.b16 %v3073
      %v3135 = vunpack.c.l.b16 %v3074
      %v3136 = vunpack.c.l.b16 %v3075
      %v3137 = vunpack.c.l.b16 %v3076
      %v3138 = vpack.c.b16 %v3135, %v3134
      %v3139 = vpack.c.b16 %v3137, %v3136
      %v3143 = vsel %vm577, %v3083, 0
      %v3146 = vsel %vm577, %v3085, 0
      %v3149 = vsel %vm577, %v3087, 0
      %v3152 = vsel %vm577, %v3089, 0
      %v3155 = vsel %vm577, %v3091, 0
      %v3158 = vsel %vm577, %v3093, 0
      %v3161 = vsel %vm577, %v3095, 0
      %v3164 = vsel %vm577, %v3097, 0
      %v3167 = vsel %vm577, %v3099, 0
      %v3170 = vsel %vm577, %v3101, 0
      %v3173 = vsel %vm577, %v3103, 0
      %v3176 = vsel %vm577, %v3105, 0
      %v3179 = vsel %vm577, %v3107, 0
      %v3182 = vsel %vm577, %v3109, 0
      %v3185 = vsel %vm577, %v3111, 0
      %v3188 = vsel %vm577, %v3113, 0
      %v3191 = vsel %vm577, %v3115, 0
      %v3194 = vsel %vm577, %v3117, 0
      %v3197 = vsel %vm577, %v3119, 0
      %v3200 = vsel %vm577, %v3121, 0
      %v3203 = vsel %vm577, %v3123, 0
      %v3206 = vsel %vm577, %v3125, 0
      %v3209 = vsel %vm577, %v3127, 0
      %v3212 = vsel %vm577, %v3129, 0
      %3214 = vmatpush.bf16.msra.mxu0 0
      %3215 = vmatpush.bf16.msra.mxu0 0
      %3216 = vmatpush.bf16.msra.mxu0 0
      %3217 = vmatpush.bf16.msra.mxu0 0
      %3218 = vmatpush.bf16.msra.mxu0 0
      %3219 = vmatpush.bf16.msra.mxu0 0
      %3220 = vmatpush.bf16.msra.mxu0 %v3139
      %3221 = vmatpush.bf16.msra.mxu0 %v3138
      %3222 = vmatmul.bf16.gmra.mxu0 %v3143
      %v3223 = vpop.f32.mrf.mxu0
      %v3224 = vadd.f32 0.0, %v3223
      %v3225 = vpop.f32.mrf.mxu0
      %v3226 = vadd.f32 0.0, %v3225
      %3227 = vmatmul.bf16.gmra.mxu0 %v3146
      %v3228 = vpop.f32.mrf.mxu0
      %v3229 = vadd.f32 0.0, %v3228
      %v3230 = vpop.f32.mrf.mxu0
      %v3231 = vadd.f32 0.0, %v3230
      %3232 = vmatmul.bf16.gmra.mxu0 %v3149
      %v3233 = vpop.f32.mrf.mxu0
      %v3234 = vadd.f32 0.0, %v3233
      %v3235 = vpop.f32.mrf.mxu0
      %v3236 = vadd.f32 0.0, %v3235
      %3237 = vmatmul.bf16.gmra.mxu0 %v3152
      %v3238 = vpop.f32.mrf.mxu0
      %v3239 = vadd.f32 0.0, %v3238
      %v3240 = vpop.f32.mrf.mxu0
      %v3241 = vadd.f32 0.0, %v3240
      %3242 = vmatmul.bf16.gmra.mxu0 %v3155
      %v3243 = vpop.f32.mrf.mxu0
      %v3244 = vadd.f32 0.0, %v3243
      %v3245 = vpop.f32.mrf.mxu0
      %v3246 = vadd.f32 0.0, %v3245
      %3247 = vmatmul.bf16.gmra.mxu0 %v3158
      %v3248 = vpop.f32.mrf.mxu0
      %v3249 = vadd.f32 0.0, %v3248
      %v3250 = vpop.f32.mrf.mxu0
      %v3251 = vadd.f32 0.0, %v3250
      %3252 = vmatmul.bf16.gmra.mxu0 %v3161
      %v3253 = vpop.f32.mrf.mxu0
      %v3254 = vadd.f32 0.0, %v3253
      %v3255 = vpop.f32.mrf.mxu0
      %v3256 = vadd.f32 0.0, %v3255
      %3257 = vmatmul.bf16.gmra.mxu0 %v3164
      %v3258 = vpop.f32.mrf.mxu0
      %v3259 = vadd.f32 0.0, %v3258
      %v3260 = vpop.f32.mrf.mxu0
      %v3261 = vadd.f32 0.0, %v3260
      %3262 = vmatmul.bf16.gmra.mxu0 %v3167
      %v3263 = vpop.f32.mrf.mxu0
      %v3264 = vadd.f32 0.0, %v3263
      %v3265 = vpop.f32.mrf.mxu0
      %v3266 = vadd.f32 0.0, %v3265
      %3267 = vmatmul.bf16.gmra.mxu0 %v3170
      %v3268 = vpop.f32.mrf.mxu0
      %v3269 = vadd.f32 0.0, %v3268
      %v3270 = vpop.f32.mrf.mxu0
      %v3271 = vadd.f32 0.0, %v3270
      %3272 = vmatmul.bf16.gmra.mxu0 %v3173
      %v3273 = vpop.f32.mrf.mxu0
      %v3274 = vadd.f32 0.0, %v3273
      %v3275 = vpop.f32.mrf.mxu0
      %v3276 = vadd.f32 0.0, %v3275
      %3277 = vmatmul.bf16.gmra.mxu0 %v3176
      %v3278 = vpop.f32.mrf.mxu0
      %v3279 = vadd.f32 0.0, %v3278
      %v3280 = vpop.f32.mrf.mxu0
      %v3281 = vadd.f32 0.0, %v3280
      %3282 = vmatmul.bf16.gmra.mxu0 %v3179
      %v3283 = vpop.f32.mrf.mxu0
      %v3284 = vadd.f32 0.0, %v3283
      %v3285 = vpop.f32.mrf.mxu0
      %v3286 = vadd.f32 0.0, %v3285
      %3287 = vmatmul.bf16.gmra.mxu0 %v3182
      %v3288 = vpop.f32.mrf.mxu0
      %v3289 = vadd.f32 0.0, %v3288
      %v3290 = vpop.f32.mrf.mxu0
      %v3291 = vadd.f32 0.0, %v3290
      %3292 = vmatmul.bf16.gmra.mxu0 %v3185
      %v3293 = vpop.f32.mrf.mxu0
      %v3294 = vadd.f32 0.0, %v3293
      %v3295 = vpop.f32.mrf.mxu0
      %v3296 = vadd.f32 0.0, %v3295
      %3297 = vmatmul.bf16.gmra.mxu0 %v3188
      %v3298 = vpop.f32.mrf.mxu0
      %v3299 = vadd.f32 0.0, %v3298
      %v3300 = vpop.f32.mrf.mxu0
      %v3301 = vadd.f32 0.0, %v3300
      %3302 = vmatmul.bf16.gmra.mxu0 %v3191
      %v3303 = vpop.f32.mrf.mxu0
      %v3304 = vadd.f32 0.0, %v3303
      %v3305 = vpop.f32.mrf.mxu0
      %v3306 = vadd.f32 0.0, %v3305
      %3307 = vmatmul.bf16.gmra.mxu0 %v3194
      %v3308 = vpop.f32.mrf.mxu0
      %v3309 = vadd.f32 0.0, %v3308
      %v3310 = vpop.f32.mrf.mxu0
      %v3311 = vadd.f32 0.0, %v3310
      %3312 = vmatmul.bf16.gmra.mxu0 %v3197
      %v3313 = vpop.f32.mrf.mxu0
      %v3314 = vadd.f32 0.0, %v3313
      %v3315 = vpop.f32.mrf.mxu0
      %v3316 = vadd.f32 0.0, %v3315
      %3317 = vmatmul.bf16.gmra.mxu0 %v3200
      %v3318 = vpop.f32.mrf.mxu0
      %v3319 = vadd.f32 0.0, %v3318
      %v3320 = vpop.f32.mrf.mxu0
      %v3321 = vadd.f32 0.0, %v3320
      %3322 = vmatmul.bf16.gmra.mxu0 %v3203
      %v3323 = vpop.f32.mrf.mxu0
      %v3324 = vadd.f32 0.0, %v3323
      %v3325 = vpop.f32.mrf.mxu0
      %v3326 = vadd.f32 0.0, %v3325
      %3327 = vmatmul.bf16.gmra.mxu0 %v3206
      %v3328 = vpop.f32.mrf.mxu0
      %v3329 = vadd.f32 0.0, %v3328
      %v3330 = vpop.f32.mrf.mxu0
      %v3331 = vadd.f32 0.0, %v3330
      %3332 = vmatmul.bf16.gmra.mxu0 %v3209
      %v3333 = vpop.f32.mrf.mxu0
      %v3334 = vadd.f32 0.0, %v3333
      %v3335 = vpop.f32.mrf.mxu0
      %v3336 = vadd.f32 0.0, %v3335
      %3337 = vmatmul.bf16.gmra.mxu0 %v3212
      %v3338 = vpop.f32.mrf.mxu0
      %v3339 = vadd.f32 0.0, %v3338
      %v3340 = vpop.f32.mrf.mxu0
      %v3341 = vadd.f32 0.0, %v3340
      %3342 = vdwg.mxu0
      %v3343 = vadd.f32 %v2952, %v3224
      %v3344 = vadd.f32 %v2954, %v3226
      %v3345 = vadd.f32 %v2957, %v3229
      %v3346 = vadd.f32 %v2959, %v3231
      %v3347 = vadd.f32 %v2962, %v3234
      %v3348 = vadd.f32 %v2964, %v3236
      %v3349 = vadd.f32 %v2967, %v3239
      %v3350 = vadd.f32 %v2969, %v3241
      %v3351 = vadd.f32 %v2972, %v3244
      %v3352 = vadd.f32 %v2974, %v3246
      %v3353 = vadd.f32 %v2977, %v3249
      %v3354 = vadd.f32 %v2979, %v3251
      %v3355 = vadd.f32 %v2982, %v3254
      %v3356 = vadd.f32 %v2984, %v3256
      %v3357 = vadd.f32 %v2987, %v3259
      %v3358 = vadd.f32 %v2989, %v3261
      %v3359 = vadd.f32 %v2992, %v3264
      %v3360 = vadd.f32 %v2994, %v3266
      %v3361 = vadd.f32 %v2997, %v3269
      %v3362 = vadd.f32 %v2999, %v3271
      %v3363 = vadd.f32 %v3002, %v3274
      %v3364 = vadd.f32 %v3004, %v3276
      %v3365 = vadd.f32 %v3007, %v3279
      %v3366 = vadd.f32 %v3009, %v3281
      %v3367 = vadd.f32 %v3012, %v3284
      %v3368 = vadd.f32 %v3014, %v3286
      %v3369 = vadd.f32 %v3017, %v3289
      %v3370 = vadd.f32 %v3019, %v3291
      %v3371 = vadd.f32 %v3022, %v3294
      %v3372 = vadd.f32 %v3024, %v3296
      %v3373 = vadd.f32 %v3027, %v3299
      %v3374 = vadd.f32 %v3029, %v3301
      %v3375 = vadd.f32 %v3032, %v3304
      %v3376 = vadd.f32 %v3034, %v3306
      %v3377 = vadd.f32 %v3037, %v3309
      %v3378 = vadd.f32 %v3039, %v3311
      %v3379 = vadd.f32 %v3042, %v3314
      %v3380 = vadd.f32 %v3044, %v3316
      %v3381 = vadd.f32 %v3047, %v3319
      %v3382 = vadd.f32 %v3049, %v3321
      %v3383 = vadd.f32 %v3052, %v3324
      %v3384 = vadd.f32 %v3054, %v3326
      %v3385 = vadd.f32 %v3057, %v3329
      %v3386 = vadd.f32 %v3059, %v3331
      %v3387 = vadd.f32 %v3062, %v3334
      %v3388 = vadd.f32 %v3064, %v3336
      %v3389 = vadd.f32 %v3067, %v3339
      %v3390 = vadd.f32 %v3069, %v3341
      %v3391 = vld [vmem:[#allocation2 + $0xc] sm:$0xf]
      %v3392 = vld [vmem:[#allocation2 + $0x10] sm:$0xf]
      %v3393 = vld [vmem:[#allocation2 + $0x14] sm:$0xf]
      %v3394 = vld [vmem:[#allocation2 + $0x18] sm:$0xf]
      %v3395 = vld [vmem:[#allocation2 + $0x1c] sm:$0xf]
      %v3396 = vld [vmem:[#allocation2 + $0x20] sm:$0xf]
      %v3397 = vld [vmem:[#allocation2 + $0x24] sm:$0xf]
      %v3398 = vld [vmem:[#allocation2 + $0x28] sm:$0xf]
      %v3399 = vld [vmem:[#allocation2 + $0x2c] sm:$0xf]
      %v3400 = vld [vmem:[#allocation2 + $0x30] sm:$0xf]
      %v3401 = vld [vmem:[#allocation2 + $0x34] sm:$0xf]
      %v3402 = vld [vmem:[#allocation2 + $0x38] sm:$0xf]
      %v3403 = vld [vmem:[#allocation2 + $0x3c] sm:$0xf]
      %v3404 = vld [vmem:[#allocation2 + $0x40] sm:$0xf]
      %v3405 = vld [vmem:[#allocation2 + $0x44] sm:$0xf]
      %v3406 = vld [vmem:[#allocation2 + $0x48] sm:$0xf]
      %v3407 = vld [vmem:[#allocation2 + $0x4c] sm:$0xf]
      %v3408 = vld [vmem:[#allocation2 + $0x50] sm:$0xf]
      %v3409 = vld [vmem:[#allocation2 + $0x54] sm:$0xf]
      %v3410 = vld [vmem:[#allocation2 + $0x58] sm:$0xf]
      %v3411 = vld [vmem:[#allocation2 + $0x5c] sm:$0xf]
      %v3412 = vld [vmem:[#allocation2 + $0x60] sm:$0xf]
      %v3413 = vld [vmem:[#allocation2 + $0x64] sm:$0xf]
      %v3414 = vld [vmem:[#allocation2 + $0x68] sm:$0xf]
      %v3415 = vld [vmem:[#allocation2 + $0x6c] sm:$0xf]
      %v3416 = vld [vmem:[#allocation2 + $0x70] sm:$0xf]
      %v3417 = vld [vmem:[#allocation2 + $0x74] sm:$0xf]
      %v3418 = vld [vmem:[#allocation2 + $0x78] sm:$0xf]
      %v3419 = vld [vmem:[#allocation2 + $0x7c] sm:$0xf]
      %v3420 = vld [vmem:[#allocation2 + $0x80] sm:$0xf]
      %v3421 = vld [vmem:[#allocation2 + $0x84] sm:$0xf]
      %v3422 = vld [vmem:[#allocation2 + $0x88] sm:$0xf]
      %v3423 = vld [vmem:[#allocation2 + $0x8c] sm:$0xf]
      %v3424 = vld [vmem:[#allocation2 + $0x90] sm:$0xf]
      %v3425 = vld [vmem:[#allocation2 + $0x94] sm:$0xf]
      %v3426 = vld [vmem:[#allocation2 + $0x98] sm:$0xf]
      %v3427 = vld [vmem:[#allocation2 + $0x9c] sm:$0xf]
      %v3428 = vld [vmem:[#allocation2 + $0xa0] sm:$0xf]
      %v3429 = vld [vmem:[#allocation2 + $0xa4] sm:$0xf]
      %v3430 = vld [vmem:[#allocation2 + $0xa8] sm:$0xf]
      %v3431 = vld [vmem:[#allocation2 + $0xac] sm:$0xf]
      %v3432 = vld [vmem:[#allocation2 + $0xb0] sm:$0xf]
      %v3433 = vld [vmem:[#allocation2 + $0xb4] sm:$0xf]
      %v3434 = vld [vmem:[#allocation2 + $0xb8] sm:$0xf]
      %v3435 = vld [vmem:[#allocation2 + $0xbc] sm:$0xf]
      %v3436 = vld [vmem:[#allocation2 + $0xc0] sm:$0xf]
      %v3437 = vld [vmem:[#allocation2 + $0xc4] sm:$0xf]
      %v3438 = vld [vmem:[#allocation2 + $0xc8] sm:$0xf]
      %s3439 = scalar_lea.vmem %s6, 48
      %v3440 = vld [vmem:[%s3439] sm:$0xf]
      %v3441 = vld [vmem:[%s3439 + $0x4] sm:$0xf]
      %v3442 = vld [vmem:[%s3439 + $0x8] sm:$0xf]
      %v3443 = vld [vmem:[%s3439 + $0xc] sm:$0xf]
      %v3492 = vunpack.c.l.b16 %v3391
      %v3493 = vunpack.c.l.b16 %v3392
      %v3494 = vunpack.c.l.b16 %v3393
      %v3495 = vunpack.c.l.b16 %v3394
      %v3496 = vunpack.c.l.b16 %v3395
      %v3497 = vunpack.c.l.b16 %v3396
      %v3498 = vunpack.c.l.b16 %v3397
      %v3499 = vunpack.c.l.b16 %v3398
      %v3500 = vunpack.c.l.b16 %v3399
      %v3501 = vunpack.c.l.b16 %v3400
      %v3502 = vunpack.c.l.b16 %v3401
      %v3503 = vunpack.c.l.b16 %v3402
      %v3504 = vunpack.c.l.b16 %v3403
      %v3505 = vunpack.c.l.b16 %v3404
      %v3506 = vunpack.c.l.b16 %v3405
      %v3507 = vunpack.c.l.b16 %v3406
      %v3508 = vunpack.c.l.b16 %v3407
      %v3509 = vunpack.c.l.b16 %v3408
      %v3510 = vunpack.c.l.b16 %v3409
      %v3511 = vunpack.c.l.b16 %v3410
      %v3512 = vunpack.c.l.b16 %v3411
      %v3513 = vunpack.c.l.b16 %v3412
      %v3514 = vunpack.c.l.b16 %v3413
      %v3515 = vunpack.c.l.b16 %v3414
      %v3516 = vunpack.c.l.b16 %v3415
      %v3517 = vunpack.c.l.b16 %v3416
      %v3518 = vunpack.c.l.b16 %v3417
      %v3519 = vunpack.c.l.b16 %v3418
      %v3520 = vunpack.c.l.b16 %v3419
      %v3521 = vunpack.c.l.b16 %v3420
      %v3522 = vunpack.c.l.b16 %v3421
      %v3523 = vunpack.c.l.b16 %v3422
      %v3524 = vunpack.c.l.b16 %v3423
      %v3525 = vunpack.c.l.b16 %v3424
      %v3526 = vunpack.c.l.b16 %v3425
      %v3527 = vunpack.c.l.b16 %v3426
      %v3528 = vunpack.c.l.b16 %v3427
      %v3529 = vunpack.c.l.b16 %v3428
      %v3530 = vunpack.c.l.b16 %v3429
      %v3531 = vunpack.c.l.b16 %v3430
      %v3532 = vunpack.c.l.b16 %v3431
      %v3533 = vunpack.c.l.b16 %v3432
      %v3534 = vunpack.c.l.b16 %v3433
      %v3535 = vunpack.c.l.b16 %v3434
      %v3536 = vunpack.c.l.b16 %v3435
      %v3537 = vunpack.c.l.b16 %v3436
      %v3538 = vunpack.c.l.b16 %v3437
      %v3539 = vunpack.c.l.b16 %v3438
      %v3540 = vpack.c.b16 %v3493, %v3492
      %v3541 = vpack.c.b16 %v3495, %v3494
      %v3542 = vpack.c.b16 %v3497, %v3496
      %v3543 = vpack.c.b16 %v3499, %v3498
      %v3544 = vpack.c.b16 %v3501, %v3500
      %v3545 = vpack.c.b16 %v3503, %v3502
      %v3546 = vpack.c.b16 %v3505, %v3504
      %v3547 = vpack.c.b16 %v3507, %v3506
      %v3548 = vpack.c.b16 %v3509, %v3508
      %v3549 = vpack.c.b16 %v3511, %v3510
      %v3550 = vpack.c.b16 %v3513, %v3512
      %v3551 = vpack.c.b16 %v3515, %v3514
      %v3552 = vpack.c.b16 %v3517, %v3516
      %v3553 = vpack.c.b16 %v3519, %v3518
      %v3554 = vpack.c.b16 %v3521, %v3520
      %v3555 = vpack.c.b16 %v3523, %v3522
      %v3556 = vpack.c.b16 %v3525, %v3524
      %v3557 = vpack.c.b16 %v3527, %v3526
      %v3558 = vpack.c.b16 %v3529, %v3528
      %v3559 = vpack.c.b16 %v3531, %v3530
      %v3560 = vpack.c.b16 %v3533, %v3532
      %v3561 = vpack.c.b16 %v3535, %v3534
      %v3562 = vpack.c.b16 %v3537, %v3536
      %v3563 = vpack.c.b16 %v3539, %v3538
      %v3568 = vunpack.c.l.b16 %v3440
      %v3569 = vunpack.c.l.b16 %v3441
      %v3570 = vunpack.c.l.b16 %v3442
      %v3571 = vunpack.c.l.b16 %v3443
      %v3572 = vpack.c.b16 %v3569, %v3568
      %v3573 = vpack.c.b16 %v3571, %v3570
      %v3577 = vsel %vm577, %v3540, 0
      %v3580 = vsel %vm577, %v3541, 0
      %v3583 = vsel %vm577, %v3542, 0
      %v3586 = vsel %vm577, %v3543, 0
      %v3589 = vsel %vm577, %v3544, 0
      %v3592 = vsel %vm577, %v3545, 0
      %v3595 = vsel %vm577, %v3546, 0
      %v3598 = vsel %vm577, %v3547, 0
      %v3601 = vsel %vm577, %v3548, 0
      %v3604 = vsel %vm577, %v3549, 0
      %v3607 = vsel %vm577, %v3550, 0
      %v3610 = vsel %vm577, %v3551, 0
      %v3613 = vsel %vm577, %v3552, 0
      %v3616 = vsel %vm577, %v3553, 0
      %v3619 = vsel %vm577, %v3554, 0
      %v3622 = vsel %vm577, %v3555, 0
      %v3625 = vsel %vm577, %v3556, 0
      %v3628 = vsel %vm577, %v3557, 0
      %v3631 = vsel %vm577, %v3558, 0
      %v3634 = vsel %vm577, %v3559, 0
      %v3637 = vsel %vm577, %v3560, 0
      %v3640 = vsel %vm577, %v3561, 0
      %v3643 = vsel %vm577, %v3562, 0
      %v3646 = vsel %vm577, %v3563, 0
      %3648 = vmatpush.bf16.msra.mxu0 0
      %3649 = vmatpush.bf16.msra.mxu0 0
      %3650 = vmatpush.bf16.msra.mxu0 0
      %3651 = vmatpush.bf16.msra.mxu0 0
      %3652 = vmatpush.bf16.msra.mxu0 0
      %3653 = vmatpush.bf16.msra.mxu0 0
      %3654 = vmatpush.bf16.msra.mxu0 %v3573
      %3655 = vmatpush.bf16.msra.mxu0 %v3572
      %3656 = vmatmul.bf16.gmra.mxu0 %v3577
      %v3657 = vpop.f32.mrf.mxu0
      %v3658 = vadd.f32 0.0, %v3657
      %v3659 = vpop.f32.mrf.mxu0
      %v3660 = vadd.f32 0.0, %v3659
      %3661 = vmatmul.bf16.gmra.mxu0 %v3580
      %v3662 = vpop.f32.mrf.mxu0
      %v3663 = vadd.f32 0.0, %v3662
      %v3664 = vpop.f32.mrf.mxu0
      %v3665 = vadd.f32 0.0, %v3664
      %3666 = vmatmul.bf16.gmra.mxu0 %v3583
      %v3667 = vpop.f32.mrf.mxu0
      %v3668 = vadd.f32 0.0, %v3667
      %v3669 = vpop.f32.mrf.mxu0
      %v3670 = vadd.f32 0.0, %v3669
      %3671 = vmatmul.bf16.gmra.mxu0 %v3586
      %v3672 = vpop.f32.mrf.mxu0
      %v3673 = vadd.f32 0.0, %v3672
      %v3674 = vpop.f32.mrf.mxu0
      %v3675 = vadd.f32 0.0, %v3674
      %3676 = vmatmul.bf16.gmra.mxu0 %v3589
      %v3677 = vpop.f32.mrf.mxu0
      %v3678 = vadd.f32 0.0, %v3677
      %v3679 = vpop.f32.mrf.mxu0
      %v3680 = vadd.f32 0.0, %v3679
      %3681 = vmatmul.bf16.gmra.mxu0 %v3592
      %v3682 = vpop.f32.mrf.mxu0
      %v3683 = vadd.f32 0.0, %v3682
      %v3684 = vpop.f32.mrf.mxu0
      %v3685 = vadd.f32 0.0, %v3684
      %3686 = vmatmul.bf16.gmra.mxu0 %v3595
      %v3687 = vpop.f32.mrf.mxu0
      %v3688 = vadd.f32 0.0, %v3687
      %v3689 = vpop.f32.mrf.mxu0
      %v3690 = vadd.f32 0.0, %v3689
      %3691 = vmatmul.bf16.gmra.mxu0 %v3598
      %v3692 = vpop.f32.mrf.mxu0
      %v3693 = vadd.f32 0.0, %v3692
      %v3694 = vpop.f32.mrf.mxu0
      %v3695 = vadd.f32 0.0, %v3694
      %3696 = vmatmul.bf16.gmra.mxu0 %v3601
      %v3697 = vpop.f32.mrf.mxu0
      %v3698 = vadd.f32 0.0, %v3697
      %v3699 = vpop.f32.mrf.mxu0
      %v3700 = vadd.f32 0.0, %v3699
      %3701 = vmatmul.bf16.gmra.mxu0 %v3604
      %v3702 = vpop.f32.mrf.mxu0
      %v3703 = vadd.f32 0.0, %v3702
      %v3704 = vpop.f32.mrf.mxu0
      %v3705 = vadd.f32 0.0, %v3704
      %3706 = vmatmul.bf16.gmra.mxu0 %v3607
      %v3707 = vpop.f32.mrf.mxu0
      %v3708 = vadd.f32 0.0, %v3707
      %v3709 = vpop.f32.mrf.mxu0
      %v3710 = vadd.f32 0.0, %v3709
      %3711 = vmatmul.bf16.gmra.mxu0 %v3610
      %v3712 = vpop.f32.mrf.mxu0
      %v3713 = vadd.f32 0.0, %v3712
      %v3714 = vpop.f32.mrf.mxu0
      %v3715 = vadd.f32 0.0, %v3714
      %3716 = vmatmul.bf16.gmra.mxu0 %v3613
      %v3717 = vpop.f32.mrf.mxu0
      %v3718 = vadd.f32 0.0, %v3717
      %v3719 = vpop.f32.mrf.mxu0
      %v3720 = vadd.f32 0.0, %v3719
      %3721 = vmatmul.bf16.gmra.mxu0 %v3616
      %v3722 = vpop.f32.mrf.mxu0
      %v3723 = vadd.f32 0.0, %v3722
      %v3724 = vpop.f32.mrf.mxu0
      %v3725 = vadd.f32 0.0, %v3724
      %3726 = vmatmul.bf16.gmra.mxu0 %v3619
      %v3727 = vpop.f32.mrf.mxu0
      %v3728 = vadd.f32 0.0, %v3727
      %v3729 = vpop.f32.mrf.mxu0
      %v3730 = vadd.f32 0.0, %v3729
      %3731 = vmatmul.bf16.gmra.mxu0 %v3622
      %v3732 = vpop.f32.mrf.mxu0
      %v3733 = vadd.f32 0.0, %v3732
      %v3734 = vpop.f32.mrf.mxu0
      %v3735 = vadd.f32 0.0, %v3734
      %3736 = vmatmul.bf16.gmra.mxu0 %v3625
      %v3737 = vpop.f32.mrf.mxu0
      %v3738 = vadd.f32 0.0, %v3737
      %v3739 = vpop.f32.mrf.mxu0
      %v3740 = vadd.f32 0.0, %v3739
      %3741 = vmatmul.bf16.gmra.mxu0 %v3628
      %v3742 = vpop.f32.mrf.mxu0
      %v3743 = vadd.f32 0.0, %v3742
      %v3744 = vpop.f32.mrf.mxu0
      %v3745 = vadd.f32 0.0, %v3744
      %3746 = vmatmul.bf16.gmra.mxu0 %v3631
      %v3747 = vpop.f32.mrf.mxu0
      %v3748 = vadd.f32 0.0, %v3747
      %v3749 = vpop.f32.mrf.mxu0
      %v3750 = vadd.f32 0.0, %v3749
      %3751 = vmatmul.bf16.gmra.mxu0 %v3634
      %v3752 = vpop.f32.mrf.mxu0
      %v3753 = vadd.f32 0.0, %v3752
      %v3754 = vpop.f32.mrf.mxu0
      %v3755 = vadd.f32 0.0, %v3754
      %3756 = vmatmul.bf16.gmra.mxu0 %v3637
      %v3757 = vpop.f32.mrf.mxu0
      %v3758 = vadd.f32 0.0, %v3757
      %v3759 = vpop.f32.mrf.mxu0
      %v3760 = vadd.f32 0.0, %v3759
      %3761 = vmatmul.bf16.gmra.mxu0 %v3640
      %v3762 = vpop.f32.mrf.mxu0
      %v3763 = vadd.f32 0.0, %v3762
      %v3764 = vpop.f32.mrf.mxu0
      %v3765 = vadd.f32 0.0, %v3764
      %3766 = vmatmul.bf16.gmra.mxu0 %v3643
      %v3767 = vpop.f32.mrf.mxu0
      %v3768 = vadd.f32 0.0, %v3767
      %v3769 = vpop.f32.mrf.mxu0
      %v3770 = vadd.f32 0.0, %v3769
      %3771 = vmatmul.bf16.gmra.mxu0 %v3646
      %v3772 = vpop.f32.mrf.mxu0
      %v3773 = vadd.f32 0.0, %v3772
      %v3774 = vpop.f32.mrf.mxu0
      %v3775 = vadd.f32 0.0, %v3774
      %3776 = vdwg.mxu0
      %v3777 = vadd.f32 %v3343, %v3658
      %v3778 = vadd.f32 %v3344, %v3660
      %v3779 = vadd.f32 %v3345, %v3663
      %v3780 = vadd.f32 %v3346, %v3665
      %v3781 = vadd.f32 %v3347, %v3668
      %v3782 = vadd.f32 %v3348, %v3670
      %v3783 = vadd.f32 %v3349, %v3673
      %v3784 = vadd.f32 %v3350, %v3675
      %v3785 = vadd.f32 %v3351, %v3678
      %v3786 = vadd.f32 %v3352, %v3680
      %v3787 = vadd.f32 %v3353, %v3683
      %v3788 = vadd.f32 %v3354, %v3685
      %v3789 = vadd.f32 %v3355, %v3688
      %v3790 = vadd.f32 %v3356, %v3690
      %v3791 = vadd.f32 %v3357, %v3693
      %v3792 = vadd.f32 %v3358, %v3695
      %v3793 = vadd.f32 %v3359, %v3698
      %v3794 = vadd.f32 %v3360, %v3700
      %v3795 = vadd.f32 %v3361, %v3703
      %v3796 = vadd.f32 %v3362, %v3705
      %v3797 = vadd.f32 %v3363, %v3708
      %v3798 = vadd.f32 %v3364, %v3710
      %v3799 = vadd.f32 %v3365, %v3713
      %v3800 = vadd.f32 %v3366, %v3715
      %v3801 = vadd.f32 %v3367, %v3718
      %v3802 = vadd.f32 %v3368, %v3720
      %v3803 = vadd.f32 %v3369, %v3723
      %v3804 = vadd.f32 %v3370, %v3725
      %v3805 = vadd.f32 %v3371, %v3728
      %v3806 = vadd.f32 %v3372, %v3730
      %v3807 = vadd.f32 %v3373, %v3733
      %v3808 = vadd.f32 %v3374, %v3735
      %v3809 = vadd.f32 %v3375, %v3738
      %v3810 = vadd.f32 %v3376, %v3740
      %v3811 = vadd.f32 %v3377, %v3743
      %v3812 = vadd.f32 %v3378, %v3745
      %v3813 = vadd.f32 %v3379, %v3748
      %v3814 = vadd.f32 %v3380, %v3750
      %v3815 = vadd.f32 %v3381, %v3753
      %v3816 = vadd.f32 %v3382, %v3755
      %v3817 = vadd.f32 %v3383, %v3758
      %v3818 = vadd.f32 %v3384, %v3760
      %v3819 = vadd.f32 %v3385, %v3763
      %v3820 = vadd.f32 %v3386, %v3765
      %v3821 = vadd.f32 %v3387, %v3768
      %v3822 = vadd.f32 %v3388, %v3770
      %v3823 = vadd.f32 %v3389, %v3773
      %v3824 = vadd.f32 %v3390, %v3775
      %v3825 = vld [vmem:[#allocation2 + $0xc] sm:$0xf]
      %v3826 = vld [vmem:[#allocation2 + $0x10] sm:$0xf]
      %v3827 = vld [vmem:[#allocation2 + $0x14] sm:$0xf]
      %v3828 = vld [vmem:[#allocation2 + $0x18] sm:$0xf]
      %v3829 = vld [vmem:[#allocation2 + $0x1c] sm:$0xf]
      %v3830 = vld [vmem:[#allocation2 + $0x20] sm:$0xf]
      %v3831 = vld [vmem:[#allocation2 + $0x24] sm:$0xf]
      %v3832 = vld [vmem:[#allocation2 + $0x28] sm:$0xf]
      %v3833 = vld [vmem:[#allocation2 + $0x2c] sm:$0xf]
      %v3834 = vld [vmem:[#allocation2 + $0x30] sm:$0xf]
      %v3835 = vld [vmem:[#allocation2 + $0x34] sm:$0xf]
      %v3836 = vld [vmem:[#allocation2 + $0x38] sm:$0xf]
      %v3837 = vld [vmem:[#allocation2 + $0x3c] sm:$0xf]
      %v3838 = vld [vmem:[#allocation2 + $0x40] sm:$0xf]
      %v3839 = vld [vmem:[#allocation2 + $0x44] sm:$0xf]
      %v3840 = vld [vmem:[#allocation2 + $0x48] sm:$0xf]
      %v3841 = vld [vmem:[#allocation2 + $0x4c] sm:$0xf]
      %v3842 = vld [vmem:[#allocation2 + $0x50] sm:$0xf]
      %v3843 = vld [vmem:[#allocation2 + $0x54] sm:$0xf]
      %v3844 = vld [vmem:[#allocation2 + $0x58] sm:$0xf]
      %v3845 = vld [vmem:[#allocation2 + $0x5c] sm:$0xf]
      %v3846 = vld [vmem:[#allocation2 + $0x60] sm:$0xf]
      %v3847 = vld [vmem:[#allocation2 + $0x64] sm:$0xf]
      %v3848 = vld [vmem:[#allocation2 + $0x68] sm:$0xf]
      %v3849 = vld [vmem:[#allocation2 + $0x6c] sm:$0xf]
      %v3850 = vld [vmem:[#allocation2 + $0x70] sm:$0xf]
      %v3851 = vld [vmem:[#allocation2 + $0x74] sm:$0xf]
      %v3852 = vld [vmem:[#allocation2 + $0x78] sm:$0xf]
      %v3853 = vld [vmem:[#allocation2 + $0x7c] sm:$0xf]
      %v3854 = vld [vmem:[#allocation2 + $0x80] sm:$0xf]
      %v3855 = vld [vmem:[#allocation2 + $0x84] sm:$0xf]
      %v3856 = vld [vmem:[#allocation2 + $0x88] sm:$0xf]
      %v3857 = vld [vmem:[#allocation2 + $0x8c] sm:$0xf]
      %v3858 = vld [vmem:[#allocation2 + $0x90] sm:$0xf]
      %v3859 = vld [vmem:[#allocation2 + $0x94] sm:$0xf]
      %v3860 = vld [vmem:[#allocation2 + $0x98] sm:$0xf]
      %v3861 = vld [vmem:[#allocation2 + $0x9c] sm:$0xf]
      %v3862 = vld [vmem:[#allocation2 + $0xa0] sm:$0xf]
      %v3863 = vld [vmem:[#allocation2 + $0xa4] sm:$0xf]
      %v3864 = vld [vmem:[#allocation2 + $0xa8] sm:$0xf]
      %v3865 = vld [vmem:[#allocation2 + $0xac] sm:$0xf]
      %v3866 = vld [vmem:[#allocation2 + $0xb0] sm:$0xf]
      %v3867 = vld [vmem:[#allocation2 + $0xb4] sm:$0xf]
      %v3868 = vld [vmem:[#allocation2 + $0xb8] sm:$0xf]
      %v3869 = vld [vmem:[#allocation2 + $0xbc] sm:$0xf]
      %v3870 = vld [vmem:[#allocation2 + $0xc0] sm:$0xf]
      %v3871 = vld [vmem:[#allocation2 + $0xc4] sm:$0xf]
      %v3872 = vld [vmem:[#allocation2 + $0xc8] sm:$0xf]
      %v3873 = vld [vmem:[#allocation2 + $0xcc] sm:$0x1]
      %s3874 = scalar_lea.vmem %s6, 64
      %v3875 = vld [vmem:[%s3874] sm:$0xf]
      %v3876 = vld [vmem:[%s3874 + $0x4] sm:$0xf]
      %v3877 = vld [vmem:[%s3874 + $0x8] sm:$0xf]
      %v3878 = vld [vmem:[%s3874 + $0xc] sm:$0xf]
      %v3928 = vunpack.c.l.b16 %v3825
      %v3929 = vunpack.c.l.b16 %v3826
      %v3930 = vunpack.c.l.b16 %v3827
      %v3931 = vunpack.c.l.b16 %v3828
      %v3932 = vunpack.c.l.b16 %v3829
      %v3933 = vunpack.c.l.b16 %v3830
      %v3934 = vunpack.c.l.b16 %v3831
      %v3935 = vunpack.c.l.b16 %v3832
      %v3936 = vunpack.c.l.b16 %v3833
      %v3937 = vunpack.c.l.b16 %v3834
      %v3938 = vunpack.c.l.b16 %v3835
      %v3939 = vunpack.c.l.b16 %v3836
      %v3940 = vunpack.c.l.b16 %v3837
      %v3941 = vunpack.c.l.b16 %v3838
      %v3942 = vunpack.c.l.b16 %v3839
      %v3943 = vunpack.c.l.b16 %v3840
      %v3944 = vunpack.c.l.b16 %v3841
      %v3945 = vunpack.c.l.b16 %v3842
      %v3946 = vunpack.c.l.b16 %v3843
      %v3947 = vunpack.c.l.b16 %v3844
      %v3948 = vunpack.c.l.b16 %v3845
      %v3949 = vunpack.c.l.b16 %v3846
      %v3950 = vunpack.c.l.b16 %v3847
      %v3951 = vunpack.c.l.b16 %v3848
      %v3952 = vunpack.c.l.b16 %v3849
      %v3953 = vunpack.c.l.b16 %v3850
      %v3954 = vunpack.c.l.b16 %v3851
      %v3955 = vunpack.c.l.b16 %v3852
      %v3956 = vunpack.c.l.b16 %v3853
      %v3957 = vunpack.c.l.b16 %v3854
      %v3958 = vunpack.c.l.b16 %v3855
      %v3959 = vunpack.c.l.b16 %v3856
      %v3960 = vunpack.c.l.b16 %v3857
      %v3961 = vunpack.c.l.b16 %v3858
      %v3962 = vunpack.c.l.b16 %v3859
      %v3963 = vunpack.c.l.b16 %v3860
      %v3964 = vunpack.c.l.b16 %v3861
      %v3965 = vunpack.c.l.b16 %v3862
      %v3966 = vunpack.c.l.b16 %v3863
      %v3967 = vunpack.c.l.b16 %v3864
      %v3968 = vunpack.c.l.b16 %v3865
      %v3969 = vunpack.c.l.b16 %v3866
      %v3970 = vunpack.c.l.b16 %v3867
      %v3971 = vunpack.c.l.b16 %v3868
      %v3972 = vunpack.c.l.b16 %v3869
      %v3973 = vunpack.c.l.b16 %v3870
      %v3974 = vunpack.c.l.b16 %v3871
      %v3975 = vunpack.c.l.b16 %v3872
      %v3976 = vunpack.c.l.b16 %v3873
      %v3977 = vpack.c.b16 %v3929, %v3928
      %v3978 = vpack.c.b16 %v3931, %v3930
      %v3979 = vpack.c.b16 %v3933, %v3932
      %v3980 = vpack.c.b16 %v3935, %v3934
      %v3981 = vpack.c.b16 %v3937, %v3936
      %v3982 = vpack.c.b16 %v3939, %v3938
      %v3983 = vpack.c.b16 %v3941, %v3940
      %v3984 = vpack.c.b16 %v3943, %v3942
      %v3985 = vpack.c.b16 %v3945, %v3944
      %v3986 = vpack.c.b16 %v3947, %v3946
      %v3987 = vpack.c.b16 %v3949, %v3948
      %v3988 = vpack.c.b16 %v3951, %v3950
      %v3989 = vpack.c.b16 %v3953, %v3952
      %v3990 = vpack.c.b16 %v3955, %v3954
      %v3991 = vpack.c.b16 %v3957, %v3956
      %v3992 = vpack.c.b16 %v3959, %v3958
      %v3993 = vpack.c.b16 %v3961, %v3960
      %v3994 = vpack.c.b16 %v3963, %v3962
      %v3995 = vpack.c.b16 %v3965, %v3964
      %v3996 = vpack.c.b16 %v3967, %v3966
      %v3997 = vpack.c.b16 %v3969, %v3968
      %v3998 = vpack.c.b16 %v3971, %v3970
      %v3999 = vpack.c.b16 %v3973, %v3972
      %v4000 = vpack.c.b16 %v3975, %v3974
      %v4001 = vpack.c.b16 %v3976, %v3976
      %v4003 = vshrl.u32 %v3977, 16
      %v4005 = vshll.u32 %v3977, 16
      %v4007 = vrot.slane %v4005, 1
      %v4008 = vor.u32 %v4003, %v4007
      %v4010 = vshll.u32 %v3978, 16
      %v4012 = vrot.slane %v4010, 1
      %v4013 = vsel %vm2472, %v4008, %v4012
      %v4014 = vshrl.u32 %v3978, 16
      %v4016 = vor.u32 %v4014, %v4012
      %v4018 = vshll.u32 %v3979, 16
      %v4020 = vrot.slane %v4018, 1
      %v4021 = vsel %vm2472, %v4016, %v4020
      %v4022 = vshrl.u32 %v3979, 16
      %v4024 = vor.u32 %v4022, %v4020
      %v4026 = vshll.u32 %v3980, 16
      %v4028 = vrot.slane %v4026, 1
      %v4029 = vsel %vm2472, %v4024, %v4028
      %v4030 = vshrl.u32 %v3980, 16
      %v4032 = vor.u32 %v4030, %v4028
      %v4034 = vshll.u32 %v3981, 16
      %v4036 = vrot.slane %v4034, 1
      %v4037 = vsel %vm2472, %v4032, %v4036
      %v4038 = vshrl.u32 %v3981, 16
      %v4040 = vor.u32 %v4038, %v4036
      %v4042 = vshll.u32 %v3982, 16
      %v4044 = vrot.slane %v4042, 1
      %v4045 = vsel %vm2472, %v4040, %v4044
      %v4046 = vshrl.u32 %v3982, 16
      %v4048 = vor.u32 %v4046, %v4044
      %v4050 = vshll.u32 %v3983, 16
      %v4052 = vrot.slane %v4050, 1
      %v4053 = vsel %vm2472, %v4048, %v4052
      %v4054 = vshrl.u32 %v3983, 16
      %v4056 = vor.u32 %v4054, %v4052
      %v4058 = vshll.u32 %v3984, 16
      %v4060 = vrot.slane %v4058, 1
      %v4061 = vsel %vm2472, %v4056, %v4060
      %v4062 = vshrl.u32 %v3984, 16
      %v4064 = vor.u32 %v4062, %v4060
      %v4066 = vshll.u32 %v3985, 16
      %v4068 = vrot.slane %v4066, 1
      %v4069 = vsel %vm2472, %v4064, %v4068
      %v4070 = vshrl.u32 %v3985, 16
      %v4072 = vor.u32 %v4070, %v4068
      %v4074 = vshll.u32 %v3986, 16
      %v4076 = vrot.slane %v4074, 1
      %v4077 = vsel %vm2472, %v4072, %v4076
      %v4078 = vshrl.u32 %v3986, 16
      %v4080 = vor.u32 %v4078, %v4076
      %v4082 = vshll.u32 %v3987, 16
      %v4084 = vrot.slane %v4082, 1
      %v4085 = vsel %vm2472, %v4080, %v4084
      %v4086 = vshrl.u32 %v3987, 16
      %v4088 = vor.u32 %v4086, %v4084
      %v4090 = vshll.u32 %v3988, 16
      %v4092 = vrot.slane %v4090, 1
      %v4093 = vsel %vm2472, %v4088, %v4092
      %v4094 = vshrl.u32 %v3988, 16
      %v4096 = vor.u32 %v4094, %v4092
      %v4098 = vshll.u32 %v3989, 16
      %v4100 = vrot.slane %v4098, 1
      %v4101 = vsel %vm2472, %v4096, %v4100
      %v4102 = vshrl.u32 %v3989, 16
      %v4104 = vor.u32 %v4102, %v4100
      %v4106 = vshll.u32 %v3990, 16
      %v4108 = vrot.slane %v4106, 1
      %v4109 = vsel %vm2472, %v4104, %v4108
      %v4110 = vshrl.u32 %v3990, 16
      %v4112 = vor.u32 %v4110, %v4108
      %v4114 = vshll.u32 %v3991, 16
      %v4116 = vrot.slane %v4114, 1
      %v4117 = vsel %vm2472, %v4112, %v4116
      %v4118 = vshrl.u32 %v3991, 16
      %v4120 = vor.u32 %v4118, %v4116
      %v4122 = vshll.u32 %v3992, 16
      %v4124 = vrot.slane %v4122, 1
      %v4125 = vsel %vm2472, %v4120, %v4124
      %v4126 = vshrl.u32 %v3992, 16
      %v4128 = vor.u32 %v4126, %v4124
      %v4130 = vshll.u32 %v3993, 16
      %v4132 = vrot.slane %v4130, 1
      %v4133 = vsel %vm2472, %v4128, %v4132
      %v4134 = vshrl.u32 %v3993, 16
      %v4136 = vor.u32 %v4134, %v4132
      %v4138 = vshll.u32 %v3994, 16
      %v4140 = vrot.slane %v4138, 1
      %v4141 = vsel %vm2472, %v4136, %v4140
      %v4142 = vshrl.u32 %v3994, 16
      %v4144 = vor.u32 %v4142, %v4140
      %v4146 = vshll.u32 %v3995, 16
      %v4148 = vrot.slane %v4146, 1
      %v4149 = vsel %vm2472, %v4144, %v4148
      %v4150 = vshrl.u32 %v3995, 16
      %v4152 = vor.u32 %v4150, %v4148
      %v4154 = vshll.u32 %v3996, 16
      %v4156 = vrot.slane %v4154, 1
      %v4157 = vsel %vm2472, %v4152, %v4156
      %v4158 = vshrl.u32 %v3996, 16
      %v4160 = vor.u32 %v4158, %v4156
      %v4162 = vshll.u32 %v3997, 16
      %v4164 = vrot.slane %v4162, 1
      %v4165 = vsel %vm2472, %v4160, %v4164
      %v4166 = vshrl.u32 %v3997, 16
      %v4168 = vor.u32 %v4166, %v4164
      %v4170 = vshll.u32 %v3998, 16
      %v4172 = vrot.slane %v4170, 1
      %v4173 = vsel %vm2472, %v4168, %v4172
      %v4174 = vshrl.u32 %v3998, 16
      %v4176 = vor.u32 %v4174, %v4172
      %v4178 = vshll.u32 %v3999, 16
      %v4180 = vrot.slane %v4178, 1
      %v4181 = vsel %vm2472, %v4176, %v4180
      %v4182 = vshrl.u32 %v3999, 16
      %v4184 = vor.u32 %v4182, %v4180
      %v4186 = vshll.u32 %v4000, 16
      %v4188 = vrot.slane %v4186, 1
      %v4189 = vsel %vm2472, %v4184, %v4188
      %v4190 = vshrl.u32 %v4000, 16
      %v4192 = vor.u32 %v4190, %v4188
      %v4194 = vshll.u32 %v4001, 16
      %v4196 = vrot.slane %v4194, 1
      %v4197 = vsel %vm2472, %v4192, %v4196
      %v4202 = vunpack.c.l.b16 %v3875
      %v4203 = vunpack.c.l.b16 %v3876
      %v4204 = vunpack.c.l.b16 %v3877
      %v4205 = vunpack.c.l.b16 %v3878
      %v4206 = vpack.c.b16 %v4203, %v4202
      %v4207 = vpack.c.b16 %v4205, %v4204
      %v4211 = vsel %vm577, %v4013, 0
      %v4214 = vsel %vm577, %v4021, 0
      %v4217 = vsel %vm577, %v4029, 0
      %v4220 = vsel %vm577, %v4037, 0
      %v4223 = vsel %vm577, %v4045, 0
      %v4226 = vsel %vm577, %v4053, 0
      %v4229 = vsel %vm577, %v4061, 0
      %v4232 = vsel %vm577, %v4069, 0
      %v4235 = vsel %vm577, %v4077, 0
      %v4238 = vsel %vm577, %v4085, 0
      %v4241 = vsel %vm577, %v4093, 0
      %v4244 = vsel %vm577, %v4101, 0
      %v4247 = vsel %vm577, %v4109, 0
      %v4250 = vsel %vm577, %v4117, 0
      %v4253 = vsel %vm577, %v4125, 0
      %v4256 = vsel %vm577, %v4133, 0
      %v4259 = vsel %vm577, %v4141, 0
      %v4262 = vsel %vm577, %v4149, 0
      %v4265 = vsel %vm577, %v4157, 0
      %v4268 = vsel %vm577, %v4165, 0
      %v4271 = vsel %vm577, %v4173, 0
      %v4274 = vsel %vm577, %v4181, 0
      %v4277 = vsel %vm577, %v4189, 0
      %v4280 = vsel %vm577, %v4197, 0
      %4282 = vmatpush.bf16.msra.mxu0 0
      %4283 = vmatpush.bf16.msra.mxu0 0
      %4284 = vmatpush.bf16.msra.mxu0 0
      %4285 = vmatpush.bf16.msra.mxu0 0
      %4286 = vmatpush.bf16.msra.mxu0 0
      %4287 = vmatpush.bf16.msra.mxu0 0
      %4288 = vmatpush.bf16.msra.mxu0 %v4207
      %4289 = vmatpush.bf16.msra.mxu0 %v4206
      %4290 = vmatmul.bf16.gmra.mxu0 %v4211
      %v4291 = vpop.f32.mrf.mxu0
      %v4292 = vadd.f32 0.0, %v4291
      %v4293 = vpop.f32.mrf.mxu0
      %v4294 = vadd.f32 0.0, %v4293
      %4295 = vmatmul.bf16.gmra.mxu0 %v4214
      %v4296 = vpop.f32.mrf.mxu0
      %v4297 = vadd.f32 0.0, %v4296
      %v4298 = vpop.f32.mrf.mxu0
      %v4299 = vadd.f32 0.0, %v4298
      %4300 = vmatmul.bf16.gmra.mxu0 %v4217
      %v4301 = vpop.f32.mrf.mxu0
      %v4302 = vadd.f32 0.0, %v4301
      %v4303 = vpop.f32.mrf.mxu0
      %v4304 = vadd.f32 0.0, %v4303
      %4305 = vmatmul.bf16.gmra.mxu0 %v4220
      %v4306 = vpop.f32.mrf.mxu0
      %v4307 = vadd.f32 0.0, %v4306
      %v4308 = vpop.f32.mrf.mxu0
      %v4309 = vadd.f32 0.0, %v4308
      %4310 = vmatmul.bf16.gmra.mxu0 %v4223
      %v4311 = vpop.f32.mrf.mxu0
      %v4312 = vadd.f32 0.0, %v4311
      %v4313 = vpop.f32.mrf.mxu0
      %v4314 = vadd.f32 0.0, %v4313
      %4315 = vmatmul.bf16.gmra.mxu0 %v4226
      %v4316 = vpop.f32.mrf.mxu0
      %v4317 = vadd.f32 0.0, %v4316
      %v4318 = vpop.f32.mrf.mxu0
      %v4319 = vadd.f32 0.0, %v4318
      %4320 = vmatmul.bf16.gmra.mxu0 %v4229
      %v4321 = vpop.f32.mrf.mxu0
      %v4322 = vadd.f32 0.0, %v4321
      %v4323 = vpop.f32.mrf.mxu0
      %v4324 = vadd.f32 0.0, %v4323
      %4325 = vmatmul.bf16.gmra.mxu0 %v4232
      %v4326 = vpop.f32.mrf.mxu0
      %v4327 = vadd.f32 0.0, %v4326
      %v4328 = vpop.f32.mrf.mxu0
      %v4329 = vadd.f32 0.0, %v4328
      %4330 = vmatmul.bf16.gmra.mxu0 %v4235
      %v4331 = vpop.f32.mrf.mxu0
      %v4332 = vadd.f32 0.0, %v4331
      %v4333 = vpop.f32.mrf.mxu0
      %v4334 = vadd.f32 0.0, %v4333
      %4335 = vmatmul.bf16.gmra.mxu0 %v4238
      %v4336 = vpop.f32.mrf.mxu0
      %v4337 = vadd.f32 0.0, %v4336
      %v4338 = vpop.f32.mrf.mxu0
      %v4339 = vadd.f32 0.0, %v4338
      %4340 = vmatmul.bf16.gmra.mxu0 %v4241
      %v4341 = vpop.f32.mrf.mxu0
      %v4342 = vadd.f32 0.0, %v4341
      %v4343 = vpop.f32.mrf.mxu0
      %v4344 = vadd.f32 0.0, %v4343
      %4345 = vmatmul.bf16.gmra.mxu0 %v4244
      %v4346 = vpop.f32.mrf.mxu0
      %v4347 = vadd.f32 0.0, %v4346
      %v4348 = vpop.f32.mrf.mxu0
      %v4349 = vadd.f32 0.0, %v4348
      %4350 = vmatmul.bf16.gmra.mxu0 %v4247
      %v4351 = vpop.f32.mrf.mxu0
      %v4352 = vadd.f32 0.0, %v4351
      %v4353 = vpop.f32.mrf.mxu0
      %v4354 = vadd.f32 0.0, %v4353
      %4355 = vmatmul.bf16.gmra.mxu0 %v4250
      %v4356 = vpop.f32.mrf.mxu0
      %v4357 = vadd.f32 0.0, %v4356
      %v4358 = vpop.f32.mrf.mxu0
      %v4359 = vadd.f32 0.0, %v4358
      %4360 = vmatmul.bf16.gmra.mxu0 %v4253
      %v4361 = vpop.f32.mrf.mxu0
      %v4362 = vadd.f32 0.0, %v4361
      %v4363 = vpop.f32.mrf.mxu0
      %v4364 = vadd.f32 0.0, %v4363
      %4365 = vmatmul.bf16.gmra.mxu0 %v4256
      %v4366 = vpop.f32.mrf.mxu0
      %v4367 = vadd.f32 0.0, %v4366
      %v4368 = vpop.f32.mrf.mxu0
      %v4369 = vadd.f32 0.0, %v4368
      %4370 = vmatmul.bf16.gmra.mxu0 %v4259
      %v4371 = vpop.f32.mrf.mxu0
      %v4372 = vadd.f32 0.0, %v4371
      %v4373 = vpop.f32.mrf.mxu0
      %v4374 = vadd.f32 0.0, %v4373
      %4375 = vmatmul.bf16.gmra.mxu0 %v4262
      %v4376 = vpop.f32.mrf.mxu0
      %v4377 = vadd.f32 0.0, %v4376
      %v4378 = vpop.f32.mrf.mxu0
      %v4379 = vadd.f32 0.0, %v4378
      %4380 = vmatmul.bf16.gmra.mxu0 %v4265
      %v4381 = vpop.f32.mrf.mxu0
      %v4382 = vadd.f32 0.0, %v4381
      %v4383 = vpop.f32.mrf.mxu0
      %v4384 = vadd.f32 0.0, %v4383
      %4385 = vmatmul.bf16.gmra.mxu0 %v4268
      %v4386 = vpop.f32.mrf.mxu0
      %v4387 = vadd.f32 0.0, %v4386
      %v4388 = vpop.f32.mrf.mxu0
      %v4389 = vadd.f32 0.0, %v4388
      %4390 = vmatmul.bf16.gmra.mxu0 %v4271
      %v4391 = vpop.f32.mrf.mxu0
      %v4392 = vadd.f32 0.0, %v4391
      %v4393 = vpop.f32.mrf.mxu0
      %v4394 = vadd.f32 0.0, %v4393
      %4395 = vmatmul.bf16.gmra.mxu0 %v4274
      %v4396 = vpop.f32.mrf.mxu0
      %v4397 = vadd.f32 0.0, %v4396
      %v4398 = vpop.f32.mrf.mxu0
      %v4399 = vadd.f32 0.0, %v4398
      %4400 = vmatmul.bf16.gmra.mxu0 %v4277
      %v4401 = vpop.f32.mrf.mxu0
      %v4402 = vadd.f32 0.0, %v4401
      %v4403 = vpop.f32.mrf.mxu0
      %v4404 = vadd.f32 0.0, %v4403
      %4405 = vmatmul.bf16.gmra.mxu0 %v4280
      %v4406 = vpop.f32.mrf.mxu0
      %v4407 = vadd.f32 0.0, %v4406
      %v4408 = vpop.f32.mrf.mxu0
      %v4409 = vadd.f32 0.0, %v4408
      %4410 = vdwg.mxu0
      %v4411 = vadd.f32 %v3777, %v4292
      %v4412 = vadd.f32 %v3778, %v4294
      %v4413 = vadd.f32 %v3779, %v4297
      %v4414 = vadd.f32 %v3780, %v4299
      %v4415 = vadd.f32 %v3781, %v4302
      %v4416 = vadd.f32 %v3782, %v4304
      %v4417 = vadd.f32 %v3783, %v4307
      %v4418 = vadd.f32 %v3784, %v4309
      %v4419 = vadd.f32 %v3785, %v4312
      %v4420 = vadd.f32 %v3786, %v4314
      %v4421 = vadd.f32 %v3787, %v4317
      %v4422 = vadd.f32 %v3788, %v4319
      %v4423 = vadd.f32 %v3789, %v4322
      %v4424 = vadd.f32 %v3790, %v4324
      %v4425 = vadd.f32 %v3791, %v4327
      %v4426 = vadd.f32 %v3792, %v4329
      %v4427 = vadd.f32 %v3793, %v4332
      %v4428 = vadd.f32 %v3794, %v4334
      %v4429 = vadd.f32 %v3795, %v4337
      %v4430 = vadd.f32 %v3796, %v4339
      %v4431 = vadd.f32 %v3797, %v4342
      %v4432 = vadd.f32 %v3798, %v4344
      %v4433 = vadd.f32 %v3799, %v4347
      %v4434 = vadd.f32 %v3800, %v4349
      %v4435 = vadd.f32 %v3801, %v4352
      %v4436 = vadd.f32 %v3802, %v4354
      %v4437 = vadd.f32 %v3803, %v4357
      %v4438 = vadd.f32 %v3804, %v4359
      %v4439 = vadd.f32 %v3805, %v4362
      %v4440 = vadd.f32 %v3806, %v4364
      %v4441 = vadd.f32 %v3807, %v4367
      %v4442 = vadd.f32 %v3808, %v4369
      %v4443 = vadd.f32 %v3809, %v4372
      %v4444 = vadd.f32 %v3810, %v4374
      %v4445 = vadd.f32 %v3811, %v4377
      %v4446 = vadd.f32 %v3812, %v4379
      %v4447 = vadd.f32 %v3813, %v4382
      %v4448 = vadd.f32 %v3814, %v4384
      %v4449 = vadd.f32 %v3815, %v4387
      %v4450 = vadd.f32 %v3816, %v4389
      %v4451 = vadd.f32 %v3817, %v4392
      %v4452 = vadd.f32 %v3818, %v4394
      %v4453 = vadd.f32 %v3819, %v4397
      %v4454 = vadd.f32 %v3820, %v4399
      %v4455 = vadd.f32 %v3821, %v4402
      %v4456 = vadd.f32 %v3822, %v4404
      %v4457 = vadd.f32 %v3823, %v4407
      %v4458 = vadd.f32 %v3824, %v4409
      %v4459 = vld [vmem:[#allocation2 + $0xc] sm:$0xe]
      %s4460 = scalar_lea.vmem %s6, 80
      %v4461 = vld [vmem:[%s4460] sm:$0xf]
      %v4462 = vld [vmem:[%s4460 + $0x4] sm:$0xf]
      %v4463 = vld [vmem:[%s4460 + $0x8] sm:$0xf]
      %v4464 = vld [vmem:[%s4460 + $0xc] sm:$0xf]
      %v4466 = vunpack.c.l.b16 %v4459
      %v4467 = vpack.c.b16 %v3929, %v4466
      %v4468 = vrot.slane %v4467, 1
      %v4469 = vrot.slane %v3978, 1
      %v4470 = vsel %vm3080, %v4468, %v4469
      %v4471 = vrot.slane %v3979, 1
      %v4472 = vsel %vm3080, %v4469, %v4471
      %v4473 = vrot.slane %v3980, 1
      %v4474 = vsel %vm3080, %v4471, %v4473
      %v4475 = vrot.slane %v3981, 1
      %v4476 = vsel %vm3080, %v4473, %v4475
      %v4477 = vrot.slane %v3982, 1
      %v4478 = vsel %vm3080, %v4475, %v4477
      %v4479 = vrot.slane %v3983, 1
      %v4480 = vsel %vm3080, %v4477, %v4479
      %v4481 = vrot.slane %v3984, 1
      %v4482 = vsel %vm3080, %v4479, %v4481
      %v4483 = vrot.slane %v3985, 1
      %v4484 = vsel %vm3080, %v4481, %v4483
      %v4485 = vrot.slane %v3986, 1
      %v4486 = vsel %vm3080, %v4483, %v4485
      %v4487 = vrot.slane %v3987, 1
      %v4488 = vsel %vm3080, %v4485, %v4487
      %v4489 = vrot.slane %v3988, 1
      %v4490 = vsel %vm3080, %v4487, %v4489
      %v4491 = vrot.slane %v3989, 1
      %v4492 = vsel %vm3080, %v4489, %v4491
      %v4493 = vrot.slane %v3990, 1
      %v4494 = vsel %vm3080, %v4491, %v4493
      %v4495 = vrot.slane %v3991, 1
      %v4496 = vsel %vm3080, %v4493, %v4495
      %v4497 = vrot.slane %v3992, 1
      %v4498 = vsel %vm3080, %v4495, %v4497
      %v4499 = vrot.slane %v3993, 1
      %v4500 = vsel %vm3080, %v4497, %v4499
      %v4501 = vrot.slane %v3994, 1
      %v4502 = vsel %vm3080, %v4499, %v4501
      %v4503 = vrot.slane %v3995, 1
      %v4504 = vsel %vm3080, %v4501, %v4503
      %v4505 = vrot.slane %v3996, 1
      %v4506 = vsel %vm3080, %v4503, %v4505
      %v4507 = vrot.slane %v3997, 1
      %v4508 = vsel %vm3080, %v4505, %v4507
      %v4509 = vrot.slane %v3998, 1
      %v4510 = vsel %vm3080, %v4507, %v4509
      %v4511 = vrot.slane %v3999, 1
      %v4512 = vsel %vm3080, %v4509, %v4511
      %v4513 = vrot.slane %v4000, 1
      %v4514 = vsel %vm3080, %v4511, %v4513
      %v4515 = vrot.slane %v4001, 1
      %v4516 = vsel %vm3080, %v4513, %v4515
      %v4521 = vunpack.c.l.b16 %v4461
      %v4522 = vunpack.c.l.b16 %v4462
      %v4523 = vunpack.c.l.b16 %v4463
      %v4524 = vunpack.c.l.b16 %v4464
      %v4525 = vpack.c.b16 %v4522, %v4521
      %v4526 = vpack.c.b16 %v4524, %v4523
      %v4530 = vsel %vm577, %v4470, 0
      %v4533 = vsel %vm577, %v4472, 0
      %v4536 = vsel %vm577, %v4474, 0
      %v4539 = vsel %vm577, %v4476, 0
      %v4542 = vsel %vm577, %v4478, 0
      %v4545 = vsel %vm577, %v4480, 0
      %v4548 = vsel %vm577, %v4482, 0
      %v4551 = vsel %vm577, %v4484, 0
      %v4554 = vsel %vm577, %v4486, 0
      %v4557 = vsel %vm577, %v4488, 0
      %v4560 = vsel %vm577, %v4490, 0
      %v4563 = vsel %vm577, %v4492, 0
      %v4566 = vsel %vm577, %v4494, 0
      %v4569 = vsel %vm577, %v4496, 0
      %v4572 = vsel %vm577, %v4498, 0
      %v4575 = vsel %vm577, %v4500, 0
      %v4578 = vsel %vm577, %v4502, 0
      %v4581 = vsel %vm577, %v4504, 0
      %v4584 = vsel %vm577, %v4506, 0
      %v4587 = vsel %vm577, %v4508, 0
      %v4590 = vsel %vm577, %v4510, 0
      %v4593 = vsel %vm577, %v4512, 0
      %v4596 = vsel %vm577, %v4514, 0
      %v4599 = vsel %vm577, %v4516, 0
      %4601 = vmatpush.bf16.msra.mxu0 0
      %4602 = vmatpush.bf16.msra.mxu0 0
      %4603 = vmatpush.bf16.msra.mxu0 0
      %4604 = vmatpush.bf16.msra.mxu0 0
      %4605 = vmatpush.bf16.msra.mxu0 0
      %4606 = vmatpush.bf16.msra.mxu0 0
      %4607 = vmatpush.bf16.msra.mxu0 %v4526
      %4608 = vmatpush.bf16.msra.mxu0 %v4525
      %4609 = vmatmul.bf16.gmra.mxu0 %v4530
      %v4610 = vpop.f32.mrf.mxu0
      %v4611 = vadd.f32 0.0, %v4610
      %v4612 = vpop.f32.mrf.mxu0
      %v4613 = vadd.f32 0.0, %v4612
      %4614 = vmatmul.bf16.gmra.mxu0 %v4533
      %v4615 = vpop.f32.mrf.mxu0
      %v4616 = vadd.f32 0.0, %v4615
      %v4617 = vpop.f32.mrf.mxu0
      %v4618 = vadd.f32 0.0, %v4617
      %4619 = vmatmul.bf16.gmra.mxu0 %v4536
      %v4620 = vpop.f32.mrf.mxu0
      %v4621 = vadd.f32 0.0, %v4620
      %v4622 = vpop.f32.mrf.mxu0
      %v4623 = vadd.f32 0.0, %v4622
      %4624 = vmatmul.bf16.gmra.mxu0 %v4539
      %v4625 = vpop.f32.mrf.mxu0
      %v4626 = vadd.f32 0.0, %v4625
      %v4627 = vpop.f32.mrf.mxu0
      %v4628 = vadd.f32 0.0, %v4627
      %4629 = vmatmul.bf16.gmra.mxu0 %v4542
      %v4630 = vpop.f32.mrf.mxu0
      %v4631 = vadd.f32 0.0, %v4630
      %v4632 = vpop.f32.mrf.mxu0
      %v4633 = vadd.f32 0.0, %v4632
      %4634 = vmatmul.bf16.gmra.mxu0 %v4545
      %v4635 = vpop.f32.mrf.mxu0
      %v4636 = vadd.f32 0.0, %v4635
      %v4637 = vpop.f32.mrf.mxu0
      %v4638 = vadd.f32 0.0, %v4637
      %4639 = vmatmul.bf16.gmra.mxu0 %v4548
      %v4640 = vpop.f32.mrf.mxu0
      %v4641 = vadd.f32 0.0, %v4640
      %v4642 = vpop.f32.mrf.mxu0
      %v4643 = vadd.f32 0.0, %v4642
      %4644 = vmatmul.bf16.gmra.mxu0 %v4551
      %v4645 = vpop.f32.mrf.mxu0
      %v4646 = vadd.f32 0.0, %v4645
      %v4647 = vpop.f32.mrf.mxu0
      %v4648 = vadd.f32 0.0, %v4647
      %4649 = vmatmul.bf16.gmra.mxu0 %v4554
      %v4650 = vpop.f32.mrf.mxu0
      %v4651 = vadd.f32 0.0, %v4650
      %v4652 = vpop.f32.mrf.mxu0
      %v4653 = vadd.f32 0.0, %v4652
      %4654 = vmatmul.bf16.gmra.mxu0 %v4557
      %v4655 = vpop.f32.mrf.mxu0
      %v4656 = vadd.f32 0.0, %v4655
      %v4657 = vpop.f32.mrf.mxu0
      %v4658 = vadd.f32 0.0, %v4657
      %4659 = vmatmul.bf16.gmra.mxu0 %v4560
      %v4660 = vpop.f32.mrf.mxu0
      %v4661 = vadd.f32 0.0, %v4660
      %v4662 = vpop.f32.mrf.mxu0
      %v4663 = vadd.f32 0.0, %v4662
      %4664 = vmatmul.bf16.gmra.mxu0 %v4563
      %v4665 = vpop.f32.mrf.mxu0
      %v4666 = vadd.f32 0.0, %v4665
      %v4667 = vpop.f32.mrf.mxu0
      %v4668 = vadd.f32 0.0, %v4667
      %4669 = vmatmul.bf16.gmra.mxu0 %v4566
      %v4670 = vpop.f32.mrf.mxu0
      %v4671 = vadd.f32 0.0, %v4670
      %v4672 = vpop.f32.mrf.mxu0
      %v4673 = vadd.f32 0.0, %v4672
      %4674 = vmatmul.bf16.gmra.mxu0 %v4569
      %v4675 = vpop.f32.mrf.mxu0
      %v4676 = vadd.f32 0.0, %v4675
      %v4677 = vpop.f32.mrf.mxu0
      %v4678 = vadd.f32 0.0, %v4677
      %4679 = vmatmul.bf16.gmra.mxu0 %v4572
      %v4680 = vpop.f32.mrf.mxu0
      %v4681 = vadd.f32 0.0, %v4680
      %v4682 = vpop.f32.mrf.mxu0
      %v4683 = vadd.f32 0.0, %v4682
      %4684 = vmatmul.bf16.gmra.mxu0 %v4575
      %v4685 = vpop.f32.mrf.mxu0
      %v4686 = vadd.f32 0.0, %v4685
      %v4687 = vpop.f32.mrf.mxu0
      %v4688 = vadd.f32 0.0, %v4687
      %4689 = vmatmul.bf16.gmra.mxu0 %v4578
      %v4690 = vpop.f32.mrf.mxu0
      %v4691 = vadd.f32 0.0, %v4690
      %v4692 = vpop.f32.mrf.mxu0
      %v4693 = vadd.f32 0.0, %v4692
      %4694 = vmatmul.bf16.gmra.mxu0 %v4581
      %v4695 = vpop.f32.mrf.mxu0
      %v4696 = vadd.f32 0.0, %v4695
      %v4697 = vpop.f32.mrf.mxu0
      %v4698 = vadd.f32 0.0, %v4697
      %4699 = vmatmul.bf16.gmra.mxu0 %v4584
      %v4700 = vpop.f32.mrf.mxu0
      %v4701 = vadd.f32 0.0, %v4700
      %v4702 = vpop.f32.mrf.mxu0
      %v4703 = vadd.f32 0.0, %v4702
      %4704 = vmatmul.bf16.gmra.mxu0 %v4587
      %v4705 = vpop.f32.mrf.mxu0
      %v4706 = vadd.f32 0.0, %v4705
      %v4707 = vpop.f32.mrf.mxu0
      %v4708 = vadd.f32 0.0, %v4707
      %4709 = vmatmul.bf16.gmra.mxu0 %v4590
      %v4710 = vpop.f32.mrf.mxu0
      %v4711 = vadd.f32 0.0, %v4710
      %v4712 = vpop.f32.mrf.mxu0
      %v4713 = vadd.f32 0.0, %v4712
      %4714 = vmatmul.bf16.gmra.mxu0 %v4593
      %v4715 = vpop.f32.mrf.mxu0
      %v4716 = vadd.f32 0.0, %v4715
      %v4717 = vpop.f32.mrf.mxu0
      %v4718 = vadd.f32 0.0, %v4717
      %4719 = vmatmul.bf16.gmra.mxu0 %v4596
      %v4720 = vpop.f32.mrf.mxu0
      %v4721 = vadd.f32 0.0, %v4720
      %v4722 = vpop.f32.mrf.mxu0
      %v4723 = vadd.f32 0.0, %v4722
      %4724 = vmatmul.bf16.gmra.mxu0 %v4599
      %v4725 = vpop.f32.mrf.mxu0
      %v4726 = vadd.f32 0.0, %v4725
      %v4727 = vpop.f32.mrf.mxu0
      %v4728 = vadd.f32 0.0, %v4727
      %4729 = vdwg.mxu0
      %v4730 = vadd.f32 %v4411, %v4611
      %v4731 = vadd.f32 %v4412, %v4613
      %v4732 = vadd.f32 %v4413, %v4616
      %v4733 = vadd.f32 %v4414, %v4618
      %v4734 = vadd.f32 %v4415, %v4621
      %v4735 = vadd.f32 %v4416, %v4623
      %v4736 = vadd.f32 %v4417, %v4626
      %v4737 = vadd.f32 %v4418, %v4628
      %v4738 = vadd.f32 %v4419, %v4631
      %v4739 = vadd.f32 %v4420, %v4633
      %v4740 = vadd.f32 %v4421, %v4636
      %v4741 = vadd.f32 %v4422, %v4638
      %v4742 = vadd.f32 %v4423, %v4641
      %v4743 = vadd.f32 %v4424, %v4643
      %v4744 = vadd.f32 %v4425, %v4646
      %v4745 = vadd.f32 %v4426, %v4648
      %v4746 = vadd.f32 %v4427, %v4651
      %v4747 = vadd.f32 %v4428, %v4653
      %v4748 = vadd.f32 %v4429, %v4656
      %v4749 = vadd.f32 %v4430, %v4658
      %v4750 = vadd.f32 %v4431, %v4661
      %v4751 = vadd.f32 %v4432, %v4663
      %v4752 = vadd.f32 %v4433, %v4666
      %v4753 = vadd.f32 %v4434, %v4668
      %v4754 = vadd.f32 %v4435, %v4671
      %v4755 = vadd.f32 %v4436, %v4673
      %v4756 = vadd.f32 %v4437, %v4676
      %v4757 = vadd.f32 %v4438, %v4678
      %v4758 = vadd.f32 %v4439, %v4681
      %v4759 = vadd.f32 %v4440, %v4683
      %v4760 = vadd.f32 %v4441, %v4686
      %v4761 = vadd.f32 %v4442, %v4688
      %v4762 = vadd.f32 %v4443, %v4691
      %v4763 = vadd.f32 %v4444, %v4693
      %v4764 = vadd.f32 %v4445, %v4696
      %v4765 = vadd.f32 %v4446, %v4698
      %v4766 = vadd.f32 %v4447, %v4701
      %v4767 = vadd.f32 %v4448, %v4703
      %v4768 = vadd.f32 %v4449, %v4706
      %v4769 = vadd.f32 %v4450, %v4708
      %v4770 = vadd.f32 %v4451, %v4711
      %v4771 = vadd.f32 %v4452, %v4713
      %v4772 = vadd.f32 %v4453, %v4716
      %v4773 = vadd.f32 %v4454, %v4718
      %v4774 = vadd.f32 %v4455, %v4721
      %v4775 = vadd.f32 %v4456, %v4723
      %v4776 = vadd.f32 %v4457, %v4726
      %v4777 = vadd.f32 %v4458, %v4728
      %v4778 = vld [vmem:[#allocation2 + $0x18] sm:$0xf]
      %v4779 = vld [vmem:[#allocation2 + $0x1c] sm:$0xf]
      %v4780 = vld [vmem:[#allocation2 + $0x20] sm:$0xf]
      %v4781 = vld [vmem:[#allocation2 + $0x24] sm:$0xf]
      %v4782 = vld [vmem:[#allocation2 + $0x28] sm:$0xf]
      %v4783 = vld [vmem:[#allocation2 + $0x2c] sm:$0xf]
      %v4784 = vld [vmem:[#allocation2 + $0x30] sm:$0xf]
      %v4785 = vld [vmem:[#allocation2 + $0x34] sm:$0xf]
      %v4786 = vld [vmem:[#allocation2 + $0x38] sm:$0xf]
      %v4787 = vld [vmem:[#allocation2 + $0x3c] sm:$0xf]
      %v4788 = vld [vmem:[#allocation2 + $0x40] sm:$0xf]
      %v4789 = vld [vmem:[#allocation2 + $0x44] sm:$0xf]
      %v4790 = vld [vmem:[#allocation2 + $0x48] sm:$0xf]
      %v4791 = vld [vmem:[#allocation2 + $0x4c] sm:$0xf]
      %v4792 = vld [vmem:[#allocation2 + $0x50] sm:$0xf]
      %v4793 = vld [vmem:[#allocation2 + $0x54] sm:$0xf]
      %v4794 = vld [vmem:[#allocation2 + $0x58] sm:$0xf]
      %v4795 = vld [vmem:[#allocation2 + $0x5c] sm:$0xf]
      %v4796 = vld [vmem:[#allocation2 + $0x60] sm:$0xf]
      %v4797 = vld [vmem:[#allocation2 + $0x64] sm:$0xf]
      %v4798 = vld [vmem:[#allocation2 + $0x68] sm:$0xf]
      %v4799 = vld [vmem:[#allocation2 + $0x6c] sm:$0xf]
      %v4800 = vld [vmem:[#allocation2 + $0x70] sm:$0xf]
      %v4801 = vld [vmem:[#allocation2 + $0x74] sm:$0xf]
      %v4802 = vld [vmem:[#allocation2 + $0x78] sm:$0xf]
      %v4803 = vld [vmem:[#allocation2 + $0x7c] sm:$0xf]
      %v4804 = vld [vmem:[#allocation2 + $0x80] sm:$0xf]
      %v4805 = vld [vmem:[#allocation2 + $0x84] sm:$0xf]
      %v4806 = vld [vmem:[#allocation2 + $0x88] sm:$0xf]
      %v4807 = vld [vmem:[#allocation2 + $0x8c] sm:$0xf]
      %v4808 = vld [vmem:[#allocation2 + $0x90] sm:$0xf]
      %v4809 = vld [vmem:[#allocation2 + $0x94] sm:$0xf]
      %v4810 = vld [vmem:[#allocation2 + $0x98] sm:$0xf]
      %v4811 = vld [vmem:[#allocation2 + $0x9c] sm:$0xf]
      %v4812 = vld [vmem:[#allocation2 + $0xa0] sm:$0xf]
      %v4813 = vld [vmem:[#allocation2 + $0xa4] sm:$0xf]
      %v4814 = vld [vmem:[#allocation2 + $0xa8] sm:$0xf]
      %v4815 = vld [vmem:[#allocation2 + $0xac] sm:$0xf]
      %v4816 = vld [vmem:[#allocation2 + $0xb0] sm:$0xf]
      %v4817 = vld [vmem:[#allocation2 + $0xb4] sm:$0xf]
      %v4818 = vld [vmem:[#allocation2 + $0xb8] sm:$0xf]
      %v4819 = vld [vmem:[#allocation2 + $0xbc] sm:$0xf]
      %v4820 = vld [vmem:[#allocation2 + $0xc0] sm:$0xf]
      %v4821 = vld [vmem:[#allocation2 + $0xc4] sm:$0xf]
      %v4822 = vld [vmem:[#allocation2 + $0xc8] sm:$0xf]
      %v4823 = vld [vmem:[#allocation2 + $0xcc] sm:$0xf]
      %v4824 = vld [vmem:[#allocation2 + $0xd0] sm:$0xf]
      %v4825 = vld [vmem:[#allocation2 + $0xd4] sm:$0xf]
      %s4826 = scalar_lea.vmem %s6, 96
      %v4827 = vld [vmem:[%s4826] sm:$0xf]
      %v4828 = vld [vmem:[%s4826 + $0x4] sm:$0xf]
      %v4829 = vld [vmem:[%s4826 + $0x8] sm:$0xf]
      %v4830 = vld [vmem:[%s4826 + $0xc] sm:$0xf]
      %v4879 = vunpack.c.l.b16 %v4778
      %v4880 = vunpack.c.l.b16 %v4779
      %v4881 = vunpack.c.l.b16 %v4780
      %v4882 = vunpack.c.l.b16 %v4781
      %v4883 = vunpack.c.l.b16 %v4782
      %v4884 = vunpack.c.l.b16 %v4783
      %v4885 = vunpack.c.l.b16 %v4784
      %v4886 = vunpack.c.l.b16 %v4785
      %v4887 = vunpack.c.l.b16 %v4786
      %v4888 = vunpack.c.l.b16 %v4787
      %v4889 = vunpack.c.l.b16 %v4788
      %v4890 = vunpack.c.l.b16 %v4789
      %v4891 = vunpack.c.l.b16 %v4790
      %v4892 = vunpack.c.l.b16 %v4791
      %v4893 = vunpack.c.l.b16 %v4792
      %v4894 = vunpack.c.l.b16 %v4793
      %v4895 = vunpack.c.l.b16 %v4794
      %v4896 = vunpack.c.l.b16 %v4795
      %v4897 = vunpack.c.l.b16 %v4796
      %v4898 = vunpack.c.l.b16 %v4797
      %v4899 = vunpack.c.l.b16 %v4798
      %v4900 = vunpack.c.l.b16 %v4799
      %v4901 = vunpack.c.l.b16 %v4800
      %v4902 = vunpack.c.l.b16 %v4801
      %v4903 = vunpack.c.l.b16 %v4802
      %v4904 = vunpack.c.l.b16 %v4803
      %v4905 = vunpack.c.l.b16 %v4804
      %v4906 = vunpack.c.l.b16 %v4805
      %v4907 = vunpack.c.l.b16 %v4806
      %v4908 = vunpack.c.l.b16 %v4807
      %v4909 = vunpack.c.l.b16 %v4808
      %v4910 = vunpack.c.l.b16 %v4809
      %v4911 = vunpack.c.l.b16 %v4810
      %v4912 = vunpack.c.l.b16 %v4811
      %v4913 = vunpack.c.l.b16 %v4812
      %v4914 = vunpack.c.l.b16 %v4813
      %v4915 = vunpack.c.l.b16 %v4814
      %v4916 = vunpack.c.l.b16 %v4815
      %v4917 = vunpack.c.l.b16 %v4816
      %v4918 = vunpack.c.l.b16 %v4817
      %v4919 = vunpack.c.l.b16 %v4818
      %v4920 = vunpack.c.l.b16 %v4819
      %v4921 = vunpack.c.l.b16 %v4820
      %v4922 = vunpack.c.l.b16 %v4821
      %v4923 = vunpack.c.l.b16 %v4822
      %v4924 = vunpack.c.l.b16 %v4823
      %v4925 = vunpack.c.l.b16 %v4824
      %v4926 = vunpack.c.l.b16 %v4825
      %v4927 = vpack.c.b16 %v4880, %v4879
      %v4928 = vpack.c.b16 %v4882, %v4881
      %v4929 = vpack.c.b16 %v4884, %v4883
      %v4930 = vpack.c.b16 %v4886, %v4885
      %v4931 = vpack.c.b16 %v4888, %v4887
      %v4932 = vpack.c.b16 %v4890, %v4889
      %v4933 = vpack.c.b16 %v4892, %v4891
      %v4934 = vpack.c.b16 %v4894, %v4893
      %v4935 = vpack.c.b16 %v4896, %v4895
      %v4936 = vpack.c.b16 %v4898, %v4897
      %v4937 = vpack.c.b16 %v4900, %v4899
      %v4938 = vpack.c.b16 %v4902, %v4901
      %v4939 = vpack.c.b16 %v4904, %v4903
      %v4940 = vpack.c.b16 %v4906, %v4905
      %v4941 = vpack.c.b16 %v4908, %v4907
      %v4942 = vpack.c.b16 %v4910, %v4909
      %v4943 = vpack.c.b16 %v4912, %v4911
      %v4944 = vpack.c.b16 %v4914, %v4913
      %v4945 = vpack.c.b16 %v4916, %v4915
      %v4946 = vpack.c.b16 %v4918, %v4917
      %v4947 = vpack.c.b16 %v4920, %v4919
      %v4948 = vpack.c.b16 %v4922, %v4921
      %v4949 = vpack.c.b16 %v4924, %v4923
      %v4950 = vpack.c.b16 %v4926, %v4925
      %v4955 = vunpack.c.l.b16 %v4827
      %v4956 = vunpack.c.l.b16 %v4828
      %v4957 = vunpack.c.l.b16 %v4829
      %v4958 = vunpack.c.l.b16 %v4830
      %v4959 = vpack.c.b16 %v4956, %v4955
      %v4960 = vpack.c.b16 %v4958, %v4957
      %v4964 = vsel %vm577, %v4927, 0
      %v4967 = vsel %vm577, %v4928, 0
      %v4970 = vsel %vm577, %v4929, 0
      %v4973 = vsel %vm577, %v4930, 0
      %v4976 = vsel %vm577, %v4931, 0
      %v4979 = vsel %vm577, %v4932, 0
      %v4982 = vsel %vm577, %v4933, 0
      %v4985 = vsel %vm577, %v4934, 0
      %v4988 = vsel %vm577, %v4935, 0
      %v4991 = vsel %vm577, %v4936, 0
      %v4994 = vsel %vm577, %v4937, 0
      %v4997 = vsel %vm577, %v4938, 0
      %v5000 = vsel %vm577, %v4939, 0
      %v5003 = vsel %vm577, %v4940, 0
      %v5006 = vsel %vm577, %v4941, 0
      %v5009 = vsel %vm577, %v4942, 0
      %v5012 = vsel %vm577, %v4943, 0
      %v5015 = vsel %vm577, %v4944, 0
      %v5018 = vsel %vm577, %v4945, 0
      %v5021 = vsel %vm577, %v4946, 0
      %v5024 = vsel %vm577, %v4947, 0
      %v5027 = vsel %vm577, %v4948, 0
      %v5030 = vsel %vm577, %v4949, 0
      %v5033 = vsel %vm577, %v4950, 0
      %5035 = vmatpush.bf16.msra.mxu0 0
      %5036 = vmatpush.bf16.msra.mxu0 0
      %5037 = vmatpush.bf16.msra.mxu0 0
      %5038 = vmatpush.bf16.msra.mxu0 0
      %5039 = vmatpush.bf16.msra.mxu0 0
      %5040 = vmatpush.bf16.msra.mxu0 0
      %5041 = vmatpush.bf16.msra.mxu0 %v4960
      %5042 = vmatpush.bf16.msra.mxu0 %v4959
      %5043 = vmatmul.bf16.gmra.mxu0 %v4964
      %v5044 = vpop.f32.mrf.mxu0
      %v5045 = vadd.f32 0.0, %v5044
      %v5046 = vpop.f32.mrf.mxu0
      %v5047 = vadd.f32 0.0, %v5046
      %5048 = vmatmul.bf16.gmra.mxu0 %v4967
      %v5049 = vpop.f32.mrf.mxu0
      %v5050 = vadd.f32 0.0, %v5049
      %v5051 = vpop.f32.mrf.mxu0
      %v5052 = vadd.f32 0.0, %v5051
      %5053 = vmatmul.bf16.gmra.mxu0 %v4970
      %v5054 = vpop.f32.mrf.mxu0
      %v5055 = vadd.f32 0.0, %v5054
      %v5056 = vpop.f32.mrf.mxu0
      %v5057 = vadd.f32 0.0, %v5056
      %5058 = vmatmul.bf16.gmra.mxu0 %v4973
      %v5059 = vpop.f32.mrf.mxu0
      %v5060 = vadd.f32 0.0, %v5059
      %v5061 = vpop.f32.mrf.mxu0
      %v5062 = vadd.f32 0.0, %v5061
      %5063 = vmatmul.bf16.gmra.mxu0 %v4976
      %v5064 = vpop.f32.mrf.mxu0
      %v5065 = vadd.f32 0.0, %v5064
      %v5066 = vpop.f32.mrf.mxu0
      %v5067 = vadd.f32 0.0, %v5066
      %5068 = vmatmul.bf16.gmra.mxu0 %v4979
      %v5069 = vpop.f32.mrf.mxu0
      %v5070 = vadd.f32 0.0, %v5069
      %v5071 = vpop.f32.mrf.mxu0
      %v5072 = vadd.f32 0.0, %v5071
      %5073 = vmatmul.bf16.gmra.mxu0 %v4982
      %v5074 = vpop.f32.mrf.mxu0
      %v5075 = vadd.f32 0.0, %v5074
      %v5076 = vpop.f32.mrf.mxu0
      %v5077 = vadd.f32 0.0, %v5076
      %5078 = vmatmul.bf16.gmra.mxu0 %v4985
      %v5079 = vpop.f32.mrf.mxu0
      %v5080 = vadd.f32 0.0, %v5079
      %v5081 = vpop.f32.mrf.mxu0
      %v5082 = vadd.f32 0.0, %v5081
      %5083 = vmatmul.bf16.gmra.mxu0 %v4988
      %v5084 = vpop.f32.mrf.mxu0
      %v5085 = vadd.f32 0.0, %v5084
      %v5086 = vpop.f32.mrf.mxu0
      %v5087 = vadd.f32 0.0, %v5086
      %5088 = vmatmul.bf16.gmra.mxu0 %v4991
      %v5089 = vpop.f32.mrf.mxu0
      %v5090 = vadd.f32 0.0, %v5089
      %v5091 = vpop.f32.mrf.mxu0
      %v5092 = vadd.f32 0.0, %v5091
      %5093 = vmatmul.bf16.gmra.mxu0 %v4994
      %v5094 = vpop.f32.mrf.mxu0
      %v5095 = vadd.f32 0.0, %v5094
      %v5096 = vpop.f32.mrf.mxu0
      %v5097 = vadd.f32 0.0, %v5096
      %5098 = vmatmul.bf16.gmra.mxu0 %v4997
      %v5099 = vpop.f32.mrf.mxu0
      %v5100 = vadd.f32 0.0, %v5099
      %v5101 = vpop.f32.mrf.mxu0
      %v5102 = vadd.f32 0.0, %v5101
      %5103 = vmatmul.bf16.gmra.mxu0 %v5000
      %v5104 = vpop.f32.mrf.mxu0
      %v5105 = vadd.f32 0.0, %v5104
      %v5106 = vpop.f32.mrf.mxu0
      %v5107 = vadd.f32 0.0, %v5106
      %5108 = vmatmul.bf16.gmra.mxu0 %v5003
      %v5109 = vpop.f32.mrf.mxu0
      %v5110 = vadd.f32 0.0, %v5109
      %v5111 = vpop.f32.mrf.mxu0
      %v5112 = vadd.f32 0.0, %v5111
      %5113 = vmatmul.bf16.gmra.mxu0 %v5006
      %v5114 = vpop.f32.mrf.mxu0
      %v5115 = vadd.f32 0.0, %v5114
      %v5116 = vpop.f32.mrf.mxu0
      %v5117 = vadd.f32 0.0, %v5116
      %5118 = vmatmul.bf16.gmra.mxu0 %v5009
      %v5119 = vpop.f32.mrf.mxu0
      %v5120 = vadd.f32 0.0, %v5119
      %v5121 = vpop.f32.mrf.mxu0
      %v5122 = vadd.f32 0.0, %v5121
      %5123 = vmatmul.bf16.gmra.mxu0 %v5012
      %v5124 = vpop.f32.mrf.mxu0
      %v5125 = vadd.f32 0.0, %v5124
      %v5126 = vpop.f32.mrf.mxu0
      %v5127 = vadd.f32 0.0, %v5126
      %5128 = vmatmul.bf16.gmra.mxu0 %v5015
      %v5129 = vpop.f32.mrf.mxu0
      %v5130 = vadd.f32 0.0, %v5129
      %v5131 = vpop.f32.mrf.mxu0
      %v5132 = vadd.f32 0.0, %v5131
      %5133 = vmatmul.bf16.gmra.mxu0 %v5018
      %v5134 = vpop.f32.mrf.mxu0
      %v5135 = vadd.f32 0.0, %v5134
      %v5136 = vpop.f32.mrf.mxu0
      %v5137 = vadd.f32 0.0, %v5136
      %5138 = vmatmul.bf16.gmra.mxu0 %v5021
      %v5139 = vpop.f32.mrf.mxu0
      %v5140 = vadd.f32 0.0, %v5139
      %v5141 = vpop.f32.mrf.mxu0
      %v5142 = vadd.f32 0.0, %v5141
      %5143 = vmatmul.bf16.gmra.mxu0 %v5024
      %v5144 = vpop.f32.mrf.mxu0
      %v5145 = vadd.f32 0.0, %v5144
      %v5146 = vpop.f32.mrf.mxu0
      %v5147 = vadd.f32 0.0, %v5146
      %5148 = vmatmul.bf16.gmra.mxu0 %v5027
      %v5149 = vpop.f32.mrf.mxu0
      %v5150 = vadd.f32 0.0, %v5149
      %v5151 = vpop.f32.mrf.mxu0
      %v5152 = vadd.f32 0.0, %v5151
      %5153 = vmatmul.bf16.gmra.mxu0 %v5030
      %v5154 = vpop.f32.mrf.mxu0
      %v5155 = vadd.f32 0.0, %v5154
      %v5156 = vpop.f32.mrf.mxu0
      %v5157 = vadd.f32 0.0, %v5156
      %5158 = vmatmul.bf16.gmra.mxu0 %v5033
      %v5159 = vpop.f32.mrf.mxu0
      %v5160 = vadd.f32 0.0, %v5159
      %v5161 = vpop.f32.mrf.mxu0
      %v5162 = vadd.f32 0.0, %v5161
      %5163 = vdwg.mxu0
      %v5164 = vadd.f32 %v4730, %v5045
      %v5165 = vadd.f32 %v4731, %v5047
      %v5166 = vadd.f32 %v4732, %v5050
      %v5167 = vadd.f32 %v4733, %v5052
      %v5168 = vadd.f32 %v4734, %v5055
      %v5169 = vadd.f32 %v4735, %v5057
      %v5170 = vadd.f32 %v4736, %v5060
      %v5171 = vadd.f32 %v4737, %v5062
      %v5172 = vadd.f32 %v4738, %v5065
      %v5173 = vadd.f32 %v4739, %v5067
      %v5174 = vadd.f32 %v4740, %v5070
      %v5175 = vadd.f32 %v4741, %v5072
      %v5176 = vadd.f32 %v4742, %v5075
      %v5177 = vadd.f32 %v4743, %v5077
      %v5178 = vadd.f32 %v4744, %v5080
      %v5179 = vadd.f32 %v4745, %v5082
      %v5180 = vadd.f32 %v4746, %v5085
      %v5181 = vadd.f32 %v4747, %v5087
      %v5182 = vadd.f32 %v4748, %v5090
      %v5183 = vadd.f32 %v4749, %v5092
      %v5184 = vadd.f32 %v4750, %v5095
      %v5185 = vadd.f32 %v4751, %v5097
      %v5186 = vadd.f32 %v4752, %v5100
      %v5187 = vadd.f32 %v4753, %v5102
      %v5188 = vadd.f32 %v4754, %v5105
      %v5189 = vadd.f32 %v4755, %v5107
      %v5190 = vadd.f32 %v4756, %v5110
      %v5191 = vadd.f32 %v4757, %v5112
      %v5192 = vadd.f32 %v4758, %v5115
      %v5193 = vadd.f32 %v4759, %v5117
      %v5194 = vadd.f32 %v4760, %v5120
      %v5195 = vadd.f32 %v4761, %v5122
      %v5196 = vadd.f32 %v4762, %v5125
      %v5197 = vadd.f32 %v4763, %v5127
      %v5198 = vadd.f32 %v4764, %v5130
      %v5199 = vadd.f32 %v4765, %v5132
      %v5200 = vadd.f32 %v4766, %v5135
      %v5201 = vadd.f32 %v4767, %v5137
      %v5202 = vadd.f32 %v4768, %v5140
      %v5203 = vadd.f32 %v4769, %v5142
      %v5204 = vadd.f32 %v4770, %v5145
      %v5205 = vadd.f32 %v4771, %v5147
      %v5206 = vadd.f32 %v4772, %v5150
      %v5207 = vadd.f32 %v4773, %v5152
      %v5208 = vadd.f32 %v4774, %v5155
      %v5209 = vadd.f32 %v4775, %v5157
      %v5210 = vadd.f32 %v4776, %v5160
      %v5211 = vadd.f32 %v4777, %v5162
      %v5212 = vld [vmem:[#allocation2 + $0x18] sm:$0xf]
      %v5213 = vld [vmem:[#allocation2 + $0x1c] sm:$0xf]
      %v5214 = vld [vmem:[#allocation2 + $0x20] sm:$0xf]
      %v5215 = vld [vmem:[#allocation2 + $0x24] sm:$0xf]
      %v5216 = vld [vmem:[#allocation2 + $0x28] sm:$0xf]
      %v5217 = vld [vmem:[#allocation2 + $0x2c] sm:$0xf]
      %v5218 = vld [vmem:[#allocation2 + $0x30] sm:$0xf]
      %v5219 = vld [vmem:[#allocation2 + $0x34] sm:$0xf]
      %v5220 = vld [vmem:[#allocation2 + $0x38] sm:$0xf]
      %v5221 = vld [vmem:[#allocation2 + $0x3c] sm:$0xf]
      %v5222 = vld [vmem:[#allocation2 + $0x40] sm:$0xf]
      %v5223 = vld [vmem:[#allocation2 + $0x44] sm:$0xf]
      %v5224 = vld [vmem:[#allocation2 + $0x48] sm:$0xf]
      %v5225 = vld [vmem:[#allocation2 + $0x4c] sm:$0xf]
      %v5226 = vld [vmem:[#allocation2 + $0x50] sm:$0xf]
      %v5227 = vld [vmem:[#allocation2 + $0x54] sm:$0xf]
      %v5228 = vld [vmem:[#allocation2 + $0x58] sm:$0xf]
      %v5229 = vld [vmem:[#allocation2 + $0x5c] sm:$0xf]
      %v5230 = vld [vmem:[#allocation2 + $0x60] sm:$0xf]
      %v5231 = vld [vmem:[#allocation2 + $0x64] sm:$0xf]
      %v5232 = vld [vmem:[#allocation2 + $0x68] sm:$0xf]
      %v5233 = vld [vmem:[#allocation2 + $0x6c] sm:$0xf]
      %v5234 = vld [vmem:[#allocation2 + $0x70] sm:$0xf]
      %v5235 = vld [vmem:[#allocation2 + $0x74] sm:$0xf]
      %v5236 = vld [vmem:[#allocation2 + $0x78] sm:$0xf]
      %v5237 = vld [vmem:[#allocation2 + $0x7c] sm:$0xf]
      %v5238 = vld [vmem:[#allocation2 + $0x80] sm:$0xf]
      %v5239 = vld [vmem:[#allocation2 + $0x84] sm:$0xf]
      %v5240 = vld [vmem:[#allocation2 + $0x88] sm:$0xf]
      %v5241 = vld [vmem:[#allocation2 + $0x8c] sm:$0xf]
      %v5242 = vld [vmem:[#allocation2 + $0x90] sm:$0xf]
      %v5243 = vld [vmem:[#allocation2 + $0x94] sm:$0xf]
      %v5244 = vld [vmem:[#allocation2 + $0x98] sm:$0xf]
      %v5245 = vld [vmem:[#allocation2 + $0x9c] sm:$0xf]
      %v5246 = vld [vmem:[#allocation2 + $0xa0] sm:$0xf]
      %v5247 = vld [vmem:[#allocation2 + $0xa4] sm:$0xf]
      %v5248 = vld [vmem:[#allocation2 + $0xa8] sm:$0xf]
      %v5249 = vld [vmem:[#allocation2 + $0xac] sm:$0xf]
      %v5250 = vld [vmem:[#allocation2 + $0xb0] sm:$0xf]
      %v5251 = vld [vmem:[#allocation2 + $0xb4] sm:$0xf]
      %v5252 = vld [vmem:[#allocation2 + $0xb8] sm:$0xf]
      %v5253 = vld [vmem:[#allocation2 + $0xbc] sm:$0xf]
      %v5254 = vld [vmem:[#allocation2 + $0xc0] sm:$0xf]
      %v5255 = vld [vmem:[#allocation2 + $0xc4] sm:$0xf]
      %v5256 = vld [vmem:[#allocation2 + $0xc8] sm:$0xf]
      %v5257 = vld [vmem:[#allocation2 + $0xcc] sm:$0xf]
      %v5258 = vld [vmem:[#allocation2 + $0xd0] sm:$0xf]
      %v5259 = vld [vmem:[#allocation2 + $0xd4] sm:$0xf]
      %v5260 = vld [vmem:[#allocation2 + $0xd8] sm:$0x1]
      %s5261 = scalar_lea.vmem %s6, 112
      %v5262 = vld [vmem:[%s5261] sm:$0xf]
      %v5263 = vld [vmem:[%s5261 + $0x4] sm:$0xf]
      %v5264 = vld [vmem:[%s5261 + $0x8] sm:$0xf]
      %v5265 = vld [vmem:[%s5261 + $0xc] sm:$0xf]
      %v5315 = vunpack.c.l.b16 %v5212
      %v5316 = vunpack.c.l.b16 %v5213
      %v5317 = vunpack.c.l.b16 %v5214
      %v5318 = vunpack.c.l.b16 %v5215
      %v5319 = vunpack.c.l.b16 %v5216
      %v5320 = vunpack.c.l.b16 %v5217
      %v5321 = vunpack.c.l.b16 %v5218
      %v5322 = vunpack.c.l.b16 %v5219
      %v5323 = vunpack.c.l.b16 %v5220
      %v5324 = vunpack.c.l.b16 %v5221
      %v5325 = vunpack.c.l.b16 %v5222
      %v5326 = vunpack.c.l.b16 %v5223
      %v5327 = vunpack.c.l.b16 %v5224
      %v5328 = vunpack.c.l.b16 %v5225
      %v5329 = vunpack.c.l.b16 %v5226
      %v5330 = vunpack.c.l.b16 %v5227
      %v5331 = vunpack.c.l.b16 %v5228
      %v5332 = vunpack.c.l.b16 %v5229
      %v5333 = vunpack.c.l.b16 %v5230
      %v5334 = vunpack.c.l.b16 %v5231
      %v5335 = vunpack.c.l.b16 %v5232
      %v5336 = vunpack.c.l.b16 %v5233
      %v5337 = vunpack.c.l.b16 %v5234
      %v5338 = vunpack.c.l.b16 %v5235
      %v5339 = vunpack.c.l.b16 %v5236
      %v5340 = vunpack.c.l.b16 %v5237
      %v5341 = vunpack.c.l.b16 %v5238
      %v5342 = vunpack.c.l.b16 %v5239
      %v5343 = vunpack.c.l.b16 %v5240
      %v5344 = vunpack.c.l.b16 %v5241
      %v5345 = vunpack.c.l.b16 %v5242
      %v5346 = vunpack.c.l.b16 %v5243
      %v5347 = vunpack.c.l.b16 %v5244
      %v5348 = vunpack.c.l.b16 %v5245
      %v5349 = vunpack.c.l.b16 %v5246
      %v5350 = vunpack.c.l.b16 %v5247
      %v5351 = vunpack.c.l.b16 %v5248
      %v5352 = vunpack.c.l.b16 %v5249
      %v5353 = vunpack.c.l.b16 %v5250
      %v5354 = vunpack.c.l.b16 %v5251
      %v5355 = vunpack.c.l.b16 %v5252
      %v5356 = vunpack.c.l.b16 %v5253
      %v5357 = vunpack.c.l.b16 %v5254
      %v5358 = vunpack.c.l.b16 %v5255
      %v5359 = vunpack.c.l.b16 %v5256
      %v5360 = vunpack.c.l.b16 %v5257
      %v5361 = vunpack.c.l.b16 %v5258
      %v5362 = vunpack.c.l.b16 %v5259
      %v5363 = vunpack.c.l.b16 %v5260
      %v5364 = vpack.c.b16 %v5316, %v5315
      %v5365 = vpack.c.b16 %v5318, %v5317
      %v5366 = vpack.c.b16 %v5320, %v5319
      %v5367 = vpack.c.b16 %v5322, %v5321
      %v5368 = vpack.c.b16 %v5324, %v5323
      %v5369 = vpack.c.b16 %v5326, %v5325
      %v5370 = vpack.c.b16 %v5328, %v5327
      %v5371 = vpack.c.b16 %v5330, %v5329
      %v5372 = vpack.c.b16 %v5332, %v5331
      %v5373 = vpack.c.b16 %v5334, %v5333
      %v5374 = vpack.c.b16 %v5336, %v5335
      %v5375 = vpack.c.b16 %v5338, %v5337
      %v5376 = vpack.c.b16 %v5340, %v5339
      %v5377 = vpack.c.b16 %v5342, %v5341
      %v5378 = vpack.c.b16 %v5344, %v5343
      %v5379 = vpack.c.b16 %v5346, %v5345
      %v5380 = vpack.c.b16 %v5348, %v5347
      %v5381 = vpack.c.b16 %v5350, %v5349
      %v5382 = vpack.c.b16 %v5352, %v5351
      %v5383 = vpack.c.b16 %v5354, %v5353
      %v5384 = vpack.c.b16 %v5356, %v5355
      %v5385 = vpack.c.b16 %v5358, %v5357
      %v5386 = vpack.c.b16 %v5360, %v5359
      %v5387 = vpack.c.b16 %v5362, %v5361
      %v5388 = vpack.c.b16 %v5363, %v5363
      %v5390 = vshrl.u32 %v5364, 16
      %v5392 = vshll.u32 %v5364, 16
      %v5394 = vrot.slane %v5392, 1
      %v5395 = vor.u32 %v5390, %v5394
      %v5397 = vshll.u32 %v5365, 16
      %v5399 = vrot.slane %v5397, 1
      %v5400 = vsel %vm2472, %v5395, %v5399
      %v5401 = vshrl.u32 %v5365, 16
      %v5403 = vor.u32 %v5401, %v5399
      %v5405 = vshll.u32 %v5366, 16
      %v5407 = vrot.slane %v5405, 1
      %v5408 = vsel %vm2472, %v5403, %v5407
      %v5409 = vshrl.u32 %v5366, 16
      %v5411 = vor.u32 %v5409, %v5407
      %v5413 = vshll.u32 %v5367, 16
      %v5415 = vrot.slane %v5413, 1
      %v5416 = vsel %vm2472, %v5411, %v5415
      %v5417 = vshrl.u32 %v5367, 16
      %v5419 = vor.u32 %v5417, %v5415
      %v5421 = vshll.u32 %v5368, 16
      %v5423 = vrot.slane %v5421, 1
      %v5424 = vsel %vm2472, %v5419, %v5423
      %v5425 = vshrl.u32 %v5368, 16
      %v5427 = vor.u32 %v5425, %v5423
      %v5429 = vshll.u32 %v5369, 16
      %v5431 = vrot.slane %v5429, 1
      %v5432 = vsel %vm2472, %v5427, %v5431
      %v5433 = vshrl.u32 %v5369, 16
      %v5435 = vor.u32 %v5433, %v5431
      %v5437 = vshll.u32 %v5370, 16
      %v5439 = vrot.slane %v5437, 1
      %v5440 = vsel %vm2472, %v5435, %v5439
      %v5441 = vshrl.u32 %v5370, 16
      %v5443 = vor.u32 %v5441, %v5439
      %v5445 = vshll.u32 %v5371, 16
      %v5447 = vrot.slane %v5445, 1
      %v5448 = vsel %vm2472, %v5443, %v5447
      %v5449 = vshrl.u32 %v5371, 16
      %v5451 = vor.u32 %v5449, %v5447
      %v5453 = vshll.u32 %v5372, 16
      %v5455 = vrot.slane %v5453, 1
      %v5456 = vsel %vm2472, %v5451, %v5455
      %v5457 = vshrl.u32 %v5372, 16
      %v5459 = vor.u32 %v5457, %v5455
      %v5461 = vshll.u32 %v5373, 16
      %v5463 = vrot.slane %v5461, 1
      %v5464 = vsel %vm2472, %v5459, %v5463
      %v5465 = vshrl.u32 %v5373, 16
      %v5467 = vor.u32 %v5465, %v5463
      %v5469 = vshll.u32 %v5374, 16
      %v5471 = vrot.slane %v5469, 1
      %v5472 = vsel %vm2472, %v5467, %v5471
      %v5473 = vshrl.u32 %v5374, 16
      %v5475 = vor.u32 %v5473, %v5471
      %v5477 = vshll.u32 %v5375, 16
      %v5479 = vrot.slane %v5477, 1
      %v5480 = vsel %vm2472, %v5475, %v5479
      %v5481 = vshrl.u32 %v5375, 16
      %v5483 = vor.u32 %v5481, %v5479
      %v5485 = vshll.u32 %v5376, 16
      %v5487 = vrot.slane %v5485, 1
      %v5488 = vsel %vm2472, %v5483, %v5487
      %v5489 = vshrl.u32 %v5376, 16
      %v5491 = vor.u32 %v5489, %v5487
      %v5493 = vshll.u32 %v5377, 16
      %v5495 = vrot.slane %v5493, 1
      %v5496 = vsel %vm2472, %v5491, %v5495
      %v5497 = vshrl.u32 %v5377, 16
      %v5499 = vor.u32 %v5497, %v5495
      %v5501 = vshll.u32 %v5378, 16
      %v5503 = vrot.slane %v5501, 1
      %v5504 = vsel %vm2472, %v5499, %v5503
      %v5505 = vshrl.u32 %v5378, 16
      %v5507 = vor.u32 %v5505, %v5503
      %v5509 = vshll.u32 %v5379, 16
      %v5511 = vrot.slane %v5509, 1
      %v5512 = vsel %vm2472, %v5507, %v5511
      %v5513 = vshrl.u32 %v5379, 16
      %v5515 = vor.u32 %v5513, %v5511
      %v5517 = vshll.u32 %v5380, 16
      %v5519 = vrot.slane %v5517, 1
      %v5520 = vsel %vm2472, %v5515, %v5519
      %v5521 = vshrl.u32 %v5380, 16
      %v5523 = vor.u32 %v5521, %v5519
      %v5525 = vshll.u32 %v5381, 16
      %v5527 = vrot.slane %v5525, 1
      %v5528 = vsel %vm2472, %v5523, %v5527
      %v5529 = vshrl.u32 %v5381, 16
      %v5531 = vor.u32 %v5529, %v5527
      %v5533 = vshll.u32 %v5382, 16
      %v5535 = vrot.slane %v5533, 1
      %v5536 = vsel %vm2472, %v5531, %v5535
      %v5537 = vshrl.u32 %v5382, 16
      %v5539 = vor.u32 %v5537, %v5535
      %v5541 = vshll.u32 %v5383, 16
      %v5543 = vrot.slane %v5541, 1
      %v5544 = vsel %vm2472, %v5539, %v5543
      %v5545 = vshrl.u32 %v5383, 16
      %v5547 = vor.u32 %v5545, %v5543
      %v5549 = vshll.u32 %v5384, 16
      %v5551 = vrot.slane %v5549, 1
      %v5552 = vsel %vm2472, %v5547, %v5551
      %v5553 = vshrl.u32 %v5384, 16
      %v5555 = vor.u32 %v5553, %v5551
      %v5557 = vshll.u32 %v5385, 16
      %v5559 = vrot.slane %v5557, 1
      %v5560 = vsel %vm2472, %v5555, %v5559
      %v5561 = vshrl.u32 %v5385, 16
      %v5563 = vor.u32 %v5561, %v5559
      %v5565 = vshll.u32 %v5386, 16
      %v5567 = vrot.slane %v5565, 1
      %v5568 = vsel %vm2472, %v5563, %v5567
      %v5569 = vshrl.u32 %v5386, 16
      %v5571 = vor.u32 %v5569, %v5567
      %v5573 = vshll.u32 %v5387, 16
      %v5575 = vrot.slane %v5573, 1
      %v5576 = vsel %vm2472, %v5571, %v5575
      %v5577 = vshrl.u32 %v5387, 16
      %v5579 = vor.u32 %v5577, %v5575
      %v5581 = vshll.u32 %v5388, 16
      %v5583 = vrot.slane %v5581, 1
      %v5584 = vsel %vm2472, %v5579, %v5583
      %v5589 = vunpack.c.l.b16 %v5262
      %v5590 = vunpack.c.l.b16 %v5263
      %v5591 = vunpack.c.l.b16 %v5264
      %v5592 = vunpack.c.l.b16 %v5265
      %v5593 = vpack.c.b16 %v5590, %v5589
      %v5594 = vpack.c.b16 %v5592, %v5591
      %v5598 = vsel %vm577, %v5400, 0
      %v5601 = vsel %vm577, %v5408, 0
      %v5604 = vsel %vm577, %v5416, 0
      %v5607 = vsel %vm577, %v5424, 0
      %v5610 = vsel %vm577, %v5432, 0
      %v5613 = vsel %vm577, %v5440, 0
      %v5616 = vsel %vm577, %v5448, 0
      %v5619 = vsel %vm577, %v5456, 0
      %v5622 = vsel %vm577, %v5464, 0
      %v5625 = vsel %vm577, %v5472, 0
      %v5628 = vsel %vm577, %v5480, 0
      %v5631 = vsel %vm577, %v5488, 0
      %v5634 = vsel %vm577, %v5496, 0
      %v5637 = vsel %vm577, %v5504, 0
      %v5640 = vsel %vm577, %v5512, 0
      %v5643 = vsel %vm577, %v5520, 0
      %v5646 = vsel %vm577, %v5528, 0
      %v5649 = vsel %vm577, %v5536, 0
      %v5652 = vsel %vm577, %v5544, 0
      %v5655 = vsel %vm577, %v5552, 0
      %v5658 = vsel %vm577, %v5560, 0
      %v5661 = vsel %vm577, %v5568, 0
      %v5664 = vsel %vm577, %v5576, 0
      %v5667 = vsel %vm577, %v5584, 0
      %5669 = vmatpush.bf16.msra.mxu0 0
      %5670 = vmatpush.bf16.msra.mxu0 0
      %5671 = vmatpush.bf16.msra.mxu0 0
      %5672 = vmatpush.bf16.msra.mxu0 0
      %5673 = vmatpush.bf16.msra.mxu0 0
      %5674 = vmatpush.bf16.msra.mxu0 0
      %5675 = vmatpush.bf16.msra.mxu0 %v5594
      %5676 = vmatpush.bf16.msra.mxu0 %v5593
      %5677 = vmatmul.bf16.gmra.mxu0 %v5598
      %v5678 = vpop.f32.mrf.mxu0
      %v5679 = vadd.f32 0.0, %v5678
      %v5680 = vpop.f32.mrf.mxu0
      %v5681 = vadd.f32 0.0, %v5680
      %5682 = vmatmul.bf16.gmra.mxu0 %v5601
      %v5683 = vpop.f32.mrf.mxu0
      %v5684 = vadd.f32 0.0, %v5683
      %v5685 = vpop.f32.mrf.mxu0
      %v5686 = vadd.f32 0.0, %v5685
      %5687 = vmatmul.bf16.gmra.mxu0 %v5604
      %v5688 = vpop.f32.mrf.mxu0
      %v5689 = vadd.f32 0.0, %v5688
      %v5690 = vpop.f32.mrf.mxu0
      %v5691 = vadd.f32 0.0, %v5690
      %5692 = vmatmul.bf16.gmra.mxu0 %v5607
      %v5693 = vpop.f32.mrf.mxu0
      %v5694 = vadd.f32 0.0, %v5693
      %v5695 = vpop.f32.mrf.mxu0
      %v5696 = vadd.f32 0.0, %v5695
      %5697 = vmatmul.bf16.gmra.mxu0 %v5610
      %v5698 = vpop.f32.mrf.mxu0
      %v5699 = vadd.f32 0.0, %v5698
      %v5700 = vpop.f32.mrf.mxu0
      %v5701 = vadd.f32 0.0, %v5700
      %5702 = vmatmul.bf16.gmra.mxu0 %v5613
      %v5703 = vpop.f32.mrf.mxu0
      %v5704 = vadd.f32 0.0, %v5703
      %v5705 = vpop.f32.mrf.mxu0
      %v5706 = vadd.f32 0.0, %v5705
      %5707 = vmatmul.bf16.gmra.mxu0 %v5616
      %v5708 = vpop.f32.mrf.mxu0
      %v5709 = vadd.f32 0.0, %v5708
      %v5710 = vpop.f32.mrf.mxu0
      %v5711 = vadd.f32 0.0, %v5710
      %5712 = vmatmul.bf16.gmra.mxu0 %v5619
      %v5713 = vpop.f32.mrf.mxu0
      %v5714 = vadd.f32 0.0, %v5713
      %v5715 = vpop.f32.mrf.mxu0
      %v5716 = vadd.f32 0.0, %v5715
      %5717 = vmatmul.bf16.gmra.mxu0 %v5622
      %v5718 = vpop.f32.mrf.mxu0
      %v5719 = vadd.f32 0.0, %v5718
      %v5720 = vpop.f32.mrf.mxu0
      %v5721 = vadd.f32 0.0, %v5720
      %5722 = vmatmul.bf16.gmra.mxu0 %v5625
      %v5723 = vpop.f32.mrf.mxu0
      %v5724 = vadd.f32 0.0, %v5723
      %v5725 = vpop.f32.mrf.mxu0
      %v5726 = vadd.f32 0.0, %v5725
      %5727 = vmatmul.bf16.gmra.mxu0 %v5628
      %v5728 = vpop.f32.mrf.mxu0
      %v5729 = vadd.f32 0.0, %v5728
      %v5730 = vpop.f32.mrf.mxu0
      %v5731 = vadd.f32 0.0, %v5730
      %5732 = vmatmul.bf16.gmra.mxu0 %v5631
      %v5733 = vpop.f32.mrf.mxu0
      %v5734 = vadd.f32 0.0, %v5733
      %v5735 = vpop.f32.mrf.mxu0
      %v5736 = vadd.f32 0.0, %v5735
      %5737 = vmatmul.bf16.gmra.mxu0 %v5634
      %v5738 = vpop.f32.mrf.mxu0
      %v5739 = vadd.f32 0.0, %v5738
      %v5740 = vpop.f32.mrf.mxu0
      %v5741 = vadd.f32 0.0, %v5740
      %5742 = vmatmul.bf16.gmra.mxu0 %v5637
      %v5743 = vpop.f32.mrf.mxu0
      %v5744 = vadd.f32 0.0, %v5743
      %v5745 = vpop.f32.mrf.mxu0
      %v5746 = vadd.f32 0.0, %v5745
      %5747 = vmatmul.bf16.gmra.mxu0 %v5640
      %v5748 = vpop.f32.mrf.mxu0
      %v5749 = vadd.f32 0.0, %v5748
      %v5750 = vpop.f32.mrf.mxu0
      %v5751 = vadd.f32 0.0, %v5750
      %5752 = vmatmul.bf16.gmra.mxu0 %v5643
      %v5753 = vpop.f32.mrf.mxu0
      %v5754 = vadd.f32 0.0, %v5753
      %v5755 = vpop.f32.mrf.mxu0
      %v5756 = vadd.f32 0.0, %v5755
      %5757 = vmatmul.bf16.gmra.mxu0 %v5646
      %v5758 = vpop.f32.mrf.mxu0
      %v5759 = vadd.f32 0.0, %v5758
      %v5760 = vpop.f32.mrf.mxu0
      %v5761 = vadd.f32 0.0, %v5760
      %5762 = vmatmul.bf16.gmra.mxu0 %v5649
      %v5763 = vpop.f32.mrf.mxu0
      %v5764 = vadd.f32 0.0, %v5763
      %v5765 = vpop.f32.mrf.mxu0
      %v5766 = vadd.f32 0.0, %v5765
      %5767 = vmatmul.bf16.gmra.mxu0 %v5652
      %v5768 = vpop.f32.mrf.mxu0
      %v5769 = vadd.f32 0.0, %v5768
      %v5770 = vpop.f32.mrf.mxu0
      %v5771 = vadd.f32 0.0, %v5770
      %5772 = vmatmul.bf16.gmra.mxu0 %v5655
      %v5773 = vpop.f32.mrf.mxu0
      %v5774 = vadd.f32 0.0, %v5773
      %v5775 = vpop.f32.mrf.mxu0
      %v5776 = vadd.f32 0.0, %v5775
      %5777 = vmatmul.bf16.gmra.mxu0 %v5658
      %v5778 = vpop.f32.mrf.mxu0
      %v5779 = vadd.f32 0.0, %v5778
      %v5780 = vpop.f32.mrf.mxu0
      %v5781 = vadd.f32 0.0, %v5780
      %5782 = vmatmul.bf16.gmra.mxu0 %v5661
      %v5783 = vpop.f32.mrf.mxu0
      %v5784 = vadd.f32 0.0, %v5783
      %v5785 = vpop.f32.mrf.mxu0
      %v5786 = vadd.f32 0.0, %v5785
      %5787 = vmatmul.bf16.gmra.mxu0 %v5664
      %v5788 = vpop.f32.mrf.mxu0
      %v5789 = vadd.f32 0.0, %v5788
      %v5790 = vpop.f32.mrf.mxu0
      %v5791 = vadd.f32 0.0, %v5790
      %5792 = vmatmul.bf16.gmra.mxu0 %v5667
      %v5793 = vpop.f32.mrf.mxu0
      %v5794 = vadd.f32 0.0, %v5793
      %v5795 = vpop.f32.mrf.mxu0
      %v5796 = vadd.f32 0.0, %v5795
      %5797 = vdwg.mxu0
      %v5798 = vadd.f32 %v5164, %v5679
      %v5799 = vadd.f32 %v5165, %v5681
      %v5800 = vadd.f32 %v5166, %v5684
      %v5801 = vadd.f32 %v5167, %v5686
      %v5802 = vadd.f32 %v5168, %v5689
      %v5803 = vadd.f32 %v5169, %v5691
      %v5804 = vadd.f32 %v5170, %v5694
      %v5805 = vadd.f32 %v5171, %v5696
      %v5806 = vadd.f32 %v5172, %v5699
      %v5807 = vadd.f32 %v5173, %v5701
      %v5808 = vadd.f32 %v5174, %v5704
      %v5809 = vadd.f32 %v5175, %v5706
      %v5810 = vadd.f32 %v5176, %v5709
      %v5811 = vadd.f32 %v5177, %v5711
      %v5812 = vadd.f32 %v5178, %v5714
      %v5813 = vadd.f32 %v5179, %v5716
      %v5814 = vadd.f32 %v5180, %v5719
      %v5815 = vadd.f32 %v5181, %v5721
      %v5816 = vadd.f32 %v5182, %v5724
      %v5817 = vadd.f32 %v5183, %v5726
      %v5818 = vadd.f32 %v5184, %v5729
      %v5819 = vadd.f32 %v5185, %v5731
      %v5820 = vadd.f32 %v5186, %v5734
      %v5821 = vadd.f32 %v5187, %v5736
      %v5822 = vadd.f32 %v5188, %v5739
      %v5823 = vadd.f32 %v5189, %v5741
      %v5824 = vadd.f32 %v5190, %v5744
      %v5825 = vadd.f32 %v5191, %v5746
      %v5826 = vadd.f32 %v5192, %v5749
      %v5827 = vadd.f32 %v5193, %v5751
      %v5828 = vadd.f32 %v5194, %v5754
      %v5829 = vadd.f32 %v5195, %v5756
      %v5830 = vadd.f32 %v5196, %v5759
      %v5831 = vadd.f32 %v5197, %v5761
      %v5832 = vadd.f32 %v5198, %v5764
      %v5833 = vadd.f32 %v5199, %v5766
      %v5834 = vadd.f32 %v5200, %v5769
      %v5835 = vadd.f32 %v5201, %v5771
      %v5836 = vadd.f32 %v5202, %v5774
      %v5837 = vadd.f32 %v5203, %v5776
      %v5838 = vadd.f32 %v5204, %v5779
      %v5839 = vadd.f32 %v5205, %v5781
      %v5840 = vadd.f32 %v5206, %v5784
      %v5841 = vadd.f32 %v5207, %v5786
      %v5842 = vadd.f32 %v5208, %v5789
      %v5843 = vadd.f32 %v5209, %v5791
      %v5844 = vadd.f32 %v5210, %v5794
      %v5845 = vadd.f32 %v5211, %v5796
      %v5846 = vld [vmem:[#allocation2 + $0x18] sm:$0xe]
      %s5847 = scalar_lea.vmem %s6, 128
      %v5848 = vld [vmem:[%s5847] sm:$0xf]
      %v5849 = vld [vmem:[%s5847 + $0x4] sm:$0xf]
      %v5850 = vld [vmem:[%s5847 + $0x8] sm:$0xf]
      %v5851 = vld [vmem:[%s5847 + $0xc] sm:$0xf]
      %v5853 = vunpack.c.l.b16 %v5846
      %v5854 = vpack.c.b16 %v5316, %v5853
      %v5855 = vrot.slane %v5854, 1
      %v5856 = vrot.slane %v5365, 1
      %v5857 = vsel %vm3080, %v5855, %v5856
      %v5858 = vrot.slane %v5366, 1
      %v5859 = vsel %vm3080, %v5856, %v5858
      %v5860 = vrot.slane %v5367, 1
      %v5861 = vsel %vm3080, %v5858, %v5860
      %v5862 = vrot.slane %v5368, 1
      %v5863 = vsel %vm3080, %v5860, %v5862
      %v5864 = vrot.slane %v5369, 1
      %v5865 = vsel %vm3080, %v5862, %v5864
      %v5866 = vrot.slane %v5370, 1
      %v5867 = vsel %vm3080, %v5864, %v5866
      %v5868 = vrot.slane %v5371, 1
      %v5869 = vsel %vm3080, %v5866, %v5868
      %v5870 = vrot.slane %v5372, 1
      %v5871 = vsel %vm3080, %v5868, %v5870
      %v5872 = vrot.slane %v5373, 1
      %v5873 = vsel %vm3080, %v5870, %v5872
      %v5874 = vrot.slane %v5374, 1
      %v5875 = vsel %vm3080, %v5872, %v5874
      %v5876 = vrot.slane %v5375, 1
      %v5877 = vsel %vm3080, %v5874, %v5876
      %v5878 = vrot.slane %v5376, 1
      %v5879 = vsel %vm3080, %v5876, %v5878
      %v5880 = vrot.slane %v5377, 1
      %v5881 = vsel %vm3080, %v5878, %v5880
      %v5882 = vrot.slane %v5378, 1
      %v5883 = vsel %vm3080, %v5880, %v5882
      %v5884 = vrot.slane %v5379, 1
      %v5885 = vsel %vm3080, %v5882, %v5884
      %v5886 = vrot.slane %v5380, 1
      %v5887 = vsel %vm3080, %v5884, %v5886
      %v5888 = vrot.slane %v5381, 1
      %v5889 = vsel %vm3080, %v5886, %v5888
      %v5890 = vrot.slane %v5382, 1
      %v5891 = vsel %vm3080, %v5888, %v5890
      %v5892 = vrot.slane %v5383, 1
      %v5893 = vsel %vm3080, %v5890, %v5892
      %v5894 = vrot.slane %v5384, 1
      %v5895 = vsel %vm3080, %v5892, %v5894
      %v5896 = vrot.slane %v5385, 1
      %v5897 = vsel %vm3080, %v5894, %v5896
      %v5898 = vrot.slane %v5386, 1
      %v5899 = vsel %vm3080, %v5896, %v5898
      %v5900 = vrot.slane %v5387, 1
      %v5901 = vsel %vm3080, %v5898, %v5900
      %v5902 = vrot.slane %v5388, 1
      %v5903 = vsel %vm3080, %v5900, %v5902
      %v5908 = vunpack.c.l.b16 %v5848
      %v5909 = vunpack.c.l.b16 %v5849
      %v5910 = vunpack.c.l.b16 %v5850
      %v5911 = vunpack.c.l.b16 %v5851
      %v5912 = vpack.c.b16 %v5909, %v5908
      %v5913 = vpack.c.b16 %v5911, %v5910
      %v5917 = vsel %vm577, %v5857, 0
      %v5920 = vsel %vm577, %v5859, 0
      %v5923 = vsel %vm577, %v5861, 0
      %v5926 = vsel %vm577, %v5863, 0
      %v5929 = vsel %vm577, %v5865, 0
      %v5932 = vsel %vm577, %v5867, 0
      %v5935 = vsel %vm577, %v5869, 0
      %v5938 = vsel %vm577, %v5871, 0
      %v5941 = vsel %vm577, %v5873, 0
      %v5944 = vsel %vm577, %v5875, 0
      %v5947 = vsel %vm577, %v5877, 0
      %v5950 = vsel %vm577, %v5879, 0
      %v5953 = vsel %vm577, %v5881, 0
      %v5956 = vsel %vm577, %v5883, 0
      %v5959 = vsel %vm577, %v5885, 0
      %v5962 = vsel %vm577, %v5887, 0
      %v5965 = vsel %vm577, %v5889, 0
      %v5968 = vsel %vm577, %v5891, 0
      %v5971 = vsel %vm577, %v5893, 0
      %v5974 = vsel %vm577, %v5895, 0
      %v5977 = vsel %vm577, %v5897, 0
      %v5980 = vsel %vm577, %v5899, 0
      %v5983 = vsel %vm577, %v5901, 0
      %v5986 = vsel %vm577, %v5903, 0
      %5988 = vmatpush.bf16.msra.mxu0 0
      %5989 = vmatpush.bf16.msra.mxu0 0
      %5990 = vmatpush.bf16.msra.mxu0 0
      %5991 = vmatpush.bf16.msra.mxu0 0
      %5992 = vmatpush.bf16.msra.mxu0 0
      %5993 = vmatpush.bf16.msra.mxu0 0
      %5994 = vmatpush.bf16.msra.mxu0 %v5913
      %5995 = vmatpush.bf16.msra.mxu0 %v5912
      %5996 = vmatmul.bf16.gmra.mxu0 %v5917
      %v5997 = vpop.f32.mrf.mxu0
      %v5998 = vadd.f32 0.0, %v5997
      %v5999 = vpop.f32.mrf.mxu0
      %v6000 = vadd.f32 0.0, %v5999
      %6001 = vmatmul.bf16.gmra.mxu0 %v5920
      %v6002 = vpop.f32.mrf.mxu0
      %v6003 = vadd.f32 0.0, %v6002
      %v6004 = vpop.f32.mrf.mxu0
      %v6005 = vadd.f32 0.0, %v6004
      %6006 = vmatmul.bf16.gmra.mxu0 %v5923
      %v6007 = vpop.f32.mrf.mxu0
      %v6008 = vadd.f32 0.0, %v6007
      %v6009 = vpop.f32.mrf.mxu0
      %v6010 = vadd.f32 0.0, %v6009
      %6011 = vmatmul.bf16.gmra.mxu0 %v5926
      %v6012 = vpop.f32.mrf.mxu0
      %v6013 = vadd.f32 0.0, %v6012
      %v6014 = vpop.f32.mrf.mxu0
      %v6015 = vadd.f32 0.0, %v6014
      %6016 = vmatmul.bf16.gmra.mxu0 %v5929
      %v6017 = vpop.f32.mrf.mxu0
      %v6018 = vadd.f32 0.0, %v6017
      %v6019 = vpop.f32.mrf.mxu0
      %v6020 = vadd.f32 0.0, %v6019
      %6021 = vmatmul.bf16.gmra.mxu0 %v5932
      %v6022 = vpop.f32.mrf.mxu0
      %v6023 = vadd.f32 0.0, %v6022
      %v6024 = vpop.f32.mrf.mxu0
      %v6025 = vadd.f32 0.0, %v6024
      %6026 = vmatmul.bf16.gmra.mxu0 %v5935
      %v6027 = vpop.f32.mrf.mxu0
      %v6028 = vadd.f32 0.0, %v6027
      %v6029 = vpop.f32.mrf.mxu0
      %v6030 = vadd.f32 0.0, %v6029
      %6031 = vmatmul.bf16.gmra.mxu0 %v5938
      %v6032 = vpop.f32.mrf.mxu0
      %v6033 = vadd.f32 0.0, %v6032
      %v6034 = vpop.f32.mrf.mxu0
      %v6035 = vadd.f32 0.0, %v6034
      %6036 = vmatmul.bf16.gmra.mxu0 %v5941
      %v6037 = vpop.f32.mrf.mxu0
      %v6038 = vadd.f32 0.0, %v6037
      %v6039 = vpop.f32.mrf.mxu0
      %v6040 = vadd.f32 0.0, %v6039
      %6041 = vmatmul.bf16.gmra.mxu0 %v5944
      %v6042 = vpop.f32.mrf.mxu0
      %v6043 = vadd.f32 0.0, %v6042
      %v6044 = vpop.f32.mrf.mxu0
      %v6045 = vadd.f32 0.0, %v6044
      %6046 = vmatmul.bf16.gmra.mxu0 %v5947
      %v6047 = vpop.f32.mrf.mxu0
      %v6048 = vadd.f32 0.0, %v6047
      %v6049 = vpop.f32.mrf.mxu0
      %v6050 = vadd.f32 0.0, %v6049
      %6051 = vmatmul.bf16.gmra.mxu0 %v5950
      %v6052 = vpop.f32.mrf.mxu0
      %v6053 = vadd.f32 0.0, %v6052
      %v6054 = vpop.f32.mrf.mxu0
      %v6055 = vadd.f32 0.0, %v6054
      %6056 = vmatmul.bf16.gmra.mxu0 %v5953
      %v6057 = vpop.f32.mrf.mxu0
      %v6058 = vadd.f32 0.0, %v6057
      %v6059 = vpop.f32.mrf.mxu0
      %v6060 = vadd.f32 0.0, %v6059
      %6061 = vmatmul.bf16.gmra.mxu0 %v5956
      %v6062 = vpop.f32.mrf.mxu0
      %v6063 = vadd.f32 0.0, %v6062
      %v6064 = vpop.f32.mrf.mxu0
      %v6065 = vadd.f32 0.0, %v6064
      %6066 = vmatmul.bf16.gmra.mxu0 %v5959
      %v6067 = vpop.f32.mrf.mxu0
      %v6068 = vadd.f32 0.0, %v6067
      %v6069 = vpop.f32.mrf.mxu0
      %v6070 = vadd.f32 0.0, %v6069
      %6071 = vmatmul.bf16.gmra.mxu0 %v5962
      %v6072 = vpop.f32.mrf.mxu0
      %v6073 = vadd.f32 0.0, %v6072
      %v6074 = vpop.f32.mrf.mxu0
      %v6075 = vadd.f32 0.0, %v6074
      %6076 = vmatmul.bf16.gmra.mxu0 %v5965
      %v6077 = vpop.f32.mrf.mxu0
      %v6078 = vadd.f32 0.0, %v6077
      %v6079 = vpop.f32.mrf.mxu0
      %v6080 = vadd.f32 0.0, %v6079
      %6081 = vmatmul.bf16.gmra.mxu0 %v5968
      %v6082 = vpop.f32.mrf.mxu0
      %v6083 = vadd.f32 0.0, %v6082
      %v6084 = vpop.f32.mrf.mxu0
      %v6085 = vadd.f32 0.0, %v6084
      %6086 = vmatmul.bf16.gmra.mxu0 %v5971
      %v6087 = vpop.f32.mrf.mxu0
      %v6088 = vadd.f32 0.0, %v6087
      %v6089 = vpop.f32.mrf.mxu0
      %v6090 = vadd.f32 0.0, %v6089
      %6091 = vmatmul.bf16.gmra.mxu0 %v5974
      %v6092 = vpop.f32.mrf.mxu0
      %v6093 = vadd.f32 0.0, %v6092
      %v6094 = vpop.f32.mrf.mxu0
      %v6095 = vadd.f32 0.0, %v6094
      %6096 = vmatmul.bf16.gmra.mxu0 %v5977
      %v6097 = vpop.f32.mrf.mxu0
      %v6098 = vadd.f32 0.0, %v6097
      %v6099 = vpop.f32.mrf.mxu0
      %v6100 = vadd.f32 0.0, %v6099
      %6101 = vmatmul.bf16.gmra.mxu0 %v5980
      %v6102 = vpop.f32.mrf.mxu0
      %v6103 = vadd.f32 0.0, %v6102
      %v6104 = vpop.f32.mrf.mxu0
      %v6105 = vadd.f32 0.0, %v6104
      %6106 = vmatmul.bf16.gmra.mxu0 %v5983
      %v6107 = vpop.f32.mrf.mxu0
      %v6108 = vadd.f32 0.0, %v6107
      %v6109 = vpop.f32.mrf.mxu0
      %v6110 = vadd.f32 0.0, %v6109
      %6111 = vmatmul.bf16.gmra.mxu0 %v5986
      %v6112 = vpop.f32.mrf.mxu0
      %v6113 = vadd.f32 0.0, %v6112
      %v6114 = vpop.f32.mrf.mxu0
      %v6115 = vadd.f32 0.0, %v6114
      %6116 = vdwg.mxu0
      %v6117 = vadd.f32 %v5798, %v5998
      %v6118 = vadd.f32 %v5799, %v6000
      %v6119 = vadd.f32 %v5800, %v6003
      %v6120 = vadd.f32 %v5801, %v6005
      %v6121 = vadd.f32 %v5802, %v6008
      %v6122 = vadd.f32 %v5803, %v6010
      %v6123 = vadd.f32 %v5804, %v6013
      %v6124 = vadd.f32 %v5805, %v6015
      %v6125 = vadd.f32 %v5806, %v6018
      %v6126 = vadd.f32 %v5807, %v6020
      %v6127 = vadd.f32 %v5808, %v6023
      %v6128 = vadd.f32 %v5809, %v6025
      %v6129 = vadd.f32 %v5810, %v6028
      %v6130 = vadd.f32 %v5811, %v6030
      %v6131 = vadd.f32 %v5812, %v6033
      %v6132 = vadd.f32 %v5813, %v6035
      %v6133 = vadd.f32 %v5814, %v6038
      %v6134 = vadd.f32 %v5815, %v6040
      %v6135 = vadd.f32 %v5816, %v6043
      %v6136 = vadd.f32 %v5817, %v6045
      %v6137 = vadd.f32 %v5818, %v6048
      %v6138 = vadd.f32 %v5819, %v6050
      %v6139 = vadd.f32 %v5820, %v6053
      %v6140 = vadd.f32 %v5821, %v6055
      %v6141 = vadd.f32 %v5822, %v6058
      %v6142 = vadd.f32 %v5823, %v6060
      %v6143 = vadd.f32 %v5824, %v6063
      %v6144 = vadd.f32 %v5825, %v6065
      %v6145 = vadd.f32 %v5826, %v6068
      %v6146 = vadd.f32 %v5827, %v6070
      %v6147 = vadd.f32 %v5828, %v6073
      %v6148 = vadd.f32 %v5829, %v6075
      %v6149 = vadd.f32 %v5830, %v6078
      %v6150 = vadd.f32 %v5831, %v6080
      %v6151 = vadd.f32 %v5832, %v6083
      %v6152 = vadd.f32 %v5833, %v6085
      %v6153 = vadd.f32 %v5834, %v6088
      %v6154 = vadd.f32 %v5835, %v6090
      %v6155 = vadd.f32 %v5836, %v6093
      %v6156 = vadd.f32 %v5837, %v6095
      %v6157 = vadd.f32 %v5838, %v6098
      %v6158 = vadd.f32 %v5839, %v6100
      %v6159 = vadd.f32 %v5840, %v6103
      %v6160 = vadd.f32 %v5841, %v6105
      %v6161 = vadd.f32 %v5842, %v6108
      %v6162 = vadd.f32 %v5843, %v6110
      %v6163 = vadd.f32 %v5844, %v6113
      %v6164 = vadd.f32 %v5845, %v6115
      %v6165 = vld [vmem:[%s7] sm:$0x1]
      %v6166 = vld [vmem:[%s449] sm:$0x1]
      %v6167 = vadd.f32 %v6165, %v6166
      %v6169 = vperm.slane %v6167, 0
      %v6171 = vadd.f32 %v6117, %v6169
      %v6172 = vadd.f32 %v6118, %v6169
      %v6173 = vadd.f32 %v6119, %v6169
      %v6174 = vadd.f32 %v6120, %v6169
      %v6175 = vadd.f32 %v6121, %v6169
      %v6176 = vadd.f32 %v6122, %v6169
      %v6177 = vadd.f32 %v6123, %v6169
      %v6178 = vadd.f32 %v6124, %v6169
      %v6179 = vadd.f32 %v6125, %v6169
      %v6180 = vadd.f32 %v6126, %v6169
      %v6181 = vadd.f32 %v6127, %v6169
      %v6182 = vadd.f32 %v6128, %v6169
      %v6183 = vadd.f32 %v6129, %v6169
      %v6184 = vadd.f32 %v6130, %v6169
      %v6185 = vadd.f32 %v6131, %v6169
      %v6186 = vadd.f32 %v6132, %v6169
      %v6187 = vadd.f32 %v6133, %v6169
      %v6188 = vadd.f32 %v6134, %v6169
      %v6189 = vadd.f32 %v6135, %v6169
      %v6190 = vadd.f32 %v6136, %v6169
      %v6191 = vadd.f32 %v6137, %v6169
      %v6192 = vadd.f32 %v6138, %v6169
      %v6193 = vadd.f32 %v6139, %v6169
      %v6194 = vadd.f32 %v6140, %v6169
      %v6195 = vadd.f32 %v6141, %v6169
      %v6196 = vadd.f32 %v6142, %v6169
      %v6197 = vadd.f32 %v6143, %v6169
      %v6198 = vadd.f32 %v6144, %v6169
      %v6199 = vadd.f32 %v6145, %v6169
      %v6200 = vadd.f32 %v6146, %v6169
      %v6201 = vadd.f32 %v6147, %v6169
      %v6202 = vadd.f32 %v6148, %v6169
      %v6203 = vadd.f32 %v6149, %v6169
      %v6204 = vadd.f32 %v6150, %v6169
      %v6205 = vadd.f32 %v6151, %v6169
      %v6206 = vadd.f32 %v6152, %v6169
      %v6207 = vadd.f32 %v6153, %v6169
      %v6208 = vadd.f32 %v6154, %v6169
      %v6209 = vadd.f32 %v6155, %v6169
      %v6210 = vadd.f32 %v6156, %v6169
      %v6211 = vadd.f32 %v6157, %v6169
      %v6212 = vadd.f32 %v6158, %v6169
      %v6213 = vadd.f32 %v6159, %v6169
      %v6214 = vadd.f32 %v6160, %v6169
      %v6215 = vadd.f32 %v6161, %v6169
      %v6216 = vadd.f32 %v6162, %v6169
      %v6217 = vadd.f32 %v6163, %v6169
      %v6218 = vadd.f32 %v6164, %v6169
      %v6219 = vmul.f32 %v6171, %v754
      %v6220 = vmul.f32 %v6172, %v759
      %v6221 = vmul.f32 %v6173, %v764
      %v6222 = vmul.f32 %v6174, %v769
      %v6223 = vmul.f32 %v6175, %v774
      %v6224 = vmul.f32 %v6176, %v779
      %v6225 = vmul.f32 %v6177, %v784
      %v6226 = vmul.f32 %v6178, %v789
      %v6227 = vmul.f32 %v6179, %v794
      %v6228 = vmul.f32 %v6180, %v799
      %v6229 = vmul.f32 %v6181, %v804
      %v6230 = vmul.f32 %v6182, %v809
      %v6231 = vmul.f32 %v6183, %v814
      %v6232 = vmul.f32 %v6184, %v819
      %v6233 = vmul.f32 %v6185, %v824
      %v6234 = vmul.f32 %v6186, %v829
      %v6235 = vmul.f32 %v6187, %v834
      %v6236 = vmul.f32 %v6188, %v839
      %v6237 = vmul.f32 %v6189, %v844
      %v6238 = vmul.f32 %v6190, %v849
      %v6239 = vmul.f32 %v6191, %v854
      %v6240 = vmul.f32 %v6192, %v859
      %v6241 = vmul.f32 %v6193, %v864
      %v6242 = vmul.f32 %v6194, %v869
      %v6243 = vmul.f32 %v6195, %v874
      %v6244 = vmul.f32 %v6196, %v879
      %v6245 = vmul.f32 %v6197, %v884
      %v6246 = vmul.f32 %v6198, %v889
      %v6247 = vmul.f32 %v6199, %v894
      %v6248 = vmul.f32 %v6200, %v899
      %v6249 = vmul.f32 %v6201, %v904
      %v6250 = vmul.f32 %v6202, %v909
      %v6251 = vmul.f32 %v6203, %v914
      %v6252 = vmul.f32 %v6204, %v919
      %v6253 = vmul.f32 %v6205, %v924
      %v6254 = vmul.f32 %v6206, %v929
      %v6255 = vmul.f32 %v6207, %v934
      %v6256 = vmul.f32 %v6208, %v939
      %v6257 = vmul.f32 %v6209, %v944
      %v6258 = vmul.f32 %v6210, %v949
      %v6259 = vmul.f32 %v6211, %v954
      %v6260 = vmul.f32 %v6212, %v959
      %v6261 = vmul.f32 %v6213, %v964
      %v6262 = vmul.f32 %v6214, %v969
      %v6263 = vmul.f32 %v6215, %v974
      %v6264 = vmul.f32 %v6216, %v979
      %v6265 = vmul.f32 %v6217, %v984
      %v6266 = vmul.f32 %v6218, %v989
      %v6267 = vld [vmem:[%s10] sm:$0xff]
      %v6268 = vld [vmem:[%s10 + $0x8] sm:$0xff]
      %v6269 = vld [vmem:[%s10 + $0x10] sm:$0xff]
      %v6270 = vld [vmem:[%s10 + $0x18] sm:$0xff]
      %v6271 = vld [vmem:[%s8] sm:$0x1]
      %v6272 = vld [vmem:[%s9] sm:$0x1]
      %v6273 = vsel %vm577, %v6219, 0.0
      %v6274 = vsel %vm577, %v6220, 0.0
      %v6275 = vadd.f32 %v6273, %v6274
      %v6276 = vsel %vm577, %v6221, 0.0
      %v6277 = vadd.f32 %v6275, %v6276
      %v6278 = vsel %vm577, %v6222, 0.0
      %v6279 = vadd.f32 %v6277, %v6278
      %v6280 = vsel %vm577, %v6223, 0.0
      %v6281 = vadd.f32 %v6279, %v6280
      %v6282 = vsel %vm577, %v6224, 0.0
      %v6283 = vadd.f32 %v6281, %v6282
      %v6284 = vsel %vm577, %v6225, 0.0
      %v6285 = vadd.f32 %v6283, %v6284
      %v6286 = vsel %vm577, %v6226, 0.0
      %v6287 = vadd.f32 %v6285, %v6286
      %v6288 = vsel %vm577, %v6227, 0.0
      %v6289 = vadd.f32 %v6287, %v6288
      %v6290 = vsel %vm577, %v6228, 0.0
      %v6291 = vadd.f32 %v6289, %v6290
      %v6292 = vsel %vm577, %v6229, 0.0
      %v6293 = vadd.f32 %v6291, %v6292
      %v6294 = vsel %vm577, %v6230, 0.0
      %v6295 = vadd.f32 %v6293, %v6294
      %v6296 = vsel %vm577, %v6231, 0.0
      %v6297 = vadd.f32 %v6295, %v6296
      %v6298 = vsel %vm577, %v6232, 0.0
      %v6299 = vadd.f32 %v6297, %v6298
      %v6300 = vsel %vm577, %v6233, 0.0
      %v6301 = vadd.f32 %v6299, %v6300
      %v6302 = vsel %vm577, %v6234, 0.0
      %v6303 = vadd.f32 %v6301, %v6302
      %v6304 = vsel %vm577, %v6235, 0.0
      %v6305 = vadd.f32 %v6303, %v6304
      %v6306 = vsel %vm577, %v6236, 0.0
      %v6307 = vadd.f32 %v6305, %v6306
      %v6308 = vsel %vm577, %v6237, 0.0
      %v6309 = vadd.f32 %v6307, %v6308
      %v6310 = vsel %vm577, %v6238, 0.0
      %v6311 = vadd.f32 %v6309, %v6310
      %v6312 = vsel %vm577, %v6239, 0.0
      %v6313 = vadd.f32 %v6311, %v6312
      %v6314 = vsel %vm577, %v6240, 0.0
      %v6315 = vadd.f32 %v6313, %v6314
      %v6316 = vsel %vm577, %v6241, 0.0
      %v6317 = vadd.f32 %v6315, %v6316
      %v6318 = vsel %vm577, %v6242, 0.0
      %v6319 = vadd.f32 %v6317, %v6318
      %v6320 = vsel %vm577, %v6243, 0.0
      %v6321 = vadd.f32 %v6319, %v6320
      %v6322 = vsel %vm577, %v6244, 0.0
      %v6323 = vadd.f32 %v6321, %v6322
      %v6324 = vsel %vm577, %v6245, 0.0
      %v6325 = vadd.f32 %v6323, %v6324
      %v6326 = vsel %vm577, %v6246, 0.0
      %v6327 = vadd.f32 %v6325, %v6326
      %v6328 = vsel %vm577, %v6247, 0.0
      %v6329 = vadd.f32 %v6327, %v6328
      %v6330 = vsel %vm577, %v6248, 0.0
      %v6331 = vadd.f32 %v6329, %v6330
      %v6332 = vsel %vm577, %v6249, 0.0
      %v6333 = vadd.f32 %v6331, %v6332
      %v6334 = vsel %vm577, %v6250, 0.0
      %v6335 = vadd.f32 %v6333, %v6334
      %v6336 = vsel %vm577, %v6251, 0.0
      %v6337 = vadd.f32 %v6335, %v6336
      %v6338 = vsel %vm577, %v6252, 0.0
      %v6339 = vadd.f32 %v6337, %v6338
      %v6340 = vsel %vm577, %v6253, 0.0
      %v6341 = vadd.f32 %v6339, %v6340
      %v6342 = vsel %vm577, %v6254, 0.0
      %v6343 = vadd.f32 %v6341, %v6342
      %v6344 = vsel %vm577, %v6255, 0.0
      %v6345 = vadd.f32 %v6343, %v6344
      %v6346 = vsel %vm577, %v6256, 0.0
      %v6347 = vadd.f32 %v6345, %v6346
      %v6348 = vsel %vm577, %v6257, 0.0
      %v6349 = vadd.f32 %v6347, %v6348
      %v6350 = vsel %vm577, %v6258, 0.0
      %v6351 = vadd.f32 %v6349, %v6350
      %v6352 = vsel %vm577, %v6259, 0.0
      %v6353 = vadd.f32 %v6351, %v6352
      %v6354 = vsel %vm577, %v6260, 0.0
      %v6355 = vadd.f32 %v6353, %v6354
      %v6356 = vsel %vm577, %v6261, 0.0
      %v6357 = vadd.f32 %v6355, %v6356
      %v6358 = vsel %vm577, %v6262, 0.0
      %v6359 = vadd.f32 %v6357, %v6358
      %v6360 = vsel %vm577, %v6263, 0.0
      %v6361 = vadd.f32 %v6359, %v6360
      %v6362 = vsel %vm577, %v6264, 0.0
      %v6363 = vadd.f32 %v6361, %v6362
      %v6364 = vsel %vm577, %v6265, 0.0
      %v6365 = vadd.f32 %v6363, %v6364
      %v6366 = vsel %vm577, %v6266, 0.0
      %v6367 = vadd.f32 %v6365, %v6366
      %v6368 = vrot.slane %v6367, 4
      %v6369 = vadd.f32 %v6367, %v6368
      %v6370 = vrot.slane %v6369, 2
      %v6371 = vadd.f32 %v6369, %v6370
      %v6372 = vrot.slane %v6371, 1
      %v6373 = vadd.f32 %v6371, %v6372
      %v6375 = vsel %vm577, %v6373, 0
      %6377 = vmatpush.msra.mxu0 0.0
      %6378 = vmatpush.msra.mxu0 0.0
      %6379 = vmatpush.msra.mxu0 0.0
      %6380 = vmatpush.msra.mxu0 0.0
      %6381 = vmatpush.msra.mxu0 0.0
      %6382 = vmatpush.msra.mxu0 0.0
      %6383 = vmatpush.msra.mxu0 0.0
      %6384 = vmatpush.msra.mxu0 0.0
      %6385 = vmatpush.msra.mxu0 0.0
      %6386 = vmatpush.msra.mxu0 0.0
      %6387 = vmatpush.msra.mxu0 0.0
      %6388 = vmatpush.msra.mxu0 0.0
      %6389 = vmatpush.msra.mxu0 %v6270
      %6390 = vmatpush.msra.mxu0 %v6269
      %6391 = vmatpush.msra.mxu0 %v6268
      %6392 = vmatpush.msra.mxu0 %v6267
      %6393 = vmatmul.f32.gmra.mxu0 %v6375
      %v6394 = vpop.f32.mrf.mxu0
      %v6395 = vadd.f32 0.0, %v6394
      %6396 = vdwg.mxu0
      %v6397 = vperm.slane %v6395, 0
      %v6398 = vsub.f32 %v6171, %v6397
      %v6399 = vsub.f32 %v6172, %v6397
      %v6400 = vsub.f32 %v6173, %v6397
      %v6401 = vsub.f32 %v6174, %v6397
      %v6402 = vsub.f32 %v6175, %v6397
      %v6403 = vsub.f32 %v6176, %v6397
      %v6404 = vsub.f32 %v6177, %v6397
      %v6405 = vsub.f32 %v6178, %v6397
      %v6406 = vsub.f32 %v6179, %v6397
      %v6407 = vsub.f32 %v6180, %v6397
      %v6408 = vsub.f32 %v6181, %v6397
      %v6409 = vsub.f32 %v6182, %v6397
      %v6410 = vsub.f32 %v6183, %v6397
      %v6411 = vsub.f32 %v6184, %v6397
      %v6412 = vsub.f32 %v6185, %v6397
      %v6413 = vsub.f32 %v6186, %v6397
      %v6414 = vsub.f32 %v6187, %v6397
      %v6415 = vsub.f32 %v6188, %v6397
      %v6416 = vsub.f32 %v6189, %v6397
      %v6417 = vsub.f32 %v6190, %v6397
      %v6418 = vsub.f32 %v6191, %v6397
      %v6419 = vsub.f32 %v6192, %v6397
      %v6420 = vsub.f32 %v6193, %v6397
      %v6421 = vsub.f32 %v6194, %v6397
      %v6422 = vsub.f32 %v6195, %v6397
      %v6423 = vsub.f32 %v6196, %v6397
      %v6424 = vsub.f32 %v6197, %v6397
      %v6425 = vsub.f32 %v6198, %v6397
      %v6426 = vsub.f32 %v6199, %v6397
      %v6427 = vsub.f32 %v6200, %v6397
      %v6428 = vsub.f32 %v6201, %v6397
      %v6429 = vsub.f32 %v6202, %v6397
      %v6430 = vsub.f32 %v6203, %v6397
      %v6431 = vsub.f32 %v6204, %v6397
      %v6432 = vsub.f32 %v6205, %v6397
      %v6433 = vsub.f32 %v6206, %v6397
      %v6434 = vsub.f32 %v6207, %v6397
      %v6435 = vsub.f32 %v6208, %v6397
      %v6436 = vsub.f32 %v6209, %v6397
      %v6437 = vsub.f32 %v6210, %v6397
      %v6438 = vsub.f32 %v6211, %v6397
      %v6439 = vsub.f32 %v6212, %v6397
      %v6440 = vsub.f32 %v6213, %v6397
      %v6441 = vsub.f32 %v6214, %v6397
      %v6442 = vsub.f32 %v6215, %v6397
      %v6443 = vsub.f32 %v6216, %v6397
      %v6444 = vsub.f32 %v6217, %v6397
      %v6445 = vsub.f32 %v6218, %v6397
      %v6446 = vmul.f32 %v6398, %v754
      %v6447 = vmul.f32 %v6399, %v759
      %v6448 = vmul.f32 %v6400, %v764
      %v6449 = vmul.f32 %v6401, %v769
      %v6450 = vmul.f32 %v6402, %v774
      %v6451 = vmul.f32 %v6403, %v779
      %v6452 = vmul.f32 %v6404, %v784
      %v6453 = vmul.f32 %v6405, %v789
      %v6454 = vmul.f32 %v6406, %v794
      %v6455 = vmul.f32 %v6407, %v799
      %v6456 = vmul.f32 %v6408, %v804
      %v6457 = vmul.f32 %v6409, %v809
      %v6458 = vmul.f32 %v6410, %v814
      %v6459 = vmul.f32 %v6411, %v819
      %v6460 = vmul.f32 %v6412, %v824
      %v6461 = vmul.f32 %v6413, %v829
      %v6462 = vmul.f32 %v6414, %v834
      %v6463 = vmul.f32 %v6415, %v839
      %v6464 = vmul.f32 %v6416, %v844
      %v6465 = vmul.f32 %v6417, %v849
      %v6466 = vmul.f32 %v6418, %v854
      %v6467 = vmul.f32 %v6419, %v859
      %v6468 = vmul.f32 %v6420, %v864
      %v6469 = vmul.f32 %v6421, %v869
      %v6470 = vmul.f32 %v6422, %v874
      %v6471 = vmul.f32 %v6423, %v879
      %v6472 = vmul.f32 %v6424, %v884
      %v6473 = vmul.f32 %v6425, %v889
      %v6474 = vmul.f32 %v6426, %v894
      %v6475 = vmul.f32 %v6427, %v899
      %v6476 = vmul.f32 %v6428, %v904
      %v6477 = vmul.f32 %v6429, %v909
      %v6478 = vmul.f32 %v6430, %v914
      %v6479 = vmul.f32 %v6431, %v919
      %v6480 = vmul.f32 %v6432, %v924
      %v6481 = vmul.f32 %v6433, %v929
      %v6482 = vmul.f32 %v6434, %v934
      %v6483 = vmul.f32 %v6435, %v939
      %v6484 = vmul.f32 %v6436, %v944
      %v6485 = vmul.f32 %v6437, %v949
      %v6486 = vmul.f32 %v6438, %v954
      %v6487 = vmul.f32 %v6439, %v959
      %v6488 = vmul.f32 %v6440, %v964
      %v6489 = vmul.f32 %v6441, %v969
      %v6490 = vmul.f32 %v6442, %v974
      %v6491 = vmul.f32 %v6443, %v979
      %v6492 = vmul.f32 %v6444, %v984
      %v6493 = vmul.f32 %v6445, %v989
      %v6494 = vmul.f32 %v6446, %v6446
      %v6495 = vmul.f32 %v6447, %v6447
      %v6496 = vmul.f32 %v6448, %v6448
      %v6497 = vmul.f32 %v6449, %v6449
      %v6498 = vmul.f32 %v6450, %v6450
      %v6499 = vmul.f32 %v6451, %v6451
      %v6500 = vmul.f32 %v6452, %v6452
      %v6501 = vmul.f32 %v6453, %v6453
      %v6502 = vmul.f32 %v6454, %v6454
      %v6503 = vmul.f32 %v6455, %v6455
      %v6504 = vmul.f32 %v6456, %v6456
      %v6505 = vmul.f32 %v6457, %v6457
      %v6506 = vmul.f32 %v6458, %v6458
      %v6507 = vmul.f32 %v6459, %v6459
      %v6508 = vmul.f32 %v6460, %v6460
      %v6509 = vmul.f32 %v6461, %v6461
      %v6510 = vmul.f32 %v6462, %v6462
      %v6511 = vmul.f32 %v6463, %v6463
      %v6512 = vmul.f32 %v6464, %v6464
      %v6513 = vmul.f32 %v6465, %v6465
      %v6514 = vmul.f32 %v6466, %v6466
      %v6515 = vmul.f32 %v6467, %v6467
      %v6516 = vmul.f32 %v6468, %v6468
      %v6517 = vmul.f32 %v6469, %v6469
      %v6518 = vmul.f32 %v6470, %v6470
      %v6519 = vmul.f32 %v6471, %v6471
      %v6520 = vmul.f32 %v6472, %v6472
      %v6521 = vmul.f32 %v6473, %v6473
      %v6522 = vmul.f32 %v6474, %v6474
      %v6523 = vmul.f32 %v6475, %v6475
      %v6524 = vmul.f32 %v6476, %v6476
      %v6525 = vmul.f32 %v6477, %v6477
      %v6526 = vmul.f32 %v6478, %v6478
      %v6527 = vmul.f32 %v6479, %v6479
      %v6528 = vmul.f32 %v6480, %v6480
      %v6529 = vmul.f32 %v6481, %v6481
      %v6530 = vmul.f32 %v6482, %v6482
      %v6531 = vmul.f32 %v6483, %v6483
      %v6532 = vmul.f32 %v6484, %v6484
      %v6533 = vmul.f32 %v6485, %v6485
      %v6534 = vmul.f32 %v6486, %v6486
      %v6535 = vmul.f32 %v6487, %v6487
      %v6536 = vmul.f32 %v6488, %v6488
      %v6537 = vmul.f32 %v6489, %v6489
      %v6538 = vmul.f32 %v6490, %v6490
      %v6539 = vmul.f32 %v6491, %v6491
      %v6540 = vmul.f32 %v6492, %v6492
      %v6541 = vmul.f32 %v6493, %v6493
      %v6542 = vsel %vm577, %v6494, 0.0
      %v6543 = vsel %vm577, %v6495, 0.0
      %v6544 = vadd.f32 %v6542, %v6543
      %v6545 = vsel %vm577, %v6496, 0.0
      %v6546 = vadd.f32 %v6544, %v6545
      %v6547 = vsel %vm577, %v6497, 0.0
      %v6548 = vadd.f32 %v6546, %v6547
      %v6549 = vsel %vm577, %v6498, 0.0
      %v6550 = vadd.f32 %v6548, %v6549
      %v6551 = vsel %vm577, %v6499, 0.0
      %v6552 = vadd.f32 %v6550, %v6551
      %v6553 = vsel %vm577, %v6500, 0.0
      %v6554 = vadd.f32 %v6552, %v6553
      %v6555 = vsel %vm577, %v6501, 0.0
      %v6556 = vadd.f32 %v6554, %v6555
      %v6557 = vsel %vm577, %v6502, 0.0
      %v6558 = vadd.f32 %v6556, %v6557
      %v6559 = vsel %vm577, %v6503, 0.0
      %v6560 = vadd.f32 %v6558, %v6559
      %v6561 = vsel %vm577, %v6504, 0.0
      %v6562 = vadd.f32 %v6560, %v6561
      %v6563 = vsel %vm577, %v6505, 0.0
      %v6564 = vadd.f32 %v6562, %v6563
      %v6565 = vsel %vm577, %v6506, 0.0
      %v6566 = vadd.f32 %v6564, %v6565
      %v6567 = vsel %vm577, %v6507, 0.0
      %v6568 = vadd.f32 %v6566, %v6567
      %v6569 = vsel %vm577, %v6508, 0.0
      %v6570 = vadd.f32 %v6568, %v6569
      %v6571 = vsel %vm577, %v6509, 0.0
      %v6572 = vadd.f32 %v6570, %v6571
      %v6573 = vsel %vm577, %v6510, 0.0
      %v6574 = vadd.f32 %v6572, %v6573
      %v6575 = vsel %vm577, %v6511, 0.0
      %v6576 = vadd.f32 %v6574, %v6575
      %v6577 = vsel %vm577, %v6512, 0.0
      %v6578 = vadd.f32 %v6576, %v6577
      %v6579 = vsel %vm577, %v6513, 0.0
      %v6580 = vadd.f32 %v6578, %v6579
      %v6581 = vsel %vm577, %v6514, 0.0
      %v6582 = vadd.f32 %v6580, %v6581
      %v6583 = vsel %vm577, %v6515, 0.0
      %v6584 = vadd.f32 %v6582, %v6583
      %v6585 = vsel %vm577, %v6516, 0.0
      %v6586 = vadd.f32 %v6584, %v6585
      %v6587 = vsel %vm577, %v6517, 0.0
      %v6588 = vadd.f32 %v6586, %v6587
      %v6589 = vsel %vm577, %v6518, 0.0
      %v6590 = vadd.f32 %v6588, %v6589
      %v6591 = vsel %vm577, %v6519, 0.0
      %v6592 = vadd.f32 %v6590, %v6591
      %v6593 = vsel %vm577, %v6520, 0.0
      %v6594 = vadd.f32 %v6592, %v6593
      %v6595 = vsel %vm577, %v6521, 0.0
      %v6596 = vadd.f32 %v6594, %v6595
      %v6597 = vsel %vm577, %v6522, 0.0
      %v6598 = vadd.f32 %v6596, %v6597
      %v6599 = vsel %vm577, %v6523, 0.0
      %v6600 = vadd.f32 %v6598, %v6599
      %v6601 = vsel %vm577, %v6524, 0.0
      %v6602 = vadd.f32 %v6600, %v6601
      %v6603 = vsel %vm577, %v6525, 0.0
      %v6604 = vadd.f32 %v6602, %v6603
      %v6605 = vsel %vm577, %v6526, 0.0
      %v6606 = vadd.f32 %v6604, %v6605
      %v6607 = vsel %vm577, %v6527, 0.0
      %v6608 = vadd.f32 %v6606, %v6607
      %v6609 = vsel %vm577, %v6528, 0.0
      %v6610 = vadd.f32 %v6608, %v6609
      %v6611 = vsel %vm577, %v6529, 0.0
      %v6612 = vadd.f32 %v6610, %v6611
      %v6613 = vsel %vm577, %v6530, 0.0
      %v6614 = vadd.f32 %v6612, %v6613
      %v6615 = vsel %vm577, %v6531, 0.0
      %v6616 = vadd.f32 %v6614, %v6615
      %v6617 = vsel %vm577, %v6532, 0.0
      %v6618 = vadd.f32 %v6616, %v6617
      %v6619 = vsel %vm577, %v6533, 0.0
      %v6620 = vadd.f32 %v6618, %v6619
      %v6621 = vsel %vm577, %v6534, 0.0
      %v6622 = vadd.f32 %v6620, %v6621
      %v6623 = vsel %vm577, %v6535, 0.0
      %v6624 = vadd.f32 %v6622, %v6623
      %v6625 = vsel %vm577, %v6536, 0.0
      %v6626 = vadd.f32 %v6624, %v6625
      %v6627 = vsel %vm577, %v6537, 0.0
      %v6628 = vadd.f32 %v6626, %v6627
      %v6629 = vsel %vm577, %v6538, 0.0
      %v6630 = vadd.f32 %v6628, %v6629
      %v6631 = vsel %vm577, %v6539, 0.0
      %v6632 = vadd.f32 %v6630, %v6631
      %v6633 = vsel %vm577, %v6540, 0.0
      %v6634 = vadd.f32 %v6632, %v6633
      %v6635 = vsel %vm577, %v6541, 0.0
      %v6636 = vadd.f32 %v6634, %v6635
      %v6637 = vrot.slane %v6636, 4
      %v6638 = vadd.f32 %v6636, %v6637
      %v6639 = vrot.slane %v6638, 2
      %v6640 = vadd.f32 %v6638, %v6639
      %v6641 = vrot.slane %v6640, 1
      %v6642 = vadd.f32 %v6640, %v6641
      %v6644 = vsel %vm577, %v6642, 0
      %6646 = vmatpush.msra.mxu0 0.0
      %6647 = vmatpush.msra.mxu0 0.0
      %6648 = vmatpush.msra.mxu0 0.0
      %6649 = vmatpush.msra.mxu0 0.0
      %6650 = vmatpush.msra.mxu0 0.0
      %6651 = vmatpush.msra.mxu0 0.0
      %6652 = vmatpush.msra.mxu0 0.0
      %6653 = vmatpush.msra.mxu0 0.0
      %6654 = vmatpush.msra.mxu0 0.0
      %6655 = vmatpush.msra.mxu0 0.0
      %6656 = vmatpush.msra.mxu0 0.0
      %6657 = vmatpush.msra.mxu0 0.0
      %6658 = vmatpush.msra.mxu0 %v6270
      %6659 = vmatpush.msra.mxu0 %v6269
      %6660 = vmatpush.msra.mxu0 %v6268
      %6661 = vmatpush.msra.mxu0 %v6267
      %6662 = vmatmul.f32.gmra.mxu0 %v6644
      %v6663 = vpop.f32.mrf.mxu0
      %v6664 = vadd.f32 1e-05, %v6663
      %6665 = vdwg.mxu0
      %v6666 = vrsqrt.pop %v6664
      %v6667 = vmul.f32 %v6666, %v6664
      %v6668 = vmul.f32 %v6667, %v6666
      %v6669 = vmul.f32 0.5, %v6668
      %v6670 = vsub.f32 1.5, %v6669
      %v6671 = vmul.f32 %v6666, %v6670
      %vm6672 = vweird.f32 %v6664
      %vm6673 = vweird.f32 %v6666
      %vm6674 = vmor %vm6672, %vm6673
      %v6675 = vsel %vm6674, %v6666, %v6671
      %v6676 = vperm.slane %v6675, 0
      %v6677 = vmul.f32 %v6398, %v6676
      %v6678 = vmul.f32 %v6399, %v6676
      %v6679 = vmul.f32 %v6400, %v6676
      %v6680 = vmul.f32 %v6401, %v6676
      %v6681 = vmul.f32 %v6402, %v6676
      %v6682 = vmul.f32 %v6403, %v6676
      %v6683 = vmul.f32 %v6404, %v6676
      %v6684 = vmul.f32 %v6405, %v6676
      %v6685 = vmul.f32 %v6406, %v6676
      %v6686 = vmul.f32 %v6407, %v6676
      %v6687 = vmul.f32 %v6408, %v6676
      %v6688 = vmul.f32 %v6409, %v6676
      %v6689 = vmul.f32 %v6410, %v6676
      %v6690 = vmul.f32 %v6411, %v6676
      %v6691 = vmul.f32 %v6412, %v6676
      %v6692 = vmul.f32 %v6413, %v6676
      %v6693 = vmul.f32 %v6414, %v6676
      %v6694 = vmul.f32 %v6415, %v6676
      %v6695 = vmul.f32 %v6416, %v6676
      %v6696 = vmul.f32 %v6417, %v6676
      %v6697 = vmul.f32 %v6418, %v6676
      %v6698 = vmul.f32 %v6419, %v6676
      %v6699 = vmul.f32 %v6420, %v6676
      %v6700 = vmul.f32 %v6421, %v6676
      %v6701 = vmul.f32 %v6422, %v6676
      %v6702 = vmul.f32 %v6423, %v6676
      %v6703 = vmul.f32 %v6424, %v6676
      %v6704 = vmul.f32 %v6425, %v6676
      %v6705 = vmul.f32 %v6426, %v6676
      %v6706 = vmul.f32 %v6427, %v6676
      %v6707 = vmul.f32 %v6428, %v6676
      %v6708 = vmul.f32 %v6429, %v6676
      %v6709 = vmul.f32 %v6430, %v6676
      %v6710 = vmul.f32 %v6431, %v6676
      %v6711 = vmul.f32 %v6432, %v6676
      %v6712 = vmul.f32 %v6433, %v6676
      %v6713 = vmul.f32 %v6434, %v6676
      %v6714 = vmul.f32 %v6435, %v6676
      %v6715 = vmul.f32 %v6436, %v6676
      %v6716 = vmul.f32 %v6437, %v6676
      %v6717 = vmul.f32 %v6438, %v6676
      %v6718 = vmul.f32 %v6439, %v6676
      %v6719 = vmul.f32 %v6440, %v6676
      %v6720 = vmul.f32 %v6441, %v6676
      %v6721 = vmul.f32 %v6442, %v6676
      %v6722 = vmul.f32 %v6443, %v6676
      %v6723 = vmul.f32 %v6444, %v6676
      %v6724 = vmul.f32 %v6445, %v6676
      %v6726 = vperm.slane %v6271, 0
      %v6728 = vmul.f32 %v6677, %v6726
      %v6729 = vmul.f32 %v6678, %v6726
      %v6730 = vmul.f32 %v6679, %v6726
      %v6731 = vmul.f32 %v6680, %v6726
      %v6732 = vmul.f32 %v6681, %v6726
      %v6733 = vmul.f32 %v6682, %v6726
      %v6734 = vmul.f32 %v6683, %v6726
      %v6735 = vmul.f32 %v6684, %v6726
      %v6736 = vmul.f32 %v6685, %v6726
      %v6737 = vmul.f32 %v6686, %v6726
      %v6738 = vmul.f32 %v6687, %v6726
      %v6739 = vmul.f32 %v6688, %v6726
      %v6740 = vmul.f32 %v6689, %v6726
      %v6741 = vmul.f32 %v6690, %v6726
      %v6742 = vmul.f32 %v6691, %v6726
      %v6743 = vmul.f32 %v6692, %v6726
      %v6744 = vmul.f32 %v6693, %v6726
      %v6745 = vmul.f32 %v6694, %v6726
      %v6746 = vmul.f32 %v6695, %v6726
      %v6747 = vmul.f32 %v6696, %v6726
      %v6748 = vmul.f32 %v6697, %v6726
      %v6749 = vmul.f32 %v6698, %v6726
      %v6750 = vmul.f32 %v6699, %v6726
      %v6751 = vmul.f32 %v6700, %v6726
      %v6752 = vmul.f32 %v6701, %v6726
      %v6753 = vmul.f32 %v6702, %v6726
      %v6754 = vmul.f32 %v6703, %v6726
      %v6755 = vmul.f32 %v6704, %v6726
      %v6756 = vmul.f32 %v6705, %v6726
      %v6757 = vmul.f32 %v6706, %v6726
      %v6758 = vmul.f32 %v6707, %v6726
      %v6759 = vmul.f32 %v6708, %v6726
      %v6760 = vmul.f32 %v6709, %v6726
      %v6761 = vmul.f32 %v6710, %v6726
      %v6762 = vmul.f32 %v6711, %v6726
      %v6763 = vmul.f32 %v6712, %v6726
      %v6764 = vmul.f32 %v6713, %v6726
      %v6765 = vmul.f32 %v6714, %v6726
      %v6766 = vmul.f32 %v6715, %v6726
      %v6767 = vmul.f32 %v6716, %v6726
      %v6768 = vmul.f32 %v6717, %v6726
      %v6769 = vmul.f32 %v6718, %v6726
      %v6770 = vmul.f32 %v6719, %v6726
      %v6771 = vmul.f32 %v6720, %v6726
      %v6772 = vmul.f32 %v6721, %v6726
      %v6773 = vmul.f32 %v6722, %v6726
      %v6774 = vmul.f32 %v6723, %v6726
      %v6775 = vmul.f32 %v6724, %v6726
      %v6777 = vperm.slane %v6272, 0
      %v6779 = vadd.f32 %v6728, %v6777
      %v6780 = vadd.f32 %v6729, %v6777
      %v6781 = vadd.f32 %v6730, %v6777
      %v6782 = vadd.f32 %v6731, %v6777
      %v6783 = vadd.f32 %v6732, %v6777
      %v6784 = vadd.f32 %v6733, %v6777
      %v6785 = vadd.f32 %v6734, %v6777
      %v6786 = vadd.f32 %v6735, %v6777
      %v6787 = vadd.f32 %v6736, %v6777
      %v6788 = vadd.f32 %v6737, %v6777
      %v6789 = vadd.f32 %v6738, %v6777
      %v6790 = vadd.f32 %v6739, %v6777
      %v6791 = vadd.f32 %v6740, %v6777
      %v6792 = vadd.f32 %v6741, %v6777
      %v6793 = vadd.f32 %v6742, %v6777
      %v6794 = vadd.f32 %v6743, %v6777
      %v6795 = vadd.f32 %v6744, %v6777
      %v6796 = vadd.f32 %v6745, %v6777
      %v6797 = vadd.f32 %v6746, %v6777
      %v6798 = vadd.f32 %v6747, %v6777
      %v6799 = vadd.f32 %v6748, %v6777
      %v6800 = vadd.f32 %v6749, %v6777
      %v6801 = vadd.f32 %v6750, %v6777
      %v6802 = vadd.f32 %v6751, %v6777
      %v6803 = vadd.f32 %v6752, %v6777
      %v6804 = vadd.f32 %v6753, %v6777
      %v6805 = vadd.f32 %v6754, %v6777
      %v6806 = vadd.f32 %v6755, %v6777
      %v6807 = vadd.f32 %v6756, %v6777
      %v6808 = vadd.f32 %v6757, %v6777
      %v6809 = vadd.f32 %v6758, %v6777
      %v6810 = vadd.f32 %v6759, %v6777
      %v6811 = vadd.f32 %v6760, %v6777
      %v6812 = vadd.f32 %v6761, %v6777
      %v6813 = vadd.f32 %v6762, %v6777
      %v6814 = vadd.f32 %v6763, %v6777
      %v6815 = vadd.f32 %v6764, %v6777
      %v6816 = vadd.f32 %v6765, %v6777
      %v6817 = vadd.f32 %v6766, %v6777
      %v6818 = vadd.f32 %v6767, %v6777
      %v6819 = vadd.f32 %v6768, %v6777
      %v6820 = vadd.f32 %v6769, %v6777
      %v6821 = vadd.f32 %v6770, %v6777
      %v6822 = vadd.f32 %v6771, %v6777
      %v6823 = vadd.f32 %v6772, %v6777
      %v6824 = vadd.f32 %v6773, %v6777
      %v6825 = vadd.f32 %v6774, %v6777
      %v6826 = vadd.f32 %v6775, %v6777
      %v6827 = vsub.f32 0.0, %v6779
      %v6828 = vsub.f32 0.0, %v6780
      %v6829 = vsub.f32 0.0, %v6781
      %v6830 = vsub.f32 0.0, %v6782
      %v6831 = vsub.f32 0.0, %v6783
      %v6832 = vsub.f32 0.0, %v6784
      %v6833 = vsub.f32 0.0, %v6785
      %v6834 = vsub.f32 0.0, %v6786
      %v6835 = vsub.f32 0.0, %v6787
      %v6836 = vsub.f32 0.0, %v6788
      %v6837 = vsub.f32 0.0, %v6789
      %v6838 = vsub.f32 0.0, %v6790
      %v6839 = vsub.f32 0.0, %v6791
      %v6840 = vsub.f32 0.0, %v6792
      %v6841 = vsub.f32 0.0, %v6793
      %v6842 = vsub.f32 0.0, %v6794
      %v6843 = vsub.f32 0.0, %v6795
      %v6844 = vsub.f32 0.0, %v6796
      %v6845 = vsub.f32 0.0, %v6797
      %v6846 = vsub.f32 0.0, %v6798
      %v6847 = vsub.f32 0.0, %v6799
      %v6848 = vsub.f32 0.0, %v6800
      %v6849 = vsub.f32 0.0, %v6801
      %v6850 = vsub.f32 0.0, %v6802
      %v6851 = vsub.f32 0.0, %v6803
      %v6852 = vsub.f32 0.0, %v6804
      %v6853 = vsub.f32 0.0, %v6805
      %v6854 = vsub.f32 0.0, %v6806
      %v6855 = vsub.f32 0.0, %v6807
      %v6856 = vsub.f32 0.0, %v6808
      %v6857 = vsub.f32 0.0, %v6809
      %v6858 = vsub.f32 0.0, %v6810
      %v6859 = vsub.f32 0.0, %v6811
      %v6860 = vsub.f32 0.0, %v6812
      %v6861 = vsub.f32 0.0, %v6813
      %v6862 = vsub.f32 0.0, %v6814
      %v6863 = vsub.f32 0.0, %v6815
      %v6864 = vsub.f32 0.0, %v6816
      %v6865 = vsub.f32 0.0, %v6817
      %v6866 = vsub.f32 0.0, %v6818
      %v6867 = vsub.f32 0.0, %v6819
      %v6868 = vsub.f32 0.0, %v6820
      %v6869 = vsub.f32 0.0, %v6821
      %v6870 = vsub.f32 0.0, %v6822
      %v6871 = vsub.f32 0.0, %v6823
      %v6872 = vsub.f32 0.0, %v6824
      %v6873 = vsub.f32 0.0, %v6825
      %v6874 = vsub.f32 0.0, %v6826
      %v6875 = vmul.f32 %v6827, 1.442695
      %v6876 = vpow.pop %v6875
      %v6877 = vmul.f32 %v6828, 1.442695
      %v6878 = vpow.pop %v6877
      %v6879 = vmul.f32 %v6829, 1.442695
      %v6880 = vpow.pop %v6879
      %v6881 = vmul.f32 %v6830, 1.442695
      %v6882 = vpow.pop %v6881
      %v6883 = vmul.f32 %v6831, 1.442695
      %v6884 = vpow.pop %v6883
      %v6885 = vmul.f32 %v6832, 1.442695
      %v6886 = vpow.pop %v6885
      %v6887 = vmul.f32 %v6833, 1.442695
      %v6888 = vpow.pop %v6887
      %v6889 = vmul.f32 %v6834, 1.442695
      %v6890 = vpow.pop %v6889
      %v6891 = vmul.f32 %v6835, 1.442695
      %v6892 = vpow.pop %v6891
      %v6893 = vmul.f32 %v6836, 1.442695
      %v6894 = vpow.pop %v6893
      %v6895 = vmul.f32 %v6837, 1.442695
      %v6896 = vpow.pop %v6895
      %v6897 = vmul.f32 %v6838, 1.442695
      %v6898 = vpow.pop %v6897
      %v6899 = vmul.f32 %v6839, 1.442695
      %v6900 = vpow.pop %v6899
      %v6901 = vmul.f32 %v6840, 1.442695
      %v6902 = vpow.pop %v6901
      %v6903 = vmul.f32 %v6841, 1.442695
      %v6904 = vpow.pop %v6903
      %v6905 = vmul.f32 %v6842, 1.442695
      %v6906 = vpow.pop %v6905
      %v6907 = vmul.f32 %v6843, 1.442695
      %v6908 = vpow.pop %v6907
      %v6909 = vmul.f32 %v6844, 1.442695
      %v6910 = vpow.pop %v6909
      %v6911 = vmul.f32 %v6845, 1.442695
      %v6912 = vpow.pop %v6911
      %v6913 = vmul.f32 %v6846, 1.442695
      %v6914 = vpow.pop %v6913
      %v6915 = vmul.f32 %v6847, 1.442695
      %v6916 = vpow.pop %v6915
      %v6917 = vmul.f32 %v6848, 1.442695
      %v6918 = vpow.pop %v6917
      %v6919 = vmul.f32 %v6849, 1.442695
      %v6920 = vpow.pop %v6919
      %v6921 = vmul.f32 %v6850, 1.442695
      %v6922 = vpow.pop %v6921
      %v6923 = vmul.f32 %v6851, 1.442695
      %v6924 = vpow.pop %v6923
      %v6925 = vmul.f32 %v6852, 1.442695
      %v6926 = vpow.pop %v6925
      %v6927 = vmul.f32 %v6853, 1.442695
      %v6928 = vpow.pop %v6927
      %v6929 = vmul.f32 %v6854, 1.442695
      %v6930 = vpow.pop %v6929
      %v6931 = vmul.f32 %v6855, 1.442695
      %v6932 = vpow.pop %v6931
      %v6933 = vmul.f32 %v6856, 1.442695
      %v6934 = vpow.pop %v6933
      %v6935 = vmul.f32 %v6857, 1.442695
      %v6936 = vpow.pop %v6935
      %v6937 = vmul.f32 %v6858, 1.442695
      %v6938 = vpow.pop %v6937
      %v6939 = vmul.f32 %v6859, 1.442695
      %v6940 = vpow.pop %v6939
      %v6941 = vmul.f32 %v6860, 1.442695
      %v6942 = vpow.pop %v6941
      %v6943 = vmul.f32 %v6861, 1.442695
      %v6944 = vpow.pop %v6943
      %v6945 = vmul.f32 %v6862, 1.442695
      %v6946 = vpow.pop %v6945
      %v6947 = vmul.f32 %v6863, 1.442695
      %v6948 = vpow.pop %v6947
      %v6949 = vmul.f32 %v6864, 1.442695
      %v6950 = vpow.pop %v6949
      %v6951 = vmul.f32 %v6865, 1.442695
      %v6952 = vpow.pop %v6951
      %v6953 = vmul.f32 %v6866, 1.442695
      %v6954 = vpow.pop %v6953
      %v6955 = vmul.f32 %v6867, 1.442695
      %v6956 = vpow.pop %v6955
      %v6957 = vmul.f32 %v6868, 1.442695
      %v6958 = vpow.pop %v6957
      %v6959 = vmul.f32 %v6869, 1.442695
      %v6960 = vpow.pop %v6959
      %v6961 = vmul.f32 %v6870, 1.442695
      %v6962 = vpow.pop %v6961
      %v6963 = vmul.f32 %v6871, 1.442695
      %v6964 = vpow.pop %v6963
      %v6965 = vmul.f32 %v6872, 1.442695
      %v6966 = vpow.pop %v6965
      %v6967 = vmul.f32 %v6873, 1.442695
      %v6968 = vpow.pop %v6967
      %v6969 = vmul.f32 %v6874, 1.442695
      %v6970 = vpow.pop %v6969
      %v6971 = vadd.f32 %v6876, 1.0
      %v6972 = vadd.f32 %v6878, 1.0
      %v6973 = vadd.f32 %v6880, 1.0
      %v6974 = vadd.f32 %v6882, 1.0
      %v6975 = vadd.f32 %v6884, 1.0
      %v6976 = vadd.f32 %v6886, 1.0
      %v6977 = vadd.f32 %v6888, 1.0
      %v6978 = vadd.f32 %v6890, 1.0
      %v6979 = vadd.f32 %v6892, 1.0
      %v6980 = vadd.f32 %v6894, 1.0
      %v6981 = vadd.f32 %v6896, 1.0
      %v6982 = vadd.f32 %v6898, 1.0
      %v6983 = vadd.f32 %v6900, 1.0
      %v6984 = vadd.f32 %v6902, 1.0
      %v6985 = vadd.f32 %v6904, 1.0
      %v6986 = vadd.f32 %v6906, 1.0
      %v6987 = vadd.f32 %v6908, 1.0
      %v6988 = vadd.f32 %v6910, 1.0
      %v6989 = vadd.f32 %v6912, 1.0
      %v6990 = vadd.f32 %v6914, 1.0
      %v6991 = vadd.f32 %v6916, 1.0
      %v6992 = vadd.f32 %v6918, 1.0
      %v6993 = vadd.f32 %v6920, 1.0
      %v6994 = vadd.f32 %v6922, 1.0
      %v6995 = vadd.f32 %v6924, 1.0
      %v6996 = vadd.f32 %v6926, 1.0
      %v6997 = vadd.f32 %v6928, 1.0
      %v6998 = vadd.f32 %v6930, 1.0
      %v6999 = vadd.f32 %v6932, 1.0
      %v7000 = vadd.f32 %v6934, 1.0
      %v7001 = vadd.f32 %v6936, 1.0
      %v7002 = vadd.f32 %v6938, 1.0
      %v7003 = vadd.f32 %v6940, 1.0
      %v7004 = vadd.f32 %v6942, 1.0
      %v7005 = vadd.f32 %v6944, 1.0
      %v7006 = vadd.f32 %v6946, 1.0
      %v7007 = vadd.f32 %v6948, 1.0
      %v7008 = vadd.f32 %v6950, 1.0
      %v7009 = vadd.f32 %v6952, 1.0
      %v7010 = vadd.f32 %v6954, 1.0
      %v7011 = vadd.f32 %v6956, 1.0
      %v7012 = vadd.f32 %v6958, 1.0
      %v7013 = vadd.f32 %v6960, 1.0
      %v7014 = vadd.f32 %v6962, 1.0
      %v7015 = vadd.f32 %v6964, 1.0
      %v7016 = vadd.f32 %v6966, 1.0
      %v7017 = vadd.f32 %v6968, 1.0
      %v7018 = vadd.f32 %v6970, 1.0
      %v7019 = vrcp.pop %v6971
      %v7020 = vrcp.pop %v6972
      %v7021 = vrcp.pop %v6973
      %v7022 = vrcp.pop %v6974
      %v7023 = vrcp.pop %v6975
      %v7024 = vrcp.pop %v6976
      %v7025 = vrcp.pop %v6977
      %v7026 = vrcp.pop %v6978
      %v7027 = vrcp.pop %v6979
      %v7028 = vrcp.pop %v6980
      %v7029 = vrcp.pop %v6981
      %v7030 = vrcp.pop %v6982
      %v7031 = vrcp.pop %v6983
      %v7032 = vrcp.pop %v6984
      %v7033 = vrcp.pop %v6985
      %v7034 = vrcp.pop %v6986
      %v7035 = vrcp.pop %v6987
      %v7036 = vrcp.pop %v6988
      %v7037 = vrcp.pop %v6989
      %v7038 = vrcp.pop %v6990
      %v7039 = vrcp.pop %v6991
      %v7040 = vrcp.pop %v6992
      %v7041 = vrcp.pop %v6993
      %v7042 = vrcp.pop %v6994
      %v7043 = vrcp.pop %v6995
      %v7044 = vrcp.pop %v6996
      %v7045 = vrcp.pop %v6997
      %v7046 = vrcp.pop %v6998
      %v7047 = vrcp.pop %v6999
      %v7048 = vrcp.pop %v7000
      %v7049 = vrcp.pop %v7001
      %v7050 = vrcp.pop %v7002
      %v7051 = vrcp.pop %v7003
      %v7052 = vrcp.pop %v7004
      %v7053 = vrcp.pop %v7005
      %v7054 = vrcp.pop %v7006
      %v7055 = vrcp.pop %v7007
      %v7056 = vrcp.pop %v7008
      %v7057 = vrcp.pop %v7009
      %v7058 = vrcp.pop %v7010
      %v7059 = vrcp.pop %v7011
      %v7060 = vrcp.pop %v7012
      %v7061 = vrcp.pop %v7013
      %v7062 = vrcp.pop %v7014
      %v7063 = vrcp.pop %v7015
      %v7064 = vrcp.pop %v7016
      %v7065 = vrcp.pop %v7017
      %v7066 = vrcp.pop %v7018
      %v7067 = vmul.f32 %v6779, %v7019
      %v7068 = vmul.f32 %v6780, %v7020
      %v7069 = vmul.f32 %v6781, %v7021
      %v7070 = vmul.f32 %v6782, %v7022
      %v7071 = vmul.f32 %v6783, %v7023
      %v7072 = vmul.f32 %v6784, %v7024
      %v7073 = vmul.f32 %v6785, %v7025
      %v7074 = vmul.f32 %v6786, %v7026
      %v7075 = vmul.f32 %v6787, %v7027
      %v7076 = vmul.f32 %v6788, %v7028
      %v7077 = vmul.f32 %v6789, %v7029
      %v7078 = vmul.f32 %v6790, %v7030
      %v7079 = vmul.f32 %v6791, %v7031
      %v7080 = vmul.f32 %v6792, %v7032
      %v7081 = vmul.f32 %v6793, %v7033
      %v7082 = vmul.f32 %v6794, %v7034
      %v7083 = vmul.f32 %v6795, %v7035
      %v7084 = vmul.f32 %v6796, %v7036
      %v7085 = vmul.f32 %v6797, %v7037
      %v7086 = vmul.f32 %v6798, %v7038
      %v7087 = vmul.f32 %v6799, %v7039
      %v7088 = vmul.f32 %v6800, %v7040
      %v7089 = vmul.f32 %v6801, %v7041
      %v7090 = vmul.f32 %v6802, %v7042
      %v7091 = vmul.f32 %v6803, %v7043
      %v7092 = vmul.f32 %v6804, %v7044
      %v7093 = vmul.f32 %v6805, %v7045
      %v7094 = vmul.f32 %v6806, %v7046
      %v7095 = vmul.f32 %v6807, %v7047
      %v7096 = vmul.f32 %v6808, %v7048
      %v7097 = vmul.f32 %v6809, %v7049
      %v7098 = vmul.f32 %v6810, %v7050
      %v7099 = vmul.f32 %v6811, %v7051
      %v7100 = vmul.f32 %v6812, %v7052
      %v7101 = vmul.f32 %v6813, %v7053
      %v7102 = vmul.f32 %v6814, %v7054
      %v7103 = vmul.f32 %v6815, %v7055
      %v7104 = vmul.f32 %v6816, %v7056
      %v7105 = vmul.f32 %v6817, %v7057
      %v7106 = vmul.f32 %v6818, %v7058
      %v7107 = vmul.f32 %v6819, %v7059
      %v7108 = vmul.f32 %v6820, %v7060
      %v7109 = vmul.f32 %v6821, %v7061
      %v7110 = vmul.f32 %v6822, %v7062
      %v7111 = vmul.f32 %v6823, %v7063
      %v7112 = vmul.f32 %v6824, %v7064
      %v7113 = vmul.f32 %v6825, %v7065
      %v7114 = vmul.f32 %v6826, %v7066
      %v7115 = vmul.f32 %v7067, %v754
      %v7116 = vmul.f32 %v7068, %v759
      %v7117 = vmul.f32 %v7069, %v764
      %v7118 = vmul.f32 %v7070, %v769
      %v7119 = vmul.f32 %v7071, %v774
      %v7120 = vmul.f32 %v7072, %v779
      %v7121 = vmul.f32 %v7073, %v784
      %v7122 = vmul.f32 %v7074, %v789
      %v7123 = vmul.f32 %v7075, %v794
      %v7124 = vmul.f32 %v7076, %v799
      %v7125 = vmul.f32 %v7077, %v804
      %v7126 = vmul.f32 %v7078, %v809
      %v7127 = vmul.f32 %v7079, %v814
      %v7128 = vmul.f32 %v7080, %v819
      %v7129 = vmul.f32 %v7081, %v824
      %v7130 = vmul.f32 %v7082, %v829
      %v7131 = vmul.f32 %v7083, %v834
      %v7132 = vmul.f32 %v7084, %v839
      %v7133 = vmul.f32 %v7085, %v844
      %v7134 = vmul.f32 %v7086, %v849
      %v7135 = vmul.f32 %v7087, %v854
      %v7136 = vmul.f32 %v7088, %v859
      %v7137 = vmul.f32 %v7089, %v864
      %v7138 = vmul.f32 %v7090, %v869
      %v7139 = vmul.f32 %v7091, %v874
      %v7140 = vmul.f32 %v7092, %v879
      %v7141 = vmul.f32 %v7093, %v884
      %v7142 = vmul.f32 %v7094, %v889
      %v7143 = vmul.f32 %v7095, %v894
      %v7144 = vmul.f32 %v7096, %v899
      %v7145 = vmul.f32 %v7097, %v904
      %v7146 = vmul.f32 %v7098, %v909
      %v7147 = vmul.f32 %v7099, %v914
      %v7148 = vmul.f32 %v7100, %v919
      %v7149 = vmul.f32 %v7101, %v924
      %v7150 = vmul.f32 %v7102, %v929
      %v7151 = vmul.f32 %v7103, %v934
      %v7152 = vmul.f32 %v7104, %v939
      %v7153 = vmul.f32 %v7105, %v944
      %v7154 = vmul.f32 %v7106, %v949
      %v7155 = vmul.f32 %v7107, %v954
      %v7156 = vmul.f32 %v7108, %v959
      %v7157 = vmul.f32 %v7109, %v964
      %v7158 = vmul.f32 %v7110, %v969
      %v7159 = vmul.f32 %v7111, %v974
      %v7160 = vmul.f32 %v7112, %v979
      %v7161 = vmul.f32 %v7113, %v984
      %v7162 = vmul.f32 %v7114, %v989
      %v7163 = vpack.c.bf16 %v7115, %v7115
      %v7164 = vpack.c.bf16 %v7116, %v7116
      %v7165 = vpack.c.bf16 %v7117, %v7117
      %v7166 = vpack.c.bf16 %v7118, %v7118
      %v7167 = vpack.c.bf16 %v7119, %v7119
      %v7168 = vpack.c.bf16 %v7120, %v7120
      %v7169 = vpack.c.bf16 %v7121, %v7121
      %v7170 = vpack.c.bf16 %v7122, %v7122
      %v7171 = vpack.c.bf16 %v7123, %v7123
      %v7172 = vpack.c.bf16 %v7124, %v7124
      %v7173 = vpack.c.bf16 %v7125, %v7125
      %v7174 = vpack.c.bf16 %v7126, %v7126
      %v7175 = vpack.c.bf16 %v7127, %v7127
      %v7176 = vpack.c.bf16 %v7128, %v7128
      %v7177 = vpack.c.bf16 %v7129, %v7129
      %v7178 = vpack.c.bf16 %v7130, %v7130
      %v7179 = vpack.c.bf16 %v7131, %v7131
      %v7180 = vpack.c.bf16 %v7132, %v7132
      %v7181 = vpack.c.bf16 %v7133, %v7133
      %v7182 = vpack.c.bf16 %v7134, %v7134
      %v7183 = vpack.c.bf16 %v7135, %v7135
      %v7184 = vpack.c.bf16 %v7136, %v7136
      %v7185 = vpack.c.bf16 %v7137, %v7137
      %v7186 = vpack.c.bf16 %v7138, %v7138
      %v7187 = vpack.c.bf16 %v7139, %v7139
      %v7188 = vpack.c.bf16 %v7140, %v7140
      %v7189 = vpack.c.bf16 %v7141, %v7141
      %v7190 = vpack.c.bf16 %v7142, %v7142
      %v7191 = vpack.c.bf16 %v7143, %v7143
      %v7192 = vpack.c.bf16 %v7144, %v7144
      %v7193 = vpack.c.bf16 %v7145, %v7145
      %v7194 = vpack.c.bf16 %v7146, %v7146
      %v7195 = vpack.c.bf16 %v7147, %v7147
      %v7196 = vpack.c.bf16 %v7148, %v7148
      %v7197 = vpack.c.bf16 %v7149, %v7149
      %v7198 = vpack.c.bf16 %v7150, %v7150
      %v7199 = vpack.c.bf16 %v7151, %v7151
      %v7200 = vpack.c.bf16 %v7152, %v7152
      %v7201 = vpack.c.bf16 %v7153, %v7153
      %v7202 = vpack.c.bf16 %v7154, %v7154
      %v7203 = vpack.c.bf16 %v7155, %v7155
      %v7204 = vpack.c.bf16 %v7156, %v7156
      %v7205 = vpack.c.bf16 %v7157, %v7157
      %v7206 = vpack.c.bf16 %v7158, %v7158
      %v7207 = vpack.c.bf16 %v7159, %v7159
      %v7208 = vpack.c.bf16 %v7160, %v7160
      %v7209 = vpack.c.bf16 %v7161, %v7161
      %v7210 = vpack.c.bf16 %v7162, %v7162
      %v7212 = vshrl.u32 %v7163, 16
      %v7214 = vrot.slane %v7212, 7
      %v7215 = vshll.u32 %v7163, 16
      %v7217 = vor.u32 %v7214, %v7215
      %v7218 = vrot.slane %v7214, 4
      %v7220 = vshrl.u32 %v7164, 16
      %v7222 = vrot.slane %v7220, 7
      %v7223 = vshll.u32 %v7164, 16
      %v7225 = vor.u32 %v7222, %v7223
      %v7226 = vsel %vm1757, %v7218, %v7225
      %v7227 = vrot.slane %v7222, 4
      %v7229 = vshrl.u32 %v7165, 16
      %v7231 = vrot.slane %v7229, 7
      %v7232 = vshll.u32 %v7165, 16
      %v7234 = vor.u32 %v7231, %v7232
      %v7235 = vsel %vm1757, %v7227, %v7234
      %v7236 = vrot.slane %v7231, 4
      %v7238 = vshrl.u32 %v7166, 16
      %v7240 = vrot.slane %v7238, 7
      %v7241 = vshll.u32 %v7166, 16
      %v7243 = vor.u32 %v7240, %v7241
      %v7244 = vsel %vm1757, %v7236, %v7243
      %v7245 = vrot.slane %v7240, 4
      %v7247 = vshrl.u32 %v7167, 16
      %v7249 = vrot.slane %v7247, 7
      %v7250 = vshll.u32 %v7167, 16
      %v7252 = vor.u32 %v7249, %v7250
      %v7253 = vsel %vm1757, %v7245, %v7252
      %v7254 = vrot.slane %v7249, 4
      %v7256 = vshrl.u32 %v7168, 16
      %v7258 = vrot.slane %v7256, 7
      %v7259 = vshll.u32 %v7168, 16
      %v7261 = vor.u32 %v7258, %v7259
      %v7262 = vsel %vm1757, %v7254, %v7261
      %v7263 = vrot.slane %v7258, 4
      %v7265 = vshrl.u32 %v7169, 16
      %v7267 = vrot.slane %v7265, 7
      %v7268 = vshll.u32 %v7169, 16
      %v7270 = vor.u32 %v7267, %v7268
      %v7271 = vsel %vm1757, %v7263, %v7270
      %v7272 = vrot.slane %v7267, 4
      %v7274 = vshrl.u32 %v7170, 16
      %v7276 = vrot.slane %v7274, 7
      %v7277 = vshll.u32 %v7170, 16
      %v7279 = vor.u32 %v7276, %v7277
      %v7280 = vsel %vm1757, %v7272, %v7279
      %v7281 = vrot.slane %v7276, 4
      %v7283 = vshrl.u32 %v7171, 16
      %v7285 = vrot.slane %v7283, 7
      %v7286 = vshll.u32 %v7171, 16
      %v7288 = vor.u32 %v7285, %v7286
      %v7289 = vsel %vm1757, %v7281, %v7288
      %v7290 = vrot.slane %v7285, 4
      %v7292 = vshrl.u32 %v7172, 16
      %v7294 = vrot.slane %v7292, 7
      %v7295 = vshll.u32 %v7172, 16
      %v7297 = vor.u32 %v7294, %v7295
      %v7298 = vsel %vm1757, %v7290, %v7297
      %v7299 = vrot.slane %v7294, 4
      %v7301 = vshrl.u32 %v7173, 16
      %v7303 = vrot.slane %v7301, 7
      %v7304 = vshll.u32 %v7173, 16
      %v7306 = vor.u32 %v7303, %v7304
      %v7307 = vsel %vm1757, %v7299, %v7306
      %v7308 = vrot.slane %v7303, 4
      %v7310 = vshrl.u32 %v7174, 16
      %v7312 = vrot.slane %v7310, 7
      %v7313 = vshll.u32 %v7174, 16
      %v7315 = vor.u32 %v7312, %v7313
      %v7316 = vsel %vm1757, %v7308, %v7315
      %v7317 = vrot.slane %v7312, 4
      %v7319 = vshrl.u32 %v7175, 16
      %v7321 = vrot.slane %v7319, 7
      %v7322 = vshll.u32 %v7175, 16
      %v7324 = vor.u32 %v7321, %v7322
      %v7325 = vsel %vm1757, %v7317, %v7324
      %v7326 = vrot.slane %v7321, 4
      %v7328 = vshrl.u32 %v7176, 16
      %v7330 = vrot.slane %v7328, 7
      %v7331 = vshll.u32 %v7176, 16
      %v7333 = vor.u32 %v7330, %v7331
      %v7334 = vsel %vm1757, %v7326, %v7333
      %v7335 = vrot.slane %v7330, 4
      %v7337 = vshrl.u32 %v7177, 16
      %v7339 = vrot.slane %v7337, 7
      %v7340 = vshll.u32 %v7177, 16
      %v7342 = vor.u32 %v7339, %v7340
      %v7343 = vsel %vm1757, %v7335, %v7342
      %v7344 = vrot.slane %v7339, 4
      %v7346 = vshrl.u32 %v7178, 16
      %v7348 = vrot.slane %v7346, 7
      %v7349 = vshll.u32 %v7178, 16
      %v7351 = vor.u32 %v7348, %v7349
      %v7352 = vsel %vm1757, %v7344, %v7351
      %v7353 = vrot.slane %v7348, 4
      %v7355 = vshrl.u32 %v7179, 16
      %v7357 = vrot.slane %v7355, 7
      %v7358 = vshll.u32 %v7179, 16
      %v7360 = vor.u32 %v7357, %v7358
      %v7361 = vsel %vm1757, %v7353, %v7360
      %v7362 = vrot.slane %v7357, 4
      %v7364 = vshrl.u32 %v7180, 16
      %v7366 = vrot.slane %v7364, 7
      %v7367 = vshll.u32 %v7180, 16
      %v7369 = vor.u32 %v7366, %v7367
      %v7370 = vsel %vm1757, %v7362, %v7369
      %v7371 = vrot.slane %v7366, 4
      %v7373 = vshrl.u32 %v7181, 16
      %v7375 = vrot.slane %v7373, 7
      %v7376 = vshll.u32 %v7181, 16
      %v7378 = vor.u32 %v7375, %v7376
      %v7379 = vsel %vm1757, %v7371, %v7378
      %v7380 = vrot.slane %v7375, 4
      %v7382 = vshrl.u32 %v7182, 16
      %v7384 = vrot.slane %v7382, 7
      %v7385 = vshll.u32 %v7182, 16
      %v7387 = vor.u32 %v7384, %v7385
      %v7388 = vsel %vm1757, %v7380, %v7387
      %v7389 = vrot.slane %v7384, 4
      %v7391 = vshrl.u32 %v7183, 16
      %v7393 = vrot.slane %v7391, 7
      %v7394 = vshll.u32 %v7183, 16
      %v7396 = vor.u32 %v7393, %v7394
      %v7397 = vsel %vm1757, %v7389, %v7396
      %v7398 = vrot.slane %v7393, 4
      %v7400 = vshrl.u32 %v7184, 16
      %v7402 = vrot.slane %v7400, 7
      %v7403 = vshll.u32 %v7184, 16
      %v7405 = vor.u32 %v7402, %v7403
      %v7406 = vsel %vm1757, %v7398, %v7405
      %v7407 = vrot.slane %v7402, 4
      %v7409 = vshrl.u32 %v7185, 16
      %v7411 = vrot.slane %v7409, 7
      %v7412 = vshll.u32 %v7185, 16
      %v7414 = vor.u32 %v7411, %v7412
      %v7415 = vsel %vm1757, %v7407, %v7414
      %v7416 = vrot.slane %v7411, 4
      %v7418 = vshrl.u32 %v7186, 16
      %v7420 = vrot.slane %v7418, 7
      %v7421 = vshll.u32 %v7186, 16
      %v7423 = vor.u32 %v7420, %v7421
      %v7424 = vsel %vm1757, %v7416, %v7423
      %v7425 = vrot.slane %v7420, 4
      %v7427 = vshrl.u32 %v7187, 16
      %v7429 = vrot.slane %v7427, 7
      %v7430 = vshll.u32 %v7187, 16
      %v7432 = vor.u32 %v7429, %v7430
      %v7433 = vsel %vm1757, %v7425, %v7432
      %v7434 = vrot.slane %v7429, 4
      %v7436 = vshrl.u32 %v7188, 16
      %v7438 = vrot.slane %v7436, 7
      %v7439 = vshll.u32 %v7188, 16
      %v7441 = vor.u32 %v7438, %v7439
      %v7442 = vsel %vm1757, %v7434, %v7441
      %v7443 = vrot.slane %v7438, 4
      %v7445 = vshrl.u32 %v7189, 16
      %v7447 = vrot.slane %v7445, 7
      %v7448 = vshll.u32 %v7189, 16
      %v7450 = vor.u32 %v7447, %v7448
      %v7451 = vsel %vm1757, %v7443, %v7450
      %v7452 = vrot.slane %v7447, 4
      %v7454 = vshrl.u32 %v7190, 16
      %v7456 = vrot.slane %v7454, 7
      %v7457 = vshll.u32 %v7190, 16
      %v7459 = vor.u32 %v7456, %v7457
      %v7460 = vsel %vm1757, %v7452, %v7459
      %v7461 = vrot.slane %v7456, 4
      %v7463 = vshrl.u32 %v7191, 16
      %v7465 = vrot.slane %v7463, 7
      %v7466 = vshll.u32 %v7191, 16
      %v7468 = vor.u32 %v7465, %v7466
      %v7469 = vsel %vm1757, %v7461, %v7468
      %v7470 = vrot.slane %v7465, 4
      %v7472 = vshrl.u32 %v7192, 16
      %v7474 = vrot.slane %v7472, 7
      %v7475 = vshll.u32 %v7192, 16
      %v7477 = vor.u32 %v7474, %v7475
      %v7478 = vsel %vm1757, %v7470, %v7477
      %v7479 = vrot.slane %v7474, 4
      %v7481 = vshrl.u32 %v7193, 16
      %v7483 = vrot.slane %v7481, 7
      %v7484 = vshll.u32 %v7193, 16
      %v7486 = vor.u32 %v7483, %v7484
      %v7487 = vsel %vm1757, %v7479, %v7486
      %v7488 = vrot.slane %v7483, 4
      %v7490 = vshrl.u32 %v7194, 16
      %v7492 = vrot.slane %v7490, 7
      %v7493 = vshll.u32 %v7194, 16
      %v7495 = vor.u32 %v7492, %v7493
      %v7496 = vsel %vm1757, %v7488, %v7495
      %v7497 = vrot.slane %v7492, 4
      %v7499 = vshrl.u32 %v7195, 16
      %v7501 = vrot.slane %v7499, 7
      %v7502 = vshll.u32 %v7195, 16
      %v7504 = vor.u32 %v7501, %v7502
      %v7505 = vsel %vm1757, %v7497, %v7504
      %v7506 = vrot.slane %v7501, 4
      %v7508 = vshrl.u32 %v7196, 16
      %v7510 = vrot.slane %v7508, 7
      %v7511 = vshll.u32 %v7196, 16
      %v7513 = vor.u32 %v7510, %v7511
      %v7514 = vsel %vm1757, %v7506, %v7513
      %v7515 = vrot.slane %v7510, 4
      %v7517 = vshrl.u32 %v7197, 16
      %v7519 = vrot.slane %v7517, 7
      %v7520 = vshll.u32 %v7197, 16
      %v7522 = vor.u32 %v7519, %v7520
      %v7523 = vsel %vm1757, %v7515, %v7522
      %v7524 = vrot.slane %v7519, 4
      %v7526 = vshrl.u32 %v7198, 16
      %v7528 = vrot.slane %v7526, 7
      %v7529 = vshll.u32 %v7198, 16
      %v7531 = vor.u32 %v7528, %v7529
      %v7532 = vsel %vm1757, %v7524, %v7531
      %v7533 = vrot.slane %v7528, 4
      %v7535 = vshrl.u32 %v7199, 16
      %v7537 = vrot.slane %v7535, 7
      %v7538 = vshll.u32 %v7199, 16
      %v7540 = vor.u32 %v7537, %v7538
      %v7541 = vsel %vm1757, %v7533, %v7540
      %v7542 = vrot.slane %v7537, 4
      %v7544 = vshrl.u32 %v7200, 16
      %v7546 = vrot.slane %v7544, 7
      %v7547 = vshll.u32 %v7200, 16
      %v7549 = vor.u32 %v7546, %v7547
      %v7550 = vsel %vm1757, %v7542, %v7549
      %v7551 = vrot.slane %v7546, 4
      %v7553 = vshrl.u32 %v7201, 16
      %v7555 = vrot.slane %v7553, 7
      %v7556 = vshll.u32 %v7201, 16
      %v7558 = vor.u32 %v7555, %v7556
      %v7559 = vsel %vm1757, %v7551, %v7558
      %v7560 = vrot.slane %v7555, 4
      %v7562 = vshrl.u32 %v7202, 16
      %v7564 = vrot.slane %v7562, 7
      %v7565 = vshll.u32 %v7202, 16
      %v7567 = vor.u32 %v7564, %v7565
      %v7568 = vsel %vm1757, %v7560, %v7567
      %v7569 = vrot.slane %v7564, 4
      %v7571 = vshrl.u32 %v7203, 16
      %v7573 = vrot.slane %v7571, 7
      %v7574 = vshll.u32 %v7203, 16
      %v7576 = vor.u32 %v7573, %v7574
      %v7577 = vsel %vm1757, %v7569, %v7576
      %v7578 = vrot.slane %v7573, 4
      %v7580 = vshrl.u32 %v7204, 16
      %v7582 = vrot.slane %v7580, 7
      %v7583 = vshll.u32 %v7204, 16
      %v7585 = vor.u32 %v7582, %v7583
      %v7586 = vsel %vm1757, %v7578, %v7585
      %v7587 = vrot.slane %v7582, 4
      %v7589 = vshrl.u32 %v7205, 16
      %v7591 = vrot.slane %v7589, 7
      %v7592 = vshll.u32 %v7205, 16
      %v7594 = vor.u32 %v7591, %v7592
      %v7595 = vsel %vm1757, %v7587, %v7594
      %v7596 = vrot.slane %v7591, 4
      %v7598 = vshrl.u32 %v7206, 16
      %v7600 = vrot.slane %v7598, 7
      %v7601 = vshll.u32 %v7206, 16
      %v7603 = vor.u32 %v7600, %v7601
      %v7604 = vsel %vm1757, %v7596, %v7603
      %v7605 = vrot.slane %v7600, 4
      %v7607 = vshrl.u32 %v7207, 16
      %v7609 = vrot.slane %v7607, 7
      %v7610 = vshll.u32 %v7207, 16
      %v7612 = vor.u32 %v7609, %v7610
      %v7613 = vsel %vm1757, %v7605, %v7612
      %v7614 = vrot.slane %v7609, 4
      %v7616 = vshrl.u32 %v7208, 16
      %v7618 = vrot.slane %v7616, 7
      %v7619 = vshll.u32 %v7208, 16
      %v7621 = vor.u32 %v7618, %v7619
      %v7622 = vsel %vm1757, %v7614, %v7621
      %v7623 = vrot.slane %v7618, 4
      %v7625 = vshrl.u32 %v7209, 16
      %v7627 = vrot.slane %v7625, 7
      %v7628 = vshll.u32 %v7209, 16
      %v7630 = vor.u32 %v7627, %v7628
      %v7631 = vsel %vm1757, %v7623, %v7630
      %v7632 = vrot.slane %v7627, 4
      %v7634 = vshrl.u32 %v7210, 16
      %v7636 = vrot.slane %v7634, 7
      %v7637 = vshll.u32 %v7210, 16
      %v7639 = vor.u32 %v7636, %v7637
      %v7640 = vsel %vm1757, %v7632, %v7639
      %v7641 = vrot.slane %v7636, 4
      %v7691 = vsel %vm564, %v7217, %v3825
      %7692 = vst [vmem:[#allocation2 + $0xc] sm:$0xf] %v7691
      %7693 = vst.msk [vmem:[#allocation2 + $0x10] sm:$0xf] %vm552, %v7226
      %7694 = vst.msk [vmem:[#allocation2 + $0x14] sm:$0xf] %vm552, %v7235
      %7695 = vst.msk [vmem:[#allocation2 + $0x18] sm:$0xf] %vm552, %v7244
      %7696 = vst.msk [vmem:[#allocation2 + $0x1c] sm:$0xf] %vm552, %v7253
      %7697 = vst.msk [vmem:[#allocation2 + $0x20] sm:$0xf] %vm552, %v7262
      %7698 = vst.msk [vmem:[#allocation2 + $0x24] sm:$0xf] %vm552, %v7271
      %7699 = vst.msk [vmem:[#allocation2 + $0x28] sm:$0xf] %vm552, %v7280
      %7700 = vst.msk [vmem:[#allocation2 + $0x2c] sm:$0xf] %vm552, %v7289
      %7701 = vst.msk [vmem:[#allocation2 + $0x30] sm:$0xf] %vm552, %v7298
      %7702 = vst.msk [vmem:[#allocation2 + $0x34] sm:$0xf] %vm552, %v7307
      %7703 = vst.msk [vmem:[#allocation2 + $0x38] sm:$0xf] %vm552, %v7316
      %7704 = vst.msk [vmem:[#allocation2 + $0x3c] sm:$0xf] %vm552, %v7325
      %7705 = vst.msk [vmem:[#allocation2 + $0x40] sm:$0xf] %vm552, %v7334
      %7706 = vst.msk [vmem:[#allocation2 + $0x44] sm:$0xf] %vm552, %v7343
      %7707 = vst.msk [vmem:[#allocation2 + $0x48] sm:$0xf] %vm552, %v7352
      %7708 = vst.msk [vmem:[#allocation2 + $0x4c] sm:$0xf] %vm552, %v7361
      %7709 = vst.msk [vmem:[#allocation2 + $0x50] sm:$0xf] %vm552, %v7370
      %7710 = vst.msk [vmem:[#allocation2 + $0x54] sm:$0xf] %vm552, %v7379
      %7711 = vst.msk [vmem:[#allocation2 + $0x58] sm:$0xf] %vm552, %v7388
      %7712 = vst.msk [vmem:[#allocation2 + $0x5c] sm:$0xf] %vm552, %v7397
      %7713 = vst.msk [vmem:[#allocation2 + $0x60] sm:$0xf] %vm552, %v7406
      %7714 = vst.msk [vmem:[#allocation2 + $0x64] sm:$0xf] %vm552, %v7415
      %7715 = vst.msk [vmem:[#allocation2 + $0x68] sm:$0xf] %vm552, %v7424
      %7716 = vst.msk [vmem:[#allocation2 + $0x6c] sm:$0xf] %vm552, %v7433
      %7717 = vst.msk [vmem:[#allocation2 + $0x70] sm:$0xf] %vm552, %v7442
      %7718 = vst.msk [vmem:[#allocation2 + $0x74] sm:$0xf] %vm552, %v7451
      %7719 = vst.msk [vmem:[#allocation2 + $0x78] sm:$0xf] %vm552, %v7460
      %7720 = vst.msk [vmem:[#allocation2 + $0x7c] sm:$0xf] %vm552, %v7469
      %7721 = vst.msk [vmem:[#allocation2 + $0x80] sm:$0xf] %vm552, %v7478
      %7722 = vst.msk [vmem:[#allocation2 + $0x84] sm:$0xf] %vm552, %v7487
      %7723 = vst.msk [vmem:[#allocation2 + $0x88] sm:$0xf] %vm552, %v7496
      %7724 = vst.msk [vmem:[#allocation2 + $0x8c] sm:$0xf] %vm552, %v7505
      %7725 = vst.msk [vmem:[#allocation2 + $0x90] sm:$0xf] %vm552, %v7514
      %7726 = vst.msk [vmem:[#allocation2 + $0x94] sm:$0xf] %vm552, %v7523
      %7727 = vst.msk [vmem:[#allocation2 + $0x98] sm:$0xf] %vm552, %v7532
      %7728 = vst.msk [vmem:[#allocation2 + $0x9c] sm:$0xf] %vm552, %v7541
      %7729 = vst.msk [vmem:[#allocation2 + $0xa0] sm:$0xf] %vm552, %v7550
      %7730 = vst.msk [vmem:[#allocation2 + $0xa4] sm:$0xf] %vm552, %v7559
      %7731 = vst.msk [vmem:[#allocation2 + $0xa8] sm:$0xf] %vm552, %v7568
      %7732 = vst.msk [vmem:[#allocation2 + $0xac] sm:$0xf] %vm552, %v7577
      %7733 = vst.msk [vmem:[#allocation2 + $0xb0] sm:$0xf] %vm552, %v7586
      %7734 = vst.msk [vmem:[#allocation2 + $0xb4] sm:$0xf] %vm552, %v7595
      %7735 = vst.msk [vmem:[#allocation2 + $0xb8] sm:$0xf] %vm552, %v7604
      %7736 = vst.msk [vmem:[#allocation2 + $0xbc] sm:$0xf] %vm552, %v7613
      %7737 = vst.msk [vmem:[#allocation2 + $0xc0] sm:$0xf] %vm552, %v7622
      %7738 = vst.msk [vmem:[#allocation2 + $0xc4] sm:$0xf] %vm552, %v7631
      %7739 = vst.msk [vmem:[#allocation2 + $0xc8] sm:$0xf] %vm552, %v7640
      %v7740 = vld [vmem:[#allocation2 + $0xcc] sm:$0x1]
      %v7741 = vsel %vm558, %v7641, %v7740
      %7742 = vst [vmem:[#allocation2 + $0xcc] sm:$0x1] %v7741
      %v7743 = vld [vmem:[#allocation2] sm:$0xf]
      %v7744 = vld [vmem:[#allocation2 + $0x4] sm:$0xf]
      %v7745 = vld [vmem:[#allocation2 + $0x8] sm:$0xf]
      %v7746 = vld [vmem:[#allocation2 + $0xc] sm:$0xf]
      %v7747 = vld [vmem:[#allocation2 + $0x10] sm:$0xf]
      %v7748 = vld [vmem:[#allocation2 + $0x14] sm:$0xf]
      %v7749 = vld [vmem:[#allocation2 + $0x18] sm:$0xf]
      %v7750 = vld [vmem:[#allocation2 + $0x1c] sm:$0xf]
      %v7751 = vld [vmem:[#allocation2 + $0x20] sm:$0xf]
      %v7752 = vld [vmem:[#allocation2 + $0x24] sm:$0xf]
      %v7753 = vld [vmem:[#allocation2 + $0x28] sm:$0xf]
      %v7754 = vld [vmem:[#allocation2 + $0x2c] sm:$0xf]
      %v7755 = vld [vmem:[#allocation2 + $0x30] sm:$0xf]
      %v7756 = vld [vmem:[#allocation2 + $0x34] sm:$0xf]
      %v7757 = vld [vmem:[#allocation2 + $0x38] sm:$0xf]
      %v7758 = vld [vmem:[#allocation2 + $0x3c] sm:$0xf]
      %v7759 = vld [vmem:[#allocation2 + $0x40] sm:$0xf]
      %v7760 = vld [vmem:[#allocation2 + $0x44] sm:$0xf]
      %v7761 = vld [vmem:[#allocation2 + $0x48] sm:$0xf]
      %v7762 = vld [vmem:[#allocation2 + $0x4c] sm:$0xf]
      %v7763 = vld [vmem:[#allocation2 + $0x50] sm:$0xf]
      %v7764 = vld [vmem:[#allocation2 + $0x54] sm:$0xf]
      %v7765 = vld [vmem:[#allocation2 + $0x58] sm:$0xf]
      %v7766 = vld [vmem:[#allocation2 + $0x5c] sm:$0xf]
      %v7767 = vld [vmem:[#allocation2 + $0x60] sm:$0xf]
      %v7768 = vld [vmem:[#allocation2 + $0x64] sm:$0xf]
      %v7769 = vld [vmem:[#allocation2 + $0x68] sm:$0xf]
      %v7770 = vld [vmem:[#allocation2 + $0x6c] sm:$0xf]
      %v7771 = vld [vmem:[#allocation2 + $0x70] sm:$0xf]
      %v7772 = vld [vmem:[#allocation2 + $0x74] sm:$0xf]
      %v7773 = vld [vmem:[#allocation2 + $0x78] sm:$0xf]
      %v7774 = vld [vmem:[#allocation2 + $0x7c] sm:$0xf]
      %v7775 = vld [vmem:[#allocation2 + $0x80] sm:$0xf]
      %v7776 = vld [vmem:[#allocation2 + $0x84] sm:$0xf]
      %v7777 = vld [vmem:[#allocation2 + $0x88] sm:$0xf]
      %v7778 = vld [vmem:[#allocation2 + $0x8c] sm:$0xf]
      %v7779 = vld [vmem:[#allocation2 + $0x90] sm:$0xf]
      %v7780 = vld [vmem:[#allocation2 + $0x94] sm:$0xf]
      %v7781 = vld [vmem:[#allocation2 + $0x98] sm:$0xf]
      %v7782 = vld [vmem:[#allocation2 + $0x9c] sm:$0xf]
      %v7783 = vld [vmem:[#allocation2 + $0xa0] sm:$0xf]
      %v7784 = vld [vmem:[#allocation2 + $0xa4] sm:$0xf]
      %v7785 = vld [vmem:[#allocation2 + $0xa8] sm:$0xf]
      %v7786 = vld [vmem:[#allocation2 + $0xac] sm:$0xf]
      %v7787 = vld [vmem:[#allocation2 + $0xb0] sm:$0xf]
      %v7788 = vld [vmem:[#allocation2 + $0xb4] sm:$0xf]
      %v7789 = vld [vmem:[#allocation2 + $0xb8] sm:$0xf]
      %v7790 = vld [vmem:[#allocation2 + $0xbc] sm:$0xf]
      %v7791 = vld [vmem:[%s11] sm:$0xf]
      %v7792 = vld [vmem:[%s11 + $0x4] sm:$0xf]
      %v7793 = vld [vmem:[%s11 + $0x8] sm:$0xf]
      %v7794 = vld [vmem:[%s11 + $0xc] sm:$0xf]
      %v7795 = vld [vmem:[#allocation2 + $0xc0] sm:$0x1]
      %s7796 = scalar_lea.vmem %s11, 16
      %v7797 = vld [vmem:[%s7796] sm:$0xf]
      %v7798 = vld [vmem:[%s7796 + $0x4] sm:$0xf]
      %v7799 = vld [vmem:[%s7796 + $0x8] sm:$0xf]
      %v7800 = vld [vmem:[%s7796 + $0xc] sm:$0xf]
      %v7850 = vunpack.c.l.b16 %v7743
      %v7851 = vunpack.c.l.b16 %v7744
      %v7852 = vunpack.c.l.b16 %v7745
      %v7853 = vunpack.c.l.b16 %v7746
      %v7854 = vunpack.c.l.b16 %v7747
      %v7855 = vunpack.c.l.b16 %v7748
      %v7856 = vunpack.c.l.b16 %v7749
      %v7857 = vunpack.c.l.b16 %v7750
      %v7858 = vunpack.c.l.b16 %v7751
      %v7859 = vunpack.c.l.b16 %v7752
      %v7860 = vunpack.c.l.b16 %v7753
      %v7861 = vunpack.c.l.b16 %v7754
      %v7862 = vunpack.c.l.b16 %v7755
      %v7863 = vunpack.c.l.b16 %v7756
      %v7864 = vunpack.c.l.b16 %v7757
      %v7865 = vunpack.c.l.b16 %v7758
      %v7866 = vunpack.c.l.b16 %v7759
      %v7867 = vunpack.c.l.b16 %v7760
      %v7868 = vunpack.c.l.b16 %v7761
      %v7869 = vunpack.c.l.b16 %v7762
      %v7870 = vunpack.c.l.b16 %v7763
      %v7871 = vunpack.c.l.b16 %v7764
      %v7872 = vunpack.c.l.b16 %v7765
      %v7873 = vunpack.c.l.b16 %v7766
      %v7874 = vunpack.c.l.b16 %v7767
      %v7875 = vunpack.c.l.b16 %v7768
      %v7876 = vunpack.c.l.b16 %v7769
      %v7877 = vunpack.c.l.b16 %v7770
      %v7878 = vunpack.c.l.b16 %v7771
      %v7879 = vunpack.c.l.b16 %v7772
      %v7880 = vunpack.c.l.b16 %v7773
      %v7881 = vunpack.c.l.b16 %v7774
      %v7882 = vunpack.c.l.b16 %v7775
      %v7883 = vunpack.c.l.b16 %v7776
      %v7884 = vunpack.c.l.b16 %v7777
      %v7885 = vunpack.c.l.b16 %v7778
      %v7886 = vunpack.c.l.b16 %v7779
      %v7887 = vunpack.c.l.b16 %v7780
      %v7888 = vunpack.c.l.b16 %v7781
      %v7889 = vunpack.c.l.b16 %v7782
      %v7890 = vunpack.c.l.b16 %v7783
      %v7891 = vunpack.c.l.b16 %v7784
      %v7892 = vunpack.c.l.b16 %v7785
      %v7893 = vunpack.c.l.b16 %v7786
      %v7894 = vunpack.c.l.b16 %v7787
      %v7895 = vunpack.c.l.b16 %v7788
      %v7896 = vunpack.c.l.b16 %v7789
      %v7897 = vunpack.c.l.b16 %v7790
      %v7898 = vunpack.c.l.b16 %v7795
      %v7899 = vpack.c.b16 %v7851, %v7850
      %v7900 = vpack.c.b16 %v7853, %v7852
      %v7901 = vpack.c.b16 %v7855, %v7854
      %v7902 = vpack.c.b16 %v7857, %v7856
      %v7903 = vpack.c.b16 %v7859, %v7858
      %v7904 = vpack.c.b16 %v7861, %v7860
      %v7905 = vpack.c.b16 %v7863, %v7862
      %v7906 = vpack.c.b16 %v7865, %v7864
      %v7907 = vpack.c.b16 %v7867, %v7866
      %v7908 = vpack.c.b16 %v7869, %v7868
      %v7909 = vpack.c.b16 %v7871, %v7870
      %v7910 = vpack.c.b16 %v7873, %v7872
      %v7911 = vpack.c.b16 %v7875, %v7874
      %v7912 = vpack.c.b16 %v7877, %v7876
      %v7913 = vpack.c.b16 %v7879, %v7878
      %v7914 = vpack.c.b16 %v7881, %v7880
      %v7915 = vpack.c.b16 %v7883, %v7882
      %v7916 = vpack.c.b16 %v7885, %v7884
      %v7917 = vpack.c.b16 %v7887, %v7886
      %v7918 = vpack.c.b16 %v7889, %v7888
      %v7919 = vpack.c.b16 %v7891, %v7890
      %v7920 = vpack.c.b16 %v7893, %v7892
      %v7921 = vpack.c.b16 %v7895, %v7894
      %v7922 = vpack.c.b16 %v7897, %v7896
      %v7923 = vpack.c.b16 %v7898, %v7898
      %v7925 = vshrl.u32 %v7899, 16
      %v7927 = vshll.u32 %v7899, 16
      %v7929 = vrot.slane %v7927, 1
      %v7930 = vor.u32 %v7925, %v7929
      %v7932 = vshll.u32 %v7900, 16
      %v7934 = vrot.slane %v7932, 1
      %v7935 = vsel %vm2472, %v7930, %v7934
      %v7936 = vshrl.u32 %v7900, 16
      %v7938 = vor.u32 %v7936, %v7934
      %v7940 = vshll.u32 %v7901, 16
      %v7942 = vrot.slane %v7940, 1
      %v7943 = vsel %vm2472, %v7938, %v7942
      %v7944 = vshrl.u32 %v7901, 16
      %v7946 = vor.u32 %v7944, %v7942
      %v7948 = vshll.u32 %v7902, 16
      %v7950 = vrot.slane %v7948, 1
      %v7951 = vsel %vm2472, %v7946, %v7950
      %v7952 = vshrl.u32 %v7902, 16
      %v7954 = vor.u32 %v7952, %v7950
      %v7956 = vshll.u32 %v7903, 16
      %v7958 = vrot.slane %v7956, 1
      %v7959 = vsel %vm2472, %v7954, %v7958
      %v7960 = vshrl.u32 %v7903, 16
      %v7962 = vor.u32 %v7960, %v7958
      %v7964 = vshll.u32 %v7904, 16
      %v7966 = vrot.slane %v7964, 1
      %v7967 = vsel %vm2472, %v7962, %v7966
      %v7968 = vshrl.u32 %v7904, 16
      %v7970 = vor.u32 %v7968, %v7966
      %v7972 = vshll.u32 %v7905, 16
      %v7974 = vrot.slane %v7972, 1
      %v7975 = vsel %vm2472, %v7970, %v7974
      %v7976 = vshrl.u32 %v7905, 16
      %v7978 = vor.u32 %v7976, %v7974
      %v7980 = vshll.u32 %v7906, 16
      %v7982 = vrot.slane %v7980, 1
      %v7983 = vsel %vm2472, %v7978, %v7982
      %v7984 = vshrl.u32 %v7906, 16
      %v7986 = vor.u32 %v7984, %v7982
      %v7988 = vshll.u32 %v7907, 16
      %v7990 = vrot.slane %v7988, 1
      %v7991 = vsel %vm2472, %v7986, %v7990
      %v7992 = vshrl.u32 %v7907, 16
      %v7994 = vor.u32 %v7992, %v7990
      %v7996 = vshll.u32 %v7908, 16
      %v7998 = vrot.slane %v7996, 1
      %v7999 = vsel %vm2472, %v7994, %v7998
      %v8000 = vshrl.u32 %v7908, 16
      %v8002 = vor.u32 %v8000, %v7998
      %v8004 = vshll.u32 %v7909, 16
      %v8006 = vrot.slane %v8004, 1
      %v8007 = vsel %vm2472, %v8002, %v8006
      %v8008 = vshrl.u32 %v7909, 16
      %v8010 = vor.u32 %v8008, %v8006
      %v8012 = vshll.u32 %v7910, 16
      %v8014 = vrot.slane %v8012, 1
      %v8015 = vsel %vm2472, %v8010, %v8014
      %v8016 = vshrl.u32 %v7910, 16
      %v8018 = vor.u32 %v8016, %v8014
      %v8020 = vshll.u32 %v7911, 16
      %v8022 = vrot.slane %v8020, 1
      %v8023 = vsel %vm2472, %v8018, %v8022
      %v8024 = vshrl.u32 %v7911, 16
      %v8026 = vor.u32 %v8024, %v8022
      %v8028 = vshll.u32 %v7912, 16
      %v8030 = vrot.slane %v8028, 1
      %v8031 = vsel %vm2472, %v8026, %v8030
      %v8032 = vshrl.u32 %v7912, 16
      %v8034 = vor.u32 %v8032, %v8030
      %v8036 = vshll.u32 %v7913, 16
      %v8038 = vrot.slane %v8036, 1
      %v8039 = vsel %vm2472, %v8034, %v8038
      %v8040 = vshrl.u32 %v7913, 16
      %v8042 = vor.u32 %v8040, %v8038
      %v8044 = vshll.u32 %v7914, 16
      %v8046 = vrot.slane %v8044, 1
      %v8047 = vsel %vm2472, %v8042, %v8046
      %v8048 = vshrl.u32 %v7914, 16
      %v8050 = vor.u32 %v8048, %v8046
      %v8052 = vshll.u32 %v7915, 16
      %v8054 = vrot.slane %v8052, 1
      %v8055 = vsel %vm2472, %v8050, %v8054
      %v8056 = vshrl.u32 %v7915, 16
      %v8058 = vor.u32 %v8056, %v8054
      %v8060 = vshll.u32 %v7916, 16
      %v8062 = vrot.slane %v8060, 1
      %v8063 = vsel %vm2472, %v8058, %v8062
      %v8064 = vshrl.u32 %v7916, 16
      %v8066 = vor.u32 %v8064, %v8062
      %v8068 = vshll.u32 %v7917, 16
      %v8070 = vrot.slane %v8068, 1
      %v8071 = vsel %vm2472, %v8066, %v8070
      %v8072 = vshrl.u32 %v7917, 16
      %v8074 = vor.u32 %v8072, %v8070
      %v8076 = vshll.u32 %v7918, 16
      %v8078 = vrot.slane %v8076, 1
      %v8079 = vsel %vm2472, %v8074, %v8078
      %v8080 = vshrl.u32 %v7918, 16
      %v8082 = vor.u32 %v8080, %v8078
      %v8084 = vshll.u32 %v7919, 16
      %v8086 = vrot.slane %v8084, 1
      %v8087 = vsel %vm2472, %v8082, %v8086
      %v8088 = vshrl.u32 %v7919, 16
      %v8090 = vor.u32 %v8088, %v8086
      %v8092 = vshll.u32 %v7920, 16
      %v8094 = vrot.slane %v8092, 1
      %v8095 = vsel %vm2472, %v8090, %v8094
      %v8096 = vshrl.u32 %v7920, 16
      %v8098 = vor.u32 %v8096, %v8094
      %v8100 = vshll.u32 %v7921, 16
      %v8102 = vrot.slane %v8100, 1
      %v8103 = vsel %vm2472, %v8098, %v8102
      %v8104 = vshrl.u32 %v7921, 16
      %v8106 = vor.u32 %v8104, %v8102
      %v8108 = vshll.u32 %v7922, 16
      %v8110 = vrot.slane %v8108, 1
      %v8111 = vsel %vm2472, %v8106, %v8110
      %v8112 = vshrl.u32 %v7922, 16
      %v8114 = vor.u32 %v8112, %v8110
      %v8116 = vshll.u32 %v7923, 16
      %v8118 = vrot.slane %v8116, 1
      %v8119 = vsel %vm2472, %v8114, %v8118
      %v8124 = vunpack.c.l.b16 %v7797
      %v8125 = vunpack.c.l.b16 %v7798
      %v8126 = vunpack.c.l.b16 %v7799
      %v8127 = vunpack.c.l.b16 %v7800
      %v8128 = vpack.c.b16 %v8125, %v8124
      %v8129 = vpack.c.b16 %v8127, %v8126
      %v8133 = vsel %vm577, %v7935, 0
      %v8136 = vsel %vm577, %v7943, 0
      %v8139 = vsel %vm577, %v7951, 0
      %v8142 = vsel %vm577, %v7959, 0
      %v8145 = vsel %vm577, %v7967, 0
      %v8148 = vsel %vm577, %v7975, 0
      %v8151 = vsel %vm577, %v7983, 0
      %v8154 = vsel %vm577, %v7991, 0
      %v8157 = vsel %vm577, %v7999, 0
      %v8160 = vsel %vm577, %v8007, 0
      %v8163 = vsel %vm577, %v8015, 0
      %v8166 = vsel %vm577, %v8023, 0
      %v8169 = vsel %vm577, %v8031, 0
      %v8172 = vsel %vm577, %v8039, 0
      %v8175 = vsel %vm577, %v8047, 0
      %v8178 = vsel %vm577, %v8055, 0
      %v8181 = vsel %vm577, %v8063, 0
      %v8184 = vsel %vm577, %v8071, 0
      %v8187 = vsel %vm577, %v8079, 0
      %v8190 = vsel %vm577, %v8087, 0
      %v8193 = vsel %vm577, %v8095, 0
      %v8196 = vsel %vm577, %v8103, 0
      %v8199 = vsel %vm577, %v8111, 0
      %v8202 = vsel %vm577, %v8119, 0
      %8204 = vmatpush.bf16.msra.mxu0 0
      %8205 = vmatpush.bf16.msra.mxu0 0
      %8206 = vmatpush.bf16.msra.mxu0 0
      %8207 = vmatpush.bf16.msra.mxu0 0
      %8208 = vmatpush.bf16.msra.mxu0 0
      %8209 = vmatpush.bf16.msra.mxu0 0
      %8210 = vmatpush.bf16.msra.mxu0 %v8129
      %8211 = vmatpush.bf16.msra.mxu0 %v8128
      %8212 = vmatmul.bf16.gmra.mxu0 %v8133
      %v8213 = vpop.f32.mrf.mxu0
      %v8214 = vadd.f32 0.0, %v8213
      %v8215 = vpop.f32.mrf.mxu0
      %v8216 = vadd.f32 0.0, %v8215
      %8217 = vmatmul.bf16.gmra.mxu0 %v8136
      %v8218 = vpop.f32.mrf.mxu0
      %v8219 = vadd.f32 0.0, %v8218
      %v8220 = vpop.f32.mrf.mxu0
      %v8221 = vadd.f32 0.0, %v8220
      %8222 = vmatmul.bf16.gmra.mxu0 %v8139
      %v8223 = vpop.f32.mrf.mxu0
      %v8224 = vadd.f32 0.0, %v8223
      %v8225 = vpop.f32.mrf.mxu0
      %v8226 = vadd.f32 0.0, %v8225
      %8227 = vmatmul.bf16.gmra.mxu0 %v8142
      %v8228 = vpop.f32.mrf.mxu0
      %v8229 = vadd.f32 0.0, %v8228
      %v8230 = vpop.f32.mrf.mxu0
      %v8231 = vadd.f32 0.0, %v8230
      %8232 = vmatmul.bf16.gmra.mxu0 %v8145
      %v8233 = vpop.f32.mrf.mxu0
      %v8234 = vadd.f32 0.0, %v8233
      %v8235 = vpop.f32.mrf.mxu0
      %v8236 = vadd.f32 0.0, %v8235
      %8237 = vmatmul.bf16.gmra.mxu0 %v8148
      %v8238 = vpop.f32.mrf.mxu0
      %v8239 = vadd.f32 0.0, %v8238
      %v8240 = vpop.f32.mrf.mxu0
      %v8241 = vadd.f32 0.0, %v8240
      %8242 = vmatmul.bf16.gmra.mxu0 %v8151
      %v8243 = vpop.f32.mrf.mxu0
      %v8244 = vadd.f32 0.0, %v8243
      %v8245 = vpop.f32.mrf.mxu0
      %v8246 = vadd.f32 0.0, %v8245
      %8247 = vmatmul.bf16.gmra.mxu0 %v8154
      %v8248 = vpop.f32.mrf.mxu0
      %v8249 = vadd.f32 0.0, %v8248
      %v8250 = vpop.f32.mrf.mxu0
      %v8251 = vadd.f32 0.0, %v8250
      %8252 = vmatmul.bf16.gmra.mxu0 %v8157
      %v8253 = vpop.f32.mrf.mxu0
      %v8254 = vadd.f32 0.0, %v8253
      %v8255 = vpop.f32.mrf.mxu0
      %v8256 = vadd.f32 0.0, %v8255
      %8257 = vmatmul.bf16.gmra.mxu0 %v8160
      %v8258 = vpop.f32.mrf.mxu0
      %v8259 = vadd.f32 0.0, %v8258
      %v8260 = vpop.f32.mrf.mxu0
      %v8261 = vadd.f32 0.0, %v8260
      %8262 = vmatmul.bf16.gmra.mxu0 %v8163
      %v8263 = vpop.f32.mrf.mxu0
      %v8264 = vadd.f32 0.0, %v8263
      %v8265 = vpop.f32.mrf.mxu0
      %v8266 = vadd.f32 0.0, %v8265
      %8267 = vmatmul.bf16.gmra.mxu0 %v8166
      %v8268 = vpop.f32.mrf.mxu0
      %v8269 = vadd.f32 0.0, %v8268
      %v8270 = vpop.f32.mrf.mxu0
      %v8271 = vadd.f32 0.0, %v8270
      %8272 = vmatmul.bf16.gmra.mxu0 %v8169
      %v8273 = vpop.f32.mrf.mxu0
      %v8274 = vadd.f32 0.0, %v8273
      %v8275 = vpop.f32.mrf.mxu0
      %v8276 = vadd.f32 0.0, %v8275
      %8277 = vmatmul.bf16.gmra.mxu0 %v8172
      %v8278 = vpop.f32.mrf.mxu0
      %v8279 = vadd.f32 0.0, %v8278
      %v8280 = vpop.f32.mrf.mxu0
      %v8281 = vadd.f32 0.0, %v8280
      %8282 = vmatmul.bf16.gmra.mxu0 %v8175
      %v8283 = vpop.f32.mrf.mxu0
      %v8284 = vadd.f32 0.0, %v8283
      %v8285 = vpop.f32.mrf.mxu0
      %v8286 = vadd.f32 0.0, %v8285
      %8287 = vmatmul.bf16.gmra.mxu0 %v8178
      %v8288 = vpop.f32.mrf.mxu0
      %v8289 = vadd.f32 0.0, %v8288
      %v8290 = vpop.f32.mrf.mxu0
      %v8291 = vadd.f32 0.0, %v8290
      %8292 = vmatmul.bf16.gmra.mxu0 %v8181
      %v8293 = vpop.f32.mrf.mxu0
      %v8294 = vadd.f32 0.0, %v8293
      %v8295 = vpop.f32.mrf.mxu0
      %v8296 = vadd.f32 0.0, %v8295
      %8297 = vmatmul.bf16.gmra.mxu0 %v8184
      %v8298 = vpop.f32.mrf.mxu0
      %v8299 = vadd.f32 0.0, %v8298
      %v8300 = vpop.f32.mrf.mxu0
      %v8301 = vadd.f32 0.0, %v8300
      %8302 = vmatmul.bf16.gmra.mxu0 %v8187
      %v8303 = vpop.f32.mrf.mxu0
      %v8304 = vadd.f32 0.0, %v8303
      %v8305 = vpop.f32.mrf.mxu0
      %v8306 = vadd.f32 0.0, %v8305
      %8307 = vmatmul.bf16.gmra.mxu0 %v8190
      %v8308 = vpop.f32.mrf.mxu0
      %v8309 = vadd.f32 0.0, %v8308
      %v8310 = vpop.f32.mrf.mxu0
      %v8311 = vadd.f32 0.0, %v8310
      %8312 = vmatmul.bf16.gmra.mxu0 %v8193
      %v8313 = vpop.f32.mrf.mxu0
      %v8314 = vadd.f32 0.0, %v8313
      %v8315 = vpop.f32.mrf.mxu0
      %v8316 = vadd.f32 0.0, %v8315
      %8317 = vmatmul.bf16.gmra.mxu0 %v8196
      %v8318 = vpop.f32.mrf.mxu0
      %v8319 = vadd.f32 0.0, %v8318
      %v8320 = vpop.f32.mrf.mxu0
      %v8321 = vadd.f32 0.0, %v8320
      %8322 = vmatmul.bf16.gmra.mxu0 %v8199
      %v8323 = vpop.f32.mrf.mxu0
      %v8324 = vadd.f32 0.0, %v8323
      %v8325 = vpop.f32.mrf.mxu0
      %v8326 = vadd.f32 0.0, %v8325
      %8327 = vmatmul.bf16.gmra.mxu0 %v8202
      %v8328 = vpop.f32.mrf.mxu0
      %v8329 = vadd.f32 0.0, %v8328
      %v8330 = vpop.f32.mrf.mxu0
      %v8331 = vadd.f32 0.0, %v8330
      %8332 = vdwg.mxu0
      %v8337 = vunpack.c.l.b16 %v7791
      %v8338 = vunpack.c.l.b16 %v7792
      %v8339 = vunpack.c.l.b16 %v7793
      %v8340 = vunpack.c.l.b16 %v7794
      %v8341 = vpack.c.b16 %v8338, %v8337
      %v8342 = vpack.c.b16 %v8340, %v8339
      %v8345 = vsel %vm577, %v7899, 0
      %v8347 = vsel %vm577, %v7900, 0
      %v8349 = vsel %vm577, %v7901, 0
      %v8351 = vsel %vm577, %v7902, 0
      %v8353 = vsel %vm577, %v7903, 0
      %v8355 = vsel %vm577, %v7904, 0
      %v8357 = vsel %vm577, %v7905, 0
      %v8359 = vsel %vm577, %v7906, 0
      %v8361 = vsel %vm577, %v7907, 0
      %v8363 = vsel %vm577, %v7908, 0
      %v8365 = vsel %vm577, %v7909, 0
      %v8367 = vsel %vm577, %v7910, 0
      %v8369 = vsel %vm577, %v7911, 0
      %v8371 = vsel %vm577, %v7912, 0
      %v8373 = vsel %vm577, %v7913, 0
      %v8375 = vsel %vm577, %v7914, 0
      %v8377 = vsel %vm577, %v7915, 0
      %v8379 = vsel %vm577, %v7916, 0
      %v8381 = vsel %vm577, %v7917, 0
      %v8383 = vsel %vm577, %v7918, 0
      %v8385 = vsel %vm577, %v7919, 0
      %v8387 = vsel %vm577, %v7920, 0
      %v8389 = vsel %vm577, %v7921, 0
      %v8391 = vsel %vm577, %v7922, 0
      %8393 = vmatpush.bf16.msra.mxu0 0
      %8394 = vmatpush.bf16.msra.mxu0 0
      %8395 = vmatpush.bf16.msra.mxu0 0
      %8396 = vmatpush.bf16.msra.mxu0 0
      %8397 = vmatpush.bf16.msra.mxu0 0
      %8398 = vmatpush.bf16.msra.mxu0 0
      %8399 = vmatpush.bf16.msra.mxu0 %v8342
      %8400 = vmatpush.bf16.msra.mxu0 %v8341
      %8401 = vmatmul.bf16.gmra.mxu0 %v8345
      %v8402 = vpop.f32.mrf.mxu0
      %v8403 = vadd.f32 %v8214, %v8402
      %v8404 = vpop.f32.mrf.mxu0
      %v8405 = vadd.f32 %v8216, %v8404
      %8406 = vmatmul.bf16.gmra.mxu0 %v8347
      %v8407 = vpop.f32.mrf.mxu0
      %v8408 = vadd.f32 %v8219, %v8407
      %v8409 = vpop.f32.mrf.mxu0
      %v8410 = vadd.f32 %v8221, %v8409
      %8411 = vmatmul.bf16.gmra.mxu0 %v8349
      %v8412 = vpop.f32.mrf.mxu0
      %v8413 = vadd.f32 %v8224, %v8412
      %v8414 = vpop.f32.mrf.mxu0
      %v8415 = vadd.f32 %v8226, %v8414
      %8416 = vmatmul.bf16.gmra.mxu0 %v8351
      %v8417 = vpop.f32.mrf.mxu0
      %v8418 = vadd.f32 %v8229, %v8417
      %v8419 = vpop.f32.mrf.mxu0
      %v8420 = vadd.f32 %v8231, %v8419
      %8421 = vmatmul.bf16.gmra.mxu0 %v8353
      %v8422 = vpop.f32.mrf.mxu0
      %v8423 = vadd.f32 %v8234, %v8422
      %v8424 = vpop.f32.mrf.mxu0
      %v8425 = vadd.f32 %v8236, %v8424
      %8426 = vmatmul.bf16.gmra.mxu0 %v8355
      %v8427 = vpop.f32.mrf.mxu0
      %v8428 = vadd.f32 %v8239, %v8427
      %v8429 = vpop.f32.mrf.mxu0
      %v8430 = vadd.f32 %v8241, %v8429
      %8431 = vmatmul.bf16.gmra.mxu0 %v8357
      %v8432 = vpop.f32.mrf.mxu0
      %v8433 = vadd.f32 %v8244, %v8432
      %v8434 = vpop.f32.mrf.mxu0
      %v8435 = vadd.f32 %v8246, %v8434
      %8436 = vmatmul.bf16.gmra.mxu0 %v8359
      %v8437 = vpop.f32.mrf.mxu0
      %v8438 = vadd.f32 %v8249, %v8437
      %v8439 = vpop.f32.mrf.mxu0
      %v8440 = vadd.f32 %v8251, %v8439
      %8441 = vmatmul.bf16.gmra.mxu0 %v8361
      %v8442 = vpop.f32.mrf.mxu0
      %v8443 = vadd.f32 %v8254, %v8442
      %v8444 = vpop.f32.mrf.mxu0
      %v8445 = vadd.f32 %v8256, %v8444
      %8446 = vmatmul.bf16.gmra.mxu0 %v8363
      %v8447 = vpop.f32.mrf.mxu0
      %v8448 = vadd.f32 %v8259, %v8447
      %v8449 = vpop.f32.mrf.mxu0
      %v8450 = vadd.f32 %v8261, %v8449
      %8451 = vmatmul.bf16.gmra.mxu0 %v8365
      %v8452 = vpop.f32.mrf.mxu0
      %v8453 = vadd.f32 %v8264, %v8452
      %v8454 = vpop.f32.mrf.mxu0
      %v8455 = vadd.f32 %v8266, %v8454
      %8456 = vmatmul.bf16.gmra.mxu0 %v8367
      %v8457 = vpop.f32.mrf.mxu0
      %v8458 = vadd.f32 %v8269, %v8457
      %v8459 = vpop.f32.mrf.mxu0
      %v8460 = vadd.f32 %v8271, %v8459
      %8461 = vmatmul.bf16.gmra.mxu0 %v8369
      %v8462 = vpop.f32.mrf.mxu0
      %v8463 = vadd.f32 %v8274, %v8462
      %v8464 = vpop.f32.mrf.mxu0
      %v8465 = vadd.f32 %v8276, %v8464
      %8466 = vmatmul.bf16.gmra.mxu0 %v8371
      %v8467 = vpop.f32.mrf.mxu0
      %v8468 = vadd.f32 %v8279, %v8467
      %v8469 = vpop.f32.mrf.mxu0
      %v8470 = vadd.f32 %v8281, %v8469
      %8471 = vmatmul.bf16.gmra.mxu0 %v8373
      %v8472 = vpop.f32.mrf.mxu0
      %v8473 = vadd.f32 %v8284, %v8472
      %v8474 = vpop.f32.mrf.mxu0
      %v8475 = vadd.f32 %v8286, %v8474
      %8476 = vmatmul.bf16.gmra.mxu0 %v8375
      %v8477 = vpop.f32.mrf.mxu0
      %v8478 = vadd.f32 %v8289, %v8477
      %v8479 = vpop.f32.mrf.mxu0
      %v8480 = vadd.f32 %v8291, %v8479
      %8481 = vmatmul.bf16.gmra.mxu0 %v8377
      %v8482 = vpop.f32.mrf.mxu0
      %v8483 = vadd.f32 %v8294, %v8482
      %v8484 = vpop.f32.mrf.mxu0
      %v8485 = vadd.f32 %v8296, %v8484
      %8486 = vmatmul.bf16.gmra.mxu0 %v8379
      %v8487 = vpop.f32.mrf.mxu0
      %v8488 = vadd.f32 %v8299, %v8487
      %v8489 = vpop.f32.mrf.mxu0
      %v8490 = vadd.f32 %v8301, %v8489
      %8491 = vmatmul.bf16.gmra.mxu0 %v8381
      %v8492 = vpop.f32.mrf.mxu0
      %v8493 = vadd.f32 %v8304, %v8492
      %v8494 = vpop.f32.mrf.mxu0
      %v8495 = vadd.f32 %v8306, %v8494
      %8496 = vmatmul.bf16.gmra.mxu0 %v8383
      %v8497 = vpop.f32.mrf.mxu0
      %v8498 = vadd.f32 %v8309, %v8497
      %v8499 = vpop.f32.mrf.mxu0
      %v8500 = vadd.f32 %v8311, %v8499
      %8501 = vmatmul.bf16.gmra.mxu0 %v8385
      %v8502 = vpop.f32.mrf.mxu0
      %v8503 = vadd.f32 %v8314, %v8502
      %v8504 = vpop.f32.mrf.mxu0
      %v8505 = vadd.f32 %v8316, %v8504
      %8506 = vmatmul.bf16.gmra.mxu0 %v8387
      %v8507 = vpop.f32.mrf.mxu0
      %v8508 = vadd.f32 %v8319, %v8507
      %v8509 = vpop.f32.mrf.mxu0
      %v8510 = vadd.f32 %v8321, %v8509
      %8511 = vmatmul.bf16.gmra.mxu0 %v8389
      %v8512 = vpop.f32.mrf.mxu0
      %v8513 = vadd.f32 %v8324, %v8512
      %v8514 = vpop.f32.mrf.mxu0
      %v8515 = vadd.f32 %v8326, %v8514
      %8516 = vmatmul.bf16.gmra.mxu0 %v8391
      %v8517 = vpop.f32.mrf.mxu0
      %v8518 = vadd.f32 %v8329, %v8517
      %v8519 = vpop.f32.mrf.mxu0
      %v8520 = vadd.f32 %v8331, %v8519
      %8521 = vdwg.mxu0
      %v8522 = vld [vmem:[#allocation2] sm:$0xe]
      %s8523 = scalar_lea.vmem %s11, 32
      %v8524 = vld [vmem:[%s8523] sm:$0xf]
      %v8525 = vld [vmem:[%s8523 + $0x4] sm:$0xf]
      %v8526 = vld [vmem:[%s8523 + $0x8] sm:$0xf]
      %v8527 = vld [vmem:[%s8523 + $0xc] sm:$0xf]
      %v8529 = vunpack.c.l.b16 %v8522
      %v8530 = vpack.c.b16 %v7851, %v8529
      %v8531 = vrot.slane %v8530, 1
      %v8532 = vrot.slane %v7900, 1
      %v8533 = vsel %vm3080, %v8531, %v8532
      %v8534 = vrot.slane %v7901, 1
      %v8535 = vsel %vm3080, %v8532, %v8534
      %v8536 = vrot.slane %v7902, 1
      %v8537 = vsel %vm3080, %v8534, %v8536
      %v8538 = vrot.slane %v7903, 1
      %v8539 = vsel %vm3080, %v8536, %v8538
      %v8540 = vrot.slane %v7904, 1
      %v8541 = vsel %vm3080, %v8538, %v8540
      %v8542 = vrot.slane %v7905, 1
      %v8543 = vsel %vm3080, %v8540, %v8542
      %v8544 = vrot.slane %v7906, 1
      %v8545 = vsel %vm3080, %v8542, %v8544
      %v8546 = vrot.slane %v7907, 1
      %v8547 = vsel %vm3080, %v8544, %v8546
      %v8548 = vrot.slane %v7908, 1
      %v8549 = vsel %vm3080, %v8546, %v8548
      %v8550 = vrot.slane %v7909, 1
      %v8551 = vsel %vm3080, %v8548, %v8550
      %v8552 = vrot.slane %v7910, 1
      %v8553 = vsel %vm3080, %v8550, %v8552
      %v8554 = vrot.slane %v7911, 1
      %v8555 = vsel %vm3080, %v8552, %v8554
      %v8556 = vrot.slane %v7912, 1
      %v8557 = vsel %vm3080, %v8554, %v8556
      %v8558 = vrot.slane %v7913, 1
      %v8559 = vsel %vm3080, %v8556, %v8558
      %v8560 = vrot.slane %v7914, 1
      %v8561 = vsel %vm3080, %v8558, %v8560
      %v8562 = vrot.slane %v7915, 1
      %v8563 = vsel %vm3080, %v8560, %v8562
      %v8564 = vrot.slane %v7916, 1
      %v8565 = vsel %vm3080, %v8562, %v8564
      %v8566 = vrot.slane %v7917, 1
      %v8567 = vsel %vm3080, %v8564, %v8566
      %v8568 = vrot.slane %v7918, 1
      %v8569 = vsel %vm3080, %v8566, %v8568
      %v8570 = vrot.slane %v7919, 1
      %v8571 = vsel %vm3080, %v8568, %v8570
      %v8572 = vrot.slane %v7920, 1
      %v8573 = vsel %vm3080, %v8570, %v8572
      %v8574 = vrot.slane %v7921, 1
      %v8575 = vsel %vm3080, %v8572, %v8574
      %v8576 = vrot.slane %v7922, 1
      %v8577 = vsel %vm3080, %v8574, %v8576
      %v8578 = vrot.slane %v7923, 1
      %v8579 = vsel %vm3080, %v8576, %v8578
      %v8584 = vunpack.c.l.b16 %v8524
      %v8585 = vunpack.c.l.b16 %v8525
      %v8586 = vunpack.c.l.b16 %v8526
      %v8587 = vunpack.c.l.b16 %v8527
      %v8588 = vpack.c.b16 %v8585, %v8584
      %v8589 = vpack.c.b16 %v8587, %v8586
      %v8593 = vsel %vm577, %v8533, 0
      %v8596 = vsel %vm577, %v8535, 0
      %v8599 = vsel %vm577, %v8537, 0
      %v8602 = vsel %vm577, %v8539, 0
      %v8605 = vsel %vm577, %v8541, 0
      %v8608 = vsel %vm577, %v8543, 0
      %v8611 = vsel %vm577, %v8545, 0
      %v8614 = vsel %vm577, %v8547, 0
      %v8617 = vsel %vm577, %v8549, 0
      %v8620 = vsel %vm577, %v8551, 0
      %v8623 = vsel %vm577, %v8553, 0
      %v8626 = vsel %vm577, %v8555, 0
      %v8629 = vsel %vm577, %v8557, 0
      %v8632 = vsel %vm577, %v8559, 0
      %v8635 = vsel %vm577, %v8561, 0
      %v8638 = vsel %vm577, %v8563, 0
      %v8641 = vsel %vm577, %v8565, 0
      %v8644 = vsel %vm577, %v8567, 0
      %v8647 = vsel %vm577, %v8569, 0
      %v8650 = vsel %vm577, %v8571, 0
      %v8653 = vsel %vm577, %v8573, 0
      %v8656 = vsel %vm577, %v8575, 0
      %v8659 = vsel %vm577, %v8577, 0
      %v8662 = vsel %vm577, %v8579, 0
      %8664 = vmatpush.bf16.msra.mxu0 0
      %8665 = vmatpush.bf16.msra.mxu0 0
      %8666 = vmatpush.bf16.msra.mxu0 0
      %8667 = vmatpush.bf16.msra.mxu0 0
      %8668 = vmatpush.bf16.msra.mxu0 0
      %8669 = vmatpush.bf16.msra.mxu0 0
      %8670 = vmatpush.bf16.msra.mxu0 %v8589
      %8671 = vmatpush.bf16.msra.mxu0 %v8588
      %8672 = vmatmul.bf16.gmra.mxu0 %v8593
      %v8673 = vpop.f32.mrf.mxu0
      %v8674 = vadd.f32 0.0, %v8673
      %v8675 = vpop.f32.mrf.mxu0
      %v8676 = vadd.f32 0.0, %v8675
      %8677 = vmatmul.bf16.gmra.mxu0 %v8596
      %v8678 = vpop.f32.mrf.mxu0
      %v8679 = vadd.f32 0.0, %v8678
      %v8680 = vpop.f32.mrf.mxu0
      %v8681 = vadd.f32 0.0, %v8680
      %8682 = vmatmul.bf16.gmra.mxu0 %v8599
      %v8683 = vpop.f32.mrf.mxu0
      %v8684 = vadd.f32 0.0, %v8683
      %v8685 = vpop.f32.mrf.mxu0
      %v8686 = vadd.f32 0.0, %v8685
      %8687 = vmatmul.bf16.gmra.mxu0 %v8602
      %v8688 = vpop.f32.mrf.mxu0
      %v8689 = vadd.f32 0.0, %v8688
      %v8690 = vpop.f32.mrf.mxu0
      %v8691 = vadd.f32 0.0, %v8690
      %8692 = vmatmul.bf16.gmra.mxu0 %v8605
      %v8693 = vpop.f32.mrf.mxu0
      %v8694 = vadd.f32 0.0, %v8693
      %v8695 = vpop.f32.mrf.mxu0
      %v8696 = vadd.f32 0.0, %v8695
      %8697 = vmatmul.bf16.gmra.mxu0 %v8608
      %v8698 = vpop.f32.mrf.mxu0
      %v8699 = vadd.f32 0.0, %v8698
      %v8700 = vpop.f32.mrf.mxu0
      %v8701 = vadd.f32 0.0, %v8700
      %8702 = vmatmul.bf16.gmra.mxu0 %v8611
      %v8703 = vpop.f32.mrf.mxu0
      %v8704 = vadd.f32 0.0, %v8703
      %v8705 = vpop.f32.mrf.mxu0
      %v8706 = vadd.f32 0.0, %v8705
      %8707 = vmatmul.bf16.gmra.mxu0 %v8614
      %v8708 = vpop.f32.mrf.mxu0
      %v8709 = vadd.f32 0.0, %v8708
      %v8710 = vpop.f32.mrf.mxu0
      %v8711 = vadd.f32 0.0, %v8710
      %8712 = vmatmul.bf16.gmra.mxu0 %v8617
      %v8713 = vpop.f32.mrf.mxu0
      %v8714 = vadd.f32 0.0, %v8713
      %v8715 = vpop.f32.mrf.mxu0
      %v8716 = vadd.f32 0.0, %v8715
      %8717 = vmatmul.bf16.gmra.mxu0 %v8620
      %v8718 = vpop.f32.mrf.mxu0
      %v8719 = vadd.f32 0.0, %v8718
      %v8720 = vpop.f32.mrf.mxu0
      %v8721 = vadd.f32 0.0, %v8720
      %8722 = vmatmul.bf16.gmra.mxu0 %v8623
      %v8723 = vpop.f32.mrf.mxu0
      %v8724 = vadd.f32 0.0, %v8723
      %v8725 = vpop.f32.mrf.mxu0
      %v8726 = vadd.f32 0.0, %v8725
      %8727 = vmatmul.bf16.gmra.mxu0 %v8626
      %v8728 = vpop.f32.mrf.mxu0
      %v8729 = vadd.f32 0.0, %v8728
      %v8730 = vpop.f32.mrf.mxu0
      %v8731 = vadd.f32 0.0, %v8730
      %8732 = vmatmul.bf16.gmra.mxu0 %v8629
      %v8733 = vpop.f32.mrf.mxu0
      %v8734 = vadd.f32 0.0, %v8733
      %v8735 = vpop.f32.mrf.mxu0
      %v8736 = vadd.f32 0.0, %v8735
      %8737 = vmatmul.bf16.gmra.mxu0 %v8632
      %v8738 = vpop.f32.mrf.mxu0
      %v8739 = vadd.f32 0.0, %v8738
      %v8740 = vpop.f32.mrf.mxu0
      %v8741 = vadd.f32 0.0, %v8740
      %8742 = vmatmul.bf16.gmra.mxu0 %v8635
      %v8743 = vpop.f32.mrf.mxu0
      %v8744 = vadd.f32 0.0, %v8743
      %v8745 = vpop.f32.mrf.mxu0
      %v8746 = vadd.f32 0.0, %v8745
      %8747 = vmatmul.bf16.gmra.mxu0 %v8638
      %v8748 = vpop.f32.mrf.mxu0
      %v8749 = vadd.f32 0.0, %v8748
      %v8750 = vpop.f32.mrf.mxu0
      %v8751 = vadd.f32 0.0, %v8750
      %8752 = vmatmul.bf16.gmra.mxu0 %v8641
      %v8753 = vpop.f32.mrf.mxu0
      %v8754 = vadd.f32 0.0, %v8753
      %v8755 = vpop.f32.mrf.mxu0
      %v8756 = vadd.f32 0.0, %v8755
      %8757 = vmatmul.bf16.gmra.mxu0 %v8644
      %v8758 = vpop.f32.mrf.mxu0
      %v8759 = vadd.f32 0.0, %v8758
      %v8760 = vpop.f32.mrf.mxu0
      %v8761 = vadd.f32 0.0, %v8760
      %8762 = vmatmul.bf16.gmra.mxu0 %v8647
      %v8763 = vpop.f32.mrf.mxu0
      %v8764 = vadd.f32 0.0, %v8763
      %v8765 = vpop.f32.mrf.mxu0
      %v8766 = vadd.f32 0.0, %v8765
      %8767 = vmatmul.bf16.gmra.mxu0 %v8650
      %v8768 = vpop.f32.mrf.mxu0
      %v8769 = vadd.f32 0.0, %v8768
      %v8770 = vpop.f32.mrf.mxu0
      %v8771 = vadd.f32 0.0, %v8770
      %8772 = vmatmul.bf16.gmra.mxu0 %v8653
      %v8773 = vpop.f32.mrf.mxu0
      %v8774 = vadd.f32 0.0, %v8773
      %v8775 = vpop.f32.mrf.mxu0
      %v8776 = vadd.f32 0.0, %v8775
      %8777 = vmatmul.bf16.gmra.mxu0 %v8656
      %v8778 = vpop.f32.mrf.mxu0
      %v8779 = vadd.f32 0.0, %v8778
      %v8780 = vpop.f32.mrf.mxu0
      %v8781 = vadd.f32 0.0, %v8780
      %8782 = vmatmul.bf16.gmra.mxu0 %v8659
      %v8783 = vpop.f32.mrf.mxu0
      %v8784 = vadd.f32 0.0, %v8783
      %v8785 = vpop.f32.mrf.mxu0
      %v8786 = vadd.f32 0.0, %v8785
      %8787 = vmatmul.bf16.gmra.mxu0 %v8662
      %v8788 = vpop.f32.mrf.mxu0
      %v8789 = vadd.f32 0.0, %v8788
      %v8790 = vpop.f32.mrf.mxu0
      %v8791 = vadd.f32 0.0, %v8790
      %8792 = vdwg.mxu0
      %v8793 = vadd.f32 %v8403, %v8674
      %v8794 = vadd.f32 %v8405, %v8676
      %v8795 = vadd.f32 %v8408, %v8679
      %v8796 = vadd.f32 %v8410, %v8681
      %v8797 = vadd.f32 %v8413, %v8684
      %v8798 = vadd.f32 %v8415, %v8686
      %v8799 = vadd.f32 %v8418, %v8689
      %v8800 = vadd.f32 %v8420, %v8691
      %v8801 = vadd.f32 %v8423, %v8694
      %v8802 = vadd.f32 %v8425, %v8696
      %v8803 = vadd.f32 %v8428, %v8699
      %v8804 = vadd.f32 %v8430, %v8701
      %v8805 = vadd.f32 %v8433, %v8704
      %v8806 = vadd.f32 %v8435, %v8706
      %v8807 = vadd.f32 %v8438, %v8709
      %v8808 = vadd.f32 %v8440, %v8711
      %v8809 = vadd.f32 %v8443, %v8714
      %v8810 = vadd.f32 %v8445, %v8716
      %v8811 = vadd.f32 %v8448, %v8719
      %v8812 = vadd.f32 %v8450, %v8721
      %v8813 = vadd.f32 %v8453, %v8724
      %v8814 = vadd.f32 %v8455, %v8726
      %v8815 = vadd.f32 %v8458, %v8729
      %v8816 = vadd.f32 %v8460, %v8731
      %v8817 = vadd.f32 %v8463, %v8734
      %v8818 = vadd.f32 %v8465, %v8736
      %v8819 = vadd.f32 %v8468, %v8739
      %v8820 = vadd.f32 %v8470, %v8741
      %v8821 = vadd.f32 %v8473, %v8744
      %v8822 = vadd.f32 %v8475, %v8746
      %v8823 = vadd.f32 %v8478, %v8749
      %v8824 = vadd.f32 %v8480, %v8751
      %v8825 = vadd.f32 %v8483, %v8754
      %v8826 = vadd.f32 %v8485, %v8756
      %v8827 = vadd.f32 %v8488, %v8759
      %v8828 = vadd.f32 %v8490, %v8761
      %v8829 = vadd.f32 %v8493, %v8764
      %v8830 = vadd.f32 %v8495, %v8766
      %v8831 = vadd.f32 %v8498, %v8769
      %v8832 = vadd.f32 %v8500, %v8771
      %v8833 = vadd.f32 %v8503, %v8774
      %v8834 = vadd.f32 %v8505, %v8776
      %v8835 = vadd.f32 %v8508, %v8779
      %v8836 = vadd.f32 %v8510, %v8781
      %v8837 = vadd.f32 %v8513, %v8784
      %v8838 = vadd.f32 %v8515, %v8786
      %v8839 = vadd.f32 %v8518, %v8789
      %v8840 = vadd.f32 %v8520, %v8791
      %v8841 = vld [vmem:[#allocation2 + $0xc] sm:$0xf]
      %v8842 = vld [vmem:[#allocation2 + $0x10] sm:$0xf]
      %v8843 = vld [vmem:[#allocation2 + $0x14] sm:$0xf]
      %v8844 = vld [vmem:[#allocation2 + $0x18] sm:$0xf]
      %v8845 = vld [vmem:[#allocation2 + $0x1c] sm:$0xf]
      %v8846 = vld [vmem:[#allocation2 + $0x20] sm:$0xf]
      %v8847 = vld [vmem:[#allocation2 + $0x24] sm:$0xf]
      %v8848 = vld [vmem:[#allocation2 + $0x28] sm:$0xf]
      %v8849 = vld [vmem:[#allocation2 + $0x2c] sm:$0xf]
      %v8850 = vld [vmem:[#allocation2 + $0x30] sm:$0xf]
      %v8851 = vld [vmem:[#allocation2 + $0x34] sm:$0xf]
      %v8852 = vld [vmem:[#allocation2 + $0x38] sm:$0xf]
      %v8853 = vld [vmem:[#allocation2 + $0x3c] sm:$0xf]
      %v8854 = vld [vmem:[#allocation2 + $0x40] sm:$0xf]
      %v8855 = vld [vmem:[#allocation2 + $0x44] sm:$0xf]
      %v8856 = vld [vmem:[#allocation2 + $0x48] sm:$0xf]
      %v8857 = vld [vmem:[#allocation2 + $0x4c] sm:$0xf]
      %v8858 = vld [vmem:[#allocation2 + $0x50] sm:$0xf]
      %v8859 = vld [vmem:[#allocation2 + $0x54] sm:$0xf]
      %v8860 = vld [vmem:[#allocation2 + $0x58] sm:$0xf]
      %v8861 = vld [vmem:[#allocation2 + $0x5c] sm:$0xf]
      %v8862 = vld [vmem:[#allocation2 + $0x60] sm:$0xf]
      %v8863 = vld [vmem:[#allocation2 + $0x64] sm:$0xf]
      %v8864 = vld [vmem:[#allocation2 + $0x68] sm:$0xf]
      %v8865 = vld [vmem:[#allocation2 + $0x6c] sm:$0xf]
      %v8866 = vld [vmem:[#allocation2 + $0x70] sm:$0xf]
      %v8867 = vld [vmem:[#allocation2 + $0x74] sm:$0xf]
      %v8868 = vld [vmem:[#allocation2 + $0x78] sm:$0xf]
      %v8869 = vld [vmem:[#allocation2 + $0x7c] sm:$0xf]
      %v8870 = vld [vmem:[#allocation2 + $0x80] sm:$0xf]
      %v8871 = vld [vmem:[#allocation2 + $0x84] sm:$0xf]
      %v8872 = vld [vmem:[#allocation2 + $0x88] sm:$0xf]
      %v8873 = vld [vmem:[#allocation2 + $0x8c] sm:$0xf]
      %v8874 = vld [vmem:[#allocation2 + $0x90] sm:$0xf]
      %v8875 = vld [vmem:[#allocation2 + $0x94] sm:$0xf]
      %v8876 = vld [vmem:[#allocation2 + $0x98] sm:$0xf]
      %v8877 = vld [vmem:[#allocation2 + $0x9c] sm:$0xf]
      %v8878 = vld [vmem:[#allocation2 + $0xa0] sm:$0xf]
      %v8879 = vld [vmem:[#allocation2 + $0xa4] sm:$0xf]
      %v8880 = vld [vmem:[#allocation2 + $0xa8] sm:$0xf]
      %v8881 = vld [vmem:[#allocation2 + $0xac] sm:$0xf]
      %v8882 = vld [vmem:[#allocation2 + $0xb0] sm:$0xf]
      %v8883 = vld [vmem:[#allocation2 + $0xb4] sm:$0xf]
      %v8884 = vld [vmem:[#allocation2 + $0xb8] sm:$0xf]
      %v8885 = vld [vmem:[#allocation2 + $0xbc] sm:$0xf]
      %v8886 = vld [vmem:[#allocation2 + $0xc0] sm:$0xf]
      %v8887 = vld [vmem:[#allocation2 + $0xc4] sm:$0xf]
      %v8888 = vld [vmem:[#allocation2 + $0xc8] sm:$0xf]
      %s8889 = scalar_lea.vmem %s11, 48
      %v8890 = vld [vmem:[%s8889] sm:$0xf]
      %v8891 = vld [vmem:[%s8889 + $0x4] sm:$0xf]
      %v8892 = vld [vmem:[%s8889 + $0x8] sm:$0xf]
      %v8893 = vld [vmem:[%s8889 + $0xc] sm:$0xf]
      %v8942 = vunpack.c.l.b16 %v8841
      %v8943 = vunpack.c.l.b16 %v8842
      %v8944 = vunpack.c.l.b16 %v8843
      %v8945 = vunpack.c.l.b16 %v8844
      %v8946 = vunpack.c.l.b16 %v8845
      %v8947 = vunpack.c.l.b16 %v8846
      %v8948 = vunpack.c.l.b16 %v8847
      %v8949 = vunpack.c.l.b16 %v8848
      %v8950 = vunpack.c.l.b16 %v8849
      %v8951 = vunpack.c.l.b16 %v8850
      %v8952 = vunpack.c.l.b16 %v8851
      %v8953 = vunpack.c.l.b16 %v8852
      %v8954 = vunpack.c.l.b16 %v8853
      %v8955 = vunpack.c.l.b16 %v8854
      %v8956 = vunpack.c.l.b16 %v8855
      %v8957 = vunpack.c.l.b16 %v8856
      %v8958 = vunpack.c.l.b16 %v8857
      %v8959 = vunpack.c.l.b16 %v8858
      %v8960 = vunpack.c.l.b16 %v8859
      %v8961 = vunpack.c.l.b16 %v8860
      %v8962 = vunpack.c.l.b16 %v8861
      %v8963 = vunpack.c.l.b16 %v8862
      %v8964 = vunpack.c.l.b16 %v8863
      %v8965 = vunpack.c.l.b16 %v8864
      %v8966 = vunpack.c.l.b16 %v8865
      %v8967 = vunpack.c.l.b16 %v8866
      %v8968 = vunpack.c.l.b16 %v8867
      %v8969 = vunpack.c.l.b16 %v8868
      %v8970 = vunpack.c.l.b16 %v8869
      %v8971 = vunpack.c.l.b16 %v8870
      %v8972 = vunpack.c.l.b16 %v8871
      %v8973 = vunpack.c.l.b16 %v8872
      %v8974 = vunpack.c.l.b16 %v8873
      %v8975 = vunpack.c.l.b16 %v8874
      %v8976 = vunpack.c.l.b16 %v8875
      %v8977 = vunpack.c.l.b16 %v8876
      %v8978 = vunpack.c.l.b16 %v8877
      %v8979 = vunpack.c.l.b16 %v8878
      %v8980 = vunpack.c.l.b16 %v8879
      %v8981 = vunpack.c.l.b16 %v8880
      %v8982 = vunpack.c.l.b16 %v8881
      %v8983 = vunpack.c.l.b16 %v8882
      %v8984 = vunpack.c.l.b16 %v8883
      %v8985 = vunpack.c.l.b16 %v8884
      %v8986 = vunpack.c.l.b16 %v8885
      %v8987 = vunpack.c.l.b16 %v8886
      %v8988 = vunpack.c.l.b16 %v8887
      %v8989 = vunpack.c.l.b16 %v8888
      %v8990 = vpack.c.b16 %v8943, %v8942
      %v8991 = vpack.c.b16 %v8945, %v8944
      %v8992 = vpack.c.b16 %v8947, %v8946
      %v8993 = vpack.c.b16 %v8949, %v8948
      %v8994 = vpack.c.b16 %v8951, %v8950
      %v8995 = vpack.c.b16 %v8953, %v8952
      %v8996 = vpack.c.b16 %v8955, %v8954
      %v8997 = vpack.c.b16 %v8957, %v8956
      %v8998 = vpack.c.b16 %v8959, %v8958
      %v8999 = vpack.c.b16 %v8961, %v8960
      %v9000 = vpack.c.b16 %v8963, %v8962
      %v9001 = vpack.c.b16 %v8965, %v8964
      %v9002 = vpack.c.b16 %v8967, %v8966
      %v9003 = vpack.c.b16 %v8969, %v8968
      %v9004 = vpack.c.b16 %v8971, %v8970
      %v9005 = vpack.c.b16 %v8973, %v8972
      %v9006 = vpack.c.b16 %v8975, %v8974
      %v9007 = vpack.c.b16 %v8977, %v8976
      %v9008 = vpack.c.b16 %v8979, %v8978
      %v9009 = vpack.c.b16 %v8981, %v8980
      %v9010 = vpack.c.b16 %v8983, %v8982
      %v9011 = vpack.c.b16 %v8985, %v8984
      %v9012 = vpack.c.b16 %v8987, %v8986
      %v9013 = vpack.c.b16 %v8989, %v8988
      %v9018 = vunpack.c.l.b16 %v8890
      %v9019 = vunpack.c.l.b16 %v8891
      %v9020 = vunpack.c.l.b16 %v8892
      %v9021 = vunpack.c.l.b16 %v8893
      %v9022 = vpack.c.b16 %v9019, %v9018
      %v9023 = vpack.c.b16 %v9021, %v9020
      %v9027 = vsel %vm577, %v8990, 0
      %v9030 = vsel %vm577, %v8991, 0
      %v9033 = vsel %vm577, %v8992, 0
      %v9036 = vsel %vm577, %v8993, 0
      %v9039 = vsel %vm577, %v8994, 0
      %v9042 = vsel %vm577, %v8995, 0
      %v9045 = vsel %vm577, %v8996, 0
      %v9048 = vsel %vm577, %v8997, 0
      %v9051 = vsel %vm577, %v8998, 0
      %v9054 = vsel %vm577, %v8999, 0
      %v9057 = vsel %vm577, %v9000, 0
      %v9060 = vsel %vm577, %v9001, 0
      %v9063 = vsel %vm577, %v9002, 0
      %v9066 = vsel %vm577, %v9003, 0
      %v9069 = vsel %vm577, %v9004, 0
      %v9072 = vsel %vm577, %v9005, 0
      %v9075 = vsel %vm577, %v9006, 0
      %v9078 = vsel %vm577, %v9007, 0
      %v9081 = vsel %vm577, %v9008, 0
      %v9084 = vsel %vm577, %v9009, 0
      %v9087 = vsel %vm577, %v9010, 0
      %v9090 = vsel %vm577, %v9011, 0
      %v9093 = vsel %vm577, %v9012, 0
      %v9096 = vsel %vm577, %v9013, 0
      %9098 = vmatpush.bf16.msra.mxu0 0
      %9099 = vmatpush.bf16.msra.mxu0 0
      %9100 = vmatpush.bf16.msra.mxu0 0
      %9101 = vmatpush.bf16.msra.mxu0 0
      %9102 = vmatpush.bf16.msra.mxu0 0
      %9103 = vmatpush.bf16.msra.mxu0 0
      %9104 = vmatpush.bf16.msra.mxu0 %v9023
      %9105 = vmatpush.bf16.msra.mxu0 %v9022
      %9106 = vmatmul.bf16.gmra.mxu0 %v9027
      %v9107 = vpop.f32.mrf.mxu0
      %v9108 = vadd.f32 0.0, %v9107
      %v9109 = vpop.f32.mrf.mxu0
      %v9110 = vadd.f32 0.0, %v9109
      %9111 = vmatmul.bf16.gmra.mxu0 %v9030
      %v9112 = vpop.f32.mrf.mxu0
      %v9113 = vadd.f32 0.0, %v9112
      %v9114 = vpop.f32.mrf.mxu0
      %v9115 = vadd.f32 0.0, %v9114
      %9116 = vmatmul.bf16.gmra.mxu0 %v9033
      %v9117 = vpop.f32.mrf.mxu0
      %v9118 = vadd.f32 0.0, %v9117
      %v9119 = vpop.f32.mrf.mxu0
      %v9120 = vadd.f32 0.0, %v9119
      %9121 = vmatmul.bf16.gmra.mxu0 %v9036
      %v9122 = vpop.f32.mrf.mxu0
      %v9123 = vadd.f32 0.0, %v9122
      %v9124 = vpop.f32.mrf.mxu0
      %v9125 = vadd.f32 0.0, %v9124
      %9126 = vmatmul.bf16.gmra.mxu0 %v9039
      %v9127 = vpop.f32.mrf.mxu0
      %v9128 = vadd.f32 0.0, %v9127
      %v9129 = vpop.f32.mrf.mxu0
      %v9130 = vadd.f32 0.0, %v9129
      %9131 = vmatmul.bf16.gmra.mxu0 %v9042
      %v9132 = vpop.f32.mrf.mxu0
      %v9133 = vadd.f32 0.0, %v9132
      %v9134 = vpop.f32.mrf.mxu0
      %v9135 = vadd.f32 0.0, %v9134
      %9136 = vmatmul.bf16.gmra.mxu0 %v9045
      %v9137 = vpop.f32.mrf.mxu0
      %v9138 = vadd.f32 0.0, %v9137
      %v9139 = vpop.f32.mrf.mxu0
      %v9140 = vadd.f32 0.0, %v9139
      %9141 = vmatmul.bf16.gmra.mxu0 %v9048
      %v9142 = vpop.f32.mrf.mxu0
      %v9143 = vadd.f32 0.0, %v9142
      %v9144 = vpop.f32.mrf.mxu0
      %v9145 = vadd.f32 0.0, %v9144
      %9146 = vmatmul.bf16.gmra.mxu0 %v9051
      %v9147 = vpop.f32.mrf.mxu0
      %v9148 = vadd.f32 0.0, %v9147
      %v9149 = vpop.f32.mrf.mxu0
      %v9150 = vadd.f32 0.0, %v9149
      %9151 = vmatmul.bf16.gmra.mxu0 %v9054
      %v9152 = vpop.f32.mrf.mxu0
      %v9153 = vadd.f32 0.0, %v9152
      %v9154 = vpop.f32.mrf.mxu0
      %v9155 = vadd.f32 0.0, %v9154
      %9156 = vmatmul.bf16.gmra.mxu0 %v9057
      %v9157 = vpop.f32.mrf.mxu0
      %v9158 = vadd.f32 0.0, %v9157
      %v9159 = vpop.f32.mrf.mxu0
      %v9160 = vadd.f32 0.0, %v9159
      %9161 = vmatmul.bf16.gmra.mxu0 %v9060
      %v9162 = vpop.f32.mrf.mxu0
      %v9163 = vadd.f32 0.0, %v9162
      %v9164 = vpop.f32.mrf.mxu0
      %v9165 = vadd.f32 0.0, %v9164
      %9166 = vmatmul.bf16.gmra.mxu0 %v9063
      %v9167 = vpop.f32.mrf.mxu0
      %v9168 = vadd.f32 0.0, %v9167
      %v9169 = vpop.f32.mrf.mxu0
      %v9170 = vadd.f32 0.0, %v9169
      %9171 = vmatmul.bf16.gmra.mxu0 %v9066
      %v9172 = vpop.f32.mrf.mxu0
      %v9173 = vadd.f32 0.0, %v9172
      %v9174 = vpop.f32.mrf.mxu0
      %v9175 = vadd.f32 0.0, %v9174
      %9176 = vmatmul.bf16.gmra.mxu0 %v9069
      %v9177 = vpop.f32.mrf.mxu0
      %v9178 = vadd.f32 0.0, %v9177
      %v9179 = vpop.f32.mrf.mxu0
      %v9180 = vadd.f32 0.0, %v9179
      %9181 = vmatmul.bf16.gmra.mxu0 %v9072
      %v9182 = vpop.f32.mrf.mxu0
      %v9183 = vadd.f32 0.0, %v9182
      %v9184 = vpop.f32.mrf.mxu0
      %v9185 = vadd.f32 0.0, %v9184
      %9186 = vmatmul.bf16.gmra.mxu0 %v9075
      %v9187 = vpop.f32.mrf.mxu0
      %v9188 = vadd.f32 0.0, %v9187
      %v9189 = vpop.f32.mrf.mxu0
      %v9190 = vadd.f32 0.0, %v9189
      %9191 = vmatmul.bf16.gmra.mxu0 %v9078
      %v9192 = vpop.f32.mrf.mxu0
      %v9193 = vadd.f32 0.0, %v9192
      %v9194 = vpop.f32.mrf.mxu0
      %v9195 = vadd.f32 0.0, %v9194
      %9196 = vmatmul.bf16.gmra.mxu0 %v9081
      %v9197 = vpop.f32.mrf.mxu0
      %v9198 = vadd.f32 0.0, %v9197
      %v9199 = vpop.f32.mrf.mxu0
      %v9200 = vadd.f32 0.0, %v9199
      %9201 = vmatmul.bf16.gmra.mxu0 %v9084
      %v9202 = vpop.f32.mrf.mxu0
      %v9203 = vadd.f32 0.0, %v9202
      %v9204 = vpop.f32.mrf.mxu0
      %v9205 = vadd.f32 0.0, %v9204
      %9206 = vmatmul.bf16.gmra.mxu0 %v9087
      %v9207 = vpop.f32.mrf.mxu0
      %v9208 = vadd.f32 0.0, %v9207
      %v9209 = vpop.f32.mrf.mxu0
      %v9210 = vadd.f32 0.0, %v9209
      %9211 = vmatmul.bf16.gmra.mxu0 %v9090
      %v9212 = vpop.f32.mrf.mxu0
      %v9213 = vadd.f32 0.0, %v9212
      %v9214 = vpop.f32.mrf.mxu0
      %v9215 = vadd.f32 0.0, %v9214
      %9216 = vmatmul.bf16.gmra.mxu0 %v9093
      %v9217 = vpop.f32.mrf.mxu0
      %v9218 = vadd.f32 0.0, %v9217
      %v9219 = vpop.f32.mrf.mxu0
      %v9220 = vadd.f32 0.0, %v9219
      %9221 = vmatmul.bf16.gmra.mxu0 %v9096
      %v9222 = vpop.f32.mrf.mxu0
      %v9223 = vadd.f32 0.0, %v9222
      %v9224 = vpop.f32.mrf.mxu0
      %v9225 = vadd.f32 0.0, %v9224
      %9226 = vdwg.mxu0
      %v9227 = vadd.f32 %v8793, %v9108
      %v9228 = vadd.f32 %v8794, %v9110
      %v9229 = vadd.f32 %v8795, %v9113
      %v9230 = vadd.f32 %v8796, %v9115
      %v9231 = vadd.f32 %v8797, %v9118
      %v9232 = vadd.f32 %v8798, %v9120
      %v9233 = vadd.f32 %v8799, %v9123
      %v9234 = vadd.f32 %v8800, %v9125
      %v9235 = vadd.f32 %v8801, %v9128
      %v9236 = vadd.f32 %v8802, %v9130
      %v9237 = vadd.f32 %v8803, %v9133
      %v9238 = vadd.f32 %v8804, %v9135
      %v9239 = vadd.f32 %v8805, %v9138
      %v9240 = vadd.f32 %v8806, %v9140
      %v9241 = vadd.f32 %v8807, %v9143
      %v9242 = vadd.f32 %v8808, %v9145
      %v9243 = vadd.f32 %v8809, %v9148
      %v9244 = vadd.f32 %v8810, %v9150
      %v9245 = vadd.f32 %v8811, %v9153
      %v9246 = vadd.f32 %v8812, %v9155
      %v9247 = vadd.f32 %v8813, %v9158
      %v9248 = vadd.f32 %v8814, %v9160
      %v9249 = vadd.f32 %v8815, %v9163
      %v9250 = vadd.f32 %v8816, %v9165
      %v9251 = vadd.f32 %v8817, %v9168
      %v9252 = vadd.f32 %v8818, %v9170
      %v9253 = vadd.f32 %v8819, %v9173
      %v9254 = vadd.f32 %v8820, %v9175
      %v9255 = vadd.f32 %v8821, %v9178
      %v9256 = vadd.f32 %v8822, %v9180
      %v9257 = vadd.f32 %v8823, %v9183
      %v9258 = vadd.f32 %v8824, %v9185
      %v9259 = vadd.f32 %v8825, %v9188
      %v9260 = vadd.f32 %v8826, %v9190
      %v9261 = vadd.f32 %v8827, %v9193
      %v9262 = vadd.f32 %v8828, %v9195
      %v9263 = vadd.f32 %v8829, %v9198
      %v9264 = vadd.f32 %v8830, %v9200
      %v9265 = vadd.f32 %v8831, %v9203
      %v9266 = vadd.f32 %v8832, %v9205
      %v9267 = vadd.f32 %v8833, %v9208
      %v9268 = vadd.f32 %v8834, %v9210
      %v9269 = vadd.f32 %v8835, %v9213
      %v9270 = vadd.f32 %v8836, %v9215
      %v9271 = vadd.f32 %v8837, %v9218
      %v9272 = vadd.f32 %v8838, %v9220
      %v9273 = vadd.f32 %v8839, %v9223
      %v9274 = vadd.f32 %v8840, %v9225
      %v9275 = vld [vmem:[#allocation2 + $0xc] sm:$0xf]
      %v9276 = vld [vmem:[#allocation2 + $0x10] sm:$0xf]
      %v9277 = vld [vmem:[#allocation2 + $0x14] sm:$0xf]
      %v9278 = vld [vmem:[#allocation2 + $0x18] sm:$0xf]
      %v9279 = vld [vmem:[#allocation2 + $0x1c] sm:$0xf]
      %v9280 = vld [vmem:[#allocation2 + $0x20] sm:$0xf]
      %v9281 = vld [vmem:[#allocation2 + $0x24] sm:$0xf]
      %v9282 = vld [vmem:[#allocation2 + $0x28] sm:$0xf]
      %v9283 = vld [vmem:[#allocation2 + $0x2c] sm:$0xf]
      %v9284 = vld [vmem:[#allocation2 + $0x30] sm:$0xf]
      %v9285 = vld [vmem:[#allocation2 + $0x34] sm:$0xf]
      %v9286 = vld [vmem:[#allocation2 + $0x38] sm:$0xf]
      %v9287 = vld [vmem:[#allocation2 + $0x3c] sm:$0xf]
      %v9288 = vld [vmem:[#allocation2 + $0x40] sm:$0xf]
      %v9289 = vld [vmem:[#allocation2 + $0x44] sm:$0xf]
      %v9290 = vld [vmem:[#allocation2 + $0x48] sm:$0xf]
      %v9291 = vld [vmem:[#allocation2 + $0x4c] sm:$0xf]
      %v9292 = vld [vmem:[#allocation2 + $0x50] sm:$0xf]
      %v9293 = vld [vmem:[#allocation2 + $0x54] sm:$0xf]
      %v9294 = vld [vmem:[#allocation2 + $0x58] sm:$0xf]
      %v9295 = vld [vmem:[#allocation2 + $0x5c] sm:$0xf]
      %v9296 = vld [vmem:[#allocation2 + $0x60] sm:$0xf]
      %v9297 = vld [vmem:[#allocation2 + $0x64] sm:$0xf]
      %v9298 = vld [vmem:[#allocation2 + $0x68] sm:$0xf]
      %v9299 = vld [vmem:[#allocation2 + $0x6c] sm:$0xf]
      %v9300 = vld [vmem:[#allocation2 + $0x70] sm:$0xf]
      %v9301 = vld [vmem:[#allocation2 + $0x74] sm:$0xf]
      %v9302 = vld [vmem:[#allocation2 + $0x78] sm:$0xf]
      %v9303 = vld [vmem:[#allocation2 + $0x7c] sm:$0xf]
      %v9304 = vld [vmem:[#allocation2 + $0x80] sm:$0xf]
      %v9305 = vld [vmem:[#allocation2 + $0x84] sm:$0xf]
      %v9306 = vld [vmem:[#allocation2 + $0x88] sm:$0xf]
      %v9307 = vld [vmem:[#allocation2 + $0x8c] sm:$0xf]
      %v9308 = vld [vmem:[#allocation2 + $0x90] sm:$0xf]
      %v9309 = vld [vmem:[#allocation2 + $0x94] sm:$0xf]
      %v9310 = vld [vmem:[#allocation2 + $0x98] sm:$0xf]
      %v9311 = vld [vmem:[#allocation2 + $0x9c] sm:$0xf]
      %v9312 = vld [vmem:[#allocation2 + $0xa0] sm:$0xf]
      %v9313 = vld [vmem:[#allocation2 + $0xa4] sm:$0xf]
      %v9314 = vld [vmem:[#allocation2 + $0xa8] sm:$0xf]
      %v9315 = vld [vmem:[#allocation2 + $0xac] sm:$0xf]
      %v9316 = vld [vmem:[#allocation2 + $0xb0] sm:$0xf]
      %v9317 = vld [vmem:[#allocation2 + $0xb4] sm:$0xf]
      %v9318 = vld [vmem:[#allocation2 + $0xb8] sm:$0xf]
      %v9319 = vld [vmem:[#allocation2 + $0xbc] sm:$0xf]
      %v9320 = vld [vmem:[#allocation2 + $0xc0] sm:$0xf]
      %v9321 = vld [vmem:[#allocation2 + $0xc4] sm:$0xf]
      %v9322 = vld [vmem:[#allocation2 + $0xc8] sm:$0xf]
      %v9323 = vld [vmem:[#allocation2 + $0xcc] sm:$0x1]
      %s9324 = scalar_lea.vmem %s11, 64
      %v9325 = vld [vmem:[%s9324] sm:$0xf]
      %v9326 = vld [vmem:[%s9324 + $0x4] sm:$0xf]
      %v9327 = vld [vmem:[%s9324 + $0x8] sm:$0xf]
      %v9328 = vld [vmem:[%s9324 + $0xc] sm:$0xf]
      %v9378 = vunpack.c.l.b16 %v9275
      %v9379 = vunpack.c.l.b16 %v9276
      %v9380 = vunpack.c.l.b16 %v9277
      %v9381 = vunpack.c.l.b16 %v9278
      %v9382 = vunpack.c.l.b16 %v9279
      %v9383 = vunpack.c.l.b16 %v9280
      %v9384 = vunpack.c.l.b16 %v9281
      %v9385 = vunpack.c.l.b16 %v9282
      %v9386 = vunpack.c.l.b16 %v9283
      %v9387 = vunpack.c.l.b16 %v9284
      %v9388 = vunpack.c.l.b16 %v9285
      %v9389 = vunpack.c.l.b16 %v9286
      %v9390 = vunpack.c.l.b16 %v9287
      %v9391 = vunpack.c.l.b16 %v9288
      %v9392 = vunpack.c.l.b16 %v9289
      %v9393 = vunpack.c.l.b16 %v9290
      %v9394 = vunpack.c.l.b16 %v9291
      %v9395 = vunpack.c.l.b16 %v9292
      %v9396 = vunpack.c.l.b16 %v9293
      %v9397 = vunpack.c.l.b16 %v9294
      %v9398 = vunpack.c.l.b16 %v9295
      %v9399 = vunpack.c.l.b16 %v9296
      %v9400 = vunpack.c.l.b16 %v9297
      %v9401 = vunpack.c.l.b16 %v9298
      %v9402 = vunpack.c.l.b16 %v9299
      %v9403 = vunpack.c.l.b16 %v9300
      %v9404 = vunpack.c.l.b16 %v9301
      %v9405 = vunpack.c.l.b16 %v9302
      %v9406 = vunpack.c.l.b16 %v9303
      %v9407 = vunpack.c.l.b16 %v9304
      %v9408 = vunpack.c.l.b16 %v9305
      %v9409 = vunpack.c.l.b16 %v9306
      %v9410 = vunpack.c.l.b16 %v9307
      %v9411 = vunpack.c.l.b16 %v9308
      %v9412 = vunpack.c.l.b16 %v9309
      %v9413 = vunpack.c.l.b16 %v9310
      %v9414 = vunpack.c.l.b16 %v9311
      %v9415 = vunpack.c.l.b16 %v9312
      %v9416 = vunpack.c.l.b16 %v9313
      %v9417 = vunpack.c.l.b16 %v9314
      %v9418 = vunpack.c.l.b16 %v9315
      %v9419 = vunpack.c.l.b16 %v9316
      %v9420 = vunpack.c.l.b16 %v9317
      %v9421 = vunpack.c.l.b16 %v9318
      %v9422 = vunpack.c.l.b16 %v9319
      %v9423 = vunpack.c.l.b16 %v9320
      %v9424 = vunpack.c.l.b16 %v9321
      %v9425 = vunpack.c.l.b16 %v9322
      %v9426 = vunpack.c.l.b16 %v9323
      %v9427 = vpack.c.b16 %v9379, %v9378
      %v9428 = vpack.c.b16 %v9381, %v9380
      %v9429 = vpack.c.b16 %v9383, %v9382
      %v9430 = vpack.c.b16 %v9385, %v9384
      %v9431 = vpack.c.b16 %v9387, %v9386
      %v9432 = vpack.c.b16 %v9389, %v9388
      %v9433 = vpack.c.b16 %v9391, %v9390
      %v9434 = vpack.c.b16 %v9393, %v9392
      %v9435 = vpack.c.b16 %v9395, %v9394
      %v9436 = vpack.c.b16 %v9397, %v9396
      %v9437 = vpack.c.b16 %v9399, %v9398
      %v9438 = vpack.c.b16 %v9401, %v9400
      %v9439 = vpack.c.b16 %v9403, %v9402
      %v9440 = vpack.c.b16 %v9405, %v9404
      %v9441 = vpack.c.b16 %v9407, %v9406
      %v9442 = vpack.c.b16 %v9409, %v9408
      %v9443 = vpack.c.b16 %v9411, %v9410
      %v9444 = vpack.c.b16 %v9413, %v9412
      %v9445 = vpack.c.b16 %v9415, %v9414
      %v9446 = vpack.c.b16 %v9417, %v9416
      %v9447 = vpack.c.b16 %v9419, %v9418
      %v9448 = vpack.c.b16 %v9421, %v9420
      %v9449 = vpack.c.b16 %v9423, %v9422
      %v9450 = vpack.c.b16 %v9425, %v9424
      %v9451 = vpack.c.b16 %v9426, %v9426
      %v9453 = vshrl.u32 %v9427, 16
      %v9455 = vshll.u32 %v9427, 16
      %v9457 = vrot.slane %v9455, 1
      %v9458 = vor.u32 %v9453, %v9457
      %v9460 = vshll.u32 %v9428, 16
      %v9462 = vrot.slane %v9460, 1
      %v9463 = vsel %vm2472, %v9458, %v9462
      %v9464 = vshrl.u32 %v9428, 16
      %v9466 = vor.u32 %v9464, %v9462
      %v9468 = vshll.u32 %v9429, 16
      %v9470 = vrot.slane %v9468, 1
      %v9471 = vsel %vm2472, %v9466, %v9470
      %v9472 = vshrl.u32 %v9429, 16
      %v9474 = vor.u32 %v9472, %v9470
      %v9476 = vshll.u32 %v9430, 16
      %v9478 = vrot.slane %v9476, 1
      %v9479 = vsel %vm2472, %v9474, %v9478
      %v9480 = vshrl.u32 %v9430, 16
      %v9482 = vor.u32 %v9480, %v9478
      %v9484 = vshll.u32 %v9431, 16
      %v9486 = vrot.slane %v9484, 1
      %v9487 = vsel %vm2472, %v9482, %v9486
      %v9488 = vshrl.u32 %v9431, 16
      %v9490 = vor.u32 %v9488, %v9486
      %v9492 = vshll.u32 %v9432, 16
      %v9494 = vrot.slane %v9492, 1
      %v9495 = vsel %vm2472, %v9490, %v9494
      %v9496 = vshrl.u32 %v9432, 16
      %v9498 = vor.u32 %v9496, %v9494
      %v9500 = vshll.u32 %v9433, 16
      %v9502 = vrot.slane %v9500, 1
      %v9503 = vsel %vm2472, %v9498, %v9502
      %v9504 = vshrl.u32 %v9433, 16
      %v9506 = vor.u32 %v9504, %v9502
      %v9508 = vshll.u32 %v9434, 16
      %v9510 = vrot.slane %v9508, 1
      %v9511 = vsel %vm2472, %v9506, %v9510
      %v9512 = vshrl.u32 %v9434, 16
      %v9514 = vor.u32 %v9512, %v9510
      %v9516 = vshll.u32 %v9435, 16
      %v9518 = vrot.slane %v9516, 1
      %v9519 = vsel %vm2472, %v9514, %v9518
      %v9520 = vshrl.u32 %v9435, 16
      %v9522 = vor.u32 %v9520, %v9518
      %v9524 = vshll.u32 %v9436, 16
      %v9526 = vrot.slane %v9524, 1
      %v9527 = vsel %vm2472, %v9522, %v9526
      %v9528 = vshrl.u32 %v9436, 16
      %v9530 = vor.u32 %v9528, %v9526
      %v9532 = vshll.u32 %v9437, 16
      %v9534 = vrot.slane %v9532, 1
      %v9535 = vsel %vm2472, %v9530, %v9534
      %v9536 = vshrl.u32 %v9437, 16
      %v9538 = vor.u32 %v9536, %v9534
      %v9540 = vshll.u32 %v9438, 16
      %v9542 = vrot.slane %v9540, 1
      %v9543 = vsel %vm2472, %v9538, %v9542
      %v9544 = vshrl.u32 %v9438, 16
      %v9546 = vor.u32 %v9544, %v9542
      %v9548 = vshll.u32 %v9439, 16
      %v9550 = vrot.slane %v9548, 1
      %v9551 = vsel %vm2472, %v9546, %v9550
      %v9552 = vshrl.u32 %v9439, 16
      %v9554 = vor.u32 %v9552, %v9550
      %v9556 = vshll.u32 %v9440, 16
      %v9558 = vrot.slane %v9556, 1
      %v9559 = vsel %vm2472, %v9554, %v9558
      %v9560 = vshrl.u32 %v9440, 16
      %v9562 = vor.u32 %v9560, %v9558
      %v9564 = vshll.u32 %v9441, 16
      %v9566 = vrot.slane %v9564, 1
      %v9567 = vsel %vm2472, %v9562, %v9566
      %v9568 = vshrl.u32 %v9441, 16
      %v9570 = vor.u32 %v9568, %v9566
      %v9572 = vshll.u32 %v9442, 16
      %v9574 = vrot.slane %v9572, 1
      %v9575 = vsel %vm2472, %v9570, %v9574
      %v9576 = vshrl.u32 %v9442, 16
      %v9578 = vor.u32 %v9576, %v9574
      %v9580 = vshll.u32 %v9443, 16
      %v9582 = vrot.slane %v9580, 1
      %v9583 = vsel %vm2472, %v9578, %v9582
      %v9584 = vshrl.u32 %v9443, 16
      %v9586 = vor.u32 %v9584, %v9582
      %v9588 = vshll.u32 %v9444, 16
      %v9590 = vrot.slane %v9588, 1
      %v9591 = vsel %vm2472, %v9586, %v9590
      %v9592 = vshrl.u32 %v9444, 16
      %v9594 = vor.u32 %v9592, %v9590
      %v9596 = vshll.u32 %v9445, 16
      %v9598 = vrot.slane %v9596, 1
      %v9599 = vsel %vm2472, %v9594, %v9598
      %v9600 = vshrl.u32 %v9445, 16
      %v9602 = vor.u32 %v9600, %v9598
      %v9604 = vshll.u32 %v9446, 16
      %v9606 = vrot.slane %v9604, 1
      %v9607 = vsel %vm2472, %v9602, %v9606
      %v9608 = vshrl.u32 %v9446, 16
      %v9610 = vor.u32 %v9608, %v9606
      %v9612 = vshll.u32 %v9447, 16
      %v9614 = vrot.slane %v9612, 1
      %v9615 = vsel %vm2472, %v9610, %v9614
      %v9616 = vshrl.u32 %v9447, 16
      %v9618 = vor.u32 %v9616, %v9614
      %v9620 = vshll.u32 %v9448, 16
      %v9622 = vrot.slane %v9620, 1
      %v9623 = vsel %vm2472, %v9618, %v9622
      %v9624 = vshrl.u32 %v9448, 16
      %v9626 = vor.u32 %v9624, %v9622
      %v9628 = vshll.u32 %v9449, 16
      %v9630 = vrot.slane %v9628, 1
      %v9631 = vsel %vm2472, %v9626, %v9630
      %v9632 = vshrl.u32 %v9449, 16
      %v9634 = vor.u32 %v9632, %v9630
      %v9636 = vshll.u32 %v9450, 16
      %v9638 = vrot.slane %v9636, 1
      %v9639 = vsel %vm2472, %v9634, %v9638
      %v9640 = vshrl.u32 %v9450, 16
      %v9642 = vor.u32 %v9640, %v9638
      %v9644 = vshll.u32 %v9451, 16
      %v9646 = vrot.slane %v9644, 1
      %v9647 = vsel %vm2472, %v9642, %v9646
      %v9652 = vunpack.c.l.b16 %v9325
      %v9653 = vunpack.c.l.b16 %v9326
      %v9654 = vunpack.c.l.b16 %v9327
      %v9655 = vunpack.c.l.b16 %v9328
      %v9656 = vpack.c.b16 %v9653, %v9652
      %v9657 = vpack.c.b16 %v9655, %v9654
      %v9661 = vsel %vm577, %v9463, 0
      %v9664 = vsel %vm577, %v9471, 0
      %v9667 = vsel %vm577, %v9479, 0
      %v9670 = vsel %vm577, %v9487, 0
      %v9673 = vsel %vm577, %v9495, 0
      %v9676 = vsel %vm577, %v9503, 0
      %v9679 = vsel %vm577, %v9511, 0
      %v9682 = vsel %vm577, %v9519, 0
      %v9685 = vsel %vm577, %v9527, 0
      %v9688 = vsel %vm577, %v9535, 0
      %v9691 = vsel %vm577, %v9543, 0
      %v9694 = vsel %vm577, %v9551, 0
      %v9697 = vsel %vm577, %v9559, 0
      %v9700 = vsel %vm577, %v9567, 0
      %v9703 = vsel %vm577, %v9575, 0
      %v9706 = vsel %vm577, %v9583, 0
      %v9709 = vsel %vm577, %v9591, 0
      %v9712 = vsel %vm577, %v9599, 0
      %v9715 = vsel %vm577, %v9607, 0
      %v9718 = vsel %vm577, %v9615, 0
      %v9721 = vsel %vm577, %v9623, 0
      %v9724 = vsel %vm577, %v9631, 0
      %v9727 = vsel %vm577, %v9639, 0
      %v9730 = vsel %vm577, %v9647, 0
      %9732 = vmatpush.bf16.msra.mxu0 0
      %9733 = vmatpush.bf16.msra.mxu0 0
      %9734 = vmatpush.bf16.msra.mxu0 0
      %9735 = vmatpush.bf16.msra.mxu0 0
      %9736 = vmatpush.bf16.msra.mxu0 0
      %9737 = vmatpush.bf16.msra.mxu0 0
      %9738 = vmatpush.bf16.msra.mxu0 %v9657
      %9739 = vmatpush.bf16.msra.mxu0 %v9656
      %9740 = vmatmul.bf16.gmra.mxu0 %v9661
      %v9741 = vpop.f32.mrf.mxu0
      %v9742 = vadd.f32 0.0, %v9741
      %v9743 = vpop.f32.mrf.mxu0
      %v9744 = vadd.f32 0.0, %v9743
      %9745 = vmatmul.bf16.gmra.mxu0 %v9664
      %v9746 = vpop.f32.mrf.mxu0
      %v9747 = vadd.f32 0.0, %v9746
      %v9748 = vpop.f32.mrf.mxu0
      %v9749 = vadd.f32 0.0, %v9748
      %9750 = vmatmul.bf16.gmra.mxu0 %v9667
      %v9751 = vpop.f32.mrf.mxu0
      %v9752 = vadd.f32 0.0, %v9751
      %v9753 = vpop.f32.mrf.mxu0
      %v9754 = vadd.f32 0.0, %v9753
      %9755 = vmatmul.bf16.gmra.mxu0 %v9670
      %v9756 = vpop.f32.mrf.mxu0
      %v9757 = vadd.f32 0.0, %v9756
      %v9758 = vpop.f32.mrf.mxu0
      %v9759 = vadd.f32 0.0, %v9758
      %9760 = vmatmul.bf16.gmra.mxu0 %v9673
      %v9761 = vpop.f32.mrf.mxu0
      %v9762 = vadd.f32 0.0, %v9761
      %v9763 = vpop.f32.mrf.mxu0
      %v9764 = vadd.f32 0.0, %v9763
      %9765 = vmatmul.bf16.gmra.mxu0 %v9676
      %v9766 = vpop.f32.mrf.mxu0
      %v9767 = vadd.f32 0.0, %v9766
      %v9768 = vpop.f32.mrf.mxu0
      %v9769 = vadd.f32 0.0, %v9768
      %9770 = vmatmul.bf16.gmra.mxu0 %v9679
      %v9771 = vpop.f32.mrf.mxu0
      %v9772 = vadd.f32 0.0, %v9771
      %v9773 = vpop.f32.mrf.mxu0
      %v9774 = vadd.f32 0.0, %v9773
      %9775 = vmatmul.bf16.gmra.mxu0 %v9682
      %v9776 = vpop.f32.mrf.mxu0
      %v9777 = vadd.f32 0.0, %v9776
      %v9778 = vpop.f32.mrf.mxu0
      %v9779 = vadd.f32 0.0, %v9778
      %9780 = vmatmul.bf16.gmra.mxu0 %v9685
      %v9781 = vpop.f32.mrf.mxu0
      %v9782 = vadd.f32 0.0, %v9781
      %v9783 = vpop.f32.mrf.mxu0
      %v9784 = vadd.f32 0.0, %v9783
      %9785 = vmatmul.bf16.gmra.mxu0 %v9688
      %v9786 = vpop.f32.mrf.mxu0
      %v9787 = vadd.f32 0.0, %v9786
      %v9788 = vpop.f32.mrf.mxu0
      %v9789 = vadd.f32 0.0, %v9788
      %9790 = vmatmul.bf16.gmra.mxu0 %v9691
      %v9791 = vpop.f32.mrf.mxu0
      %v9792 = vadd.f32 0.0, %v9791
      %v9793 = vpop.f32.mrf.mxu0
      %v9794 = vadd.f32 0.0, %v9793
      %9795 = vmatmul.bf16.gmra.mxu0 %v9694
      %v9796 = vpop.f32.mrf.mxu0
      %v9797 = vadd.f32 0.0, %v9796
      %v9798 = vpop.f32.mrf.mxu0
      %v9799 = vadd.f32 0.0, %v9798
      %9800 = vmatmul.bf16.gmra.mxu0 %v9697
      %v9801 = vpop.f32.mrf.mxu0
      %v9802 = vadd.f32 0.0, %v9801
      %v9803 = vpop.f32.mrf.mxu0
      %v9804 = vadd.f32 0.0, %v9803
      %9805 = vmatmul.bf16.gmra.mxu0 %v9700
      %v9806 = vpop.f32.mrf.mxu0
      %v9807 = vadd.f32 0.0, %v9806
      %v9808 = vpop.f32.mrf.mxu0
      %v9809 = vadd.f32 0.0, %v9808
      %9810 = vmatmul.bf16.gmra.mxu0 %v9703
      %v9811 = vpop.f32.mrf.mxu0
      %v9812 = vadd.f32 0.0, %v9811
      %v9813 = vpop.f32.mrf.mxu0
      %v9814 = vadd.f32 0.0, %v9813
      %9815 = vmatmul.bf16.gmra.mxu0 %v9706
      %v9816 = vpop.f32.mrf.mxu0
      %v9817 = vadd.f32 0.0, %v9816
      %v9818 = vpop.f32.mrf.mxu0
      %v9819 = vadd.f32 0.0, %v9818
      %9820 = vmatmul.bf16.gmra.mxu0 %v9709
      %v9821 = vpop.f32.mrf.mxu0
      %v9822 = vadd.f32 0.0, %v9821
      %v9823 = vpop.f32.mrf.mxu0
      %v9824 = vadd.f32 0.0, %v9823
      %9825 = vmatmul.bf16.gmra.mxu0 %v9712
      %v9826 = vpop.f32.mrf.mxu0
      %v9827 = vadd.f32 0.0, %v9826
      %v9828 = vpop.f32.mrf.mxu0
      %v9829 = vadd.f32 0.0, %v9828
      %9830 = vmatmul.bf16.gmra.mxu0 %v9715
      %v9831 = vpop.f32.mrf.mxu0
      %v9832 = vadd.f32 0.0, %v9831
      %v9833 = vpop.f32.mrf.mxu0
      %v9834 = vadd.f32 0.0, %v9833
      %9835 = vmatmul.bf16.gmra.mxu0 %v9718
      %v9836 = vpop.f32.mrf.mxu0
      %v9837 = vadd.f32 0.0, %v9836
      %v9838 = vpop.f32.mrf.mxu0
      %v9839 = vadd.f32 0.0, %v9838
      %9840 = vmatmul.bf16.gmra.mxu0 %v9721
      %v9841 = vpop.f32.mrf.mxu0
      %v9842 = vadd.f32 0.0, %v9841
      %v9843 = vpop.f32.mrf.mxu0
      %v9844 = vadd.f32 0.0, %v9843
      %9845 = vmatmul.bf16.gmra.mxu0 %v9724
      %v9846 = vpop.f32.mrf.mxu0
      %v9847 = vadd.f32 0.0, %v9846
      %v9848 = vpop.f32.mrf.mxu0
      %v9849 = vadd.f32 0.0, %v9848
      %9850 = vmatmul.bf16.gmra.mxu0 %v9727
      %v9851 = vpop.f32.mrf.mxu0
      %v9852 = vadd.f32 0.0, %v9851
      %v9853 = vpop.f32.mrf.mxu0
      %v9854 = vadd.f32 0.0, %v9853
      %9855 = vmatmul.bf16.gmra.mxu0 %v9730
      %v9856 = vpop.f32.mrf.mxu0
      %v9857 = vadd.f32 0.0, %v9856
      %v9858 = vpop.f32.mrf.mxu0
      %v9859 = vadd.f32 0.0, %v9858
      %9860 = vdwg.mxu0
      %v9861 = vadd.f32 %v9227, %v9742
      %v9862 = vadd.f32 %v9228, %v9744
      %v9863 = vadd.f32 %v9229, %v9747
      %v9864 = vadd.f32 %v9230, %v9749
      %v9865 = vadd.f32 %v9231, %v9752
      %v9866 = vadd.f32 %v9232, %v9754
      %v9867 = vadd.f32 %v9233, %v9757
      %v9868 = vadd.f32 %v9234, %v9759
      %v9869 = vadd.f32 %v9235, %v9762
      %v9870 = vadd.f32 %v9236, %v9764
      %v9871 = vadd.f32 %v9237, %v9767
      %v9872 = vadd.f32 %v9238, %v9769
      %v9873 = vadd.f32 %v9239, %v9772
      %v9874 = vadd.f32 %v9240, %v9774
      %v9875 = vadd.f32 %v9241, %v9777
      %v9876 = vadd.f32 %v9242, %v9779
      %v9877 = vadd.f32 %v9243, %v9782
      %v9878 = vadd.f32 %v9244, %v9784
      %v9879 = vadd.f32 %v9245, %v9787
      %v9880 = vadd.f32 %v9246, %v9789
      %v9881 = vadd.f32 %v9247, %v9792
      %v9882 = vadd.f32 %v9248, %v9794
      %v9883 = vadd.f32 %v9249, %v9797
      %v9884 = vadd.f32 %v9250, %v9799
      %v9885 = vadd.f32 %v9251, %v9802
      %v9886 = vadd.f32 %v9252, %v9804
      %v9887 = vadd.f32 %v9253, %v9807
      %v9888 = vadd.f32 %v9254, %v9809
      %v9889 = vadd.f32 %v9255, %v9812
      %v9890 = vadd.f32 %v9256, %v9814
      %v9891 = vadd.f32 %v9257, %v9817
      %v9892 = vadd.f32 %v9258, %v9819
      %v9893 = vadd.f32 %v9259, %v9822
      %v9894 = vadd.f32 %v9260, %v9824
      %v9895 = vadd.f32 %v9261, %v9827
      %v9896 = vadd.f32 %v9262, %v9829
      %v9897 = vadd.f32 %v9263, %v9832
      %v9898 = vadd.f32 %v9264, %v9834
      %v9899 = vadd.f32 %v9265, %v9837
      %v9900 = vadd.f32 %v9266, %v9839
      %v9901 = vadd.f32 %v9267, %v9842
      %v9902 = vadd.f32 %v9268, %v9844
      %v9903 = vadd.f32 %v9269, %v9847
      %v9904 = vadd.f32 %v9270, %v9849
      %v9905 = vadd.f32 %v9271, %v9852
      %v9906 = vadd.f32 %v9272, %v9854
      %v9907 = vadd.f32 %v9273, %v9857
      %v9908 = vadd.f32 %v9274, %v9859
      %v9909 = vld [vmem:[#allocation2 + $0xc] sm:$0xe]
      %s9910 = scalar_lea.vmem %s11, 80
      %v9911 = vld [vmem:[%s9910] sm:$0xf]
      %v9912 = vld [vmem:[%s9910 + $0x4] sm:$0xf]
      %v9913 = vld [vmem:[%s9910 + $0x8] sm:$0xf]
      %v9914 = vld [vmem:[%s9910 + $0xc] sm:$0xf]
      %v9916 = vunpack.c.l.b16 %v9909
      %v9917 = vpack.c.b16 %v9379, %v9916
      %v9918 = vrot.slane %v9917, 1
      %v9919 = vrot.slane %v9428, 1
      %v9920 = vsel %vm3080, %v9918, %v9919
      %v9921 = vrot.slane %v9429, 1
      %v9922 = vsel %vm3080, %v9919, %v9921
      %v9923 = vrot.slane %v9430, 1
      %v9924 = vsel %vm3080, %v9921, %v9923
      %v9925 = vrot.slane %v9431, 1
      %v9926 = vsel %vm3080, %v9923, %v9925
      %v9927 = vrot.slane %v9432, 1
      %v9928 = vsel %vm3080, %v9925, %v9927
      %v9929 = vrot.slane %v9433, 1
      %v9930 = vsel %vm3080, %v9927, %v9929
      %v9931 = vrot.slane %v9434, 1
      %v9932 = vsel %vm3080, %v9929, %v9931
      %v9933 = vrot.slane %v9435, 1
      %v9934 = vsel %vm3080, %v9931, %v9933
      %v9935 = vrot.slane %v9436, 1
      %v9936 = vsel %vm3080, %v9933, %v9935
      %v9937 = vrot.slane %v9437, 1
      %v9938 = vsel %vm3080, %v9935, %v9937
      %v9939 = vrot.slane %v9438, 1
      %v9940 = vsel %vm3080, %v9937, %v9939
      %v9941 = vrot.slane %v9439, 1
      %v9942 = vsel %vm3080, %v9939, %v9941
      %v9943 = vrot.slane %v9440, 1
      %v9944 = vsel %vm3080, %v9941, %v9943
      %v9945 = vrot.slane %v9441, 1
      %v9946 = vsel %vm3080, %v9943, %v9945
      %v9947 = vrot.slane %v9442, 1
      %v9948 = vsel %vm3080, %v9945, %v9947
      %v9949 = vrot.slane %v9443, 1
      %v9950 = vsel %vm3080, %v9947, %v9949
      %v9951 = vrot.slane %v9444, 1
      %v9952 = vsel %vm3080, %v9949, %v9951
      %v9953 = vrot.slane %v9445, 1
      %v9954 = vsel %vm3080, %v9951, %v9953
      %v9955 = vrot.slane %v9446, 1
      %v9956 = vsel %vm3080, %v9953, %v9955
      %v9957 = vrot.slane %v9447, 1
      %v9958 = vsel %vm3080, %v9955, %v9957
      %v9959 = vrot.slane %v9448, 1
      %v9960 = vsel %vm3080, %v9957, %v9959
      %v9961 = vrot.slane %v9449, 1
      %v9962 = vsel %vm3080, %v9959, %v9961
      %v9963 = vrot.slane %v9450, 1
      %v9964 = vsel %vm3080, %v9961, %v9963
      %v9965 = vrot.slane %v9451, 1
      %v9966 = vsel %vm3080, %v9963, %v9965
      %v9971 = vunpack.c.l.b16 %v9911
      %v9972 = vunpack.c.l.b16 %v9912
      %v9973 = vunpack.c.l.b16 %v9913
      %v9974 = vunpack.c.l.b16 %v9914
      %v9975 = vpack.c.b16 %v9972, %v9971
      %v9976 = vpack.c.b16 %v9974, %v9973
      %v9980 = vsel %vm577, %v9920, 0
      %v9983 = vsel %vm577, %v9922, 0
      %v9986 = vsel %vm577, %v9924, 0
      %v9989 = vsel %vm577, %v9926, 0
      %v9992 = vsel %vm577, %v9928, 0
      %v9995 = vsel %vm577, %v9930, 0
      %v9998 = vsel %vm577, %v9932, 0
      %v10001 = vsel %vm577, %v9934, 0
      %v10004 = vsel %vm577, %v9936, 0
      %v10007 = vsel %vm577, %v9938, 0
      %v10010 = vsel %vm577, %v9940, 0
      %v10013 = vsel %vm577, %v9942, 0
      %v10016 = vsel %vm577, %v9944, 0
      %v10019 = vsel %vm577, %v9946, 0
      %v10022 = vsel %vm577, %v9948, 0
      %v10025 = vsel %vm577, %v9950, 0
      %v10028 = vsel %vm577, %v9952, 0
      %v10031 = vsel %vm577, %v9954, 0
      %v10034 = vsel %vm577, %v9956, 0
      %v10037 = vsel %vm577, %v9958, 0
      %v10040 = vsel %vm577, %v9960, 0
      %v10043 = vsel %vm577, %v9962, 0
      %v10046 = vsel %vm577, %v9964, 0
      %v10049 = vsel %vm577, %v9966, 0
      %10051 = vmatpush.bf16.msra.mxu0 0
      %10052 = vmatpush.bf16.msra.mxu0 0
      %10053 = vmatpush.bf16.msra.mxu0 0
      %10054 = vmatpush.bf16.msra.mxu0 0
      %10055 = vmatpush.bf16.msra.mxu0 0
      %10056 = vmatpush.bf16.msra.mxu0 0
      %10057 = vmatpush.bf16.msra.mxu0 %v9976
      %10058 = vmatpush.bf16.msra.mxu0 %v9975
      %10059 = vmatmul.bf16.gmra.mxu0 %v9980
      %v10060 = vpop.f32.mrf.mxu0
      %v10061 = vadd.f32 0.0, %v10060
      %v10062 = vpop.f32.mrf.mxu0
      %v10063 = vadd.f32 0.0, %v10062
      %10064 = vmatmul.bf16.gmra.mxu0 %v9983
      %v10065 = vpop.f32.mrf.mxu0
      %v10066 = vadd.f32 0.0, %v10065
      %v10067 = vpop.f32.mrf.mxu0
      %v10068 = vadd.f32 0.0, %v10067
      %10069 = vmatmul.bf16.gmra.mxu0 %v9986
      %v10070 = vpop.f32.mrf.mxu0
      %v10071 = vadd.f32 0.0, %v10070
      %v10072 = vpop.f32.mrf.mxu0
      %v10073 = vadd.f32 0.0, %v10072
      %10074 = vmatmul.bf16.gmra.mxu0 %v9989
      %v10075 = vpop.f32.mrf.mxu0
      %v10076 = vadd.f32 0.0, %v10075
      %v10077 = vpop.f32.mrf.mxu0
      %v10078 = vadd.f32 0.0, %v10077
      %10079 = vmatmul.bf16.gmra.mxu0 %v9992
      %v10080 = vpop.f32.mrf.mxu0
      %v10081 = vadd.f32 0.0, %v10080
      %v10082 = vpop.f32.mrf.mxu0
      %v10083 = vadd.f32 0.0, %v10082
      %10084 = vmatmul.bf16.gmra.mxu0 %v9995
      %v10085 = vpop.f32.mrf.mxu0
      %v10086 = vadd.f32 0.0, %v10085
      %v10087 = vpop.f32.mrf.mxu0
      %v10088 = vadd.f32 0.0, %v10087
      %10089 = vmatmul.bf16.gmra.mxu0 %v9998
      %v10090 = vpop.f32.mrf.mxu0
      %v10091 = vadd.f32 0.0, %v10090
      %v10092 = vpop.f32.mrf.mxu0
      %v10093 = vadd.f32 0.0, %v10092
      %10094 = vmatmul.bf16.gmra.mxu0 %v10001
      %v10095 = vpop.f32.mrf.mxu0
      %v10096 = vadd.f32 0.0, %v10095
      %v10097 = vpop.f32.mrf.mxu0
      %v10098 = vadd.f32 0.0, %v10097
      %10099 = vmatmul.bf16.gmra.mxu0 %v10004
      %v10100 = vpop.f32.mrf.mxu0
      %v10101 = vadd.f32 0.0, %v10100
      %v10102 = vpop.f32.mrf.mxu0
      %v10103 = vadd.f32 0.0, %v10102
      %10104 = vmatmul.bf16.gmra.mxu0 %v10007
      %v10105 = vpop.f32.mrf.mxu0
      %v10106 = vadd.f32 0.0, %v10105
      %v10107 = vpop.f32.mrf.mxu0
      %v10108 = vadd.f32 0.0, %v10107
      %10109 = vmatmul.bf16.gmra.mxu0 %v10010
      %v10110 = vpop.f32.mrf.mxu0
      %v10111 = vadd.f32 0.0, %v10110
      %v10112 = vpop.f32.mrf.mxu0
      %v10113 = vadd.f32 0.0, %v10112
      %10114 = vmatmul.bf16.gmra.mxu0 %v10013
      %v10115 = vpop.f32.mrf.mxu0
      %v10116 = vadd.f32 0.0, %v10115
      %v10117 = vpop.f32.mrf.mxu0
      %v10118 = vadd.f32 0.0, %v10117
      %10119 = vmatmul.bf16.gmra.mxu0 %v10016
      %v10120 = vpop.f32.mrf.mxu0
      %v10121 = vadd.f32 0.0, %v10120
      %v10122 = vpop.f32.mrf.mxu0
      %v10123 = vadd.f32 0.0, %v10122
      %10124 = vmatmul.bf16.gmra.mxu0 %v10019
      %v10125 = vpop.f32.mrf.mxu0
      %v10126 = vadd.f32 0.0, %v10125
      %v10127 = vpop.f32.mrf.mxu0
      %v10128 = vadd.f32 0.0, %v10127
      %10129 = vmatmul.bf16.gmra.mxu0 %v10022
      %v10130 = vpop.f32.mrf.mxu0
      %v10131 = vadd.f32 0.0, %v10130
      %v10132 = vpop.f32.mrf.mxu0
      %v10133 = vadd.f32 0.0, %v10132
      %10134 = vmatmul.bf16.gmra.mxu0 %v10025
      %v10135 = vpop.f32.mrf.mxu0
      %v10136 = vadd.f32 0.0, %v10135
      %v10137 = vpop.f32.mrf.mxu0
      %v10138 = vadd.f32 0.0, %v10137
      %10139 = vmatmul.bf16.gmra.mxu0 %v10028
      %v10140 = vpop.f32.mrf.mxu0
      %v10141 = vadd.f32 0.0, %v10140
      %v10142 = vpop.f32.mrf.mxu0
      %v10143 = vadd.f32 0.0, %v10142
      %10144 = vmatmul.bf16.gmra.mxu0 %v10031
      %v10145 = vpop.f32.mrf.mxu0
      %v10146 = vadd.f32 0.0, %v10145
      %v10147 = vpop.f32.mrf.mxu0
      %v10148 = vadd.f32 0.0, %v10147
      %10149 = vmatmul.bf16.gmra.mxu0 %v10034
      %v10150 = vpop.f32.mrf.mxu0
      %v10151 = vadd.f32 0.0, %v10150
      %v10152 = vpop.f32.mrf.mxu0
      %v10153 = vadd.f32 0.0, %v10152
      %10154 = vmatmul.bf16.gmra.mxu0 %v10037
      %v10155 = vpop.f32.mrf.mxu0
      %v10156 = vadd.f32 0.0, %v10155
      %v10157 = vpop.f32.mrf.mxu0
      %v10158 = vadd.f32 0.0, %v10157
      %10159 = vmatmul.bf16.gmra.mxu0 %v10040
      %v10160 = vpop.f32.mrf.mxu0
      %v10161 = vadd.f32 0.0, %v10160
      %v10162 = vpop.f32.mrf.mxu0
      %v10163 = vadd.f32 0.0, %v10162
      %10164 = vmatmul.bf16.gmra.mxu0 %v10043
      %v10165 = vpop.f32.mrf.mxu0
      %v10166 = vadd.f32 0.0, %v10165
      %v10167 = vpop.f32.mrf.mxu0
      %v10168 = vadd.f32 0.0, %v10167
      %10169 = vmatmul.bf16.gmra.mxu0 %v10046
      %v10170 = vpop.f32.mrf.mxu0
      %v10171 = vadd.f32 0.0, %v10170
      %v10172 = vpop.f32.mrf.mxu0
      %v10173 = vadd.f32 0.0, %v10172
      %10174 = vmatmul.bf16.gmra.mxu0 %v10049
      %v10175 = vpop.f32.mrf.mxu0
      %v10176 = vadd.f32 0.0, %v10175
      %v10177 = vpop.f32.mrf.mxu0
      %v10178 = vadd.f32 0.0, %v10177
      %10179 = vdwg.mxu0
      %v10180 = vadd.f32 %v9861, %v10061
      %v10181 = vadd.f32 %v9862, %v10063
      %v10182 = vadd.f32 %v9863, %v10066
      %v10183 = vadd.f32 %v9864, %v10068
      %v10184 = vadd.f32 %v9865, %v10071
      %v10185 = vadd.f32 %v9866, %v10073
      %v10186 = vadd.f32 %v9867, %v10076
      %v10187 = vadd.f32 %v9868, %v10078
      %v10188 = vadd.f32 %v9869, %v10081
      %v10189 = vadd.f32 %v9870, %v10083
      %v10190 = vadd.f32 %v9871, %v10086
      %v10191 = vadd.f32 %v9872, %v10088
      %v10192 = vadd.f32 %v9873, %v10091
      %v10193 = vadd.f32 %v9874, %v10093
      %v10194 = vadd.f32 %v9875, %v10096
      %v10195 = vadd.f32 %v9876, %v10098
      %v10196 = vadd.f32 %v9877, %v10101
      %v10197 = vadd.f32 %v9878, %v10103
      %v10198 = vadd.f32 %v9879, %v10106
      %v10199 = vadd.f32 %v9880, %v10108
      %v10200 = vadd.f32 %v9881, %v10111
      %v10201 = vadd.f32 %v9882, %v10113
      %v10202 = vadd.f32 %v9883, %v10116
      %v10203 = vadd.f32 %v9884, %v10118
      %v10204 = vadd.f32 %v9885, %v10121
      %v10205 = vadd.f32 %v9886, %v10123
      %v10206 = vadd.f32 %v9887, %v10126
      %v10207 = vadd.f32 %v9888, %v10128
      %v10208 = vadd.f32 %v9889, %v10131
      %v10209 = vadd.f32 %v9890, %v10133
      %v10210 = vadd.f32 %v9891, %v10136
      %v10211 = vadd.f32 %v9892, %v10138
      %v10212 = vadd.f32 %v9893, %v10141
      %v10213 = vadd.f32 %v9894, %v10143
      %v10214 = vadd.f32 %v9895, %v10146
      %v10215 = vadd.f32 %v9896, %v10148
      %v10216 = vadd.f32 %v9897, %v10151
      %v10217 = vadd.f32 %v9898, %v10153
      %v10218 = vadd.f32 %v9899, %v10156
      %v10219 = vadd.f32 %v9900, %v10158
      %v10220 = vadd.f32 %v9901, %v10161
      %v10221 = vadd.f32 %v9902, %v10163
      %v10222 = vadd.f32 %v9903, %v10166
      %v10223 = vadd.f32 %v9904, %v10168
      %v10224 = vadd.f32 %v9905, %v10171
      %v10225 = vadd.f32 %v9906, %v10173
      %v10226 = vadd.f32 %v9907, %v10176
      %v10227 = vadd.f32 %v9908, %v10178
      %v10228 = vld [vmem:[#allocation2 + $0x18] sm:$0xf]
      %v10229 = vld [vmem:[#allocation2 + $0x1c] sm:$0xf]
      %v10230 = vld [vmem:[#allocation2 + $0x20] sm:$0xf]
      %v10231 = vld [vmem:[#allocation2 + $0x24] sm:$0xf]
      %v10232 = vld [vmem:[#allocation2 + $0x28] sm:$0xf]
      %v10233 = vld [vmem:[#allocation2 + $0x2c] sm:$0xf]
      %v10234 = vld [vmem:[#allocation2 + $0x30] sm:$0xf]
      %v10235 = vld [vmem:[#allocation2 + $0x34] sm:$0xf]
      %v10236 = vld [vmem:[#allocation2 + $0x38] sm:$0xf]
      %v10237 = vld [vmem:[#allocation2 + $0x3c] sm:$0xf]
      %v10238 = vld [vmem:[#allocation2 + $0x40] sm:$0xf]
      %v10239 = vld [vmem:[#allocation2 + $0x44] sm:$0xf]
      %v10240 = vld [vmem:[#allocation2 + $0x48] sm:$0xf]
      %v10241 = vld [vmem:[#allocation2 + $0x4c] sm:$0xf]
      %v10242 = vld [vmem:[#allocation2 + $0x50] sm:$0xf]
      %v10243 = vld [vmem:[#allocation2 + $0x54] sm:$0xf]
      %v10244 = vld [vmem:[#allocation2 + $0x58] sm:$0xf]
      %v10245 = vld [vmem:[#allocation2 + $0x5c] sm:$0xf]
      %v10246 = vld [vmem:[#allocation2 + $0x60] sm:$0xf]
      %v10247 = vld [vmem:[#allocation2 + $0x64] sm:$0xf]
      %v10248 = vld [vmem:[#allocation2 + $0x68] sm:$0xf]
      %v10249 = vld [vmem:[#allocation2 + $0x6c] sm:$0xf]
      %v10250 = vld [vmem:[#allocation2 + $0x70] sm:$0xf]
      %v10251 = vld [vmem:[#allocation2 + $0x74] sm:$0xf]
      %v10252 = vld [vmem:[#allocation2 + $0x78] sm:$0xf]
      %v10253 = vld [vmem:[#allocation2 + $0x7c] sm:$0xf]
      %v10254 = vld [vmem:[#allocation2 + $0x80] sm:$0xf]
      %v10255 = vld [vmem:[#allocation2 + $0x84] sm:$0xf]
      %v10256 = vld [vmem:[#allocation2 + $0x88] sm:$0xf]
      %v10257 = vld [vmem:[#allocation2 + $0x8c] sm:$0xf]
      %v10258 = vld [vmem:[#allocation2 + $0x90] sm:$0xf]
      %v10259 = vld [vmem:[#allocation2 + $0x94] sm:$0xf]
      %v10260 = vld [vmem:[#allocation2 + $0x98] sm:$0xf]
      %v10261 = vld [vmem:[#allocation2 + $0x9c] sm:$0xf]
      %v10262 = vld [vmem:[#allocation2 + $0xa0] sm:$0xf]
      %v10263 = vld [vmem:[#allocation2 + $0xa4] sm:$0xf]
      %v10264 = vld [vmem:[#allocation2 + $0xa8] sm:$0xf]
      %v10265 = vld [vmem:[#allocation2 + $0xac] sm:$0xf]
      %v10266 = vld [vmem:[#allocation2 + $0xb0] sm:$0xf]
      %v10267 = vld [vmem:[#allocation2 + $0xb4] sm:$0xf]
      %v10268 = vld [vmem:[#allocation2 + $0xb8] sm:$0xf]
      %v10269 = vld [vmem:[#allocation2 + $0xbc] sm:$0xf]
      %v10270 = vld [vmem:[#allocation2 + $0xc0] sm:$0xf]
      %v10271 = vld [vmem:[#allocation2 + $0xc4] sm:$0xf]
      %v10272 = vld [vmem:[#allocation2 + $0xc8] sm:$0xf]
      %v10273 = vld [vmem:[#allocation2 + $0xcc] sm:$0xf]
      %v10274 = vld [vmem:[#allocation2 + $0xd0] sm:$0xf]
      %v10275 = vld [vmem:[#allocation2 + $0xd4] sm:$0xf]
      %s10276 = scalar_lea.vmem %s11, 96
      %v10277 = vld [vmem:[%s10276] sm:$0xf]
      %v10278 = vld [vmem:[%s10276 + $0x4] sm:$0xf]
      %v10279 = vld [vmem:[%s10276 + $0x8] sm:$0xf]
      %v10280 = vld [vmem:[%s10276 + $0xc] sm:$0xf]
      %v10329 = vunpack.c.l.b16 %v10228
      %v10330 = vunpack.c.l.b16 %v10229
      %v10331 = vunpack.c.l.b16 %v10230
      %v10332 = vunpack.c.l.b16 %v10231
      %v10333 = vunpack.c.l.b16 %v10232
      %v10334 = vunpack.c.l.b16 %v10233
      %v10335 = vunpack.c.l.b16 %v10234
      %v10336 = vunpack.c.l.b16 %v10235
      %v10337 = vunpack.c.l.b16 %v10236
      %v10338 = vunpack.c.l.b16 %v10237
      %v10339 = vunpack.c.l.b16 %v10238
      %v10340 = vunpack.c.l.b16 %v10239
      %v10341 = vunpack.c.l.b16 %v10240
      %v10342 = vunpack.c.l.b16 %v10241
      %v10343 = vunpack.c.l.b16 %v10242
      %v10344 = vunpack.c.l.b16 %v10243
      %v10345 = vunpack.c.l.b16 %v10244
      %v10346 = vunpack.c.l.b16 %v10245
      %v10347 = vunpack.c.l.b16 %v10246
      %v10348 = vunpack.c.l.b16 %v10247
      %v10349 = vunpack.c.l.b16 %v10248
      %v10350 = vunpack.c.l.b16 %v10249
      %v10351 = vunpack.c.l.b16 %v10250
      %v10352 = vunpack.c.l.b16 %v10251
      %v10353 = vunpack.c.l.b16 %v10252
      %v10354 = vunpack.c.l.b16 %v10253
      %v10355 = vunpack.c.l.b16 %v10254
      %v10356 = vunpack.c.l.b16 %v10255
      %v10357 = vunpack.c.l.b16 %v10256
      %v10358 = vunpack.c.l.b16 %v10257
      %v10359 = vunpack.c.l.b16 %v10258
      %v10360 = vunpack.c.l.b16 %v10259
      %v10361 = vunpack.c.l.b16 %v10260
      %v10362 = vunpack.c.l.b16 %v10261
      %v10363 = vunpack.c.l.b16 %v10262
      %v10364 = vunpack.c.l.b16 %v10263
      %v10365 = vunpack.c.l.b16 %v10264
      %v10366 = vunpack.c.l.b16 %v10265
      %v10367 = vunpack.c.l.b16 %v10266
      %v10368 = vunpack.c.l.b16 %v10267
      %v10369 = vunpack.c.l.b16 %v10268
      %v10370 = vunpack.c.l.b16 %v10269
      %v10371 = vunpack.c.l.b16 %v10270
      %v10372 = vunpack.c.l.b16 %v10271
      %v10373 = vunpack.c.l.b16 %v10272
      %v10374 = vunpack.c.l.b16 %v10273
      %v10375 = vunpack.c.l.b16 %v10274
      %v10376 = vunpack.c.l.b16 %v10275
      %v10377 = vpack.c.b16 %v10330, %v10329
      %v10378 = vpack.c.b16 %v10332, %v10331
      %v10379 = vpack.c.b16 %v10334, %v10333
      %v10380 = vpack.c.b16 %v10336, %v10335
      %v10381 = vpack.c.b16 %v10338, %v10337
      %v10382 = vpack.c.b16 %v10340, %v10339
      %v10383 = vpack.c.b16 %v10342, %v10341
      %v10384 = vpack.c.b16 %v10344, %v10343
      %v10385 = vpack.c.b16 %v10346, %v10345
      %v10386 = vpack.c.b16 %v10348, %v10347
      %v10387 = vpack.c.b16 %v10350, %v10349
      %v10388 = vpack.c.b16 %v10352, %v10351
      %v10389 = vpack.c.b16 %v10354, %v10353
      %v10390 = vpack.c.b16 %v10356, %v10355
      %v10391 = vpack.c.b16 %v10358, %v10357
      %v10392 = vpack.c.b16 %v10360, %v10359
      %v10393 = vpack.c.b16 %v10362, %v10361
      %v10394 = vpack.c.b16 %v10364, %v10363
      %v10395 = vpack.c.b16 %v10366, %v10365
      %v10396 = vpack.c.b16 %v10368, %v10367
      %v10397 = vpack.c.b16 %v10370, %v10369
      %v10398 = vpack.c.b16 %v10372, %v10371
      %v10399 = vpack.c.b16 %v10374, %v10373
      %v10400 = vpack.c.b16 %v10376, %v10375
      %v10405 = vunpack.c.l.b16 %v10277
      %v10406 = vunpack.c.l.b16 %v10278
      %v10407 = vunpack.c.l.b16 %v10279
      %v10408 = vunpack.c.l.b16 %v10280
      %v10409 = vpack.c.b16 %v10406, %v10405
      %v10410 = vpack.c.b16 %v10408, %v10407
      %v10414 = vsel %vm577, %v10377, 0
      %v10417 = vsel %vm577, %v10378, 0
      %v10420 = vsel %vm577, %v10379, 0
      %v10423 = vsel %vm577, %v10380, 0
      %v10426 = vsel %vm577, %v10381, 0
      %v10429 = vsel %vm577, %v10382, 0
      %v10432 = vsel %vm577, %v10383, 0
      %v10435 = vsel %vm577, %v10384, 0
      %v10438 = vsel %vm577, %v10385, 0
      %v10441 = vsel %vm577, %v10386, 0
      %v10444 = vsel %vm577, %v10387, 0
      %v10447 = vsel %vm577, %v10388, 0
      %v10450 = vsel %vm577, %v10389, 0
      %v10453 = vsel %vm577, %v10390, 0
      %v10456 = vsel %vm577, %v10391, 0
      %v10459 = vsel %vm577, %v10392, 0
      %v10462 = vsel %vm577, %v10393, 0
      %v10465 = vsel %vm577, %v10394, 0
      %v10468 = vsel %vm577, %v10395, 0
      %v10471 = vsel %vm577, %v10396, 0
      %v10474 = vsel %vm577, %v10397, 0
      %v10477 = vsel %vm577, %v10398, 0
      %v10480 = vsel %vm577, %v10399, 0
      %v10483 = vsel %vm577, %v10400, 0
      %10485 = vmatpush.bf16.msra.mxu0 0
      %10486 = vmatpush.bf16.msra.mxu0 0
      %10487 = vmatpush.bf16.msra.mxu0 0
      %10488 = vmatpush.bf16.msra.mxu0 0
      %10489 = vmatpush.bf16.msra.mxu0 0
      %10490 = vmatpush.bf16.msra.mxu0 0
      %10491 = vmatpush.bf16.msra.mxu0 %v10410
      %10492 = vmatpush.bf16.msra.mxu0 %v10409
      %10493 = vmatmul.bf16.gmra.mxu0 %v10414
      %v10494 = vpop.f32.mrf.mxu0
      %v10495 = vadd.f32 0.0, %v10494
      %v10496 = vpop.f32.mrf.mxu0
      %v10497 = vadd.f32 0.0, %v10496
      %10498 = vmatmul.bf16.gmra.mxu0 %v10417
      %v10499 = vpop.f32.mrf.mxu0
      %v10500 = vadd.f32 0.0, %v10499
      %v10501 = vpop.f32.mrf.mxu0
      %v10502 = vadd.f32 0.0, %v10501
      %10503 = vmatmul.bf16.gmra.mxu0 %v10420
      %v10504 = vpop.f32.mrf.mxu0
      %v10505 = vadd.f32 0.0, %v10504
      %v10506 = vpop.f32.mrf.mxu0
      %v10507 = vadd.f32 0.0, %v10506
      %10508 = vmatmul.bf16.gmra.mxu0 %v10423
      %v10509 = vpop.f32.mrf.mxu0
      %v10510 = vadd.f32 0.0, %v10509
      %v10511 = vpop.f32.mrf.mxu0
      %v10512 = vadd.f32 0.0, %v10511
      %10513 = vmatmul.bf16.gmra.mxu0 %v10426
      %v10514 = vpop.f32.mrf.mxu0
      %v10515 = vadd.f32 0.0, %v10514
      %v10516 = vpop.f32.mrf.mxu0
      %v10517 = vadd.f32 0.0, %v10516
      %10518 = vmatmul.bf16.gmra.mxu0 %v10429
      %v10519 = vpop.f32.mrf.mxu0
      %v10520 = vadd.f32 0.0, %v10519
      %v10521 = vpop.f32.mrf.mxu0
      %v10522 = vadd.f32 0.0, %v10521
      %10523 = vmatmul.bf16.gmra.mxu0 %v10432
      %v10524 = vpop.f32.mrf.mxu0
      %v10525 = vadd.f32 0.0, %v10524
      %v10526 = vpop.f32.mrf.mxu0
      %v10527 = vadd.f32 0.0, %v10526
      %10528 = vmatmul.bf16.gmra.mxu0 %v10435
      %v10529 = vpop.f32.mrf.mxu0
      %v10530 = vadd.f32 0.0, %v10529
      %v10531 = vpop.f32.mrf.mxu0
      %v10532 = vadd.f32 0.0, %v10531
      %10533 = vmatmul.bf16.gmra.mxu0 %v10438
      %v10534 = vpop.f32.mrf.mxu0
      %v10535 = vadd.f32 0.0, %v10534
      %v10536 = vpop.f32.mrf.mxu0
      %v10537 = vadd.f32 0.0, %v10536
      %10538 = vmatmul.bf16.gmra.mxu0 %v10441
      %v10539 = vpop.f32.mrf.mxu0
      %v10540 = vadd.f32 0.0, %v10539
      %v10541 = vpop.f32.mrf.mxu0
      %v10542 = vadd.f32 0.0, %v10541
      %10543 = vmatmul.bf16.gmra.mxu0 %v10444
      %v10544 = vpop.f32.mrf.mxu0
      %v10545 = vadd.f32 0.0, %v10544
      %v10546 = vpop.f32.mrf.mxu0
      %v10547 = vadd.f32 0.0, %v10546
      %10548 = vmatmul.bf16.gmra.mxu0 %v10447
      %v10549 = vpop.f32.mrf.mxu0
      %v10550 = vadd.f32 0.0, %v10549
      %v10551 = vpop.f32.mrf.mxu0
      %v10552 = vadd.f32 0.0, %v10551
      %10553 = vmatmul.bf16.gmra.mxu0 %v10450
      %v10554 = vpop.f32.mrf.mxu0
      %v10555 = vadd.f32 0.0, %v10554
      %v10556 = vpop.f32.mrf.mxu0
      %v10557 = vadd.f32 0.0, %v10556
      %10558 = vmatmul.bf16.gmra.mxu0 %v10453
      %v10559 = vpop.f32.mrf.mxu0
      %v10560 = vadd.f32 0.0, %v10559
      %v10561 = vpop.f32.mrf.mxu0
      %v10562 = vadd.f32 0.0, %v10561
      %10563 = vmatmul.bf16.gmra.mxu0 %v10456
      %v10564 = vpop.f32.mrf.mxu0
      %v10565 = vadd.f32 0.0, %v10564
      %v10566 = vpop.f32.mrf.mxu0
      %v10567 = vadd.f32 0.0, %v10566
      %10568 = vmatmul.bf16.gmra.mxu0 %v10459
      %v10569 = vpop.f32.mrf.mxu0
      %v10570 = vadd.f32 0.0, %v10569
      %v10571 = vpop.f32.mrf.mxu0
      %v10572 = vadd.f32 0.0, %v10571
      %10573 = vmatmul.bf16.gmra.mxu0 %v10462
      %v10574 = vpop.f32.mrf.mxu0
      %v10575 = vadd.f32 0.0, %v10574
      %v10576 = vpop.f32.mrf.mxu0
      %v10577 = vadd.f32 0.0, %v10576
      %10578 = vmatmul.bf16.gmra.mxu0 %v10465
      %v10579 = vpop.f32.mrf.mxu0
      %v10580 = vadd.f32 0.0, %v10579
      %v10581 = vpop.f32.mrf.mxu0
      %v10582 = vadd.f32 0.0, %v10581
      %10583 = vmatmul.bf16.gmra.mxu0 %v10468
      %v10584 = vpop.f32.mrf.mxu0
      %v10585 = vadd.f32 0.0, %v10584
      %v10586 = vpop.f32.mrf.mxu0
      %v10587 = vadd.f32 0.0, %v10586
      %10588 = vmatmul.bf16.gmra.mxu0 %v10471
      %v10589 = vpop.f32.mrf.mxu0
      %v10590 = vadd.f32 0.0, %v10589
      %v10591 = vpop.f32.mrf.mxu0
      %v10592 = vadd.f32 0.0, %v10591
      %10593 = vmatmul.bf16.gmra.mxu0 %v10474
      %v10594 = vpop.f32.mrf.mxu0
      %v10595 = vadd.f32 0.0, %v10594
      %v10596 = vpop.f32.mrf.mxu0
      %v10597 = vadd.f32 0.0, %v10596
      %10598 = vmatmul.bf16.gmra.mxu0 %v10477
      %v10599 = vpop.f32.mrf.mxu0
      %v10600 = vadd.f32 0.0, %v10599
      %v10601 = vpop.f32.mrf.mxu0
      %v10602 = vadd.f32 0.0, %v10601
      %10603 = vmatmul.bf16.gmra.mxu0 %v10480
      %v10604 = vpop.f32.mrf.mxu0
      %v10605 = vadd.f32 0.0, %v10604
      %v10606 = vpop.f32.mrf.mxu0
      %v10607 = vadd.f32 0.0, %v10606
      %10608 = vmatmul.bf16.gmra.mxu0 %v10483
      %v10609 = vpop.f32.mrf.mxu0
      %v10610 = vadd.f32 0.0, %v10609
      %v10611 = vpop.f32.mrf.mxu0
      %v10612 = vadd.f32 0.0, %v10611
      %10613 = vdwg.mxu0
      %v10614 = vadd.f32 %v10180, %v10495
      %v10615 = vadd.f32 %v10181, %v10497
      %v10616 = vadd.f32 %v10182, %v10500
      %v10617 = vadd.f32 %v10183, %v10502
      %v10618 = vadd.f32 %v10184, %v10505
      %v10619 = vadd.f32 %v10185, %v10507
      %v10620 = vadd.f32 %v10186, %v10510
      %v10621 = vadd.f32 %v10187, %v10512
      %v10622 = vadd.f32 %v10188, %v10515
      %v10623 = vadd.f32 %v10189, %v10517
      %v10624 = vadd.f32 %v10190, %v10520
      %v10625 = vadd.f32 %v10191, %v10522
      %v10626 = vadd.f32 %v10192, %v10525
      %v10627 = vadd.f32 %v10193, %v10527
      %v10628 = vadd.f32 %v10194, %v10530
      %v10629 = vadd.f32 %v10195, %v10532
      %v10630 = vadd.f32 %v10196, %v10535
      %v10631 = vadd.f32 %v10197, %v10537
      %v10632 = vadd.f32 %v10198, %v10540
      %v10633 = vadd.f32 %v10199, %v10542
      %v10634 = vadd.f32 %v10200, %v10545
      %v10635 = vadd.f32 %v10201, %v10547
      %v10636 = vadd.f32 %v10202, %v10550
      %v10637 = vadd.f32 %v10203, %v10552
      %v10638 = vadd.f32 %v10204, %v10555
      %v10639 = vadd.f32 %v10205, %v10557
      %v10640 = vadd.f32 %v10206, %v10560
      %v10641 = vadd.f32 %v10207, %v10562
      %v10642 = vadd.f32 %v10208, %v10565
      %v10643 = vadd.f32 %v10209, %v10567
      %v10644 = vadd.f32 %v10210, %v10570
      %v10645 = vadd.f32 %v10211, %v10572
      %v10646 = vadd.f32 %v10212, %v10575
      %v10647 = vadd.f32 %v10213, %v10577
      %v10648 = vadd.f32 %v10214, %v10580
      %v10649 = vadd.f32 %v10215, %v10582
      %v10650 = vadd.f32 %v10216, %v10585
      %v10651 = vadd.f32 %v10217, %v10587
      %v10652 = vadd.f32 %v10218, %v10590
      %v10653 = vadd.f32 %v10219, %v10592
      %v10654 = vadd.f32 %v10220, %v10595
      %v10655 = vadd.f32 %v10221, %v10597
      %v10656 = vadd.f32 %v10222, %v10600
      %v10657 = vadd.f32 %v10223, %v10602
      %v10658 = vadd.f32 %v10224, %v10605
      %v10659 = vadd.f32 %v10225, %v10607
      %v10660 = vadd.f32 %v10226, %v10610
      %v10661 = vadd.f32 %v10227, %v10612
      %v10662 = vld [vmem:[#allocation2 + $0x18] sm:$0xf]
      %v10663 = vld [vmem:[#allocation2 + $0x1c] sm:$0xf]
      %v10664 = vld [vmem:[#allocation2 + $0x20] sm:$0xf]
      %v10665 = vld [vmem:[#allocation2 + $0x24] sm:$0xf]
      %v10666 = vld [vmem:[#allocation2 + $0x28] sm:$0xf]
      %v10667 = vld [vmem:[#allocation2 + $0x2c] sm:$0xf]
      %v10668 = vld [vmem:[#allocation2 + $0x30] sm:$0xf]
      %v10669 = vld [vmem:[#allocation2 + $0x34] sm:$0xf]
      %v10670 = vld [vmem:[#allocation2 + $0x38] sm:$0xf]
      %v10671 = vld [vmem:[#allocation2 + $0x3c] sm:$0xf]
      %v10672 = vld [vmem:[#allocation2 + $0x40] sm:$0xf]
      %v10673 = vld [vmem:[#allocation2 + $0x44] sm:$0xf]
      %v10674 = vld [vmem:[#allocation2 + $0x48] sm:$0xf]
      %v10675 = vld [vmem:[#allocation2 + $0x4c] sm:$0xf]
      %v10676 = vld [vmem:[#allocation2 + $0x50] sm:$0xf]
      %v10677 = vld [vmem:[#allocation2 + $0x54] sm:$0xf]
      %v10678 = vld [vmem:[#allocation2 + $0x58] sm:$0xf]
      %v10679 = vld [vmem:[#allocation2 + $0x5c] sm:$0xf]
      %v10680 = vld [vmem:[#allocation2 + $0x60] sm:$0xf]
      %v10681 = vld [vmem:[#allocation2 + $0x64] sm:$0xf]
      %v10682 = vld [vmem:[#allocation2 + $0x68] sm:$0xf]
      %v10683 = vld [vmem:[#allocation2 + $0x6c] sm:$0xf]
      %v10684 = vld [vmem:[#allocation2 + $0x70] sm:$0xf]
      %v10685 = vld [vmem:[#allocation2 + $0x74] sm:$0xf]
      %v10686 = vld [vmem:[#allocation2 + $0x78] sm:$0xf]
      %v10687 = vld [vmem:[#allocation2 + $0x7c] sm:$0xf]
      %v10688 = vld [vmem:[#allocation2 + $0x80] sm:$0xf]
      %v10689 = vld [vmem:[#allocation2 + $0x84] sm:$0xf]
      %v10690 = vld [vmem:[#allocation2 + $0x88] sm:$0xf]
      %v10691 = vld [vmem:[#allocation2 + $0x8c] sm:$0xf]
      %v10692 = vld [vmem:[#allocation2 + $0x90] sm:$0xf]
      %v10693 = vld [vmem:[#allocation2 + $0x94] sm:$0xf]
      %v10694 = vld [vmem:[#allocation2 + $0x98] sm:$0xf]
      %v10695 = vld [vmem:[#allocation2 + $0x9c] sm:$0xf]
      %v10696 = vld [vmem:[#allocation2 + $0xa0] sm:$0xf]
      %v10697 = vld [vmem:[#allocation2 + $0xa4] sm:$0xf]
      %v10698 = vld [vmem:[#allocation2 + $0xa8] sm:$0xf]
      %v10699 = vld [vmem:[#allocation2 + $0xac] sm:$0xf]
      %v10700 = vld [vmem:[#allocation2 + $0xb0] sm:$0xf]
      %v10701 = vld [vmem:[#allocation2 + $0xb4] sm:$0xf]
      %v10702 = vld [vmem:[#allocation2 + $0xb8] sm:$0xf]
      %v10703 = vld [vmem:[#allocation2 + $0xbc] sm:$0xf]
      %v10704 = vld [vmem:[#allocation2 + $0xc0] sm:$0xf]
      %v10705 = vld [vmem:[#allocation2 + $0xc4] sm:$0xf]
      %v10706 = vld [vmem:[#allocation2 + $0xc8] sm:$0xf]
      %v10707 = vld [vmem:[#allocation2 + $0xcc] sm:$0xf]
      %v10708 = vld [vmem:[#allocation2 + $0xd0] sm:$0xf]
      %v10709 = vld [vmem:[#allocation2 + $0xd4] sm:$0xf]
      %v10710 = vld [vmem:[#allocation2 + $0xd8] sm:$0x1]
      %s10711 = scalar_lea.vmem %s11, 112
      %v10712 = vld [vmem:[%s10711] sm:$0xf]
      %v10713 = vld [vmem:[%s10711 + $0x4] sm:$0xf]
      %v10714 = vld [vmem:[%s10711 + $0x8] sm:$0xf]
      %v10715 = vld [vmem:[%s10711 + $0xc] sm:$0xf]
      %v10765 = vunpack.c.l.b16 %v10662
      %v10766 = vunpack.c.l.b16 %v10663
      %v10767 = vunpack.c.l.b16 %v10664
      %v10768 = vunpack.c.l.b16 %v10665
      %v10769 = vunpack.c.l.b16 %v10666
      %v10770 = vunpack.c.l.b16 %v10667
      %v10771 = vunpack.c.l.b16 %v10668
      %v10772 = vunpack.c.l.b16 %v10669
      %v10773 = vunpack.c.l.b16 %v10670
      %v10774 = vunpack.c.l.b16 %v10671
      %v10775 = vunpack.c.l.b16 %v10672
      %v10776 = vunpack.c.l.b16 %v10673
      %v10777 = vunpack.c.l.b16 %v10674
      %v10778 = vunpack.c.l.b16 %v10675
      %v10779 = vunpack.c.l.b16 %v10676
      %v10780 = vunpack.c.l.b16 %v10677
      %v10781 = vunpack.c.l.b16 %v10678
      %v10782 = vunpack.c.l.b16 %v10679
      %v10783 = vunpack.c.l.b16 %v10680
      %v10784 = vunpack.c.l.b16 %v10681
      %v10785 = vunpack.c.l.b16 %v10682
      %v10786 = vunpack.c.l.b16 %v10683
      %v10787 = vunpack.c.l.b16 %v10684
      %v10788 = vunpack.c.l.b16 %v10685
      %v10789 = vunpack.c.l.b16 %v10686
      %v10790 = vunpack.c.l.b16 %v10687
      %v10791 = vunpack.c.l.b16 %v10688
      %v10792 = vunpack.c.l.b16 %v10689
      %v10793 = vunpack.c.l.b16 %v10690
      %v10794 = vunpack.c.l.b16 %v10691
      %v10795 = vunpack.c.l.b16 %v10692
      %v10796 = vunpack.c.l.b16 %v10693
      %v10797 = vunpack.c.l.b16 %v10694
      %v10798 = vunpack.c.l.b16 %v10695
      %v10799 = vunpack.c.l.b16 %v10696
      %v10800 = vunpack.c.l.b16 %v10697
      %v10801 = vunpack.c.l.b16 %v10698
      %v10802 = vunpack.c.l.b16 %v10699
      %v10803 = vunpack.c.l.b16 %v10700
      %v10804 = vunpack.c.l.b16 %v10701
      %v10805 = vunpack.c.l.b16 %v10702
      %v10806 = vunpack.c.l.b16 %v10703
      %v10807 = vunpack.c.l.b16 %v10704
      %v10808 = vunpack.c.l.b16 %v10705
      %v10809 = vunpack.c.l.b16 %v10706
      %v10810 = vunpack.c.l.b16 %v10707
      %v10811 = vunpack.c.l.b16 %v10708
      %v10812 = vunpack.c.l.b16 %v10709
      %v10813 = vunpack.c.l.b16 %v10710
      %v10814 = vpack.c.b16 %v10766, %v10765
      %v10815 = vpack.c.b16 %v10768, %v10767
      %v10816 = vpack.c.b16 %v10770, %v10769
      %v10817 = vpack.c.b16 %v10772, %v10771
      %v10818 = vpack.c.b16 %v10774, %v10773
      %v10819 = vpack.c.b16 %v10776, %v10775
      %v10820 = vpack.c.b16 %v10778, %v10777
      %v10821 = vpack.c.b16 %v10780, %v10779
      %v10822 = vpack.c.b16 %v10782, %v10781
      %v10823 = vpack.c.b16 %v10784, %v10783
      %v10824 = vpack.c.b16 %v10786, %v10785
      %v10825 = vpack.c.b16 %v10788, %v10787
      %v10826 = vpack.c.b16 %v10790, %v10789
      %v10827 = vpack.c.b16 %v10792, %v10791
      %v10828 = vpack.c.b16 %v10794, %v10793
      %v10829 = vpack.c.b16 %v10796, %v10795
      %v10830 = vpack.c.b16 %v10798, %v10797
      %v10831 = vpack.c.b16 %v10800, %v10799
      %v10832 = vpack.c.b16 %v10802, %v10801
      %v10833 = vpack.c.b16 %v10804, %v10803
      %v10834 = vpack.c.b16 %v10806, %v10805
      %v10835 = vpack.c.b16 %v10808, %v10807
      %v10836 = vpack.c.b16 %v10810, %v10809
      %v10837 = vpack.c.b16 %v10812, %v10811
      %v10838 = vpack.c.b16 %v10813, %v10813
      %v10840 = vshrl.u32 %v10814, 16
      %v10842 = vshll.u32 %v10814, 16
      %v10844 = vrot.slane %v10842, 1
      %v10845 = vor.u32 %v10840, %v10844
      %v10847 = vshll.u32 %v10815, 16
      %v10849 = vrot.slane %v10847, 1
      %v10850 = vsel %vm2472, %v10845, %v10849
      %v10851 = vshrl.u32 %v10815, 16
      %v10853 = vor.u32 %v10851, %v10849
      %v10855 = vshll.u32 %v10816, 16
      %v10857 = vrot.slane %v10855, 1
      %v10858 = vsel %vm2472, %v10853, %v10857
      %v10859 = vshrl.u32 %v10816, 16
      %v10861 = vor.u32 %v10859, %v10857
      %v10863 = vshll.u32 %v10817, 16
      %v10865 = vrot.slane %v10863, 1
      %v10866 = vsel %vm2472, %v10861, %v10865
      %v10867 = vshrl.u32 %v10817, 16
      %v10869 = vor.u32 %v10867, %v10865
      %v10871 = vshll.u32 %v10818, 16
      %v10873 = vrot.slane %v10871, 1
      %v10874 = vsel %vm2472, %v10869, %v10873
      %v10875 = vshrl.u32 %v10818, 16
      %v10877 = vor.u32 %v10875, %v10873
      %v10879 = vshll.u32 %v10819, 16
      %v10881 = vrot.slane %v10879, 1
      %v10882 = vsel %vm2472, %v10877, %v10881
      %v10883 = vshrl.u32 %v10819, 16
      %v10885 = vor.u32 %v10883, %v10881
      %v10887 = vshll.u32 %v10820, 16
      %v10889 = vrot.slane %v10887, 1
      %v10890 = vsel %vm2472, %v10885, %v10889
      %v10891 = vshrl.u32 %v10820, 16
      %v10893 = vor.u32 %v10891, %v10889
      %v10895 = vshll.u32 %v10821, 16
      %v10897 = vrot.slane %v10895, 1
      %v10898 = vsel %vm2472, %v10893, %v10897
      %v10899 = vshrl.u32 %v10821, 16
      %v10901 = vor.u32 %v10899, %v10897
      %v10903 = vshll.u32 %v10822, 16
      %v10905 = vrot.slane %v10903, 1
      %v10906 = vsel %vm2472, %v10901, %v10905
      %v10907 = vshrl.u32 %v10822, 16
      %v10909 = vor.u32 %v10907, %v10905
      %v10911 = vshll.u32 %v10823, 16
      %v10913 = vrot.slane %v10911, 1
      %v10914 = vsel %vm2472, %v10909, %v10913
      %v10915 = vshrl.u32 %v10823, 16
      %v10917 = vor.u32 %v10915, %v10913
      %v10919 = vshll.u32 %v10824, 16
      %v10921 = vrot.slane %v10919, 1
      %v10922 = vsel %vm2472, %v10917, %v10921
      %v10923 = vshrl.u32 %v10824, 16
      %v10925 = vor.u32 %v10923, %v10921
      %v10927 = vshll.u32 %v10825, 16
      %v10929 = vrot.slane %v10927, 1
      %v10930 = vsel %vm2472, %v10925, %v10929
      %v10931 = vshrl.u32 %v10825, 16
      %v10933 = vor.u32 %v10931, %v10929
      %v10935 = vshll.u32 %v10826, 16
      %v10937 = vrot.slane %v10935, 1
      %v10938 = vsel %vm2472, %v10933, %v10937
      %v10939 = vshrl.u32 %v10826, 16
      %v10941 = vor.u32 %v10939, %v10937
      %v10943 = vshll.u32 %v10827, 16
      %v10945 = vrot.slane %v10943, 1
      %v10946 = vsel %vm2472, %v10941, %v10945
      %v10947 = vshrl.u32 %v10827, 16
      %v10949 = vor.u32 %v10947, %v10945
      %v10951 = vshll.u32 %v10828, 16
      %v10953 = vrot.slane %v10951, 1
      %v10954 = vsel %vm2472, %v10949, %v10953
      %v10955 = vshrl.u32 %v10828, 16
      %v10957 = vor.u32 %v10955, %v10953
      %v10959 = vshll.u32 %v10829, 16
      %v10961 = vrot.slane %v10959, 1
      %v10962 = vsel %vm2472, %v10957, %v10961
      %v10963 = vshrl.u32 %v10829, 16
      %v10965 = vor.u32 %v10963, %v10961
      %v10967 = vshll.u32 %v10830, 16
      %v10969 = vrot.slane %v10967, 1
      %v10970 = vsel %vm2472, %v10965, %v10969
      %v10971 = vshrl.u32 %v10830, 16
      %v10973 = vor.u32 %v10971, %v10969
      %v10975 = vshll.u32 %v10831, 16
      %v10977 = vrot.slane %v10975, 1
      %v10978 = vsel %vm2472, %v10973, %v10977
      %v10979 = vshrl.u32 %v10831, 16
      %v10981 = vor.u32 %v10979, %v10977
      %v10983 = vshll.u32 %v10832, 16
      %v10985 = vrot.slane %v10983, 1
      %v10986 = vsel %vm2472, %v10981, %v10985
      %v10987 = vshrl.u32 %v10832, 16
      %v10989 = vor.u32 %v10987, %v10985
      %v10991 = vshll.u32 %v10833, 16
      %v10993 = vrot.slane %v10991, 1
      %v10994 = vsel %vm2472, %v10989, %v10993
      %v10995 = vshrl.u32 %v10833, 16
      %v10997 = vor.u32 %v10995, %v10993
      %v10999 = vshll.u32 %v10834, 16
      %v11001 = vrot.slane %v10999, 1
      %v11002 = vsel %vm2472, %v10997, %v11001
      %v11003 = vshrl.u32 %v10834, 16
      %v11005 = vor.u32 %v11003, %v11001
      %v11007 = vshll.u32 %v10835, 16
      %v11009 = vrot.slane %v11007, 1
      %v11010 = vsel %vm2472, %v11005, %v11009
      %v11011 = vshrl.u32 %v10835, 16
      %v11013 = vor.u32 %v11011, %v11009
      %v11015 = vshll.u32 %v10836, 16
      %v11017 = vrot.slane %v11015, 1
      %v11018 = vsel %vm2472, %v11013, %v11017
      %v11019 = vshrl.u32 %v10836, 16
      %v11021 = vor.u32 %v11019, %v11017
      %v11023 = vshll.u32 %v10837, 16
      %v11025 = vrot.slane %v11023, 1
      %v11026 = vsel %vm2472, %v11021, %v11025
      %v11027 = vshrl.u32 %v10837, 16
      %v11029 = vor.u32 %v11027, %v11025
      %v11031 = vshll.u32 %v10838, 16
      %v11033 = vrot.slane %v11031, 1
      %v11034 = vsel %vm2472, %v11029, %v11033
      %v11039 = vunpack.c.l.b16 %v10712
      %v11040 = vunpack.c.l.b16 %v10713
      %v11041 = vunpack.c.l.b16 %v10714
      %v11042 = vunpack.c.l.b16 %v10715
      %v11043 = vpack.c.b16 %v11040, %v11039
      %v11044 = vpack.c.b16 %v11042, %v11041
      %v11048 = vsel %vm577, %v10850, 0
      %v11051 = vsel %vm577, %v10858, 0
      %v11054 = vsel %vm577, %v10866, 0
      %v11057 = vsel %vm577, %v10874, 0
      %v11060 = vsel %vm577, %v10882, 0
      %v11063 = vsel %vm577, %v10890, 0
      %v11066 = vsel %vm577, %v10898, 0
      %v11069 = vsel %vm577, %v10906, 0
      %v11072 = vsel %vm577, %v10914, 0
      %v11075 = vsel %vm577, %v10922, 0
      %v11078 = vsel %vm577, %v10930, 0
      %v11081 = vsel %vm577, %v10938, 0
      %v11084 = vsel %vm577, %v10946, 0
      %v11087 = vsel %vm577, %v10954, 0
      %v11090 = vsel %vm577, %v10962, 0
      %v11093 = vsel %vm577, %v10970, 0
      %v11096 = vsel %vm577, %v10978, 0
      %v11099 = vsel %vm577, %v10986, 0
      %v11102 = vsel %vm577, %v10994, 0
      %v11105 = vsel %vm577, %v11002, 0
      %v11108 = vsel %vm577, %v11010, 0
      %v11111 = vsel %vm577, %v11018, 0
      %v11114 = vsel %vm577, %v11026, 0
      %v11117 = vsel %vm577, %v11034, 0
      %11119 = vmatpush.bf16.msra.mxu0 0
      %11120 = vmatpush.bf16.msra.mxu0 0
      %11121 = vmatpush.bf16.msra.mxu0 0
      %11122 = vmatpush.bf16.msra.mxu0 0
      %11123 = vmatpush.bf16.msra.mxu0 0
      %11124 = vmatpush.bf16.msra.mxu0 0
      %11125 = vmatpush.bf16.msra.mxu0 %v11044
      %11126 = vmatpush.bf16.msra.mxu0 %v11043
      %11127 = vmatmul.bf16.gmra.mxu0 %v11048
      %v11128 = vpop.f32.mrf.mxu0
      %v11129 = vadd.f32 0.0, %v11128
      %v11130 = vpop.f32.mrf.mxu0
      %v11131 = vadd.f32 0.0, %v11130
      %11132 = vmatmul.bf16.gmra.mxu0 %v11051
      %v11133 = vpop.f32.mrf.mxu0
      %v11134 = vadd.f32 0.0, %v11133
      %v11135 = vpop.f32.mrf.mxu0
      %v11136 = vadd.f32 0.0, %v11135
      %11137 = vmatmul.bf16.gmra.mxu0 %v11054
      %v11138 = vpop.f32.mrf.mxu0
      %v11139 = vadd.f32 0.0, %v11138
      %v11140 = vpop.f32.mrf.mxu0
      %v11141 = vadd.f32 0.0, %v11140
      %11142 = vmatmul.bf16.gmra.mxu0 %v11057
      %v11143 = vpop.f32.mrf.mxu0
      %v11144 = vadd.f32 0.0, %v11143
      %v11145 = vpop.f32.mrf.mxu0
      %v11146 = vadd.f32 0.0, %v11145
      %11147 = vmatmul.bf16.gmra.mxu0 %v11060
      %v11148 = vpop.f32.mrf.mxu0
      %v11149 = vadd.f32 0.0, %v11148
      %v11150 = vpop.f32.mrf.mxu0
      %v11151 = vadd.f32 0.0, %v11150
      %11152 = vmatmul.bf16.gmra.mxu0 %v11063
      %v11153 = vpop.f32.mrf.mxu0
      %v11154 = vadd.f32 0.0, %v11153
      %v11155 = vpop.f32.mrf.mxu0
      %v11156 = vadd.f32 0.0, %v11155
      %11157 = vmatmul.bf16.gmra.mxu0 %v11066
      %v11158 = vpop.f32.mrf.mxu0
      %v11159 = vadd.f32 0.0, %v11158
      %v11160 = vpop.f32.mrf.mxu0
      %v11161 = vadd.f32 0.0, %v11160
      %11162 = vmatmul.bf16.gmra.mxu0 %v11069
      %v11163 = vpop.f32.mrf.mxu0
      %v11164 = vadd.f32 0.0, %v11163
      %v11165 = vpop.f32.mrf.mxu0
      %v11166 = vadd.f32 0.0, %v11165
      %11167 = vmatmul.bf16.gmra.mxu0 %v11072
      %v11168 = vpop.f32.mrf.mxu0
      %v11169 = vadd.f32 0.0, %v11168
      %v11170 = vpop.f32.mrf.mxu0
      %v11171 = vadd.f32 0.0, %v11170
      %11172 = vmatmul.bf16.gmra.mxu0 %v11075
      %v11173 = vpop.f32.mrf.mxu0
      %v11174 = vadd.f32 0.0, %v11173
      %v11175 = vpop.f32.mrf.mxu0
      %v11176 = vadd.f32 0.0, %v11175
      %11177 = vmatmul.bf16.gmra.mxu0 %v11078
      %v11178 = vpop.f32.mrf.mxu0
      %v11179 = vadd.f32 0.0, %v11178
      %v11180 = vpop.f32.mrf.mxu0
      %v11181 = vadd.f32 0.0, %v11180
      %11182 = vmatmul.bf16.gmra.mxu0 %v11081
      %v11183 = vpop.f32.mrf.mxu0
      %v11184 = vadd.f32 0.0, %v11183
      %v11185 = vpop.f32.mrf.mxu0
      %v11186 = vadd.f32 0.0, %v11185
      %11187 = vmatmul.bf16.gmra.mxu0 %v11084
      %v11188 = vpop.f32.mrf.mxu0
      %v11189 = vadd.f32 0.0, %v11188
      %v11190 = vpop.f32.mrf.mxu0
      %v11191 = vadd.f32 0.0, %v11190
      %11192 = vmatmul.bf16.gmra.mxu0 %v11087
      %v11193 = vpop.f32.mrf.mxu0
      %v11194 = vadd.f32 0.0, %v11193
      %v11195 = vpop.f32.mrf.mxu0
      %v11196 = vadd.f32 0.0, %v11195
      %11197 = vmatmul.bf16.gmra.mxu0 %v11090
      %v11198 = vpop.f32.mrf.mxu0
      %v11199 = vadd.f32 0.0, %v11198
      %v11200 = vpop.f32.mrf.mxu0
      %v11201 = vadd.f32 0.0, %v11200
      %11202 = vmatmul.bf16.gmra.mxu0 %v11093
      %v11203 = vpop.f32.mrf.mxu0
      %v11204 = vadd.f32 0.0, %v11203
      %v11205 = vpop.f32.mrf.mxu0
      %v11206 = vadd.f32 0.0, %v11205
      %11207 = vmatmul.bf16.gmra.mxu0 %v11096
      %v11208 = vpop.f32.mrf.mxu0
      %v11209 = vadd.f32 0.0, %v11208
      %v11210 = vpop.f32.mrf.mxu0
      %v11211 = vadd.f32 0.0, %v11210
      %11212 = vmatmul.bf16.gmra.mxu0 %v11099
      %v11213 = vpop.f32.mrf.mxu0
      %v11214 = vadd.f32 0.0, %v11213
      %v11215 = vpop.f32.mrf.mxu0
      %v11216 = vadd.f32 0.0, %v11215
      %11217 = vmatmul.bf16.gmra.mxu0 %v11102
      %v11218 = vpop.f32.mrf.mxu0
      %v11219 = vadd.f32 0.0, %v11218
      %v11220 = vpop.f32.mrf.mxu0
      %v11221 = vadd.f32 0.0, %v11220
      %11222 = vmatmul.bf16.gmra.mxu0 %v11105
      %v11223 = vpop.f32.mrf.mxu0
      %v11224 = vadd.f32 0.0, %v11223
      %v11225 = vpop.f32.mrf.mxu0
      %v11226 = vadd.f32 0.0, %v11225
      %11227 = vmatmul.bf16.gmra.mxu0 %v11108
      %v11228 = vpop.f32.mrf.mxu0
      %v11229 = vadd.f32 0.0, %v11228
      %v11230 = vpop.f32.mrf.mxu0
      %v11231 = vadd.f32 0.0, %v11230
      %11232 = vmatmul.bf16.gmra.mxu0 %v11111
      %v11233 = vpop.f32.mrf.mxu0
      %v11234 = vadd.f32 0.0, %v11233
      %v11235 = vpop.f32.mrf.mxu0
      %v11236 = vadd.f32 0.0, %v11235
      %11237 = vmatmul.bf16.gmra.mxu0 %v11114
      %v11238 = vpop.f32.mrf.mxu0
      %v11239 = vadd.f32 0.0, %v11238
      %v11240 = vpop.f32.mrf.mxu0
      %v11241 = vadd.f32 0.0, %v11240
      %11242 = vmatmul.bf16.gmra.mxu0 %v11117
      %v11243 = vpop.f32.mrf.mxu0
      %v11244 = vadd.f32 0.0, %v11243
      %v11245 = vpop.f32.mrf.mxu0
      %v11246 = vadd.f32 0.0, %v11245
      %11247 = vdwg.mxu0
      %v11248 = vadd.f32 %v10614, %v11129
      %v11249 = vadd.f32 %v10615, %v11131
      %v11250 = vadd.f32 %v10616, %v11134
      %v11251 = vadd.f32 %v10617, %v11136
      %v11252 = vadd.f32 %v10618, %v11139
      %v11253 = vadd.f32 %v10619, %v11141
      %v11254 = vadd.f32 %v10620, %v11144
      %v11255 = vadd.f32 %v10621, %v11146
      %v11256 = vadd.f32 %v10622, %v11149
      %v11257 = vadd.f32 %v10623, %v11151
      %v11258 = vadd.f32 %v10624, %v11154
      %v11259 = vadd.f32 %v10625, %v11156
      %v11260 = vadd.f32 %v10626, %v11159
      %v11261 = vadd.f32 %v10627, %v11161
      %v11262 = vadd.f32 %v10628, %v11164
      %v11263 = vadd.f32 %v10629, %v11166
      %v11264 = vadd.f32 %v10630, %v11169
      %v11265 = vadd.f32 %v10631, %v11171
      %v11266 = vadd.f32 %v10632, %v11174
      %v11267 = vadd.f32 %v10633, %v11176
      %v11268 = vadd.f32 %v10634, %v11179
      %v11269 = vadd.f32 %v10635, %v11181
      %v11270 = vadd.f32 %v10636, %v11184
      %v11271 = vadd.f32 %v10637, %v11186
      %v11272 = vadd.f32 %v10638, %v11189
      %v11273 = vadd.f32 %v10639, %v11191
      %v11274 = vadd.f32 %v10640, %v11194
      %v11275 = vadd.f32 %v10641, %v11196
      %v11276 = vadd.f32 %v10642, %v11199
      %v11277 = vadd.f32 %v10643, %v11201
      %v11278 = vadd.f32 %v10644, %v11204
      %v11279 = vadd.f32 %v10645, %v11206
      %v11280 = vadd.f32 %v10646, %v11209
      %v11281 = vadd.f32 %v10647, %v11211
      %v11282 = vadd.f32 %v10648, %v11214
      %v11283 = vadd.f32 %v10649, %v11216
      %v11284 = vadd.f32 %v10650, %v11219
      %v11285 = vadd.f32 %v10651, %v11221
      %v11286 = vadd.f32 %v10652, %v11224
      %v11287 = vadd.f32 %v10653, %v11226
      %v11288 = vadd.f32 %v10654, %v11229
      %v11289 = vadd.f32 %v10655, %v11231
      %v11290 = vadd.f32 %v10656, %v11234
      %v11291 = vadd.f32 %v10657, %v11236
      %v11292 = vadd.f32 %v10658, %v11239
      %v11293 = vadd.f32 %v10659, %v11241
      %v11294 = vadd.f32 %v10660, %v11244
      %v11295 = vadd.f32 %v10661, %v11246
      %v11296 = vld [vmem:[#allocation2 + $0x18] sm:$0xe]
      %s11297 = scalar_lea.vmem %s11, 128
      %v11298 = vld [vmem:[%s11297] sm:$0xf]
      %v11299 = vld [vmem:[%s11297 + $0x4] sm:$0xf]
      %v11300 = vld [vmem:[%s11297 + $0x8] sm:$0xf]
      %v11301 = vld [vmem:[%s11297 + $0xc] sm:$0xf]
      %v11303 = vunpack.c.l.b16 %v11296
      %v11304 = vpack.c.b16 %v10766, %v11303
      %v11305 = vrot.slane %v11304, 1
      %v11306 = vrot.slane %v10815, 1
      %v11307 = vsel %vm3080, %v11305, %v11306
      %v11308 = vrot.slane %v10816, 1
      %v11309 = vsel %vm3080, %v11306, %v11308
      %v11310 = vrot.slane %v10817, 1
      %v11311 = vsel %vm3080, %v11308, %v11310
      %v11312 = vrot.slane %v10818, 1
      %v11313 = vsel %vm3080, %v11310, %v11312
      %v11314 = vrot.slane %v10819, 1
      %v11315 = vsel %vm3080, %v11312, %v11314
      %v11316 = vrot.slane %v10820, 1
      %v11317 = vsel %vm3080, %v11314, %v11316
      %v11318 = vrot.slane %v10821, 1
      %v11319 = vsel %vm3080, %v11316, %v11318
      %v11320 = vrot.slane %v10822, 1
      %v11321 = vsel %vm3080, %v11318, %v11320
      %v11322 = vrot.slane %v10823, 1
      %v11323 = vsel %vm3080, %v11320, %v11322
      %v11324 = vrot.slane %v10824, 1
      %v11325 = vsel %vm3080, %v11322, %v11324
      %v11326 = vrot.slane %v10825, 1
      %v11327 = vsel %vm3080, %v11324, %v11326
      %v11328 = vrot.slane %v10826, 1
      %v11329 = vsel %vm3080, %v11326, %v11328
      %v11330 = vrot.slane %v10827, 1
      %v11331 = vsel %vm3080, %v11328, %v11330
      %v11332 = vrot.slane %v10828, 1
      %v11333 = vsel %vm3080, %v11330, %v11332
      %v11334 = vrot.slane %v10829, 1
      %v11335 = vsel %vm3080, %v11332, %v11334
      %v11336 = vrot.slane %v10830, 1
      %v11337 = vsel %vm3080, %v11334, %v11336
      %v11338 = vrot.slane %v10831, 1
      %v11339 = vsel %vm3080, %v11336, %v11338
      %v11340 = vrot.slane %v10832, 1
      %v11341 = vsel %vm3080, %v11338, %v11340
      %v11342 = vrot.slane %v10833, 1
      %v11343 = vsel %vm3080, %v11340, %v11342
      %v11344 = vrot.slane %v10834, 1
      %v11345 = vsel %vm3080, %v11342, %v11344
      %v11346 = vrot.slane %v10835, 1
      %v11347 = vsel %vm3080, %v11344, %v11346
      %v11348 = vrot.slane %v10836, 1
      %v11349 = vsel %vm3080, %v11346, %v11348
      %v11350 = vrot.slane %v10837, 1
      %v11351 = vsel %vm3080, %v11348, %v11350
      %v11352 = vrot.slane %v10838, 1
      %v11353 = vsel %vm3080, %v11350, %v11352
      %v11358 = vunpack.c.l.b16 %v11298
      %v11359 = vunpack.c.l.b16 %v11299
      %v11360 = vunpack.c.l.b16 %v11300
      %v11361 = vunpack.c.l.b16 %v11301
      %v11362 = vpack.c.b16 %v11359, %v11358
      %v11363 = vpack.c.b16 %v11361, %v11360
      %v11367 = vsel %vm577, %v11307, 0
      %v11370 = vsel %vm577, %v11309, 0
      %v11373 = vsel %vm577, %v11311, 0
      %v11376 = vsel %vm577, %v11313, 0
      %v11379 = vsel %vm577, %v11315, 0
      %v11382 = vsel %vm577, %v11317, 0
      %v11385 = vsel %vm577, %v11319, 0
      %v11388 = vsel %vm577, %v11321, 0
      %v11391 = vsel %vm577, %v11323, 0
      %v11394 = vsel %vm577, %v11325, 0
      %v11397 = vsel %vm577, %v11327, 0
      %v11400 = vsel %vm577, %v11329, 0
      %v11403 = vsel %vm577, %v11331, 0
      %v11406 = vsel %vm577, %v11333, 0
      %v11409 = vsel %vm577, %v11335, 0
      %v11412 = vsel %vm577, %v11337, 0
      %v11415 = vsel %vm577, %v11339, 0
      %v11418 = vsel %vm577, %v11341, 0
      %v11421 = vsel %vm577, %v11343, 0
      %v11424 = vsel %vm577, %v11345, 0
      %v11427 = vsel %vm577, %v11347, 0
      %v11430 = vsel %vm577, %v11349, 0
      %v11433 = vsel %vm577, %v11351, 0
      %v11436 = vsel %vm577, %v11353, 0
      %11438 = vmatpush.bf16.msra.mxu0 0
      %11439 = vmatpush.bf16.msra.mxu0 0
      %11440 = vmatpush.bf16.msra.mxu0 0
      %11441 = vmatpush.bf16.msra.mxu0 0
      %11442 = vmatpush.bf16.msra.mxu0 0
      %11443 = vmatpush.bf16.msra.mxu0 0
      %11444 = vmatpush.bf16.msra.mxu0 %v11363
      %11445 = vmatpush.bf16.msra.mxu0 %v11362
      %11446 = vmatmul.bf16.gmra.mxu0 %v11367
      %v11447 = vpop.f32.mrf.mxu0
      %v11448 = vadd.f32 0.0, %v11447
      %v11449 = vpop.f32.mrf.mxu0
      %v11450 = vadd.f32 0.0, %v11449
      %11451 = vmatmul.bf16.gmra.mxu0 %v11370
      %v11452 = vpop.f32.mrf.mxu0
      %v11453 = vadd.f32 0.0, %v11452
      %v11454 = vpop.f32.mrf.mxu0
      %v11455 = vadd.f32 0.0, %v11454
      %11456 = vmatmul.bf16.gmra.mxu0 %v11373
      %v11457 = vpop.f32.mrf.mxu0
      %v11458 = vadd.f32 0.0, %v11457
      %v11459 = vpop.f32.mrf.mxu0
      %v11460 = vadd.f32 0.0, %v11459
      %11461 = vmatmul.bf16.gmra.mxu0 %v11376
      %v11462 = vpop.f32.mrf.mxu0
      %v11463 = vadd.f32 0.0, %v11462
      %v11464 = vpop.f32.mrf.mxu0
      %v11465 = vadd.f32 0.0, %v11464
      %11466 = vmatmul.bf16.gmra.mxu0 %v11379
      %v11467 = vpop.f32.mrf.mxu0
      %v11468 = vadd.f32 0.0, %v11467
      %v11469 = vpop.f32.mrf.mxu0
      %v11470 = vadd.f32 0.0, %v11469
      %11471 = vmatmul.bf16.gmra.mxu0 %v11382
      %v11472 = vpop.f32.mrf.mxu0
      %v11473 = vadd.f32 0.0, %v11472
      %v11474 = vpop.f32.mrf.mxu0
      %v11475 = vadd.f32 0.0, %v11474
      %11476 = vmatmul.bf16.gmra.mxu0 %v11385
      %v11477 = vpop.f32.mrf.mxu0
      %v11478 = vadd.f32 0.0, %v11477
      %v11479 = vpop.f32.mrf.mxu0
      %v11480 = vadd.f32 0.0, %v11479
      %11481 = vmatmul.bf16.gmra.mxu0 %v11388
      %v11482 = vpop.f32.mrf.mxu0
      %v11483 = vadd.f32 0.0, %v11482
      %v11484 = vpop.f32.mrf.mxu0
      %v11485 = vadd.f32 0.0, %v11484
      %11486 = vmatmul.bf16.gmra.mxu0 %v11391
      %v11487 = vpop.f32.mrf.mxu0
      %v11488 = vadd.f32 0.0, %v11487
      %v11489 = vpop.f32.mrf.mxu0
      %v11490 = vadd.f32 0.0, %v11489
      %11491 = vmatmul.bf16.gmra.mxu0 %v11394
      %v11492 = vpop.f32.mrf.mxu0
      %v11493 = vadd.f32 0.0, %v11492
      %v11494 = vpop.f32.mrf.mxu0
      %v11495 = vadd.f32 0.0, %v11494
      %11496 = vmatmul.bf16.gmra.mxu0 %v11397
      %v11497 = vpop.f32.mrf.mxu0
      %v11498 = vadd.f32 0.0, %v11497
      %v11499 = vpop.f32.mrf.mxu0
      %v11500 = vadd.f32 0.0, %v11499
      %11501 = vmatmul.bf16.gmra.mxu0 %v11400
      %v11502 = vpop.f32.mrf.mxu0
      %v11503 = vadd.f32 0.0, %v11502
      %v11504 = vpop.f32.mrf.mxu0
      %v11505 = vadd.f32 0.0, %v11504
      %11506 = vmatmul.bf16.gmra.mxu0 %v11403
      %v11507 = vpop.f32.mrf.mxu0
      %v11508 = vadd.f32 0.0, %v11507
      %v11509 = vpop.f32.mrf.mxu0
      %v11510 = vadd.f32 0.0, %v11509
      %11511 = vmatmul.bf16.gmra.mxu0 %v11406
      %v11512 = vpop.f32.mrf.mxu0
      %v11513 = vadd.f32 0.0, %v11512
      %v11514 = vpop.f32.mrf.mxu0
      %v11515 = vadd.f32 0.0, %v11514
      %11516 = vmatmul.bf16.gmra.mxu0 %v11409
      %v11517 = vpop.f32.mrf.mxu0
      %v11518 = vadd.f32 0.0, %v11517
      %v11519 = vpop.f32.mrf.mxu0
      %v11520 = vadd.f32 0.0, %v11519
      %11521 = vmatmul.bf16.gmra.mxu0 %v11412
      %v11522 = vpop.f32.mrf.mxu0
      %v11523 = vadd.f32 0.0, %v11522
      %v11524 = vpop.f32.mrf.mxu0
      %v11525 = vadd.f32 0.0, %v11524
      %11526 = vmatmul.bf16.gmra.mxu0 %v11415
      %v11527 = vpop.f32.mrf.mxu0
      %v11528 = vadd.f32 0.0, %v11527
      %v11529 = vpop.f32.mrf.mxu0
      %v11530 = vadd.f32 0.0, %v11529
      %11531 = vmatmul.bf16.gmra.mxu0 %v11418
      %v11532 = vpop.f32.mrf.mxu0
      %v11533 = vadd.f32 0.0, %v11532
      %v11534 = vpop.f32.mrf.mxu0
      %v11535 = vadd.f32 0.0, %v11534
      %11536 = vmatmul.bf16.gmra.mxu0 %v11421
      %v11537 = vpop.f32.mrf.mxu0
      %v11538 = vadd.f32 0.0, %v11537
      %v11539 = vpop.f32.mrf.mxu0
      %v11540 = vadd.f32 0.0, %v11539
      %11541 = vmatmul.bf16.gmra.mxu0 %v11424
      %v11542 = vpop.f32.mrf.mxu0
      %v11543 = vadd.f32 0.0, %v11542
      %v11544 = vpop.f32.mrf.mxu0
      %v11545 = vadd.f32 0.0, %v11544
      %11546 = vmatmul.bf16.gmra.mxu0 %v11427
      %v11547 = vpop.f32.mrf.mxu0
      %v11548 = vadd.f32 0.0, %v11547
      %v11549 = vpop.f32.mrf.mxu0
      %v11550 = vadd.f32 0.0, %v11549
      %11551 = vmatmul.bf16.gmra.mxu0 %v11430
      %v11552 = vpop.f32.mrf.mxu0
      %v11553 = vadd.f32 0.0, %v11552
      %v11554 = vpop.f32.mrf.mxu0
      %v11555 = vadd.f32 0.0, %v11554
      %11556 = vmatmul.bf16.gmra.mxu0 %v11433
      %v11557 = vpop.f32.mrf.mxu0
      %v11558 = vadd.f32 0.0, %v11557
      %v11559 = vpop.f32.mrf.mxu0
      %v11560 = vadd.f32 0.0, %v11559
      %11561 = vmatmul.bf16.gmra.mxu0 %v11436
      %v11562 = vpop.f32.mrf.mxu0
      %v11563 = vadd.f32 0.0, %v11562
      %v11564 = vpop.f32.mrf.mxu0
      %v11565 = vadd.f32 0.0, %v11564
      %11566 = vdwg.mxu0
      %v11567 = vadd.f32 %v11248, %v11448
      %v11568 = vadd.f32 %v11249, %v11450
      %v11569 = vadd.f32 %v11250, %v11453
      %v11570 = vadd.f32 %v11251, %v11455
      %v11571 = vadd.f32 %v11252, %v11458
      %v11572 = vadd.f32 %v11253, %v11460
      %v11573 = vadd.f32 %v11254, %v11463
      %v11574 = vadd.f32 %v11255, %v11465
      %v11575 = vadd.f32 %v11256, %v11468
      %v11576 = vadd.f32 %v11257, %v11470
      %v11577 = vadd.f32 %v11258, %v11473
      %v11578 = vadd.f32 %v11259, %v11475
      %v11579 = vadd.f32 %v11260, %v11478
      %v11580 = vadd.f32 %v11261, %v11480
      %v11581 = vadd.f32 %v11262, %v11483
      %v11582 = vadd.f32 %v11263, %v11485
      %v11583 = vadd.f32 %v11264, %v11488
      %v11584 = vadd.f32 %v11265, %v11490
      %v11585 = vadd.f32 %v11266, %v11493
      %v11586 = vadd.f32 %v11267, %v11495
      %v11587 = vadd.f32 %v11268, %v11498
      %v11588 = vadd.f32 %v11269, %v11500
      %v11589 = vadd.f32 %v11270, %v11503
      %v11590 = vadd.f32 %v11271, %v11505
      %v11591 = vadd.f32 %v11272, %v11508
      %v11592 = vadd.f32 %v11273, %v11510
      %v11593 = vadd.f32 %v11274, %v11513
      %v11594 = vadd.f32 %v11275, %v11515
      %v11595 = vadd.f32 %v11276, %v11518
      %v11596 = vadd.f32 %v11277, %v11520
      %v11597 = vadd.f32 %v11278, %v11523
      %v11598 = vadd.f32 %v11279, %v11525
      %v11599 = vadd.f32 %v11280, %v11528
      %v11600 = vadd.f32 %v11281, %v11530
      %v11601 = vadd.f32 %v11282, %v11533
      %v11602 = vadd.f32 %v11283, %v11535
      %v11603 = vadd.f32 %v11284, %v11538
      %v11604 = vadd.f32 %v11285, %v11540
      %v11605 = vadd.f32 %v11286, %v11543
      %v11606 = vadd.f32 %v11287, %v11545
      %v11607 = vadd.f32 %v11288, %v11548
      %v11608 = vadd.f32 %v11289, %v11550
      %v11609 = vadd.f32 %v11290, %v11553
      %v11610 = vadd.f32 %v11291, %v11555
      %v11611 = vadd.f32 %v11292, %v11558
      %v11612 = vadd.f32 %v11293, %v11560
      %v11613 = vadd.f32 %v11294, %v11563
      %v11614 = vadd.f32 %v11295, %v11565
      %v11615 = vld [vmem:[%s12] sm:$0x1]
      %v11617 = vperm.slane %v11615, 0
      %v11619 = vadd.f32 %v11567, %v11617
      %v11620 = vadd.f32 %v11568, %v11617
      %v11621 = vadd.f32 %v11569, %v11617
      %v11622 = vadd.f32 %v11570, %v11617
      %v11623 = vadd.f32 %v11571, %v11617
      %v11624 = vadd.f32 %v11572, %v11617
      %v11625 = vadd.f32 %v11573, %v11617
      %v11626 = vadd.f32 %v11574, %v11617
      %v11627 = vadd.f32 %v11575, %v11617
      %v11628 = vadd.f32 %v11576, %v11617
      %v11629 = vadd.f32 %v11577, %v11617
      %v11630 = vadd.f32 %v11578, %v11617
      %v11631 = vadd.f32 %v11579, %v11617
      %v11632 = vadd.f32 %v11580, %v11617
      %v11633 = vadd.f32 %v11581, %v11617
      %v11634 = vadd.f32 %v11582, %v11617
      %v11635 = vadd.f32 %v11583, %v11617
      %v11636 = vadd.f32 %v11584, %v11617
      %v11637 = vadd.f32 %v11585, %v11617
      %v11638 = vadd.f32 %v11586, %v11617
      %v11639 = vadd.f32 %v11587, %v11617
      %v11640 = vadd.f32 %v11588, %v11617
      %v11641 = vadd.f32 %v11589, %v11617
      %v11642 = vadd.f32 %v11590, %v11617
      %v11643 = vadd.f32 %v11591, %v11617
      %v11644 = vadd.f32 %v11592, %v11617
      %v11645 = vadd.f32 %v11593, %v11617
      %v11646 = vadd.f32 %v11594, %v11617
      %v11647 = vadd.f32 %v11595, %v11617
      %v11648 = vadd.f32 %v11596, %v11617
      %v11649 = vadd.f32 %v11597, %v11617
      %v11650 = vadd.f32 %v11598, %v11617
      %v11651 = vadd.f32 %v11599, %v11617
      %v11652 = vadd.f32 %v11600, %v11617
      %v11653 = vadd.f32 %v11601, %v11617
      %v11654 = vadd.f32 %v11602, %v11617
      %v11655 = vadd.f32 %v11603, %v11617
      %v11656 = vadd.f32 %v11604, %v11617
      %v11657 = vadd.f32 %v11605, %v11617
      %v11658 = vadd.f32 %v11606, %v11617
      %v11659 = vadd.f32 %v11607, %v11617
      %v11660 = vadd.f32 %v11608, %v11617
      %v11661 = vadd.f32 %v11609, %v11617
      %v11662 = vadd.f32 %v11610, %v11617
      %v11663 = vadd.f32 %v11611, %v11617
      %v11664 = vadd.f32 %v11612, %v11617
      %v11665 = vadd.f32 %v11613, %v11617
      %v11666 = vadd.f32 %v11614, %v11617
      %v11667 = vadd.f32 %v11619, %v504
      %v11668 = vadd.f32 %v11620, %v505
      %v11669 = vadd.f32 %v11621, %v506
      %v11670 = vadd.f32 %v11622, %v507
      %v11671 = vadd.f32 %v11623, %v508
      %v11672 = vadd.f32 %v11624, %v509
      %v11673 = vadd.f32 %v11625, %v510
      %v11674 = vadd.f32 %v11626, %v511
      %v11675 = vadd.f32 %v11627, %v512
      %v11676 = vadd.f32 %v11628, %v513
      %v11677 = vadd.f32 %v11629, %v514
      %v11678 = vadd.f32 %v11630, %v515
      %v11679 = vadd.f32 %v11631, %v516
      %v11680 = vadd.f32 %v11632, %v517
      %v11681 = vadd.f32 %v11633, %v518
      %v11682 = vadd.f32 %v11634, %v519
      %v11683 = vadd.f32 %v11635, %v520
      %v11684 = vadd.f32 %v11636, %v521
      %v11685 = vadd.f32 %v11637, %v522
      %v11686 = vadd.f32 %v11638, %v523
      %v11687 = vadd.f32 %v11639, %v524
      %v11688 = vadd.f32 %v11640, %v525
      %v11689 = vadd.f32 %v11641, %v526
      %v11690 = vadd.f32 %v11642, %v527
      %v11691 = vadd.f32 %v11643, %v528
      %v11692 = vadd.f32 %v11644, %v529
      %v11693 = vadd.f32 %v11645, %v530
      %v11694 = vadd.f32 %v11646, %v531
      %v11695 = vadd.f32 %v11647, %v532
      %v11696 = vadd.f32 %v11648, %v533
      %v11697 = vadd.f32 %v11649, %v534
      %v11698 = vadd.f32 %v11650, %v535
      %v11699 = vadd.f32 %v11651, %v536
      %v11700 = vadd.f32 %v11652, %v537
      %v11701 = vadd.f32 %v11653, %v538
      %v11702 = vadd.f32 %v11654, %v539
      %v11703 = vadd.f32 %v11655, %v540
      %v11704 = vadd.f32 %v11656, %v541
      %v11705 = vadd.f32 %v11657, %v542
      %v11706 = vadd.f32 %v11658, %v543
      %v11707 = vadd.f32 %v11659, %v544
      %v11708 = vadd.f32 %v11660, %v545
      %v11709 = vadd.f32 %v11661, %v546
      %v11710 = vadd.f32 %v11662, %v547
      %v11711 = vadd.f32 %v11663, %v548
      %v11712 = vadd.f32 %v11664, %v549
      %v11713 = vadd.f32 %v11665, %v550
      %v11714 = vadd.f32 %v11666, %v551
      %11715 = vst.msk [vmem:[%s454] sm:$0xff] %vm577, %v11667
      %11716 = vst.msk [vmem:[%s454 + $0x8] sm:$0xff] %vm577, %v11668
      %11717 = vst.msk [vmem:[%s454 + $0x10] sm:$0xff] %vm577, %v11669
      %11718 = vst.msk [vmem:[%s454 + $0x18] sm:$0xff] %vm577, %v11670
      %11719 = vst.msk [vmem:[%s454 + $0x20] sm:$0xff] %vm577, %v11671
      %11720 = vst.msk [vmem:[%s454 + $0x28] sm:$0xff] %vm577, %v11672
      %11721 = vst.msk [vmem:[%s454 + $0x30] sm:$0xff] %vm577, %v11673
      %11722 = vst.msk [vmem:[%s454 + $0x38] sm:$0xff] %vm577, %v11674
      %11723 = vst.msk [vmem:[%s454 + $0x40] sm:$0xff] %vm577, %v11675
      %11724 = vst.msk [vmem:[%s454 + $0x48] sm:$0xff] %vm577, %v11676
      %11725 = vst.msk [vmem:[%s454 + $0x50] sm:$0xff] %vm577, %v11677
      %11726 = vst.msk [vmem:[%s454 + $0x58] sm:$0xff] %vm577, %v11678
      %11727 = vst.msk [vmem:[%s454 + $0x60] sm:$0xff] %vm577, %v11679
      %11728 = vst.msk [vmem:[%s454 + $0x68] sm:$0xff] %vm577, %v11680
      %11729 = vst.msk [vmem:[%s454 + $0x70] sm:$0xff] %vm577, %v11681
      %11730 = vst.msk [vmem:[%s454 + $0x78] sm:$0xff] %vm577, %v11682
      %11731 = vst.msk [vmem:[%s454 + $0x80] sm:$0xff] %vm577, %v11683
      %11732 = vst.msk [vmem:[%s454 + $0x88] sm:$0xff] %vm577, %v11684
      %11733 = vst.msk [vmem:[%s454 + $0x90] sm:$0xff] %vm577, %v11685
      %11734 = vst.msk [vmem:[%s454 + $0x98] sm:$0xff] %vm577, %v11686
      %11735 = vst.msk [vmem:[%s454 + $0xa0] sm:$0xff] %vm577, %v11687
      %11736 = vst.msk [vmem:[%s454 + $0xa8] sm:$0xff] %vm577, %v11688
      %11737 = vst.msk [vmem:[%s454 + $0xb0] sm:$0xff] %vm577, %v11689
      %11738 = vst.msk [vmem:[%s454 + $0xb8] sm:$0xff] %vm577, %v11690
      %11739 = vst.msk [vmem:[%s454 + $0xc0] sm:$0xff] %vm577, %v11691
      %11740 = vst.msk [vmem:[%s454 + $0xc8] sm:$0xff] %vm577, %v11692
      %11741 = vst.msk [vmem:[%s454 + $0xd0] sm:$0xff] %vm577, %v11693
      %11742 = vst.msk [vmem:[%s454 + $0xd8] sm:$0xff] %vm577, %v11694
      %11743 = vst.msk [vmem:[%s454 + $0xe0] sm:$0xff] %vm577, %v11695
      %11744 = vst.msk [vmem:[%s454 + $0xe8] sm:$0xff] %vm577, %v11696
      %11745 = vst.msk [vmem:[%s454 + $0xf0] sm:$0xff] %vm577, %v11697
      %11746 = vst.msk [vmem:[%s454 + $0xf8] sm:$0xff] %vm577, %v11698
      %11747 = vst.msk [vmem:[%s454 + $0x100] sm:$0xff] %vm577, %v11699
      %11748 = vst.msk [vmem:[%s454 + $0x108] sm:$0xff] %vm577, %v11700
      %11749 = vst.msk [vmem:[%s454 + $0x110] sm:$0xff] %vm577, %v11701
      %11750 = vst.msk [vmem:[%s454 + $0x118] sm:$0xff] %vm577, %v11702
      %11751 = vst.msk [vmem:[%s454 + $0x120] sm:$0xff] %vm577, %v11703
      %11752 = vst.msk [vmem:[%s454 + $0x128] sm:$0xff] %vm577, %v11704
      %11753 = vst.msk [vmem:[%s454 + $0x130] sm:$0xff] %vm577, %v11705
      %11754 = vst.msk [vmem:[%s454 + $0x138] sm:$0xff] %vm577, %v11706
      %11755 = vst.msk [vmem:[%s454 + $0x140] sm:$0xff] %vm577, %v11707
      %11756 = vst.msk [vmem:[%s454 + $0x148] sm:$0xff] %vm577, %v11708
      %11757 = vst.msk [vmem:[%s454 + $0x150] sm:$0xff] %vm577, %v11709
      %11758 = vst.msk [vmem:[%s454 + $0x158] sm:$0xff] %vm577, %v11710
      %11759 = vst.msk [vmem:[%s454 + $0x160] sm:$0xff] %vm577, %v11711
      %11760 = vst.msk [vmem:[%s454 + $0x168] sm:$0xff] %vm577, %v11712
      %11761 = vst.msk [vmem:[%s454 + $0x170] sm:$0xff] %vm577, %v11713
      %11762 = vst.msk [vmem:[%s454 + $0x178] sm:$0xff] %vm577, %v11714
      %p11763 = scmp.lt.s32.totalorder %s24, 1
      %s11764 = scalar_select %p11763, %s24, 1
      %s11765 = smul.addr %s11764, 48
      %s11766 = smul.addr %s11765, 8
      %s11767 = scalar_lea.vmem %s13, %s11766
      // Predicated region
      $region73: #{tpu_custom_call.1} parent=71 // pred_check
        %p11768 = pneg %p325
      $region74: #{tpu_custom_call.1} parent=71 // pred_check_branch
        %11770 = sbr.rel (%p11768) target = $region76
      $region75: #{tpu_custom_call.1} parent=71 // pred_region
        _
      $region76: #{tpu_custom_call.1} parent=71 // pred_fallthru
        _
    $region72: #{tpu_custom_call.1} parent=5 // pred_fallthru
      _
    %p11771 = scmp.le.s32.totalorder 2, %s19
    // Predicated region
    $region77: #{tpu_custom_call.1} parent=5 // pred_check
      %p11772 = pneg %p11771
    $region78: #{tpu_custom_call.1} parent=5 // pred_check_branch
      %11774 = sbr.rel (%p11772) target = $region80
    $region79: #{tpu_custom_call.1} parent=5 // pred_region
      %s11775 = ssub.s32 %s19, 2
      // Predicated region
      $region81: #{tpu_custom_call.1} parent=79 // pred_check
        %p11776 = pneg %p331
      $region82: #{tpu_custom_call.1} parent=79 // pred_check_branch
        %11778 = sbr.rel (%p11776) target = $region84
      $region83: #{tpu_custom_call.1} parent=79 // pred_region
        %p11779 = scmp.lt.s32.totalorder %s25, 1
        %s11780 = scalar_select %p11779, %s25, 1
        %s11781 = smul.addr %s11780, 48
        %s11782 = smul.addr %s11781, 8
        %s11783 = scalar_lea.vmem %s13, %s11782
      $region84: #{tpu_custom_call.1} parent=79 // pred_fallthru
        _
    $region80: #{tpu_custom_call.1} parent=5 // pred_fallthru
      _
  $region6: #{tpu_custom_call.1} parent=0 // loop_footer
    %s23 = sadd.s32 1, %s19
  $region7: #{tpu_custom_call.1} parent=0 // loop_footer_branch
    %18 = sbr.rel target = $region3
  $region8: #{tpu_custom_call.1} parent=0 // loop_exit
    _

</llo_original>
